<compile_context>
chip_gen: v5e
topology: v5e:2x2
jax: 0.10.0
libtpu: 0.0.40
codegen_flags: <defaults>
</compile_context>

<pallas_src>
import functools

import jax
import jax.numpy as jnp
from jax.experimental import pallas as pl
from jax.experimental.pallas import tpu as pltpu

_LANE = 128
_SUBLANE = 8

# Layer activation schedule (matches the PyTorch module):
#   encoder: LeakyReLU(0.01) x5, then identity (layer producing the encoding)
#   decoder: ReLU x5, then Sigmoid
_ACTS = ("leaky_relu",) * 5 + ("none",) + ("relu",) * 5 + ("sigmoid",)
_NUM_LAYERS = 12
_ENC_LAYER = 5  # 0-based index of the layer whose output is `encoded`


def _ceil_to(x, m):
    return ((x + m - 1) // m) * m


def _choose_tb(batch):
    """Batch tile: multiple of 8, >=2 grid blocks when possible, capped at 128."""
    pb8 = _ceil_to(batch, _SUBLANE)
    if pb8 >= 256:
        return 128
    if pb8 >= 16:
        return _ceil_to(pb8, 16) // 2  # two blocks -> both v7x TensorCores busy
    return pb8


# ----------------------------------------------------------------------------
# Fused Pallas kernel: whole encoder + decoder for one batch tile.
# ----------------------------------------------------------------------------
def _fused_autoencoder_kernel(*refs, acts):
    # refs = (x_ref, w0, b0, w1, b1, ..., w11, b11, dec_ref, enc_ref)
    x_ref = refs[0]
    param_refs = refs[1:1 + 2 * _NUM_LAYERS]
    dec_ref = refs[1 + 2 * _NUM_LAYERS]
    enc_ref = refs[2 + 2 * _NUM_LAYERS]

    h = x_ref[...].astype(jnp.float32)
    for li in range(_NUM_LAYERS):
        w = param_refs[2 * li][...]        # (d_in_pad, d_out_pad), bf16
        b = param_refs[2 * li + 1][...]    # (1, d_out_pad), f32
        y = jnp.dot(h.astype(w.dtype), w, preferred_element_type=jnp.float32)
        y = y + b
        act = acts[li]
        if act == "leaky_relu":
            y = jnp.where(y >= 0, y, jnp.float32(0.01) * y)
        elif act == "relu":
            y = jnp.maximum(y, jnp.float32(0.0))
        elif act == "sigmoid":
            y = jax.nn.sigmoid(y)
        elif act != "none":
            raise ValueError(f"unknown activation {act}")
        h = y
        if li == _ENC_LAYER:
            # Lane-dense padded slab; sliced back to encoding_dim in the wrapper.
            enc_ref[...] = h.astype(enc_ref.dtype)
    dec_ref[...] = h.astype(dec_ref.dtype)


# ----------------------------------------------------------------------------
# Deterministic parameter construction (synthetic, no checkpoint load)
# ----------------------------------------------------------------------------
def make_params(key, input_dim, encoding_dim, weight_dtype=jnp.bfloat16):
    enc_dims = [input_dim, 1024, 512, 256, 128, 64, encoding_dim]
    dec_dims = [encoding_dim, 64, 128, 256, 512, 1024, input_dim]
    dims = enc_dims + dec_dims[1:]                       # 13 entries, 12 layers
    pdims = [_ceil_to(d, _LANE) for d in dims]           # lane-padded dims

    keys = jax.random.split(key, _NUM_LAYERS)
    layers = []
    for li in range(_NUM_LAYERS):
        d_in, d_out = dims[li], dims[li + 1]
        p_in, p_out = pdims[li], pdims[li + 1]
        kw, kb = jax.random.split(keys[li])
        # small uniform init (akin to PyTorch's default bound = 1/sqrt(d_in))
        bound = 1.0 / jnp.sqrt(jnp.float32(d_in))
        w = jax.random.uniform(kw, (d_out, d_in), jnp.float32, -bound, bound)
        b = jax.random.uniform(kb, (d_out,), jnp.float32, -bound, bound)
        # stored transposed (d_in, d_out) and zero-padded to lane multiples
        w_pad = jnp.zeros((p_in, p_out), jnp.float32).at[:d_in, :d_out].set(w.T)
        b_pad = jnp.zeros((1, p_out), jnp.float32).at[0, :d_out].set(b)
        layers.append((w_pad.astype(weight_dtype), b_pad))
    return {"layers": layers, "dims": tuple(dims), "pdims": tuple(pdims)}


# ----------------------------------------------------------------------------
# Forward pass (matches SparseAutoencoder.forward: returns (decoded, encoded))
# ----------------------------------------------------------------------------
def sparse_autoencoder_forward(params, x, *, tb=None):
    layers = params["layers"]
    dims, pdims = params["dims"], params["pdims"]
    input_dim = dims[0]
    encoding_dim = dims[_ENC_LAYER + 1]
    in_pad = pdims[0]
    enc_pad = pdims[_ENC_LAYER + 1]
    out_pad = pdims[-1]

    B = x.shape[0]
    if tb is None:
        tb = _choose_tb(B)
    pB = _ceil_to(B, tb)

    # Zero-pad batch rows (to tile multiple) and feature lanes (to 128 multiple).
    xp = jnp.zeros((pB, in_pad), jnp.float32).at[:B, :input_dim].set(
        x.astype(jnp.float32))

    flat_params = []
    in_specs = [pl.BlockSpec((tb, in_pad), lambda i: (i, 0))]
    for (w, b) in layers:
        flat_params.append(w)
        flat_params.append(b)
        # Full-array, grid-invariant blocks -> weights stay resident in VMEM.
        in_specs.append(pl.BlockSpec(w.shape, lambda i: (0, 0)))
        in_specs.append(pl.BlockSpec(b.shape, lambda i: (0, 0)))

    out_shape = (
        jax.ShapeDtypeStruct((pB, out_pad), jnp.float32),   # decoded (padded)
        jax.ShapeDtypeStruct((pB, enc_pad), jnp.float32),   # encoded (padded)
    )
    out_specs = (
        pl.BlockSpec((tb, out_pad), lambda i: (i, 0)),
        pl.BlockSpec((tb, enc_pad), lambda i: (i, 0)),
    )

    kernel = functools.partial(_fused_autoencoder_kernel, acts=_ACTS)
    decoded_p, encoded_p = pl.pallas_call(
        kernel,
        out_shape=out_shape,
        grid_spec=pltpu.PrefetchScalarGridSpec(
            num_scalar_prefetch=0,
            grid=(pB // tb,),
            in_specs=in_specs,
            out_specs=out_specs,
        ),
        compiler_params=pltpu.CompilerParams(
            dimension_semantics=("parallel",),
            vmem_limit_bytes=32 * 1024 * 1024,
        ),
    )(xp, *flat_params)

    decoded = decoded_p[:B, :input_dim]
    encoded = encoded_p[:B, :encoding_dim]
    return decoded, encoded


# Pure-JAX reference (identical math: bf16 weights, f32 accumulation).
def reference_forward(params, x):
    layers = params["layers"]
    dims, pdims = params["dims"], params["pdims"]
    input_dim = dims[0]
    encoding_dim = dims[_ENC_LAYER + 1]

    B = x.shape[0]
    h = jnp.zeros((B, pdims[0]), jnp.float32).at[:, :input_dim].set(
        x.astype(jnp.float32))
    encoded = None
    for li, (w, b) in enumerate(layers):
        y = jnp.dot(h.astype(w.dtype), w, preferred_element_type=jnp.float32) + b
        act = _ACTS[li]
        if act == "leaky_relu":
            y = jnp.where(y >= 0, y, 0.01 * y)
        elif act == "relu":
            y = jnp.maximum(y, 0.0)
        elif act == "sigmoid":
            y = jax.nn.sigmoid(y)
        h = y
        if li == _ENC_LAYER:
            encoded = h[:, :encoding_dim]
    decoded = h[:, :input_dim]
    return decoded, encoded


if __name__ == "__main__":
    input_dim = 256
    encoding_dim = 32
    batch = 16  # small test batch; tile logic still gives 2 grid blocks

    key = jax.random.PRNGKey(0)
    k_params, k_x = jax.random.split(key)
    params = make_params(k_params, input_dim, encoding_dim)
    x = jax.random.uniform(k_x, (batch, input_dim), jnp.float32)

    decoded, encoded = jax.block_until_ready(sparse_autoencoder_forward(params, x))

    assert decoded.shape == (batch, input_dim), decoded.shape
    assert encoded.shape == (batch, encoding_dim), encoded.shape

    ref_dec, ref_enc = reference_forward(params, x)
    assert jnp.allclose(decoded, ref_dec, atol=1e-2, rtol=1e-2)
    assert jnp.allclose(encoded, ref_enc, atol=1e-2, rtol=1e-2)

    print("KERNEL_OK")
</pallas_src>

<mosaic_0001>
module attributes {stable_mosaic.version = 11 : i64} {
  func.func @_fused_autoencoder_kernel(%arg0: i32, %arg1: memref<8x256xf32, #tpu.memory_space<vmem>>, %arg2: memref<256x1024xbf16, #tpu.memory_space<vmem>>, %arg3: memref<1x1024xf32, #tpu.memory_space<vmem>>, %arg4: memref<1024x512xbf16, #tpu.memory_space<vmem>>, %arg5: memref<1x512xf32, #tpu.memory_space<vmem>>, %arg6: memref<512x256xbf16, #tpu.memory_space<vmem>>, %arg7: memref<1x256xf32, #tpu.memory_space<vmem>>, %arg8: memref<256x128xbf16, #tpu.memory_space<vmem>>, %arg9: memref<1x128xf32, #tpu.memory_space<vmem>>, %arg10: memref<128x128xbf16, #tpu.memory_space<vmem>>, %arg11: memref<1x128xf32, #tpu.memory_space<vmem>>, %arg12: memref<128x128xbf16, #tpu.memory_space<vmem>>, %arg13: memref<1x128xf32, #tpu.memory_space<vmem>>, %arg14: memref<128x128xbf16, #tpu.memory_space<vmem>>, %arg15: memref<1x128xf32, #tpu.memory_space<vmem>>, %arg16: memref<128x128xbf16, #tpu.memory_space<vmem>>, %arg17: memref<1x128xf32, #tpu.memory_space<vmem>>, %arg18: memref<128x256xbf16, #tpu.memory_space<vmem>>, %arg19: memref<1x256xf32, #tpu.memory_space<vmem>>, %arg20: memref<256x512xbf16, #tpu.memory_space<vmem>>, %arg21: memref<1x512xf32, #tpu.memory_space<vmem>>, %arg22: memref<512x1024xbf16, #tpu.memory_space<vmem>>, %arg23: memref<1x1024xf32, #tpu.memory_space<vmem>>, %arg24: memref<1024x256xbf16, #tpu.memory_space<vmem>>, %arg25: memref<1x256xf32, #tpu.memory_space<vmem>>, %arg26: memref<8x256xf32, #tpu.memory_space<vmem>>, %arg27: memref<8x128xf32, #tpu.memory_space<vmem>>) attributes {dimension_semantics = [#tpu.dimension_semantics<parallel>], iteration_bounds = array<i64: 2>, scalar_prefetch = 0 : i64, scratch_operands = 0 : i64, tpu.core_type = #tpu.core_type<tc>, window_params = [{transform_indices = @transform_0, window_bounds = array<i64: 8, 256>}, {pipeline_mode = #tpu.pipeline_mode<synchronous>, transform_indices = @transform_1, window_bounds = array<i64: 256, 1024>}, {pipeline_mode = #tpu.pipeline_mode<synchronous>, transform_indices = @transform_2, window_bounds = array<i64: 1, 1024>}, {pipeline_mode = #tpu.pipeline_mode<synchronous>, transform_indices = @transform_3, window_bounds = array<i64: 1024, 512>}, {pipeline_mode = #tpu.pipeline_mode<synchronous>, transform_indices = @transform_4, window_bounds = array<i64: 1, 512>}, {pipeline_mode = #tpu.pipeline_mode<synchronous>, transform_indices = @transform_5, window_bounds = array<i64: 512, 256>}, {pipeline_mode = #tpu.pipeline_mode<synchronous>, transform_indices = @transform_6, window_bounds = array<i64: 1, 256>}, {pipeline_mode = #tpu.pipeline_mode<synchronous>, transform_indices = @transform_7, window_bounds = array<i64: 256, 128>}, {pipeline_mode = #tpu.pipeline_mode<synchronous>, transform_indices = @transform_8, window_bounds = array<i64: 1, 128>}, {pipeline_mode = #tpu.pipeline_mode<synchronous>, transform_indices = @transform_9, window_bounds = array<i64: 128, 128>}, {pipeline_mode = #tpu.pipeline_mode<synchronous>, transform_indices = @transform_10, window_bounds = array<i64: 1, 128>}, {pipeline_mode = #tpu.pipeline_mode<synchronous>, transform_indices = @transform_11, window_bounds = array<i64: 128, 128>}, {pipeline_mode = #tpu.pipeline_mode<synchronous>, transform_indices = @transform_12, window_bounds = array<i64: 1, 128>}, {pipeline_mode = #tpu.pipeline_mode<synchronous>, transform_indices = @transform_13, window_bounds = array<i64: 128, 128>}, {pipeline_mode = #tpu.pipeline_mode<synchronous>, transform_indices = @transform_14, window_bounds = array<i64: 1, 128>}, {pipeline_mode = #tpu.pipeline_mode<synchronous>, transform_indices = @transform_15, window_bounds = array<i64: 128, 128>}, {pipeline_mode = #tpu.pipeline_mode<synchronous>, transform_indices = @transform_16, window_bounds = array<i64: 1, 128>}, {pipeline_mode = #tpu.pipeline_mode<synchronous>, transform_indices = @transform_17, window_bounds = array<i64: 128, 256>}, {pipeline_mode = #tpu.pipeline_mode<synchronous>, transform_indices = @transform_18, window_bounds = array<i64: 1, 256>}, {pipeline_mode = #tpu.pipeline_mode<synchronous>, transform_indices = @transform_19, window_bounds = array<i64: 256, 512>}, {pipeline_mode = #tpu.pipeline_mode<synchronous>, transform_indices = @transform_20, window_bounds = array<i64: 1, 512>}, {pipeline_mode = #tpu.pipeline_mode<synchronous>, transform_indices = @transform_21, window_bounds = array<i64: 512, 1024>}, {pipeline_mode = #tpu.pipeline_mode<synchronous>, transform_indices = @transform_22, window_bounds = array<i64: 1, 1024>}, {pipeline_mode = #tpu.pipeline_mode<synchronous>, transform_indices = @transform_23, window_bounds = array<i64: 1024, 256>}, {pipeline_mode = #tpu.pipeline_mode<synchronous>, transform_indices = @transform_24, window_bounds = array<i64: 1, 256>}, {transform_indices = @transform_25, window_bounds = array<i64: 8, 256>}, {transform_indices = @transform_26, window_bounds = array<i64: 8, 128>}]} {
    %c0 = arith.constant 0 : index
    %c0_0 = arith.constant 0 : index
    %0 = vector.load %arg1[%c0, %c0_0] : memref<8x256xf32, #tpu.memory_space<vmem>>, vector<8x256xf32>
    %c0_1 = arith.constant 0 : index
    %c0_2 = arith.constant 0 : index
    %1 = vector.load %arg2[%c0_1, %c0_2] : memref<256x1024xbf16, #tpu.memory_space<vmem>>, vector<256x1024xbf16>
    %c0_3 = arith.constant 0 : index
    %c0_4 = arith.constant 0 : index
    %2 = vector.load %arg3[%c0_3, %c0_4] : memref<1x1024xf32, #tpu.memory_space<vmem>>, vector<1x1024xf32>
    %3 = arith.truncf %0 : vector<8x256xf32> to vector<8x256xbf16>
    %cst = arith.constant dense<0.000000e+00> : vector<8x1024xf32>
    %4 = tpu.matmul %3, %1, %cst {dimension_numbers = #tpu.dot_dimension_numbers<[1], [0], [0], [1], [0, 0, 1, 1], [], []>} : vector<8x256xbf16>, vector<256x1024xbf16>, vector<8x1024xf32> -> vector<8x1024xf32>
    %5 = vector.broadcast %2 : vector<1x1024xf32> to vector<8x1024xf32>
    %6 = arith.addf %4, %5 : vector<8x1024xf32>
    %cst_5 = arith.constant 0.000000e+00 : f32
    %7 = vector.broadcast %cst_5 : f32 to vector<8x1024xf32>
    %8 = arith.cmpf oge, %6, %7 : vector<8x1024xf32>
    %cst_6 = arith.constant 0.00999999977 : f32
    %9 = vector.broadcast %cst_6 : f32 to vector<8x1024xf32>
    %10 = arith.mulf %9, %6 : vector<8x1024xf32>
    %11 = arith.select %8, %6, %10 : vector<8x1024xi1>, vector<8x1024xf32>
    %c0_7 = arith.constant 0 : index
    %c0_8 = arith.constant 0 : index
    %12 = vector.load %arg4[%c0_7, %c0_8] : memref<1024x512xbf16, #tpu.memory_space<vmem>>, vector<1024x512xbf16>
    %c0_9 = arith.constant 0 : index
    %c0_10 = arith.constant 0 : index
    %13 = vector.load %arg5[%c0_9, %c0_10] : memref<1x512xf32, #tpu.memory_space<vmem>>, vector<1x512xf32>
    %14 = arith.truncf %11 : vector<8x1024xf32> to vector<8x1024xbf16>
    %cst_11 = arith.constant dense<0.000000e+00> : vector<8x512xf32>
    %15 = tpu.matmul %14, %12, %cst_11 {dimension_numbers = #tpu.dot_dimension_numbers<[1], [0], [0], [1], [0, 0, 1, 1], [], []>} : vector<8x1024xbf16>, vector<1024x512xbf16>, vector<8x512xf32> -> vector<8x512xf32>
    %16 = vector.broadcast %13 : vector<1x512xf32> to vector<8x512xf32>
    %17 = arith.addf %15, %16 : vector<8x512xf32>
    %cst_12 = arith.constant 0.000000e+00 : f32
    %18 = vector.broadcast %cst_12 : f32 to vector<8x512xf32>
    %19 = arith.cmpf oge, %17, %18 : vector<8x512xf32>
    %cst_13 = arith.constant 0.00999999977 : f32
    %20 = vector.broadcast %cst_13 : f32 to vector<8x512xf32>
    %21 = arith.mulf %20, %17 : vector<8x512xf32>
    %22 = arith.select %19, %17, %21 : vector<8x512xi1>, vector<8x512xf32>
    %c0_14 = arith.constant 0 : index
    %c0_15 = arith.constant 0 : index
    %23 = vector.load %arg6[%c0_14, %c0_15] : memref<512x256xbf16, #tpu.memory_space<vmem>>, vector<512x256xbf16>
    %c0_16 = arith.constant 0 : index
    %c0_17 = arith.constant 0 : index
    %24 = vector.load %arg7[%c0_16, %c0_17] : memref<1x256xf32, #tpu.memory_space<vmem>>, vector<1x256xf32>
    %25 = arith.truncf %22 : vector<8x512xf32> to vector<8x512xbf16>
    %cst_18 = arith.constant dense<0.000000e+00> : vector<8x256xf32>
    %26 = tpu.matmul %25, %23, %cst_18 {dimension_numbers = #tpu.dot_dimension_numbers<[1], [0], [0], [1], [0, 0, 1, 1], [], []>} : vector<8x512xbf16>, vector<512x256xbf16>, vector<8x256xf32> -> vector<8x256xf32>
    %27 = vector.broadcast %24 : vector<1x256xf32> to vector<8x256xf32>
    %28 = arith.addf %26, %27 : vector<8x256xf32>
    %cst_19 = arith.constant 0.000000e+00 : f32
    %29 = vector.broadcast %cst_19 : f32 to vector<8x256xf32>
    %30 = arith.cmpf oge, %28, %29 : vector<8x256xf32>
    %cst_20 = arith.constant 0.00999999977 : f32
    %31 = vector.broadcast %cst_20 : f32 to vector<8x256xf32>
    %32 = arith.mulf %31, %28 : vector<8x256xf32>
    %33 = arith.select %30, %28, %32 : vector<8x256xi1>, vector<8x256xf32>
    %c0_21 = arith.constant 0 : index
    %c0_22 = arith.constant 0 : index
    %34 = vector.load %arg8[%c0_21, %c0_22] : memref<256x128xbf16, #tpu.memory_space<vmem>>, vector<256x128xbf16>
    %c0_23 = arith.constant 0 : index
    %c0_24 = arith.constant 0 : index
    %35 = vector.load %arg9[%c0_23, %c0_24] : memref<1x128xf32, #tpu.memory_space<vmem>>, vector<1x128xf32>
    %36 = arith.truncf %33 : vector<8x256xf32> to vector<8x256xbf16>
    %cst_25 = arith.constant dense<0.000000e+00> : vector<8x128xf32>
    %37 = tpu.matmul %36, %34, %cst_25 {dimension_numbers = #tpu.dot_dimension_numbers<[1], [0], [0], [1], [0, 0, 1, 1], [], []>} : vector<8x256xbf16>, vector<256x128xbf16>, vector<8x128xf32> -> vector<8x128xf32>
    %38 = vector.broadcast %35 : vector<1x128xf32> to vector<8x128xf32>
    %39 = arith.addf %37, %38 : vector<8x128xf32>
    %cst_26 = arith.constant 0.000000e+00 : f32
    %40 = vector.broadcast %cst_26 : f32 to vector<8x128xf32>
    %41 = arith.cmpf oge, %39, %40 : vector<8x128xf32>
    %cst_27 = arith.constant 0.00999999977 : f32
    %42 = vector.broadcast %cst_27 : f32 to vector<8x128xf32>
    %43 = arith.mulf %42, %39 : vector<8x128xf32>
    %44 = arith.select %41, %39, %43 : vector<8x128xi1>, vector<8x128xf32>
    %c0_28 = arith.constant 0 : index
    %c0_29 = arith.constant 0 : index
    %45 = vector.load %arg10[%c0_28, %c0_29] : memref<128x128xbf16, #tpu.memory_space<vmem>>, vector<128x128xbf16>
    %c0_30 = arith.constant 0 : index
    %c0_31 = arith.constant 0 : index
    %46 = vector.load %arg11[%c0_30, %c0_31] : memref<1x128xf32, #tpu.memory_space<vmem>>, vector<1x128xf32>
    %47 = arith.truncf %44 : vector<8x128xf32> to vector<8x128xbf16>
    %cst_32 = arith.constant dense<0.000000e+00> : vector<8x128xf32>
    %48 = tpu.matmul %47, %45, %cst_32 {dimension_numbers = #tpu.dot_dimension_numbers<[1], [0], [0], [1], [0, 0, 1, 1], [], []>} : vector<8x128xbf16>, vector<128x128xbf16>, vector<8x128xf32> -> vector<8x128xf32>
    %49 = vector.broadcast %46 : vector<1x128xf32> to vector<8x128xf32>
    %50 = arith.addf %48, %49 : vector<8x128xf32>
    %cst_33 = arith.constant 0.000000e+00 : f32
    %51 = vector.broadcast %cst_33 : f32 to vector<8x128xf32>
    %52 = arith.cmpf oge, %50, %51 : vector<8x128xf32>
    %cst_34 = arith.constant 0.00999999977 : f32
    %53 = vector.broadcast %cst_34 : f32 to vector<8x128xf32>
    %54 = arith.mulf %53, %50 : vector<8x128xf32>
    %55 = arith.select %52, %50, %54 : vector<8x128xi1>, vector<8x128xf32>
    %c0_35 = arith.constant 0 : index
    %c0_36 = arith.constant 0 : index
    %56 = vector.load %arg12[%c0_35, %c0_36] : memref<128x128xbf16, #tpu.memory_space<vmem>>, vector<128x128xbf16>
    %c0_37 = arith.constant 0 : index
    %c0_38 = arith.constant 0 : index
    %57 = vector.load %arg13[%c0_37, %c0_38] : memref<1x128xf32, #tpu.memory_space<vmem>>, vector<1x128xf32>
    %58 = arith.truncf %55 : vector<8x128xf32> to vector<8x128xbf16>
    %cst_39 = arith.constant dense<0.000000e+00> : vector<8x128xf32>
    %59 = tpu.matmul %58, %56, %cst_39 {dimension_numbers = #tpu.dot_dimension_numbers<[1], [0], [0], [1], [0, 0, 1, 1], [], []>} : vector<8x128xbf16>, vector<128x128xbf16>, vector<8x128xf32> -> vector<8x128xf32>
    %60 = vector.broadcast %57 : vector<1x128xf32> to vector<8x128xf32>
    %61 = arith.addf %59, %60 : vector<8x128xf32>
    %c0_40 = arith.constant 0 : index
    %c0_41 = arith.constant 0 : index
    %62 = vector.load %arg27[%c0_40, %c0_41] : memref<8x128xf32, #tpu.memory_space<vmem>>, vector<8x128xf32>
    tpu.vector_store %arg27[%c0_40, %c0_41], %61 {strides = array<i32>} : memref<8x128xf32, #tpu.memory_space<vmem>>, vector<8x128xf32>,
    %c0_42 = arith.constant 0 : index
    %c0_43 = arith.constant 0 : index
    %63 = vector.load %arg14[%c0_42, %c0_43] : memref<128x128xbf16, #tpu.memory_space<vmem>>, vector<128x128xbf16>
    %c0_44 = arith.constant 0 : index
    %c0_45 = arith.constant 0 : index
    %64 = vector.load %arg15[%c0_44, %c0_45] : memref<1x128xf32, #tpu.memory_space<vmem>>, vector<1x128xf32>
    %65 = arith.truncf %61 : vector<8x128xf32> to vector<8x128xbf16>
    %cst_46 = arith.constant dense<0.000000e+00> : vector<8x128xf32>
    %66 = tpu.matmul %65, %63, %cst_46 {dimension_numbers = #tpu.dot_dimension_numbers<[1], [0], [0], [1], [0, 0, 1, 1], [], []>} : vector<8x128xbf16>, vector<128x128xbf16>, vector<8x128xf32> -> vector<8x128xf32>
    %67 = vector.broadcast %64 : vector<1x128xf32> to vector<8x128xf32>
    %68 = arith.addf %66, %67 : vector<8x128xf32>
    %cst_47 = arith.constant 0.000000e+00 : f32
    %69 = vector.broadcast %cst_47 : f32 to vector<8x128xf32>
    %70 = arith.maximumf %68, %69 : vector<8x128xf32>
    %c0_48 = arith.constant 0 : index
    %c0_49 = arith.constant 0 : index
    %71 = vector.load %arg16[%c0_48, %c0_49] : memref<128x128xbf16, #tpu.memory_space<vmem>>, vector<128x128xbf16>
    %c0_50 = arith.constant 0 : index
    %c0_51 = arith.constant 0 : index
    %72 = vector.load %arg17[%c0_50, %c0_51] : memref<1x128xf32, #tpu.memory_space<vmem>>, vector<1x128xf32>
    %73 = arith.truncf %70 : vector<8x128xf32> to vector<8x128xbf16>
    %cst_52 = arith.constant dense<0.000000e+00> : vector<8x128xf32>
    %74 = tpu.matmul %73, %71, %cst_52 {dimension_numbers = #tpu.dot_dimension_numbers<[1], [0], [0], [1], [0, 0, 1, 1], [], []>} : vector<8x128xbf16>, vector<128x128xbf16>, vector<8x128xf32> -> vector<8x128xf32>
    %75 = vector.broadcast %72 : vector<1x128xf32> to vector<8x128xf32>
    %76 = arith.addf %74, %75 : vector<8x128xf32>
    %cst_53 = arith.constant 0.000000e+00 : f32
    %77 = vector.broadcast %cst_53 : f32 to vector<8x128xf32>
    %78 = arith.maximumf %76, %77 : vector<8x128xf32>
    %c0_54 = arith.constant 0 : index
    %c0_55 = arith.constant 0 : index
    %79 = vector.load %arg18[%c0_54, %c0_55] : memref<128x256xbf16, #tpu.memory_space<vmem>>, vector<128x256xbf16>
    %c0_56 = arith.constant 0 : index
    %c0_57 = arith.constant 0 : index
    %80 = vector.load %arg19[%c0_56, %c0_57] : memref<1x256xf32, #tpu.memory_space<vmem>>, vector<1x256xf32>
    %81 = arith.truncf %78 : vector<8x128xf32> to vector<8x128xbf16>
    %cst_58 = arith.constant dense<0.000000e+00> : vector<8x256xf32>
    %82 = tpu.matmul %81, %79, %cst_58 {dimension_numbers = #tpu.dot_dimension_numbers<[1], [0], [0], [1], [0, 0, 1, 1], [], []>} : vector<8x128xbf16>, vector<128x256xbf16>, vector<8x256xf32> -> vector<8x256xf32>
    %83 = vector.broadcast %80 : vector<1x256xf32> to vector<8x256xf32>
    %84 = arith.addf %82, %83 : vector<8x256xf32>
    %cst_59 = arith.constant 0.000000e+00 : f32
    %85 = vector.broadcast %cst_59 : f32 to vector<8x256xf32>
    %86 = arith.maximumf %84, %85 : vector<8x256xf32>
    %c0_60 = arith.constant 0 : index
    %c0_61 = arith.constant 0 : index
    %87 = vector.load %arg20[%c0_60, %c0_61] : memref<256x512xbf16, #tpu.memory_space<vmem>>, vector<256x512xbf16>
    %c0_62 = arith.constant 0 : index
    %c0_63 = arith.constant 0 : index
    %88 = vector.load %arg21[%c0_62, %c0_63] : memref<1x512xf32, #tpu.memory_space<vmem>>, vector<1x512xf32>
    %89 = arith.truncf %86 : vector<8x256xf32> to vector<8x256xbf16>
    %cst_64 = arith.constant dense<0.000000e+00> : vector<8x512xf32>
    %90 = tpu.matmul %89, %87, %cst_64 {dimension_numbers = #tpu.dot_dimension_numbers<[1], [0], [0], [1], [0, 0, 1, 1], [], []>} : vector<8x256xbf16>, vector<256x512xbf16>, vector<8x512xf32> -> vector<8x512xf32>
    %91 = vector.broadcast %88 : vector<1x512xf32> to vector<8x512xf32>
    %92 = arith.addf %90, %91 : vector<8x512xf32>
    %cst_65 = arith.constant 0.000000e+00 : f32
    %93 = vector.broadcast %cst_65 : f32 to vector<8x512xf32>
    %94 = arith.maximumf %92, %93 : vector<8x512xf32>
    %c0_66 = arith.constant 0 : index
    %c0_67 = arith.constant 0 : index
    %95 = vector.load %arg22[%c0_66, %c0_67] : memref<512x1024xbf16, #tpu.memory_space<vmem>>, vector<512x1024xbf16>
    %c0_68 = arith.constant 0 : index
    %c0_69 = arith.constant 0 : index
    %96 = vector.load %arg23[%c0_68, %c0_69] : memref<1x1024xf32, #tpu.memory_space<vmem>>, vector<1x1024xf32>
    %97 = arith.truncf %94 : vector<8x512xf32> to vector<8x512xbf16>
    %cst_70 = arith.constant dense<0.000000e+00> : vector<8x1024xf32>
    %98 = tpu.matmul %97, %95, %cst_70 {dimension_numbers = #tpu.dot_dimension_numbers<[1], [0], [0], [1], [0, 0, 1, 1], [], []>} : vector<8x512xbf16>, vector<512x1024xbf16>, vector<8x1024xf32> -> vector<8x1024xf32>
    %99 = vector.broadcast %96 : vector<1x1024xf32> to vector<8x1024xf32>
    %100 = arith.addf %98, %99 : vector<8x1024xf32>
    %cst_71 = arith.constant 0.000000e+00 : f32
    %101 = vector.broadcast %cst_71 : f32 to vector<8x1024xf32>
    %102 = arith.maximumf %100, %101 : vector<8x1024xf32>
    %c0_72 = arith.constant 0 : index
    %c0_73 = arith.constant 0 : index
    %103 = vector.load %arg24[%c0_72, %c0_73] : memref<1024x256xbf16, #tpu.memory_space<vmem>>, vector<1024x256xbf16>
    %c0_74 = arith.constant 0 : index
    %c0_75 = arith.constant 0 : index
    %104 = vector.load %arg25[%c0_74, %c0_75] : memref<1x256xf32, #tpu.memory_space<vmem>>, vector<1x256xf32>
    %105 = arith.truncf %102 : vector<8x1024xf32> to vector<8x1024xbf16>
    %cst_76 = arith.constant dense<0.000000e+00> : vector<8x256xf32>
    %106 = tpu.matmul %105, %103, %cst_76 {dimension_numbers = #tpu.dot_dimension_numbers<[1], [0], [0], [1], [0, 0, 1, 1], [], []>} : vector<8x1024xbf16>, vector<1024x256xbf16>, vector<8x256xf32> -> vector<8x256xf32>
    %107 = vector.broadcast %104 : vector<1x256xf32> to vector<8x256xf32>
    %108 = arith.addf %106, %107 : vector<8x256xf32>
    %109 = arith.negf %108 : vector<8x256xf32>
    %110 = math.exp %109 : vector<8x256xf32>
    %cst_77 = arith.constant 1.000000e+00 : f32
    %111 = vector.broadcast %cst_77 : f32 to vector<8x256xf32>
    %112 = arith.addf %111, %110 : vector<8x256xf32>
    %113 = arith.divf %111, %112 : vector<8x256xf32>
    %c0_78 = arith.constant 0 : index
    %c0_79 = arith.constant 0 : index
    %114 = vector.load %arg26[%c0_78, %c0_79] : memref<8x256xf32, #tpu.memory_space<vmem>>, vector<8x256xf32>
    tpu.vector_store %arg26[%c0_78, %c0_79], %113 {strides = array<i32>} : memref<8x256xf32, #tpu.memory_space<vmem>>, vector<8x256xf32>,
    return
  }
  func.func @transform_0(%arg0: i32) -> (i32, i32) {
    %c0_i32 = arith.constant 0 : i32
    %c0_i32_0 = arith.constant 0 : i32
    return %arg0, %c0_i32 : i32, i32
  }
  func.func @transform_1(%arg0: i32) -> (i32, i32) {
    %c0_i32 = arith.constant 0 : i32
    %c0_i32_0 = arith.constant 0 : i32
    %c0_i32_1 = arith.constant 0 : i32
    return %c0_i32, %c0_i32_0 : i32, i32
  }
  func.func @transform_2(%arg0: i32) -> (i32, i32) {
    %c0_i32 = arith.constant 0 : i32
    %c0_i32_0 = arith.constant 0 : i32
    %c0_i32_1 = arith.constant 0 : i32
    return %c0_i32, %c0_i32_0 : i32, i32
  }
  func.func @transform_3(%arg0: i32) -> (i32, i32) {
    %c0_i32 = arith.constant 0 : i32
    %c0_i32_0 = arith.constant 0 : i32
    %c0_i32_1 = arith.constant 0 : i32
    return %c0_i32, %c0_i32_0 : i32, i32
  }
  func.func @transform_4(%arg0: i32) -> (i32, i32) {
    %c0_i32 = arith.constant 0 : i32
    %c0_i32_0 = arith.constant 0 : i32
    %c0_i32_1 = arith.constant 0 : i32
    return %c0_i32, %c0_i32_0 : i32, i32
  }
  func.func @transform_5(%arg0: i32) -> (i32, i32) {
    %c0_i32 = arith.constant 0 : i32
    %c0_i32_0 = arith.constant 0 : i32
    %c0_i32_1 = arith.constant 0 : i32
    return %c0_i32, %c0_i32_0 : i32, i32
  }
  func.func @transform_6(%arg0: i32) -> (i32, i32) {
    %c0_i32 = arith.constant 0 : i32
    %c0_i32_0 = arith.constant 0 : i32
    %c0_i32_1 = arith.constant 0 : i32
    return %c0_i32, %c0_i32_0 : i32, i32
  }
  func.func @transform_7(%arg0: i32) -> (i32, i32) {
    %c0_i32 = arith.constant 0 : i32
    %c0_i32_0 = arith.constant 0 : i32
    %c0_i32_1 = arith.constant 0 : i32
    return %c0_i32, %c0_i32_0 : i32, i32
  }
  func.func @transform_8(%arg0: i32) -> (i32, i32) {
    %c0_i32 = arith.constant 0 : i32
    %c0_i32_0 = arith.constant 0 : i32
    %c0_i32_1 = arith.constant 0 : i32
    return %c0_i32, %c0_i32_0 : i32, i32
  }
  func.func @transform_9(%arg0: i32) -> (i32, i32) {
    %c0_i32 = arith.constant 0 : i32
    %c0_i32_0 = arith.constant 0 : i32
    %c0_i32_1 = arith.constant 0 : i32
    return %c0_i32, %c0_i32_0 : i32, i32
  }
  func.func @transform_10(%arg0: i32) -> (i32, i32) {
    %c0_i32 = arith.constant 0 : i32
    %c0_i32_0 = arith.constant 0 : i32
    %c0_i32_1 = arith.constant 0 : i32
    return %c0_i32, %c0_i32_0 : i32, i32
  }
  func.func @transform_11(%arg0: i32) -> (i32, i32) {
    %c0_i32 = arith.constant 0 : i32
    %c0_i32_0 = arith.constant 0 : i32
    %c0_i32_1 = arith.constant 0 : i32
    return %c0_i32, %c0_i32_0 : i32, i32
  }
  func.func @transform_12(%arg0: i32) -> (i32, i32) {
    %c0_i32 = arith.constant 0 : i32
    %c0_i32_0 = arith.constant 0 : i32
    %c0_i32_1 = arith.constant 0 : i32
    return %c0_i32, %c0_i32_0 : i32, i32
  }
  func.func @transform_13(%arg0: i32) -> (i32, i32) {
    %c0_i32 = arith.constant 0 : i32
    %c0_i32_0 = arith.constant 0 : i32
    %c0_i32_1 = arith.constant 0 : i32
    return %c0_i32, %c0_i32_0 : i32, i32
  }
  func.func @transform_14(%arg0: i32) -> (i32, i32) {
    %c0_i32 = arith.constant 0 : i32
    %c0_i32_0 = arith.constant 0 : i32
    %c0_i32_1 = arith.constant 0 : i32
    return %c0_i32, %c0_i32_0 : i32, i32
  }
  func.func @transform_15(%arg0: i32) -> (i32, i32) {
    %c0_i32 = arith.constant 0 : i32
    %c0_i32_0 = arith.constant 0 : i32
    %c0_i32_1 = arith.constant 0 : i32
    return %c0_i32, %c0_i32_0 : i32, i32
  }
  func.func @transform_16(%arg0: i32) -> (i32, i32) {
    %c0_i32 = arith.constant 0 : i32
    %c0_i32_0 = arith.constant 0 : i32
    %c0_i32_1 = arith.constant 0 : i32
    return %c0_i32, %c0_i32_0 : i32, i32
  }
  func.func @transform_17(%arg0: i32) -> (i32, i32) {
    %c0_i32 = arith.constant 0 : i32
    %c0_i32_0 = arith.constant 0 : i32
    %c0_i32_1 = arith.constant 0 : i32
    return %c0_i32, %c0_i32_0 : i32, i32
  }
  func.func @transform_18(%arg0: i32) -> (i32, i32) {
    %c0_i32 = arith.constant 0 : i32
    %c0_i32_0 = arith.constant 0 : i32
    %c0_i32_1 = arith.constant 0 : i32
    return %c0_i32, %c0_i32_0 : i32, i32
  }
  func.func @transform_19(%arg0: i32) -> (i32, i32) {
    %c0_i32 = arith.constant 0 : i32
    %c0_i32_0 = arith.constant 0 : i32
    %c0_i32_1 = arith.constant 0 : i32
    return %c0_i32, %c0_i32_0 : i32, i32
  }
  func.func @transform_20(%arg0: i32) -> (i32, i32) {
    %c0_i32 = arith.constant 0 : i32
    %c0_i32_0 = arith.constant 0 : i32
    %c0_i32_1 = arith.constant 0 : i32
    return %c0_i32, %c0_i32_0 : i32, i32
  }
  func.func @transform_21(%arg0: i32) -> (i32, i32) {
    %c0_i32 = arith.constant 0 : i32
    %c0_i32_0 = arith.constant 0 : i32
    %c0_i32_1 = arith.constant 0 : i32
    return %c0_i32, %c0_i32_0 : i32, i32
  }
  func.func @transform_22(%arg0: i32) -> (i32, i32) {
    %c0_i32 = arith.constant 0 : i32
    %c0_i32_0 = arith.constant 0 : i32
    %c0_i32_1 = arith.constant 0 : i32
    return %c0_i32, %c0_i32_0 : i32, i32
  }
  func.func @transform_23(%arg0: i32) -> (i32, i32) {
    %c0_i32 = arith.constant 0 : i32
    %c0_i32_0 = arith.constant 0 : i32
    %c0_i32_1 = arith.constant 0 : i32
    return %c0_i32, %c0_i32_0 : i32, i32
  }
  func.func @transform_24(%arg0: i32) -> (i32, i32) {
    %c0_i32 = arith.constant 0 : i32
    %c0_i32_0 = arith.constant 0 : i32
    %c0_i32_1 = arith.constant 0 : i32
    return %c0_i32, %c0_i32_0 : i32, i32
  }
  func.func @transform_25(%arg0: i32) -> (i32, i32) {
    %c0_i32 = arith.constant 0 : i32
    %c0_i32_0 = arith.constant 0 : i32
    return %arg0, %c0_i32 : i32, i32
  }
  func.func @transform_26(%arg0: i32) -> (i32, i32) {
    %c0_i32 = arith.constant 0 : i32
    %c0_i32_0 = arith.constant 0 : i32
    return %arg0, %c0_i32 : i32, i32
  }
}

</mosaic_0001>

<llo_original>
// kernel: tpu_custom_call.1
$region0: #{tpu_custom_call.1}
  #allocation0 [shape = 'u32[]', space=smem, size = 0x4, offset = 0x4, fixed_abs, tag = 'smem constant byte address 0x4 - core index']
  #allocation1 [shape = 'u32[72,128]{1,0:T(1,128)}', space=vmem, size = 0x9000, scoped, tag = 'internal scratch']
  %s0 = inlined_call_operand.hbm [shape: f32[16,256], index: 0, kind: input, shape index: {}]
  %s1 = inlined_call_operand.hbm [shape: bf16[256,1024], index: 1, kind: input, shape index: {}]
  %s2 = inlined_call_operand.hbm [shape: f32[1,1024], index: 2, kind: input, shape index: {}]
  %s3 = inlined_call_operand.hbm [shape: bf16[1024,512], index: 3, kind: input, shape index: {}]
  %s4 = inlined_call_operand.hbm [shape: f32[1,512], index: 4, kind: input, shape index: {}]
  %s5 = inlined_call_operand.hbm [shape: bf16[512,256], index: 5, kind: input, shape index: {}]
  %s6 = inlined_call_operand.vmem [shape: f32[1,256], index: 6, kind: input, shape index: {}]
  %s7 = inlined_call_operand.hbm [shape: bf16[256,128], index: 7, kind: input, shape index: {}]
  %s8 = inlined_call_operand.hbm [shape: f32[1,128], index: 8, kind: input, shape index: {}]
  %s9 = inlined_call_operand.hbm [shape: bf16[128,128], index: 9, kind: input, shape index: {}]
  %s10 = inlined_call_operand.hbm [shape: f32[1,128], index: 10, kind: input, shape index: {}]
  %s11 = inlined_call_operand.hbm [shape: bf16[128,128], index: 11, kind: input, shape index: {}]
  %s12 = inlined_call_operand.hbm [shape: f32[1,128], index: 12, kind: input, shape index: {}]
  %s13 = inlined_call_operand.hbm [shape: bf16[128,128], index: 13, kind: input, shape index: {}]
  %s14 = inlined_call_operand.hbm [shape: f32[1,128], index: 14, kind: input, shape index: {}]
  %s15 = inlined_call_operand.hbm [shape: bf16[128,128], index: 15, kind: input, shape index: {}]
  %s16 = inlined_call_operand.hbm [shape: f32[1,128], index: 16, kind: input, shape index: {}]
  %s17 = inlined_call_operand.hbm [shape: bf16[128,256], index: 17, kind: input, shape index: {}]
  %s18 = inlined_call_operand.vmem [shape: f32[1,256], index: 18, kind: input, shape index: {}]
  %s19 = inlined_call_operand.hbm [shape: bf16[256,512], index: 19, kind: input, shape index: {}]
  %s20 = inlined_call_operand.vmem [shape: f32[1,512], index: 20, kind: input, shape index: {}]
  %s21 = inlined_call_operand.hbm [shape: bf16[512,1024], index: 21, kind: input, shape index: {}]
  %s22 = inlined_call_operand.vmem [shape: f32[1,1024], index: 22, kind: input, shape index: {}]
  %s23 = inlined_call_operand.hbm [shape: bf16[1024,256], index: 23, kind: input, shape index: {}]
  %s24 = inlined_call_operand.vmem [shape: f32[1,256], index: 24, kind: input, shape index: {}]
  %s25 = inlined_call_operand.hbm [shape: f32[16,256], index: 25, kind: output, shape index: {0}]
  %s26 = inlined_call_operand.hbm [shape: f32[16,128], index: 26, kind: output, shape index: {1}]
  %27 = xla_tuple %s25, %s26
  %s28 = sld [smem:[#allocation0]]
  $region221: #{tpu_custom_call.1} parent=0
    _
  %s30 = ssub.s32 1, %s28
  %s31 = scalar_select 0, %s30, %s28
  $region1: #{tpu_custom_call.1} parent=0
    #allocation2 [shape = 'u8[16384]{0}', space=vmem, size = 0x4000, scoped, tag = 'input window, operand 0']
    #allocation3 [shape = 's32[2]{0}', space=sflag, size = 0x8, scoped, tag = 'scoped memory for tpu_custom_call.1']
    #allocation4 [shape = 's32[2]{0}', space=sflag, size = 0x8, scoped, tag = 'scoped memory for tpu_custom_call.1']
    #allocation5 [shape = 'u8[524288]{0}', space=vmem, size = 0x80000, scoped, tag = 'input window, operand 1, single buffered']
    #allocation6 [shape = 's32[1]{0}', space=sflag, size = 0x4, scoped, tag = 'scoped memory for tpu_custom_call.1']
    #allocation7 [shape = 'u8[4096]{0}', space=vmem, size = 0x1000, scoped, tag = 'input window, operand 2, single buffered']
    #allocation8 [shape = 'u8[1048576]{0}', space=vmem, size = 0x100000, scoped, tag = 'input window, operand 3, single buffered']
    #allocation9 [shape = 's32[1]{0}', space=sflag, size = 0x4, scoped, tag = 'scoped memory for tpu_custom_call.1']
    #allocation10 [shape = 'u8[2048]{0}', space=vmem, size = 0x800, scoped, tag = 'input window, operand 4, single buffered']
    #allocation11 [shape = 'u8[262144]{0}', space=vmem, size = 0x40000, scoped, tag = 'input window, operand 5, single buffered']
    #allocation12 [shape = 's32[1]{0}', space=sflag, size = 0x4, scoped, tag = 'scoped memory for tpu_custom_call.1']
    #allocation13 [shape = 'u8[65536]{0}', space=vmem, size = 0x10000, scoped, tag = 'input window, operand 7, single buffered']
    #allocation14 [shape = 'u8[512]{0}', space=vmem, size = 0x400, scoped, tag = 'input window, operand 8, single buffered']
    #allocation15 [shape = 's32[1]{0}', space=sflag, size = 0x4, scoped, tag = 'scoped memory for tpu_custom_call.1']
    #allocation16 [shape = 'u8[32768]{0}', space=vmem, size = 0x8000, scoped, tag = 'input window, operand 9, single buffered']
    #allocation17 [shape = 'u8[512]{0}', space=vmem, size = 0x400, scoped, tag = 'input window, operand 10, single buffered']
    #allocation18 [shape = 's32[1]{0}', space=sflag, size = 0x4, scoped, tag = 'scoped memory for tpu_custom_call.1']
    #allocation19 [shape = 'u8[32768]{0}', space=vmem, size = 0x8000, scoped, tag = 'input window, operand 11, single buffered']
    #allocation20 [shape = 'u8[512]{0}', space=vmem, size = 0x400, scoped, tag = 'input window, operand 12, single buffered']
    #allocation21 [shape = 's32[1]{0}', space=sflag, size = 0x4, scoped, tag = 'scoped memory for tpu_custom_call.1']
    #allocation22 [shape = 'u8[32768]{0}', space=vmem, size = 0x8000, scoped, tag = 'input window, operand 13, single buffered']
    #allocation23 [shape = 'u8[512]{0}', space=vmem, size = 0x400, scoped, tag = 'input window, operand 14, single buffered']
    #allocation24 [shape = 's32[1]{0}', space=sflag, size = 0x4, scoped, tag = 'scoped memory for tpu_custom_call.1']
    #allocation25 [shape = 'u8[32768]{0}', space=vmem, size = 0x8000, scoped, tag = 'input window, operand 15, single buffered']
    #allocation26 [shape = 'u8[512]{0}', space=vmem, size = 0x400, scoped, tag = 'input window, operand 16, single buffered']
    #allocation27 [shape = 's32[1]{0}', space=sflag, size = 0x4, scoped, tag = 'scoped memory for tpu_custom_call.1']
    #allocation28 [shape = 'u8[65536]{0}', space=vmem, size = 0x10000, scoped, tag = 'input window, operand 17, single buffered']
    #allocation29 [shape = 'u8[262144]{0}', space=vmem, size = 0x40000, scoped, tag = 'input window, operand 19, single buffered']
    #allocation30 [shape = 's32[1]{0}', space=sflag, size = 0x4, scoped, tag = 'scoped memory for tpu_custom_call.1']
    #allocation31 [shape = 'u8[1048576]{0}', space=vmem, size = 0x100000, scoped, tag = 'input window, operand 21, single buffered']
    #allocation32 [shape = 'u8[524288]{0}', space=vmem, size = 0x80000, scoped, tag = 'input window, operand 23, single buffered']
    #allocation33 [shape = 's32[1]{0}', space=sflag, size = 0x4, scoped, tag = 'scoped memory for tpu_custom_call.1']
    #allocation34 [shape = 'u8[16384]{0}', space=vmem, size = 0x4000, scoped, tag = 'output window, operand 0']
    #allocation35 [shape = 'u8[8192]{0}', space=vmem, size = 0x2000, scoped, tag = 'output window, operand 1']
    #allocation36 [shape = 's32[2]{0}', space=sflag, size = 0x8, scoped, tag = 'scoped memory for tpu_custom_call.1']
    %32 = vsyncpa [#allocation3], 0
    %s33 = scalar_lea.sflag [#allocation3], 1
    %34 = vsyncpa %s33, 0
    %35 = vsyncpa [#allocation6], 0
    %36 = vsyncpa [#allocation9], 0
    %37 = vsyncpa [#allocation12], 0
    %38 = vsyncpa [#allocation15], 0
    %39 = vsyncpa [#allocation18], 0
    %40 = vsyncpa [#allocation21], 0
    %41 = vsyncpa [#allocation24], 0
    %42 = vsyncpa [#allocation27], 0
    %43 = vsyncpa [#allocation30], 0
    %44 = vsyncpa [#allocation33], 0
    %45 = vsyncpa [#allocation4], 0
    %s46 = scalar_lea.sflag [#allocation4], 1
    %47 = vsyncpa %s46, 0
    %48 = vsyncpa [#allocation36], 0
    %s49 = scalar_lea.sflag [#allocation36], 1
    %50 = vsyncpa %s49, 0
    loop: start=0, step=1, limit=4
    $region2: #{tpu_custom_call.1} parent=1 // loop_pre_header
      _
    $region3: #{tpu_custom_call.1} parent=1 // loop_header
      %s52 = sphi 0, %s56
      %p53 = scmp.ge.s32.totalorder %s52, 4
      %s62 = sphi 0, %s64
      %s65 = sphi 0, %s62
      %s66 = sphi 0, %s65
      %s82 = sphi 0, %s66
      %s86 = sphi 0, %s86
      %s88 = sphi 0, %s86
      %s89 = sphi 0, %s88
      %s103 = sphi 0, %s89
      %s107 = sphi 0, %s107
      %s109 = sphi 0, %s107
      %s110 = sphi 0, %s109
      %s124 = sphi 0, %s110
      %s128 = sphi 0, %s128
      %s130 = sphi 0, %s128
      %s131 = sphi 0, %s130
      %s145 = sphi 0, %s131
      %s149 = sphi 0, %s149
      %s151 = sphi 0, %s149
      %s152 = sphi 0, %s151
      %s166 = sphi 0, %s152
      %s170 = sphi 0, %s170
      %s172 = sphi 0, %s170
      %s173 = sphi 0, %s172
      %s187 = sphi 0, %s173
      %s191 = sphi 0, %s191
      %s193 = sphi 0, %s191
      %s194 = sphi 0, %s193
      %s208 = sphi 0, %s194
      %s212 = sphi 0, %s212
      %s214 = sphi 0, %s212
      %s215 = sphi 0, %s214
      %s229 = sphi 0, %s215
      %s233 = sphi 0, %s233
      %s235 = sphi 0, %s233
      %s236 = sphi 0, %s235
      %s250 = sphi 0, %s236
      %s254 = sphi 0, %s254
      %s256 = sphi 0, %s254
      %s257 = sphi 0, %s256
      %s271 = sphi 0, %s257
      %s275 = sphi 0, %s275
      %s277 = sphi 0, %s275
      %s278 = sphi 0, %s277
      %s292 = sphi 0, %s278
      %s296 = sphi 0, %s296
      %s298 = sphi 0, %s296
      %s299 = sphi 0, %s298
      %s313 = sphi 0, %s299
      %s317 = sphi 0, %s317
      %s319 = sphi 0, %s317
      %s320 = sphi 0, %s319
      %s334 = sphi 0, %s320
      %s338 = sphi 0, %s338
      %s340 = sphi 0, %s338
      %s341 = sphi 0, %s340
      %s355 = sphi 0, %s341
      %s359 = sphi 0, %s359
      %s361 = sphi 0, %s359
      %s362 = sphi 0, %s361
      %s376 = sphi 0, %s362
      %s380 = sphi 0, %s380
      %s382 = sphi 0, %s380
      %s383 = sphi 0, %s382
      %s397 = sphi 0, %s383
      %s401 = sphi 0, %s401
      %s403 = sphi 0, %s401
      %s404 = sphi 0, %s403
      %s418 = sphi 0, %s404
      %s422 = sphi 0, %s422
      %s424 = sphi 0, %s422
      %s425 = sphi 0, %s424
      %s439 = sphi 0, %s425
      %s443 = sphi 0, %s443
      %s445 = sphi 0, %s443
      %s446 = sphi 0, %s445
      %s460 = sphi 0, %s446
      %s464 = sphi 0, %s464
      %s466 = sphi 0, %s464
      %s467 = sphi 0, %s466
      %s481 = sphi 0, %s467
      %s485 = sphi 0, %s485
      %s487 = sphi 0, %s485
      %s488 = sphi 0, %s487
      %s502 = sphi 0, %s488
      %s506 = sphi 0, %s506
      %s508 = sphi 0, %s506
      %s509 = sphi 0, %s508
      %s523 = sphi 0, %s509
      %s527 = sphi 0, %s527
      %s529 = sphi 0, %s527
      %s530 = sphi 0, %s529
      %s544 = sphi 0, %s530
      %s548 = sphi 0, %s548
      %s550 = sphi 0, %s548
      %s551 = sphi 0, %s550
      %s565 = sphi 0, %s551
      %s569 = sphi 0, %s569
      %s571 = sphi 0, %s569
      %s572 = sphi 0, %s571
      %s586 = sphi 0, %s572
      %s592 = sphi 0, %s594
      %s595 = sphi 0, %s592
      %s596 = sphi 0, %s595
      %s612 = sphi 0, %s596
      %s618 = sphi 0, %s620
      %s621 = sphi 0, %s618
      %s622 = sphi 0, %s621
      %s638 = sphi 0, %s622
    $region4: #{tpu_custom_call.1} parent=1 // loop_header_branch
      %55 = sbr.rel (%p53) target = $region8
    $region5: #{tpu_custom_call.1} parent=1 // loop_body
      %s57 = ssub.s32 %s52, 1
      %s58 = ssub.s32 %s52, 2
      %s59 = sadd.s32 %s52, 1
      %s60 = ssub.s32 %s52, %s59
      %p61 = scmp.eq.s32.totalorder %s60, 0
      %s63 = sadd.s32 %s62, 1
      %s64 = scalar_select %p61, %s62, %s63
      %p67 = pneg %p61
      %p68 = scmp.eq.s32.totalorder %s52, 1
      %p69 = por %p67, %p68
      %p70 = scmp.ne.s32.totalorder %s62, %s65
      %p71 = scmp.eq.s32.totalorder %s52, 0
      %p72 = por %p70, %p71
      %p73 = scmp.ne.s32.totalorder %s62, %s65
      %p74 = scmp.eq.s32.totalorder %s57, 1
      %p75 = por %p73, %p74
      %p76 = scmp.ne.s32.totalorder %s65, %s66
      %p77 = scmp.eq.s32.totalorder %s57, 0
      %p78 = por %p76, %p77
      %p79 = scmp.ne.s32.totalorder %s65, %s66
      %p80 = scmp.eq.s32.totalorder %s58, 1
      %p81 = por %p79, %p80
      %p83 = scmp.ne.s32.totalorder %s66, %s82
      %p84 = scmp.eq.s32.totalorder %s58, 0
      %p85 = por %p83, %p84
      %s87 = sadd.s32 %s86, 1
      %p90 = scmp.eq.s32.totalorder %s52, 1
      %p91 = scmp.ne.s32.totalorder %s86, %s88
      %p92 = scmp.eq.s32.totalorder %s52, 0
      %p93 = por %p91, %p92
      %p94 = scmp.ne.s32.totalorder %s86, %s88
      %p95 = scmp.eq.s32.totalorder %s57, 1
      %p96 = por %p94, %p95
      %p97 = scmp.ne.s32.totalorder %s88, %s89
      %p98 = scmp.eq.s32.totalorder %s57, 0
      %p99 = por %p97, %p98
      %p100 = scmp.ne.s32.totalorder %s88, %s89
      %p101 = scmp.eq.s32.totalorder %s58, 1
      %p102 = por %p100, %p101
      %p104 = scmp.ne.s32.totalorder %s89, %s103
      %p105 = scmp.eq.s32.totalorder %s58, 0
      %p106 = por %p104, %p105
      %s108 = sadd.s32 %s107, 1
      %p111 = scmp.eq.s32.totalorder %s52, 1
      %p112 = scmp.ne.s32.totalorder %s107, %s109
      %p113 = scmp.eq.s32.totalorder %s52, 0
      %p114 = por %p112, %p113
      %p115 = scmp.ne.s32.totalorder %s107, %s109
      %p116 = scmp.eq.s32.totalorder %s57, 1
      %p117 = por %p115, %p116
      %p118 = scmp.ne.s32.totalorder %s109, %s110
      %p119 = scmp.eq.s32.totalorder %s57, 0
      %p120 = por %p118, %p119
      %p121 = scmp.ne.s32.totalorder %s109, %s110
      %p122 = scmp.eq.s32.totalorder %s58, 1
      %p123 = por %p121, %p122
      %p125 = scmp.ne.s32.totalorder %s110, %s124
      %p126 = scmp.eq.s32.totalorder %s58, 0
      %p127 = por %p125, %p126
      %s129 = sadd.s32 %s128, 1
      %p132 = scmp.eq.s32.totalorder %s52, 1
      %p133 = scmp.ne.s32.totalorder %s128, %s130
      %p134 = scmp.eq.s32.totalorder %s52, 0
      %p135 = por %p133, %p134
      %p136 = scmp.ne.s32.totalorder %s128, %s130
      %p137 = scmp.eq.s32.totalorder %s57, 1
      %p138 = por %p136, %p137
      %p139 = scmp.ne.s32.totalorder %s130, %s131
      %p140 = scmp.eq.s32.totalorder %s57, 0
      %p141 = por %p139, %p140
      %p142 = scmp.ne.s32.totalorder %s130, %s131
      %p143 = scmp.eq.s32.totalorder %s58, 1
      %p144 = por %p142, %p143
      %p146 = scmp.ne.s32.totalorder %s131, %s145
      %p147 = scmp.eq.s32.totalorder %s58, 0
      %p148 = por %p146, %p147
      %s150 = sadd.s32 %s149, 1
      %p153 = scmp.eq.s32.totalorder %s52, 1
      %p154 = scmp.ne.s32.totalorder %s149, %s151
      %p155 = scmp.eq.s32.totalorder %s52, 0
      %p156 = por %p154, %p155
      %p157 = scmp.ne.s32.totalorder %s149, %s151
      %p158 = scmp.eq.s32.totalorder %s57, 1
      %p159 = por %p157, %p158
      %p160 = scmp.ne.s32.totalorder %s151, %s152
      %p161 = scmp.eq.s32.totalorder %s57, 0
      %p162 = por %p160, %p161
      %p163 = scmp.ne.s32.totalorder %s151, %s152
      %p164 = scmp.eq.s32.totalorder %s58, 1
      %p165 = por %p163, %p164
      %p167 = scmp.ne.s32.totalorder %s152, %s166
      %p168 = scmp.eq.s32.totalorder %s58, 0
      %p169 = por %p167, %p168
      %s171 = sadd.s32 %s170, 1
      %p174 = scmp.eq.s32.totalorder %s52, 1
      %p175 = scmp.ne.s32.totalorder %s170, %s172
      %p176 = scmp.eq.s32.totalorder %s52, 0
      %p177 = por %p175, %p176
      %p178 = scmp.ne.s32.totalorder %s170, %s172
      %p179 = scmp.eq.s32.totalorder %s57, 1
      %p180 = por %p178, %p179
      %p181 = scmp.ne.s32.totalorder %s172, %s173
      %p182 = scmp.eq.s32.totalorder %s57, 0
      %p183 = por %p181, %p182
      %p184 = scmp.ne.s32.totalorder %s172, %s173
      %p185 = scmp.eq.s32.totalorder %s58, 1
      %p186 = por %p184, %p185
      %p188 = scmp.ne.s32.totalorder %s173, %s187
      %p189 = scmp.eq.s32.totalorder %s58, 0
      %p190 = por %p188, %p189
      %s192 = sadd.s32 %s191, 1
      %p195 = scmp.eq.s32.totalorder %s52, 1
      %p196 = scmp.ne.s32.totalorder %s191, %s193
      %p197 = scmp.eq.s32.totalorder %s52, 0
      %p198 = por %p196, %p197
      %p199 = scmp.ne.s32.totalorder %s191, %s193
      %p200 = scmp.eq.s32.totalorder %s57, 1
      %p201 = por %p199, %p200
      %p202 = scmp.ne.s32.totalorder %s193, %s194
      %p203 = scmp.eq.s32.totalorder %s57, 0
      %p204 = por %p202, %p203
      %p205 = scmp.ne.s32.totalorder %s193, %s194
      %p206 = scmp.eq.s32.totalorder %s58, 1
      %p207 = por %p205, %p206
      %p209 = scmp.ne.s32.totalorder %s194, %s208
      %p210 = scmp.eq.s32.totalorder %s58, 0
      %p211 = por %p209, %p210
      %s213 = sadd.s32 %s212, 1
      %p216 = scmp.eq.s32.totalorder %s52, 1
      %p217 = scmp.ne.s32.totalorder %s212, %s214
      %p218 = scmp.eq.s32.totalorder %s52, 0
      %p219 = por %p217, %p218
      %p220 = scmp.ne.s32.totalorder %s212, %s214
      %p221 = scmp.eq.s32.totalorder %s57, 1
      %p222 = por %p220, %p221
      %p223 = scmp.ne.s32.totalorder %s214, %s215
      %p224 = scmp.eq.s32.totalorder %s57, 0
      %p225 = por %p223, %p224
      %p226 = scmp.ne.s32.totalorder %s214, %s215
      %p227 = scmp.eq.s32.totalorder %s58, 1
      %p228 = por %p226, %p227
      %p230 = scmp.ne.s32.totalorder %s215, %s229
      %p231 = scmp.eq.s32.totalorder %s58, 0
      %p232 = por %p230, %p231
      %s234 = sadd.s32 %s233, 1
      %p237 = scmp.eq.s32.totalorder %s52, 1
      %p238 = scmp.ne.s32.totalorder %s233, %s235
      %p239 = scmp.eq.s32.totalorder %s52, 0
      %p240 = por %p238, %p239
      %p241 = scmp.ne.s32.totalorder %s233, %s235
      %p242 = scmp.eq.s32.totalorder %s57, 1
      %p243 = por %p241, %p242
      %p244 = scmp.ne.s32.totalorder %s235, %s236
      %p245 = scmp.eq.s32.totalorder %s57, 0
      %p246 = por %p244, %p245
      %p247 = scmp.ne.s32.totalorder %s235, %s236
      %p248 = scmp.eq.s32.totalorder %s58, 1
      %p249 = por %p247, %p248
      %p251 = scmp.ne.s32.totalorder %s236, %s250
      %p252 = scmp.eq.s32.totalorder %s58, 0
      %p253 = por %p251, %p252
      %s255 = sadd.s32 %s254, 1
      %p258 = scmp.eq.s32.totalorder %s52, 1
      %p259 = scmp.ne.s32.totalorder %s254, %s256
      %p260 = scmp.eq.s32.totalorder %s52, 0
      %p261 = por %p259, %p260
      %p262 = scmp.ne.s32.totalorder %s254, %s256
      %p263 = scmp.eq.s32.totalorder %s57, 1
      %p264 = por %p262, %p263
      %p265 = scmp.ne.s32.totalorder %s256, %s257
      %p266 = scmp.eq.s32.totalorder %s57, 0
      %p267 = por %p265, %p266
      %p268 = scmp.ne.s32.totalorder %s256, %s257
      %p269 = scmp.eq.s32.totalorder %s58, 1
      %p270 = por %p268, %p269
      %p272 = scmp.ne.s32.totalorder %s257, %s271
      %p273 = scmp.eq.s32.totalorder %s58, 0
      %p274 = por %p272, %p273
      %s276 = sadd.s32 %s275, 1
      %p279 = scmp.eq.s32.totalorder %s52, 1
      %p280 = scmp.ne.s32.totalorder %s275, %s277
      %p281 = scmp.eq.s32.totalorder %s52, 0
      %p282 = por %p280, %p281
      %p283 = scmp.ne.s32.totalorder %s275, %s277
      %p284 = scmp.eq.s32.totalorder %s57, 1
      %p285 = por %p283, %p284
      %p286 = scmp.ne.s32.totalorder %s277, %s278
      %p287 = scmp.eq.s32.totalorder %s57, 0
      %p288 = por %p286, %p287
      %p289 = scmp.ne.s32.totalorder %s277, %s278
      %p290 = scmp.eq.s32.totalorder %s58, 1
      %p291 = por %p289, %p290
      %p293 = scmp.ne.s32.totalorder %s278, %s292
      %p294 = scmp.eq.s32.totalorder %s58, 0
      %p295 = por %p293, %p294
      %s297 = sadd.s32 %s296, 1
      %p300 = scmp.eq.s32.totalorder %s52, 1
      %p301 = scmp.ne.s32.totalorder %s296, %s298
      %p302 = scmp.eq.s32.totalorder %s52, 0
      %p303 = por %p301, %p302
      %p304 = scmp.ne.s32.totalorder %s296, %s298
      %p305 = scmp.eq.s32.totalorder %s57, 1
      %p306 = por %p304, %p305
      %p307 = scmp.ne.s32.totalorder %s298, %s299
      %p308 = scmp.eq.s32.totalorder %s57, 0
      %p309 = por %p307, %p308
      %p310 = scmp.ne.s32.totalorder %s298, %s299
      %p311 = scmp.eq.s32.totalorder %s58, 1
      %p312 = por %p310, %p311
      %p314 = scmp.ne.s32.totalorder %s299, %s313
      %p315 = scmp.eq.s32.totalorder %s58, 0
      %p316 = por %p314, %p315
      %s318 = sadd.s32 %s317, 1
      %p321 = scmp.eq.s32.totalorder %s52, 1
      %p322 = scmp.ne.s32.totalorder %s317, %s319
      %p323 = scmp.eq.s32.totalorder %s52, 0
      %p324 = por %p322, %p323
      %p325 = scmp.ne.s32.totalorder %s317, %s319
      %p326 = scmp.eq.s32.totalorder %s57, 1
      %p327 = por %p325, %p326
      %p328 = scmp.ne.s32.totalorder %s319, %s320
      %p329 = scmp.eq.s32.totalorder %s57, 0
      %p330 = por %p328, %p329
      %p331 = scmp.ne.s32.totalorder %s319, %s320
      %p332 = scmp.eq.s32.totalorder %s58, 1
      %p333 = por %p331, %p332
      %p335 = scmp.ne.s32.totalorder %s320, %s334
      %p336 = scmp.eq.s32.totalorder %s58, 0
      %p337 = por %p335, %p336
      %s339 = sadd.s32 %s338, 1
      %p342 = scmp.eq.s32.totalorder %s52, 1
      %p343 = scmp.ne.s32.totalorder %s338, %s340
      %p344 = scmp.eq.s32.totalorder %s52, 0
      %p345 = por %p343, %p344
      %p346 = scmp.ne.s32.totalorder %s338, %s340
      %p347 = scmp.eq.s32.totalorder %s57, 1
      %p348 = por %p346, %p347
      %p349 = scmp.ne.s32.totalorder %s340, %s341
      %p350 = scmp.eq.s32.totalorder %s57, 0
      %p351 = por %p349, %p350
      %p352 = scmp.ne.s32.totalorder %s340, %s341
      %p353 = scmp.eq.s32.totalorder %s58, 1
      %p354 = por %p352, %p353
      %p356 = scmp.ne.s32.totalorder %s341, %s355
      %p357 = scmp.eq.s32.totalorder %s58, 0
      %p358 = por %p356, %p357
      %s360 = sadd.s32 %s359, 1
      %p363 = scmp.eq.s32.totalorder %s52, 1
      %p364 = scmp.ne.s32.totalorder %s359, %s361
      %p365 = scmp.eq.s32.totalorder %s52, 0
      %p366 = por %p364, %p365
      %p367 = scmp.ne.s32.totalorder %s359, %s361
      %p368 = scmp.eq.s32.totalorder %s57, 1
      %p369 = por %p367, %p368
      %p370 = scmp.ne.s32.totalorder %s361, %s362
      %p371 = scmp.eq.s32.totalorder %s57, 0
      %p372 = por %p370, %p371
      %p373 = scmp.ne.s32.totalorder %s361, %s362
      %p374 = scmp.eq.s32.totalorder %s58, 1
      %p375 = por %p373, %p374
      %p377 = scmp.ne.s32.totalorder %s362, %s376
      %p378 = scmp.eq.s32.totalorder %s58, 0
      %p379 = por %p377, %p378
      %s381 = sadd.s32 %s380, 1
      %p384 = scmp.eq.s32.totalorder %s52, 1
      %p385 = scmp.ne.s32.totalorder %s380, %s382
      %p386 = scmp.eq.s32.totalorder %s52, 0
      %p387 = por %p385, %p386
      %p388 = scmp.ne.s32.totalorder %s380, %s382
      %p389 = scmp.eq.s32.totalorder %s57, 1
      %p390 = por %p388, %p389
      %p391 = scmp.ne.s32.totalorder %s382, %s383
      %p392 = scmp.eq.s32.totalorder %s57, 0
      %p393 = por %p391, %p392
      %p394 = scmp.ne.s32.totalorder %s382, %s383
      %p395 = scmp.eq.s32.totalorder %s58, 1
      %p396 = por %p394, %p395
      %p398 = scmp.ne.s32.totalorder %s383, %s397
      %p399 = scmp.eq.s32.totalorder %s58, 0
      %p400 = por %p398, %p399
      %s402 = sadd.s32 %s401, 1
      %p405 = scmp.eq.s32.totalorder %s52, 1
      %p406 = scmp.ne.s32.totalorder %s401, %s403
      %p407 = scmp.eq.s32.totalorder %s52, 0
      %p408 = por %p406, %p407
      %p409 = scmp.ne.s32.totalorder %s401, %s403
      %p410 = scmp.eq.s32.totalorder %s57, 1
      %p411 = por %p409, %p410
      %p412 = scmp.ne.s32.totalorder %s403, %s404
      %p413 = scmp.eq.s32.totalorder %s57, 0
      %p414 = por %p412, %p413
      %p415 = scmp.ne.s32.totalorder %s403, %s404
      %p416 = scmp.eq.s32.totalorder %s58, 1
      %p417 = por %p415, %p416
      %p419 = scmp.ne.s32.totalorder %s404, %s418
      %p420 = scmp.eq.s32.totalorder %s58, 0
      %p421 = por %p419, %p420
      %s423 = sadd.s32 %s422, 1
      %p426 = scmp.eq.s32.totalorder %s52, 1
      %p427 = scmp.ne.s32.totalorder %s422, %s424
      %p428 = scmp.eq.s32.totalorder %s52, 0
      %p429 = por %p427, %p428
      %p430 = scmp.ne.s32.totalorder %s422, %s424
      %p431 = scmp.eq.s32.totalorder %s57, 1
      %p432 = por %p430, %p431
      %p433 = scmp.ne.s32.totalorder %s424, %s425
      %p434 = scmp.eq.s32.totalorder %s57, 0
      %p435 = por %p433, %p434
      %p436 = scmp.ne.s32.totalorder %s424, %s425
      %p437 = scmp.eq.s32.totalorder %s58, 1
      %p438 = por %p436, %p437
      %p440 = scmp.ne.s32.totalorder %s425, %s439
      %p441 = scmp.eq.s32.totalorder %s58, 0
      %p442 = por %p440, %p441
      %s444 = sadd.s32 %s443, 1
      %p447 = scmp.eq.s32.totalorder %s52, 1
      %p448 = scmp.ne.s32.totalorder %s443, %s445
      %p449 = scmp.eq.s32.totalorder %s52, 0
      %p450 = por %p448, %p449
      %p451 = scmp.ne.s32.totalorder %s443, %s445
      %p452 = scmp.eq.s32.totalorder %s57, 1
      %p453 = por %p451, %p452
      %p454 = scmp.ne.s32.totalorder %s445, %s446
      %p455 = scmp.eq.s32.totalorder %s57, 0
      %p456 = por %p454, %p455
      %p457 = scmp.ne.s32.totalorder %s445, %s446
      %p458 = scmp.eq.s32.totalorder %s58, 1
      %p459 = por %p457, %p458
      %p461 = scmp.ne.s32.totalorder %s446, %s460
      %p462 = scmp.eq.s32.totalorder %s58, 0
      %p463 = por %p461, %p462
      %s465 = sadd.s32 %s464, 1
      %p468 = scmp.eq.s32.totalorder %s52, 1
      %p469 = scmp.ne.s32.totalorder %s464, %s466
      %p470 = scmp.eq.s32.totalorder %s52, 0
      %p471 = por %p469, %p470
      %p472 = scmp.ne.s32.totalorder %s464, %s466
      %p473 = scmp.eq.s32.totalorder %s57, 1
      %p474 = por %p472, %p473
      %p475 = scmp.ne.s32.totalorder %s466, %s467
      %p476 = scmp.eq.s32.totalorder %s57, 0
      %p477 = por %p475, %p476
      %p478 = scmp.ne.s32.totalorder %s466, %s467
      %p479 = scmp.eq.s32.totalorder %s58, 1
      %p480 = por %p478, %p479
      %p482 = scmp.ne.s32.totalorder %s467, %s481
      %p483 = scmp.eq.s32.totalorder %s58, 0
      %p484 = por %p482, %p483
      %s486 = sadd.s32 %s485, 1
      %p489 = scmp.eq.s32.totalorder %s52, 1
      %p490 = scmp.ne.s32.totalorder %s485, %s487
      %p491 = scmp.eq.s32.totalorder %s52, 0
      %p492 = por %p490, %p491
      %p493 = scmp.ne.s32.totalorder %s485, %s487
      %p494 = scmp.eq.s32.totalorder %s57, 1
      %p495 = por %p493, %p494
      %p496 = scmp.ne.s32.totalorder %s487, %s488
      %p497 = scmp.eq.s32.totalorder %s57, 0
      %p498 = por %p496, %p497
      %p499 = scmp.ne.s32.totalorder %s487, %s488
      %p500 = scmp.eq.s32.totalorder %s58, 1
      %p501 = por %p499, %p500
      %p503 = scmp.ne.s32.totalorder %s488, %s502
      %p504 = scmp.eq.s32.totalorder %s58, 0
      %p505 = por %p503, %p504
      %s507 = sadd.s32 %s506, 1
      %p510 = scmp.eq.s32.totalorder %s52, 1
      %p511 = scmp.ne.s32.totalorder %s506, %s508
      %p512 = scmp.eq.s32.totalorder %s52, 0
      %p513 = por %p511, %p512
      %p514 = scmp.ne.s32.totalorder %s506, %s508
      %p515 = scmp.eq.s32.totalorder %s57, 1
      %p516 = por %p514, %p515
      %p517 = scmp.ne.s32.totalorder %s508, %s509
      %p518 = scmp.eq.s32.totalorder %s57, 0
      %p519 = por %p517, %p518
      %p520 = scmp.ne.s32.totalorder %s508, %s509
      %p521 = scmp.eq.s32.totalorder %s58, 1
      %p522 = por %p520, %p521
      %p524 = scmp.ne.s32.totalorder %s509, %s523
      %p525 = scmp.eq.s32.totalorder %s58, 0
      %p526 = por %p524, %p525
      %s528 = sadd.s32 %s527, 1
      %p531 = scmp.eq.s32.totalorder %s52, 1
      %p532 = scmp.ne.s32.totalorder %s527, %s529
      %p533 = scmp.eq.s32.totalorder %s52, 0
      %p534 = por %p532, %p533
      %p535 = scmp.ne.s32.totalorder %s527, %s529
      %p536 = scmp.eq.s32.totalorder %s57, 1
      %p537 = por %p535, %p536
      %p538 = scmp.ne.s32.totalorder %s529, %s530
      %p539 = scmp.eq.s32.totalorder %s57, 0
      %p540 = por %p538, %p539
      %p541 = scmp.ne.s32.totalorder %s529, %s530
      %p542 = scmp.eq.s32.totalorder %s58, 1
      %p543 = por %p541, %p542
      %p545 = scmp.ne.s32.totalorder %s530, %s544
      %p546 = scmp.eq.s32.totalorder %s58, 0
      %p547 = por %p545, %p546
      %s549 = sadd.s32 %s548, 1
      %p552 = scmp.eq.s32.totalorder %s52, 1
      %p553 = scmp.ne.s32.totalorder %s548, %s550
      %p554 = scmp.eq.s32.totalorder %s52, 0
      %p555 = por %p553, %p554
      %p556 = scmp.ne.s32.totalorder %s548, %s550
      %p557 = scmp.eq.s32.totalorder %s57, 1
      %p558 = por %p556, %p557
      %p559 = scmp.ne.s32.totalorder %s550, %s551
      %p560 = scmp.eq.s32.totalorder %s57, 0
      %p561 = por %p559, %p560
      %p562 = scmp.ne.s32.totalorder %s550, %s551
      %p563 = scmp.eq.s32.totalorder %s58, 1
      %p564 = por %p562, %p563
      %p566 = scmp.ne.s32.totalorder %s551, %s565
      %p567 = scmp.eq.s32.totalorder %s58, 0
      %p568 = por %p566, %p567
      %s570 = sadd.s32 %s569, 1
      %p573 = scmp.eq.s32.totalorder %s52, 1
      %p574 = scmp.ne.s32.totalorder %s569, %s571
      %p575 = scmp.eq.s32.totalorder %s52, 0
      %p576 = por %p574, %p575
      %p577 = scmp.ne.s32.totalorder %s569, %s571
      %p578 = scmp.eq.s32.totalorder %s57, 1
      %p579 = por %p577, %p578
      %p580 = scmp.ne.s32.totalorder %s571, %s572
      %p581 = scmp.eq.s32.totalorder %s57, 0
      %p582 = por %p580, %p581
      %p583 = scmp.ne.s32.totalorder %s571, %s572
      %p584 = scmp.eq.s32.totalorder %s58, 1
      %p585 = por %p583, %p584
      %p587 = scmp.ne.s32.totalorder %s572, %s586
      %p588 = scmp.eq.s32.totalorder %s58, 0
      %p589 = por %p587, %p588
      %s590 = ssub.s32 %s52, %s59
      %p591 = scmp.eq.s32.totalorder %s590, 0
      %s593 = sadd.s32 %s592, 1
      %s594 = scalar_select %p591, %s592, %s593
      %p597 = pneg %p591
      %p598 = scmp.eq.s32.totalorder %s52, 1
      %p599 = por %p597, %p598
      %p600 = scmp.ne.s32.totalorder %s592, %s595
      %p601 = scmp.eq.s32.totalorder %s52, 0
      %p602 = por %p600, %p601
      %p603 = scmp.ne.s32.totalorder %s592, %s595
      %p604 = scmp.eq.s32.totalorder %s57, 1
      %p605 = por %p603, %p604
      %p606 = scmp.ne.s32.totalorder %s595, %s596
      %p607 = scmp.eq.s32.totalorder %s57, 0
      %p608 = por %p606, %p607
      %p609 = scmp.ne.s32.totalorder %s595, %s596
      %p610 = scmp.eq.s32.totalorder %s58, 1
      %p611 = por %p609, %p610
      %p613 = scmp.ne.s32.totalorder %s596, %s612
      %p614 = scmp.eq.s32.totalorder %s58, 0
      %p615 = por %p613, %p614
      %s616 = ssub.s32 %s52, %s59
      %p617 = scmp.eq.s32.totalorder %s616, 0
      %s619 = sadd.s32 %s618, 1
      %s620 = scalar_select %p617, %s618, %s619
      %p623 = pneg %p617
      %p624 = scmp.eq.s32.totalorder %s52, 1
      %p625 = por %p623, %p624
      %p626 = scmp.ne.s32.totalorder %s618, %s621
      %p627 = scmp.eq.s32.totalorder %s52, 0
      %p628 = por %p626, %p627
      %p629 = scmp.ne.s32.totalorder %s618, %s621
      %p630 = scmp.eq.s32.totalorder %s57, 1
      %p631 = por %p629, %p630
      %p632 = scmp.ne.s32.totalorder %s621, %s622
      %p633 = scmp.eq.s32.totalorder %s57, 0
      %p634 = por %p632, %p633
      %p635 = scmp.ne.s32.totalorder %s621, %s622
      %p636 = scmp.eq.s32.totalorder %s58, 1
      %p637 = por %p635, %p636
      %p639 = scmp.ne.s32.totalorder %s622, %s638
      %p640 = scmp.eq.s32.totalorder %s58, 0
      %p641 = por %p639, %p640
      %p642 = scmp.le.s32.totalorder 1, %s52
      %p643 = scmp.lt.s32.totalorder %s52, 3
      %p644 = pnand %p642, %p643
      %p645 = pneg %p644
      // Predicated region
      $region9: #{tpu_custom_call.1} parent=5 // pred_check
        _
      $region10: #{tpu_custom_call.1} parent=5 // pred_check_branch
        %647 = sbr.rel (%p644) target = $region12
      $region11: #{tpu_custom_call.1} parent=5 // pred_region
        %s648 = ssub.s32 %s52, 1
        // Predicated region
        $region13: #{tpu_custom_call.1} parent=11 // pred_check
          %p649 = pneg %p99
        $region14: #{tpu_custom_call.1} parent=11 // pred_check_branch
          %651 = sbr.rel (%p649) target = $region16
        $region15: #{tpu_custom_call.1} parent=11 // pred_region
          %653 = vsyncadd [#allocation6], 0
          %s654 = sshll.u32 %s1, 4
          %s655 = int_to_ptr.hbm [resolvable:$true] %s654
          %s656 = sshll.u32 [#allocation5], 4
          %s657 = int_to_ptr.vmem [resolvable:$true] %s656
          %662 = dma.hbm_to_vmem [thread:$0]  %s655, 16384, %s657, [#allocation6], 512, 512, 32
        $region16: #{tpu_custom_call.1} parent=11 // pred_fallthru
          _
        // Predicated region
        $region17: #{tpu_custom_call.1} parent=11 // pred_check
          %p663 = pneg %p120
        $region18: #{tpu_custom_call.1} parent=11 // pred_check_branch
          %665 = sbr.rel (%p663) target = $region20
        $region19: #{tpu_custom_call.1} parent=11 // pred_region
          %667 = vsyncadd [#allocation6], 0
          %s669 = sshll.u32 %s2, 4
          %s670 = int_to_ptr.hbm [resolvable:$true] %s669
          %s671 = sshll.u32 [#allocation7], 4
          %s672 = int_to_ptr.vmem [resolvable:$true] %s671
          %674 = dma.hbm_to_vmem [thread:$0]  %s670, 128, %s672, [#allocation6]
        $region20: #{tpu_custom_call.1} parent=11 // pred_fallthru
          _
        // Predicated region
        $region21: #{tpu_custom_call.1} parent=11 // pred_check
          %p675 = pneg %p141
        $region22: #{tpu_custom_call.1} parent=11 // pred_check_branch
          %677 = sbr.rel (%p675) target = $region24
        $region23: #{tpu_custom_call.1} parent=11 // pred_region
          %679 = vsyncadd [#allocation9], 0
          %s680 = sshll.u32 %s3, 4
          %s681 = int_to_ptr.hbm [resolvable:$true] %s680
          %s682 = sshll.u32 [#allocation8], 4
          %s683 = int_to_ptr.vmem [resolvable:$true] %s682
          %688 = dma.hbm_to_vmem [thread:$0]  %s681, 32768, %s683, [#allocation9], 256, 256, 16
        $region24: #{tpu_custom_call.1} parent=11 // pred_fallthru
          _
        // Predicated region
        $region25: #{tpu_custom_call.1} parent=11 // pred_check
          %p689 = pneg %p162
        $region26: #{tpu_custom_call.1} parent=11 // pred_check_branch
          %691 = sbr.rel (%p689) target = $region28
        $region27: #{tpu_custom_call.1} parent=11 // pred_region
          %693 = vsyncadd [#allocation9], 0
          %s695 = sshll.u32 %s4, 4
          %s696 = int_to_ptr.hbm [resolvable:$true] %s695
          %s697 = sshll.u32 [#allocation10], 4
          %s698 = int_to_ptr.vmem [resolvable:$true] %s697
          %700 = dma.hbm_to_vmem [thread:$0]  %s696, 64, %s698, [#allocation9]
        $region28: #{tpu_custom_call.1} parent=11 // pred_fallthru
          _
        // Predicated region
        $region29: #{tpu_custom_call.1} parent=11 // pred_check
          %p701 = pneg %p183
        $region30: #{tpu_custom_call.1} parent=11 // pred_check_branch
          %703 = sbr.rel (%p701) target = $region32
        $region31: #{tpu_custom_call.1} parent=11 // pred_region
          %705 = vsyncadd [#allocation12], 0
          %s706 = sshll.u32 %s5, 4
          %s707 = int_to_ptr.hbm [resolvable:$true] %s706
          %s708 = sshll.u32 [#allocation11], 4
          %s709 = int_to_ptr.vmem [resolvable:$true] %s708
          %714 = dma.hbm_to_vmem [thread:$0]  %s707, 8192, %s709, [#allocation12], 128, 128, 8
        $region32: #{tpu_custom_call.1} parent=11 // pred_fallthru
          _
        // Predicated region
        $region33: #{tpu_custom_call.1} parent=11 // pred_check
          %p715 = pneg %p204
        $region34: #{tpu_custom_call.1} parent=11 // pred_check_branch
          %717 = sbr.rel (%p715) target = $region36
        $region35: #{tpu_custom_call.1} parent=11 // pred_region
          _
        $region36: #{tpu_custom_call.1} parent=11 // pred_fallthru
          _
        // Predicated region
        $region37: #{tpu_custom_call.1} parent=11 // pred_check
          %p718 = pneg %p225
        $region38: #{tpu_custom_call.1} parent=11 // pred_check_branch
          %720 = sbr.rel (%p718) target = $region40
        $region39: #{tpu_custom_call.1} parent=11 // pred_region
          %722 = vsyncadd [#allocation12], 0
          %s723 = sshll.u32 %s7, 4
          %s724 = int_to_ptr.hbm [resolvable:$true] %s723
          %s725 = sshll.u32 [#allocation13], 4
          %s726 = int_to_ptr.vmem [resolvable:$true] %s725
          %731 = dma.hbm_to_vmem [thread:$0]  %s724, 2048, %s726, [#allocation12], 64, 64, 4
        $region40: #{tpu_custom_call.1} parent=11 // pred_fallthru
          _
        // Predicated region
        $region41: #{tpu_custom_call.1} parent=11 // pred_check
          %p732 = pneg %p246
        $region42: #{tpu_custom_call.1} parent=11 // pred_check_branch
          %734 = sbr.rel (%p732) target = $region44
        $region43: #{tpu_custom_call.1} parent=11 // pred_region
          %736 = vsyncadd [#allocation15], 0
          %s738 = sshll.u32 %s8, 4
          %s739 = int_to_ptr.hbm [resolvable:$true] %s738
          %s740 = sshll.u32 [#allocation14], 4
          %s741 = int_to_ptr.vmem [resolvable:$true] %s740
          %743 = dma.hbm_to_vmem [thread:$0]  %s739, 16, %s741, [#allocation15]
        $region44: #{tpu_custom_call.1} parent=11 // pred_fallthru
          _
        // Predicated region
        $region45: #{tpu_custom_call.1} parent=11 // pred_check
          %p744 = pneg %p267
        $region46: #{tpu_custom_call.1} parent=11 // pred_check_branch
          %746 = sbr.rel (%p744) target = $region48
        $region47: #{tpu_custom_call.1} parent=11 // pred_region
          %748 = vsyncadd [#allocation15], 0
          %s749 = sshll.u32 %s9, 4
          %s750 = int_to_ptr.hbm [resolvable:$true] %s749
          %s751 = sshll.u32 [#allocation16], 4
          %s752 = int_to_ptr.vmem [resolvable:$true] %s751
          %757 = dma.hbm_to_vmem [thread:$0]  %s750, 1024, %s752, [#allocation15], 64, 64, 4
        $region48: #{tpu_custom_call.1} parent=11 // pred_fallthru
          _
        // Predicated region
        $region49: #{tpu_custom_call.1} parent=11 // pred_check
          %p758 = pneg %p288
        $region50: #{tpu_custom_call.1} parent=11 // pred_check_branch
          %760 = sbr.rel (%p758) target = $region52
        $region51: #{tpu_custom_call.1} parent=11 // pred_region
          %762 = vsyncadd [#allocation18], 0
          %s764 = sshll.u32 %s10, 4
          %s765 = int_to_ptr.hbm [resolvable:$true] %s764
          %s766 = sshll.u32 [#allocation17], 4
          %s767 = int_to_ptr.vmem [resolvable:$true] %s766
          %769 = dma.hbm_to_vmem [thread:$0]  %s765, 16, %s767, [#allocation18]
        $region52: #{tpu_custom_call.1} parent=11 // pred_fallthru
          _
        // Predicated region
        $region53: #{tpu_custom_call.1} parent=11 // pred_check
          %p770 = pneg %p309
        $region54: #{tpu_custom_call.1} parent=11 // pred_check_branch
          %772 = sbr.rel (%p770) target = $region56
        $region55: #{tpu_custom_call.1} parent=11 // pred_region
          %774 = vsyncadd [#allocation18], 0
          %s775 = sshll.u32 %s11, 4
          %s776 = int_to_ptr.hbm [resolvable:$true] %s775
          %s777 = sshll.u32 [#allocation19], 4
          %s778 = int_to_ptr.vmem [resolvable:$true] %s777
          %783 = dma.hbm_to_vmem [thread:$0]  %s776, 1024, %s778, [#allocation18], 64, 64, 4
        $region56: #{tpu_custom_call.1} parent=11 // pred_fallthru
          _
        // Predicated region
        $region57: #{tpu_custom_call.1} parent=11 // pred_check
          %p784 = pneg %p330
        $region58: #{tpu_custom_call.1} parent=11 // pred_check_branch
          %786 = sbr.rel (%p784) target = $region60
        $region59: #{tpu_custom_call.1} parent=11 // pred_region
          %788 = vsyncadd [#allocation21], 0
          %s790 = sshll.u32 %s12, 4
          %s791 = int_to_ptr.hbm [resolvable:$true] %s790
          %s792 = sshll.u32 [#allocation20], 4
          %s793 = int_to_ptr.vmem [resolvable:$true] %s792
          %795 = dma.hbm_to_vmem [thread:$0]  %s791, 16, %s793, [#allocation21]
        $region60: #{tpu_custom_call.1} parent=11 // pred_fallthru
          _
        // Predicated region
        $region61: #{tpu_custom_call.1} parent=11 // pred_check
          %p796 = pneg %p351
        $region62: #{tpu_custom_call.1} parent=11 // pred_check_branch
          %798 = sbr.rel (%p796) target = $region64
        $region63: #{tpu_custom_call.1} parent=11 // pred_region
          %800 = vsyncadd [#allocation21], 0
          %s801 = sshll.u32 %s13, 4
          %s802 = int_to_ptr.hbm [resolvable:$true] %s801
          %s803 = sshll.u32 [#allocation22], 4
          %s804 = int_to_ptr.vmem [resolvable:$true] %s803
          %809 = dma.hbm_to_vmem [thread:$0]  %s802, 1024, %s804, [#allocation21], 64, 64, 4
        $region64: #{tpu_custom_call.1} parent=11 // pred_fallthru
          _
        // Predicated region
        $region65: #{tpu_custom_call.1} parent=11 // pred_check
          %p810 = pneg %p372
        $region66: #{tpu_custom_call.1} parent=11 // pred_check_branch
          %812 = sbr.rel (%p810) target = $region68
        $region67: #{tpu_custom_call.1} parent=11 // pred_region
          %814 = vsyncadd [#allocation24], 0
          %s816 = sshll.u32 %s14, 4
          %s817 = int_to_ptr.hbm [resolvable:$true] %s816
          %s818 = sshll.u32 [#allocation23], 4
          %s819 = int_to_ptr.vmem [resolvable:$true] %s818
          %821 = dma.hbm_to_vmem [thread:$0]  %s817, 16, %s819, [#allocation24]
        $region68: #{tpu_custom_call.1} parent=11 // pred_fallthru
          _
        // Predicated region
        $region69: #{tpu_custom_call.1} parent=11 // pred_check
          %p822 = pneg %p393
        $region70: #{tpu_custom_call.1} parent=11 // pred_check_branch
          %824 = sbr.rel (%p822) target = $region72
        $region71: #{tpu_custom_call.1} parent=11 // pred_region
          %826 = vsyncadd [#allocation24], 0
          %s827 = sshll.u32 %s15, 4
          %s828 = int_to_ptr.hbm [resolvable:$true] %s827
          %s829 = sshll.u32 [#allocation25], 4
          %s830 = int_to_ptr.vmem [resolvable:$true] %s829
          %835 = dma.hbm_to_vmem [thread:$0]  %s828, 1024, %s830, [#allocation24], 64, 64, 4
        $region72: #{tpu_custom_call.1} parent=11 // pred_fallthru
          _
        // Predicated region
        $region73: #{tpu_custom_call.1} parent=11 // pred_check
          %p836 = pneg %p414
        $region74: #{tpu_custom_call.1} parent=11 // pred_check_branch
          %838 = sbr.rel (%p836) target = $region76
        $region75: #{tpu_custom_call.1} parent=11 // pred_region
          %840 = vsyncadd [#allocation27], 0
          %s842 = sshll.u32 %s16, 4
          %s843 = int_to_ptr.hbm [resolvable:$true] %s842
          %s844 = sshll.u32 [#allocation26], 4
          %s845 = int_to_ptr.vmem [resolvable:$true] %s844
          %847 = dma.hbm_to_vmem [thread:$0]  %s843, 16, %s845, [#allocation27]
        $region76: #{tpu_custom_call.1} parent=11 // pred_fallthru
          _
        // Predicated region
        $region77: #{tpu_custom_call.1} parent=11 // pred_check
          %p848 = pneg %p435
        $region78: #{tpu_custom_call.1} parent=11 // pred_check_branch
          %850 = sbr.rel (%p848) target = $region80
        $region79: #{tpu_custom_call.1} parent=11 // pred_region
          %852 = vsyncadd [#allocation27], 0
          %s853 = sshll.u32 %s17, 4
          %s854 = int_to_ptr.hbm [resolvable:$true] %s853
          %s855 = sshll.u32 [#allocation28], 4
          %s856 = int_to_ptr.vmem [resolvable:$true] %s855
          %861 = dma.hbm_to_vmem [thread:$0]  %s854, 2048, %s856, [#allocation27], 128, 128, 8
        $region80: #{tpu_custom_call.1} parent=11 // pred_fallthru
          _
        // Predicated region
        $region81: #{tpu_custom_call.1} parent=11 // pred_check
          %p862 = pneg %p456
        $region82: #{tpu_custom_call.1} parent=11 // pred_check_branch
          %864 = sbr.rel (%p862) target = $region84
        $region83: #{tpu_custom_call.1} parent=11 // pred_region
          _
        $region84: #{tpu_custom_call.1} parent=11 // pred_fallthru
          _
        // Predicated region
        $region85: #{tpu_custom_call.1} parent=11 // pred_check
          %p865 = pneg %p477
        $region86: #{tpu_custom_call.1} parent=11 // pred_check_branch
          %867 = sbr.rel (%p865) target = $region88
        $region87: #{tpu_custom_call.1} parent=11 // pred_region
          %869 = vsyncadd [#allocation30], 0
          %s870 = sshll.u32 %s19, 4
          %s871 = int_to_ptr.hbm [resolvable:$true] %s870
          %s872 = sshll.u32 [#allocation29], 4
          %s873 = int_to_ptr.vmem [resolvable:$true] %s872
          %878 = dma.hbm_to_vmem [thread:$0]  %s871, 8192, %s873, [#allocation30], 256, 256, 16
        $region88: #{tpu_custom_call.1} parent=11 // pred_fallthru
          _
        // Predicated region
        $region89: #{tpu_custom_call.1} parent=11 // pred_check
          %p879 = pneg %p498
        $region90: #{tpu_custom_call.1} parent=11 // pred_check_branch
          %881 = sbr.rel (%p879) target = $region92
        $region91: #{tpu_custom_call.1} parent=11 // pred_region
          _
        $region92: #{tpu_custom_call.1} parent=11 // pred_fallthru
          _
        // Predicated region
        $region93: #{tpu_custom_call.1} parent=11 // pred_check
          %p882 = pneg %p519
        $region94: #{tpu_custom_call.1} parent=11 // pred_check_branch
          %884 = sbr.rel (%p882) target = $region96
        $region95: #{tpu_custom_call.1} parent=11 // pred_region
          %886 = vsyncadd [#allocation30], 0
          %s887 = sshll.u32 %s21, 4
          %s888 = int_to_ptr.hbm [resolvable:$true] %s887
          %s889 = sshll.u32 [#allocation31], 4
          %s890 = int_to_ptr.vmem [resolvable:$true] %s889
          %895 = dma.hbm_to_vmem [thread:$0]  %s888, 32768, %s890, [#allocation30], 512, 512, 32
        $region96: #{tpu_custom_call.1} parent=11 // pred_fallthru
          _
        // Predicated region
        $region97: #{tpu_custom_call.1} parent=11 // pred_check
          %p896 = pneg %p540
        $region98: #{tpu_custom_call.1} parent=11 // pred_check_branch
          %898 = sbr.rel (%p896) target = $region100
        $region99: #{tpu_custom_call.1} parent=11 // pred_region
          _
        $region100: #{tpu_custom_call.1} parent=11 // pred_fallthru
          _
        // Predicated region
        $region101: #{tpu_custom_call.1} parent=11 // pred_check
          %p899 = pneg %p561
        $region102: #{tpu_custom_call.1} parent=11 // pred_check_branch
          %901 = sbr.rel (%p899) target = $region104
        $region103: #{tpu_custom_call.1} parent=11 // pred_region
          %903 = vsyncadd [#allocation33], 0
          %s904 = sshll.u32 %s23, 4
          %s905 = int_to_ptr.hbm [resolvable:$true] %s904
          %s906 = sshll.u32 [#allocation32], 4
          %s907 = int_to_ptr.vmem [resolvable:$true] %s906
          %912 = dma.hbm_to_vmem [thread:$0]  %s905, 16384, %s907, [#allocation33], 128, 128, 8
        $region104: #{tpu_custom_call.1} parent=11 // pred_fallthru
          _
        // Predicated region
        $region105: #{tpu_custom_call.1} parent=11 // pred_check
          %p913 = pneg %p582
        $region106: #{tpu_custom_call.1} parent=11 // pred_check_branch
          %915 = sbr.rel (%p913) target = $region108
        $region107: #{tpu_custom_call.1} parent=11 // pred_region
          _
        $region108: #{tpu_custom_call.1} parent=11 // pred_fallthru
          _
      $region12: #{tpu_custom_call.1} parent=5 // pred_fallthru
        _
      %p916 = scmp.lt.s32.totalorder %s52, 2
      // Predicated region
      $region109: #{tpu_custom_call.1} parent=5 // pred_check
        %p917 = pneg %p916
      $region110: #{tpu_custom_call.1} parent=5 // pred_check_branch
        %919 = sbr.rel (%p917) target = $region112
      $region111: #{tpu_custom_call.1} parent=5 // pred_region
        // Predicated region
        $region113: #{tpu_custom_call.1} parent=111 // pred_check
          %p920 = pneg %p72
        $region114: #{tpu_custom_call.1} parent=111 // pred_check_branch
          %922 = sbr.rel (%p920) target = $region116
        $region115: #{tpu_custom_call.1} parent=111 // pred_region
          %s923 = sand.u32 %s62, 1
          %s924 = scalar_lea.sflag [#allocation3], %s923
          %s925 = sand.u32 %s62, 1
          %s926 = smul.addr %s925, 16
          %s927 = scalar_lea.vmem [#allocation2], %s926
          %929 = vsyncadd %s924, 0
          %s930 = smul.addr %s52, 2
          %s931 = smul.addr %s930, 8
          %s932 = scalar_lea.hbm %s0, %s931
          %s934 = sshll.u32 %s932, 4
          %s935 = int_to_ptr.hbm [resolvable:$true] %s934
          %s936 = sshll.u32 %s927, 4
          %s937 = int_to_ptr.vmem [resolvable:$true] %s936
          %939 = dma.hbm_to_vmem [thread:$0]  %s935, 256, %s937, %s924
        $region116: #{tpu_custom_call.1} parent=111 // pred_fallthru
          _
      $region112: #{tpu_custom_call.1} parent=5 // pred_fallthru
        _
      %p940 = scmp.le.s32.totalorder 1, %s52
      %p941 = scmp.lt.s32.totalorder %s52, 3
      %p942 = pnand %p940, %p941
      %p943 = pneg %p942
      // Predicated region
      $region117: #{tpu_custom_call.1} parent=5 // pred_check
        _
      $region118: #{tpu_custom_call.1} parent=5 // pred_check_branch
        %945 = sbr.rel (%p942) target = $region120
      $region119: #{tpu_custom_call.1} parent=5 // pred_region
        %s946 = ssub.s32 %s52, 1
        %s947 = sand.u32 %s65, 1
        %s948 = scalar_lea.sflag [#allocation3], %s947
        %s949 = sand.u32 %s65, 1
        %s950 = smul.addr %s949, 16
        %s951 = scalar_lea.vmem [#allocation2], %s950
        // Predicated region
        $region121: #{tpu_custom_call.1} parent=119 // pred_check
          %p952 = pneg %p78
        $region122: #{tpu_custom_call.1} parent=119 // pred_check_branch
          %954 = sbr.rel (%p952) target = $region124
        $region123: #{tpu_custom_call.1} parent=119 // pred_region
          %956 = dma.done %s948, 256
        $region124: #{tpu_custom_call.1} parent=119 // pred_fallthru
          _
        // Predicated region
        $region125: #{tpu_custom_call.1} parent=119 // pred_check
          %p957 = pneg %p99
        $region126: #{tpu_custom_call.1} parent=119 // pred_check_branch
          %959 = sbr.rel (%p957) target = $region128
        $region127: #{tpu_custom_call.1} parent=119 // pred_region
          %961 = dma.done [#allocation6], 16384
        $region128: #{tpu_custom_call.1} parent=119 // pred_fallthru
          _
        // Predicated region
        $region129: #{tpu_custom_call.1} parent=119 // pred_check
          %p962 = pneg %p120
        $region130: #{tpu_custom_call.1} parent=119 // pred_check_branch
          %964 = sbr.rel (%p962) target = $region132
        $region131: #{tpu_custom_call.1} parent=119 // pred_region
          %966 = dma.done [#allocation6], 128
        $region132: #{tpu_custom_call.1} parent=119 // pred_fallthru
          _
        // Predicated region
        $region133: #{tpu_custom_call.1} parent=119 // pred_check
          %p967 = pneg %p141
        $region134: #{tpu_custom_call.1} parent=119 // pred_check_branch
          %969 = sbr.rel (%p967) target = $region136
        $region135: #{tpu_custom_call.1} parent=119 // pred_region
          %971 = dma.done [#allocation9], 32768
        $region136: #{tpu_custom_call.1} parent=119 // pred_fallthru
          _
        // Predicated region
        $region137: #{tpu_custom_call.1} parent=119 // pred_check
          %p972 = pneg %p162
        $region138: #{tpu_custom_call.1} parent=119 // pred_check_branch
          %974 = sbr.rel (%p972) target = $region140
        $region139: #{tpu_custom_call.1} parent=119 // pred_region
          %976 = dma.done [#allocation9], 64
        $region140: #{tpu_custom_call.1} parent=119 // pred_fallthru
          _
        // Predicated region
        $region141: #{tpu_custom_call.1} parent=119 // pred_check
          %p977 = pneg %p183
        $region142: #{tpu_custom_call.1} parent=119 // pred_check_branch
          %979 = sbr.rel (%p977) target = $region144
        $region143: #{tpu_custom_call.1} parent=119 // pred_region
          %981 = dma.done [#allocation12], 8192
        $region144: #{tpu_custom_call.1} parent=119 // pred_fallthru
          _
        // Predicated region
        $region145: #{tpu_custom_call.1} parent=119 // pred_check
          %p982 = pneg %p225
        $region146: #{tpu_custom_call.1} parent=119 // pred_check_branch
          %984 = sbr.rel (%p982) target = $region148
        $region147: #{tpu_custom_call.1} parent=119 // pred_region
          %986 = dma.done [#allocation12], 2048
        $region148: #{tpu_custom_call.1} parent=119 // pred_fallthru
          _
        // Predicated region
        $region149: #{tpu_custom_call.1} parent=119 // pred_check
          %p987 = pneg %p246
        $region150: #{tpu_custom_call.1} parent=119 // pred_check_branch
          %989 = sbr.rel (%p987) target = $region152
        $region151: #{tpu_custom_call.1} parent=119 // pred_region
          %991 = dma.done [#allocation15], 16
        $region152: #{tpu_custom_call.1} parent=119 // pred_fallthru
          _
        // Predicated region
        $region153: #{tpu_custom_call.1} parent=119 // pred_check
          %p992 = pneg %p267
        $region154: #{tpu_custom_call.1} parent=119 // pred_check_branch
          %994 = sbr.rel (%p992) target = $region156
        $region155: #{tpu_custom_call.1} parent=119 // pred_region
          %996 = dma.done [#allocation15], 1024
        $region156: #{tpu_custom_call.1} parent=119 // pred_fallthru
          _
        // Predicated region
        $region157: #{tpu_custom_call.1} parent=119 // pred_check
          %p997 = pneg %p288
        $region158: #{tpu_custom_call.1} parent=119 // pred_check_branch
          %999 = sbr.rel (%p997) target = $region160
        $region159: #{tpu_custom_call.1} parent=119 // pred_region
          %1001 = dma.done [#allocation18], 16
        $region160: #{tpu_custom_call.1} parent=119 // pred_fallthru
          _
        // Predicated region
        $region161: #{tpu_custom_call.1} parent=119 // pred_check
          %p1002 = pneg %p309
        $region162: #{tpu_custom_call.1} parent=119 // pred_check_branch
          %1004 = sbr.rel (%p1002) target = $region164
        $region163: #{tpu_custom_call.1} parent=119 // pred_region
          %1006 = dma.done [#allocation18], 1024
        $region164: #{tpu_custom_call.1} parent=119 // pred_fallthru
          _
        // Predicated region
        $region165: #{tpu_custom_call.1} parent=119 // pred_check
          %p1007 = pneg %p330
        $region166: #{tpu_custom_call.1} parent=119 // pred_check_branch
          %1009 = sbr.rel (%p1007) target = $region168
        $region167: #{tpu_custom_call.1} parent=119 // pred_region
          %1011 = dma.done [#allocation21], 16
        $region168: #{tpu_custom_call.1} parent=119 // pred_fallthru
          _
        // Predicated region
        $region169: #{tpu_custom_call.1} parent=119 // pred_check
          %p1012 = pneg %p351
        $region170: #{tpu_custom_call.1} parent=119 // pred_check_branch
          %1014 = sbr.rel (%p1012) target = $region172
        $region171: #{tpu_custom_call.1} parent=119 // pred_region
          %1016 = dma.done [#allocation21], 1024
        $region172: #{tpu_custom_call.1} parent=119 // pred_fallthru
          _
        // Predicated region
        $region173: #{tpu_custom_call.1} parent=119 // pred_check
          %p1017 = pneg %p372
        $region174: #{tpu_custom_call.1} parent=119 // pred_check_branch
          %1019 = sbr.rel (%p1017) target = $region176
        $region175: #{tpu_custom_call.1} parent=119 // pred_region
          %1021 = dma.done [#allocation24], 16
        $region176: #{tpu_custom_call.1} parent=119 // pred_fallthru
          _
        // Predicated region
        $region177: #{tpu_custom_call.1} parent=119 // pred_check
          %p1022 = pneg %p393
        $region178: #{tpu_custom_call.1} parent=119 // pred_check_branch
          %1024 = sbr.rel (%p1022) target = $region180
        $region179: #{tpu_custom_call.1} parent=119 // pred_region
          %1026 = dma.done [#allocation24], 1024
        $region180: #{tpu_custom_call.1} parent=119 // pred_fallthru
          _
        // Predicated region
        $region181: #{tpu_custom_call.1} parent=119 // pred_check
          %p1027 = pneg %p414
        $region182: #{tpu_custom_call.1} parent=119 // pred_check_branch
          %1029 = sbr.rel (%p1027) target = $region184
        $region183: #{tpu_custom_call.1} parent=119 // pred_region
          %1031 = dma.done [#allocation27], 16
        $region184: #{tpu_custom_call.1} parent=119 // pred_fallthru
          _
        // Predicated region
        $region185: #{tpu_custom_call.1} parent=119 // pred_check
          %p1032 = pneg %p435
        $region186: #{tpu_custom_call.1} parent=119 // pred_check_branch
          %1034 = sbr.rel (%p1032) target = $region188
        $region187: #{tpu_custom_call.1} parent=119 // pred_region
          %1036 = dma.done [#allocation27], 2048
        $region188: #{tpu_custom_call.1} parent=119 // pred_fallthru
          _
        // Predicated region
        $region189: #{tpu_custom_call.1} parent=119 // pred_check
          %p1037 = pneg %p477
        $region190: #{tpu_custom_call.1} parent=119 // pred_check_branch
          %1039 = sbr.rel (%p1037) target = $region192
        $region191: #{tpu_custom_call.1} parent=119 // pred_region
          %1041 = dma.done [#allocation30], 8192
        $region192: #{tpu_custom_call.1} parent=119 // pred_fallthru
          _
        // Predicated region
        $region193: #{tpu_custom_call.1} parent=119 // pred_check
          %p1042 = pneg %p519
        $region194: #{tpu_custom_call.1} parent=119 // pred_check_branch
          %1044 = sbr.rel (%p1042) target = $region196
        $region195: #{tpu_custom_call.1} parent=119 // pred_region
          %1046 = dma.done [#allocation30], 32768
        $region196: #{tpu_custom_call.1} parent=119 // pred_fallthru
          _
        // Predicated region
        $region197: #{tpu_custom_call.1} parent=119 // pred_check
          %p1047 = pneg %p561
        $region198: #{tpu_custom_call.1} parent=119 // pred_check_branch
          %1049 = sbr.rel (%p1047) target = $region200
        $region199: #{tpu_custom_call.1} parent=119 // pred_region
          %1051 = dma.done [#allocation33], 16384
        $region200: #{tpu_custom_call.1} parent=119 // pred_fallthru
          _
        %s1052 = sand.u32 %s65, 1
        %s1053 = scalar_lea.sflag [#allocation3], %s1052
        %s1054 = sand.u32 %s65, 1
        %s1055 = smul.addr %s1054, 16
        %s1056 = scalar_lea.vmem [#allocation2], %s1055
        %p1057 = pneg %p78
        %p1058 = pneg %p75
        %p1059 = pneg %p99
        %p1060 = pneg %p96
        %p1061 = pneg %p120
        %p1062 = pneg %p117
        %p1063 = pneg %p141
        %p1064 = pneg %p138
        %p1065 = pneg %p162
        %p1066 = pneg %p159
        %p1067 = pneg %p183
        %p1068 = pneg %p180
        %p1069 = pneg %p204
        %p1070 = pneg %p201
        %p1071 = pneg %p225
        %p1072 = pneg %p222
        %p1073 = pneg %p246
        %p1074 = pneg %p243
        %p1075 = pneg %p267
        %p1076 = pneg %p264
        %p1077 = pneg %p288
        %p1078 = pneg %p285
        %p1079 = pneg %p309
        %p1080 = pneg %p306
        %p1081 = pneg %p330
        %p1082 = pneg %p327
        %p1083 = pneg %p351
        %p1084 = pneg %p348
        %p1085 = pneg %p372
        %p1086 = pneg %p369
        %p1087 = pneg %p393
        %p1088 = pneg %p390
        %p1089 = pneg %p414
        %p1090 = pneg %p411
        %p1091 = pneg %p435
        %p1092 = pneg %p432
        %p1093 = pneg %p456
        %p1094 = pneg %p453
        %p1095 = pneg %p477
        %p1096 = pneg %p474
        %p1097 = pneg %p498
        %p1098 = pneg %p495
        %p1099 = pneg %p519
        %p1100 = pneg %p516
        %p1101 = pneg %p540
        %p1102 = pneg %p537
        %p1103 = pneg %p561
        %p1104 = pneg %p558
        %p1105 = pneg %p582
        %p1106 = pneg %p579
        %p1107 = pneg %p608
        %p1108 = pneg %p605
        %s1109 = sand.u32 %s595, 1
        %s1110 = scalar_lea.sflag [#allocation4], %s1109
        %s1111 = sand.u32 %s595, 1
        %s1112 = smul.addr %s1111, 16
        %s1113 = scalar_lea.vmem [#allocation34], %s1112
        %p1114 = pneg %p634
        %p1115 = pneg %p631
        %s1116 = sand.u32 %s621, 1
        %s1117 = scalar_lea.sflag [#allocation36], %s1116
        %s1118 = sand.u32 %s621, 1
        %s1119 = smul.addr %s1118, 8
        %s1120 = scalar_lea.vmem [#allocation35], %s1119
        %v1121 = vld [vmem:[%s951] sm:$0xff]
        %v1122 = vld [vmem:[%s951 + $0x8] sm:$0xff]
        %v1123 = vld [vmem:[#allocation5] sm:$0xff]
        %v1124 = vld [vmem:[#allocation5 + $0x8] sm:$0xff]
        %v1125 = vld [vmem:[#allocation5 + $0x10] sm:$0xff]
        %v1126 = vld [vmem:[#allocation5 + $0x18] sm:$0xff]
        %v1127 = vld [vmem:[#allocation5 + $0x20] sm:$0xff]
        %v1128 = vld [vmem:[#allocation5 + $0x28] sm:$0xff]
        %v1129 = vld [vmem:[#allocation5 + $0x30] sm:$0xff]
        %v1130 = vld [vmem:[#allocation5 + $0x38] sm:$0xff]
        %v1131 = vld [vmem:[#allocation5 + $0x40] sm:$0xff]
        %v1132 = vld [vmem:[#allocation5 + $0x48] sm:$0xff]
        %v1133 = vld [vmem:[#allocation5 + $0x50] sm:$0xff]
        %v1134 = vld [vmem:[#allocation5 + $0x58] sm:$0xff]
        %v1135 = vld [vmem:[#allocation5 + $0x60] sm:$0xff]
        %v1136 = vld [vmem:[#allocation5 + $0x68] sm:$0xff]
        %v1137 = vld [vmem:[#allocation5 + $0x70] sm:$0xff]
        %v1138 = vld [vmem:[#allocation5 + $0x78] sm:$0xff]
        %v1139 = vld [vmem:[#allocation5 + $0x80] sm:$0xff]
        %v1140 = vld [vmem:[#allocation5 + $0x88] sm:$0xff]
        %v1141 = vld [vmem:[#allocation5 + $0x90] sm:$0xff]
        %v1142 = vld [vmem:[#allocation5 + $0x98] sm:$0xff]
        %v1143 = vld [vmem:[#allocation5 + $0xa0] sm:$0xff]
        %v1144 = vld [vmem:[#allocation5 + $0xa8] sm:$0xff]
        %v1145 = vld [vmem:[#allocation5 + $0xb0] sm:$0xff]
        %v1146 = vld [vmem:[#allocation5 + $0xb8] sm:$0xff]
        %v1147 = vld [vmem:[#allocation5 + $0xc0] sm:$0xff]
        %v1148 = vld [vmem:[#allocation5 + $0xc8] sm:$0xff]
        %v1149 = vld [vmem:[#allocation5 + $0xd0] sm:$0xff]
        %v1150 = vld [vmem:[#allocation5 + $0xd8] sm:$0xff]
        %v1151 = vld [vmem:[#allocation5 + $0xe0] sm:$0xff]
        %v1152 = vld [vmem:[#allocation5 + $0xe8] sm:$0xff]
        %v1153 = vld [vmem:[#allocation5 + $0xf0] sm:$0xff]
        %v1154 = vld [vmem:[#allocation5 + $0xf8] sm:$0xff]
        %v1155 = vld [vmem:[#allocation5 + $0x100] sm:$0xff]
        %v1156 = vld [vmem:[#allocation5 + $0x108] sm:$0xff]
        %v1157 = vld [vmem:[#allocation5 + $0x110] sm:$0xff]
        %v1158 = vld [vmem:[#allocation5 + $0x118] sm:$0xff]
        %v1159 = vld [vmem:[#allocation5 + $0x120] sm:$0xff]
        %v1160 = vld [vmem:[#allocation5 + $0x128] sm:$0xff]
        %v1161 = vld [vmem:[#allocation5 + $0x130] sm:$0xff]
        %v1162 = vld [vmem:[#allocation5 + $0x138] sm:$0xff]
        %v1163 = vld [vmem:[#allocation5 + $0x140] sm:$0xff]
        %v1164 = vld [vmem:[#allocation5 + $0x148] sm:$0xff]
        %v1165 = vld [vmem:[#allocation5 + $0x150] sm:$0xff]
        %v1166 = vld [vmem:[#allocation5 + $0x158] sm:$0xff]
        %v1167 = vld [vmem:[#allocation5 + $0x160] sm:$0xff]
        %v1168 = vld [vmem:[#allocation5 + $0x168] sm:$0xff]
        %v1169 = vld [vmem:[#allocation5 + $0x170] sm:$0xff]
        %v1170 = vld [vmem:[#allocation5 + $0x178] sm:$0xff]
        %v1171 = vld [vmem:[#allocation5 + $0x180] sm:$0xff]
        %v1172 = vld [vmem:[#allocation5 + $0x188] sm:$0xff]
        %v1173 = vld [vmem:[#allocation5 + $0x190] sm:$0xff]
        %v1174 = vld [vmem:[#allocation5 + $0x198] sm:$0xff]
        %v1175 = vld [vmem:[#allocation5 + $0x1a0] sm:$0xff]
        %v1176 = vld [vmem:[#allocation5 + $0x1a8] sm:$0xff]
        %v1177 = vld [vmem:[#allocation5 + $0x1b0] sm:$0xff]
        %v1178 = vld [vmem:[#allocation5 + $0x1b8] sm:$0xff]
        %v1179 = vld [vmem:[#allocation5 + $0x1c0] sm:$0xff]
        %v1180 = vld [vmem:[#allocation5 + $0x1c8] sm:$0xff]
        %v1181 = vld [vmem:[#allocation5 + $0x1d0] sm:$0xff]
        %v1182 = vld [vmem:[#allocation5 + $0x1d8] sm:$0xff]
        %v1183 = vld [vmem:[#allocation5 + $0x1e0] sm:$0xff]
        %v1184 = vld [vmem:[#allocation5 + $0x1e8] sm:$0xff]
        %v1185 = vld [vmem:[#allocation5 + $0x1f0] sm:$0xff]
        %v1186 = vld [vmem:[#allocation5 + $0x1f8] sm:$0xff]
        %v1187 = vld [vmem:[#allocation5 + $0x200] sm:$0xff]
        %v1188 = vld [vmem:[#allocation5 + $0x208] sm:$0xff]
        %v1189 = vld [vmem:[#allocation5 + $0x210] sm:$0xff]
        %v1190 = vld [vmem:[#allocation5 + $0x218] sm:$0xff]
        %v1191 = vld [vmem:[#allocation5 + $0x220] sm:$0xff]
        %v1192 = vld [vmem:[#allocation5 + $0x228] sm:$0xff]
        %v1193 = vld [vmem:[#allocation5 + $0x230] sm:$0xff]
        %v1194 = vld [vmem:[#allocation5 + $0x238] sm:$0xff]
        %v1195 = vld [vmem:[#allocation5 + $0x240] sm:$0xff]
        %v1196 = vld [vmem:[#allocation5 + $0x248] sm:$0xff]
        %v1197 = vld [vmem:[#allocation5 + $0x250] sm:$0xff]
        %v1198 = vld [vmem:[#allocation5 + $0x258] sm:$0xff]
        %v1199 = vld [vmem:[#allocation5 + $0x260] sm:$0xff]
        %v1200 = vld [vmem:[#allocation5 + $0x268] sm:$0xff]
        %v1201 = vld [vmem:[#allocation5 + $0x270] sm:$0xff]
        %v1202 = vld [vmem:[#allocation5 + $0x278] sm:$0xff]
        %v1203 = vld [vmem:[#allocation5 + $0x280] sm:$0xff]
        %v1204 = vld [vmem:[#allocation5 + $0x288] sm:$0xff]
        %v1205 = vld [vmem:[#allocation5 + $0x290] sm:$0xff]
        %v1206 = vld [vmem:[#allocation5 + $0x298] sm:$0xff]
        %v1207 = vld [vmem:[#allocation5 + $0x2a0] sm:$0xff]
        %v1208 = vld [vmem:[#allocation5 + $0x2a8] sm:$0xff]
        %v1209 = vld [vmem:[#allocation5 + $0x2b0] sm:$0xff]
        %v1210 = vld [vmem:[#allocation5 + $0x2b8] sm:$0xff]
        %v1211 = vld [vmem:[#allocation5 + $0x2c0] sm:$0xff]
        %v1212 = vld [vmem:[#allocation5 + $0x2c8] sm:$0xff]
        %v1213 = vld [vmem:[#allocation5 + $0x2d0] sm:$0xff]
        %v1214 = vld [vmem:[#allocation5 + $0x2d8] sm:$0xff]
        %v1215 = vld [vmem:[#allocation5 + $0x2e0] sm:$0xff]
        %v1216 = vld [vmem:[#allocation5 + $0x2e8] sm:$0xff]
        %v1217 = vld [vmem:[#allocation5 + $0x2f0] sm:$0xff]
        %v1218 = vld [vmem:[#allocation5 + $0x2f8] sm:$0xff]
        %v1219 = vld [vmem:[#allocation5 + $0x300] sm:$0xff]
        %v1220 = vld [vmem:[#allocation5 + $0x308] sm:$0xff]
        %v1221 = vld [vmem:[#allocation5 + $0x310] sm:$0xff]
        %v1222 = vld [vmem:[#allocation5 + $0x318] sm:$0xff]
        %v1223 = vld [vmem:[#allocation5 + $0x320] sm:$0xff]
        %v1224 = vld [vmem:[#allocation5 + $0x328] sm:$0xff]
        %v1225 = vld [vmem:[#allocation5 + $0x330] sm:$0xff]
        %v1226 = vld [vmem:[#allocation5 + $0x338] sm:$0xff]
        %v1227 = vld [vmem:[#allocation5 + $0x340] sm:$0xff]
        %v1228 = vld [vmem:[#allocation5 + $0x348] sm:$0xff]
        %v1229 = vld [vmem:[#allocation5 + $0x350] sm:$0xff]
        %v1230 = vld [vmem:[#allocation5 + $0x358] sm:$0xff]
        %v1231 = vld [vmem:[#allocation5 + $0x360] sm:$0xff]
        %v1232 = vld [vmem:[#allocation5 + $0x368] sm:$0xff]
        %v1233 = vld [vmem:[#allocation5 + $0x370] sm:$0xff]
        %v1234 = vld [vmem:[#allocation5 + $0x378] sm:$0xff]
        %v1235 = vld [vmem:[#allocation5 + $0x380] sm:$0xff]
        %v1236 = vld [vmem:[#allocation5 + $0x388] sm:$0xff]
        %v1237 = vld [vmem:[#allocation5 + $0x390] sm:$0xff]
        %v1238 = vld [vmem:[#allocation5 + $0x398] sm:$0xff]
        %v1239 = vld [vmem:[#allocation5 + $0x3a0] sm:$0xff]
        %v1240 = vld [vmem:[#allocation5 + $0x3a8] sm:$0xff]
        %v1241 = vld [vmem:[#allocation5 + $0x3b0] sm:$0xff]
        %v1242 = vld [vmem:[#allocation5 + $0x3b8] sm:$0xff]
        %v1243 = vld [vmem:[#allocation5 + $0x3c0] sm:$0xff]
        %v1244 = vld [vmem:[#allocation5 + $0x3c8] sm:$0xff]
        %v1245 = vld [vmem:[#allocation5 + $0x3d0] sm:$0xff]
        %v1246 = vld [vmem:[#allocation5 + $0x3d8] sm:$0xff]
        %v1247 = vld [vmem:[#allocation5 + $0x3e0] sm:$0xff]
        %v1248 = vld [vmem:[#allocation5 + $0x3e8] sm:$0xff]
        %v1249 = vld [vmem:[#allocation5 + $0x3f0] sm:$0xff]
        %v1250 = vld [vmem:[#allocation5 + $0x3f8] sm:$0xff]
        %v1251 = vld [vmem:[#allocation7] sm:$0xff]
        %v1252 = vpack.c.bf16 %v1121, %v1121
        %v1253 = vpack.c.bf16 %v1122, %v1122
        %v1255 = vperm.slane %v1251, 0
        %v1256 = vperm.slane %v1251, 1
        %v1257 = vperm.slane %v1251, 2
        %v1258 = vperm.slane %v1251, 3
        %v1259 = vperm.slane %v1251, 4
        %v1260 = vperm.slane %v1251, 5
        %v1261 = vperm.slane %v1251, 6
        %v1262 = vperm.slane %v1251, 7
        %v1399 = vunpack.c.l.b16 %v1123
        %v1400 = vunpack.c.h.b16 %v1123
        %v1401 = vunpack.c.l.b16 %v1124
        %v1402 = vunpack.c.h.b16 %v1124
        %v1403 = vunpack.c.l.b16 %v1125
        %v1404 = vunpack.c.h.b16 %v1125
        %v1405 = vunpack.c.l.b16 %v1126
        %v1406 = vunpack.c.h.b16 %v1126
        %v1407 = vunpack.c.l.b16 %v1127
        %v1408 = vunpack.c.h.b16 %v1127
        %v1409 = vunpack.c.l.b16 %v1128
        %v1410 = vunpack.c.h.b16 %v1128
        %v1411 = vunpack.c.l.b16 %v1129
        %v1412 = vunpack.c.h.b16 %v1129
        %v1413 = vunpack.c.l.b16 %v1130
        %v1414 = vunpack.c.h.b16 %v1130
        %v1415 = vunpack.c.l.b16 %v1131
        %v1416 = vunpack.c.h.b16 %v1131
        %v1417 = vunpack.c.l.b16 %v1132
        %v1418 = vunpack.c.h.b16 %v1132
        %v1419 = vunpack.c.l.b16 %v1133
        %v1420 = vunpack.c.h.b16 %v1133
        %v1421 = vunpack.c.l.b16 %v1134
        %v1422 = vunpack.c.h.b16 %v1134
        %v1423 = vunpack.c.l.b16 %v1135
        %v1424 = vunpack.c.h.b16 %v1135
        %v1425 = vunpack.c.l.b16 %v1136
        %v1426 = vunpack.c.h.b16 %v1136
        %v1427 = vunpack.c.l.b16 %v1137
        %v1428 = vunpack.c.h.b16 %v1137
        %v1429 = vunpack.c.l.b16 %v1138
        %v1430 = vunpack.c.h.b16 %v1138
        %v1431 = vunpack.c.l.b16 %v1139
        %v1432 = vunpack.c.h.b16 %v1139
        %v1433 = vunpack.c.l.b16 %v1140
        %v1434 = vunpack.c.h.b16 %v1140
        %v1435 = vunpack.c.l.b16 %v1141
        %v1436 = vunpack.c.h.b16 %v1141
        %v1437 = vunpack.c.l.b16 %v1142
        %v1438 = vunpack.c.h.b16 %v1142
        %v1439 = vunpack.c.l.b16 %v1143
        %v1440 = vunpack.c.h.b16 %v1143
        %v1441 = vunpack.c.l.b16 %v1144
        %v1442 = vunpack.c.h.b16 %v1144
        %v1443 = vunpack.c.l.b16 %v1145
        %v1444 = vunpack.c.h.b16 %v1145
        %v1445 = vunpack.c.l.b16 %v1146
        %v1446 = vunpack.c.h.b16 %v1146
        %v1447 = vunpack.c.l.b16 %v1147
        %v1448 = vunpack.c.h.b16 %v1147
        %v1449 = vunpack.c.l.b16 %v1148
        %v1450 = vunpack.c.h.b16 %v1148
        %v1451 = vunpack.c.l.b16 %v1149
        %v1452 = vunpack.c.h.b16 %v1149
        %v1453 = vunpack.c.l.b16 %v1150
        %v1454 = vunpack.c.h.b16 %v1150
        %v1455 = vunpack.c.l.b16 %v1151
        %v1456 = vunpack.c.h.b16 %v1151
        %v1457 = vunpack.c.l.b16 %v1152
        %v1458 = vunpack.c.h.b16 %v1152
        %v1459 = vunpack.c.l.b16 %v1153
        %v1460 = vunpack.c.h.b16 %v1153
        %v1461 = vunpack.c.l.b16 %v1154
        %v1462 = vunpack.c.h.b16 %v1154
        %v1463 = vunpack.c.l.b16 %v1155
        %v1464 = vunpack.c.h.b16 %v1155
        %v1465 = vunpack.c.l.b16 %v1156
        %v1466 = vunpack.c.h.b16 %v1156
        %v1467 = vunpack.c.l.b16 %v1157
        %v1468 = vunpack.c.h.b16 %v1157
        %v1469 = vunpack.c.l.b16 %v1158
        %v1470 = vunpack.c.h.b16 %v1158
        %v1471 = vunpack.c.l.b16 %v1159
        %v1472 = vunpack.c.h.b16 %v1159
        %v1473 = vunpack.c.l.b16 %v1160
        %v1474 = vunpack.c.h.b16 %v1160
        %v1475 = vunpack.c.l.b16 %v1161
        %v1476 = vunpack.c.h.b16 %v1161
        %v1477 = vunpack.c.l.b16 %v1162
        %v1478 = vunpack.c.h.b16 %v1162
        %v1479 = vunpack.c.l.b16 %v1163
        %v1480 = vunpack.c.h.b16 %v1163
        %v1481 = vunpack.c.l.b16 %v1164
        %v1482 = vunpack.c.h.b16 %v1164
        %v1483 = vunpack.c.l.b16 %v1165
        %v1484 = vunpack.c.h.b16 %v1165
        %v1485 = vunpack.c.l.b16 %v1166
        %v1486 = vunpack.c.h.b16 %v1166
        %v1487 = vunpack.c.l.b16 %v1167
        %v1488 = vunpack.c.h.b16 %v1167
        %v1489 = vunpack.c.l.b16 %v1168
        %v1490 = vunpack.c.h.b16 %v1168
        %v1491 = vunpack.c.l.b16 %v1169
        %v1492 = vunpack.c.h.b16 %v1169
        %v1493 = vunpack.c.l.b16 %v1170
        %v1494 = vunpack.c.h.b16 %v1170
        %v1495 = vunpack.c.l.b16 %v1171
        %v1496 = vunpack.c.h.b16 %v1171
        %v1497 = vunpack.c.l.b16 %v1172
        %v1498 = vunpack.c.h.b16 %v1172
        %v1499 = vunpack.c.l.b16 %v1173
        %v1500 = vunpack.c.h.b16 %v1173
        %v1501 = vunpack.c.l.b16 %v1174
        %v1502 = vunpack.c.h.b16 %v1174
        %v1503 = vunpack.c.l.b16 %v1175
        %v1504 = vunpack.c.h.b16 %v1175
        %v1505 = vunpack.c.l.b16 %v1176
        %v1506 = vunpack.c.h.b16 %v1176
        %v1507 = vunpack.c.l.b16 %v1177
        %v1508 = vunpack.c.h.b16 %v1177
        %v1509 = vunpack.c.l.b16 %v1178
        %v1510 = vunpack.c.h.b16 %v1178
        %v1511 = vunpack.c.l.b16 %v1179
        %v1512 = vunpack.c.h.b16 %v1179
        %v1513 = vunpack.c.l.b16 %v1180
        %v1514 = vunpack.c.h.b16 %v1180
        %v1515 = vunpack.c.l.b16 %v1181
        %v1516 = vunpack.c.h.b16 %v1181
        %v1517 = vunpack.c.l.b16 %v1182
        %v1518 = vunpack.c.h.b16 %v1182
        %v1519 = vunpack.c.l.b16 %v1183
        %v1520 = vunpack.c.h.b16 %v1183
        %v1521 = vunpack.c.l.b16 %v1184
        %v1522 = vunpack.c.h.b16 %v1184
        %v1523 = vunpack.c.l.b16 %v1185
        %v1524 = vunpack.c.h.b16 %v1185
        %v1525 = vunpack.c.l.b16 %v1186
        %v1526 = vunpack.c.h.b16 %v1186
        %v1527 = vunpack.c.l.b16 %v1187
        %v1528 = vunpack.c.h.b16 %v1187
        %v1529 = vunpack.c.l.b16 %v1188
        %v1530 = vunpack.c.h.b16 %v1188
        %v1531 = vunpack.c.l.b16 %v1189
        %v1532 = vunpack.c.h.b16 %v1189
        %v1533 = vunpack.c.l.b16 %v1190
        %v1534 = vunpack.c.h.b16 %v1190
        %v1535 = vunpack.c.l.b16 %v1191
        %v1536 = vunpack.c.h.b16 %v1191
        %v1537 = vunpack.c.l.b16 %v1192
        %v1538 = vunpack.c.h.b16 %v1192
        %v1539 = vunpack.c.l.b16 %v1193
        %v1540 = vunpack.c.h.b16 %v1193
        %v1541 = vunpack.c.l.b16 %v1194
        %v1542 = vunpack.c.h.b16 %v1194
        %v1543 = vunpack.c.l.b16 %v1195
        %v1544 = vunpack.c.h.b16 %v1195
        %v1545 = vunpack.c.l.b16 %v1196
        %v1546 = vunpack.c.h.b16 %v1196
        %v1547 = vunpack.c.l.b16 %v1197
        %v1548 = vunpack.c.h.b16 %v1197
        %v1549 = vunpack.c.l.b16 %v1198
        %v1550 = vunpack.c.h.b16 %v1198
        %v1551 = vunpack.c.l.b16 %v1199
        %v1552 = vunpack.c.h.b16 %v1199
        %v1553 = vunpack.c.l.b16 %v1200
        %v1554 = vunpack.c.h.b16 %v1200
        %v1555 = vunpack.c.l.b16 %v1201
        %v1556 = vunpack.c.h.b16 %v1201
        %v1557 = vunpack.c.l.b16 %v1202
        %v1558 = vunpack.c.h.b16 %v1202
        %v1559 = vunpack.c.l.b16 %v1203
        %v1560 = vunpack.c.h.b16 %v1203
        %v1561 = vunpack.c.l.b16 %v1204
        %v1562 = vunpack.c.h.b16 %v1204
        %v1563 = vunpack.c.l.b16 %v1205
        %v1564 = vunpack.c.h.b16 %v1205
        %v1565 = vunpack.c.l.b16 %v1206
        %v1566 = vunpack.c.h.b16 %v1206
        %v1567 = vunpack.c.l.b16 %v1207
        %v1568 = vunpack.c.h.b16 %v1207
        %v1569 = vunpack.c.l.b16 %v1208
        %v1570 = vunpack.c.h.b16 %v1208
        %v1571 = vunpack.c.l.b16 %v1209
        %v1572 = vunpack.c.h.b16 %v1209
        %v1573 = vunpack.c.l.b16 %v1210
        %v1574 = vunpack.c.h.b16 %v1210
        %v1575 = vunpack.c.l.b16 %v1211
        %v1576 = vunpack.c.h.b16 %v1211
        %v1577 = vunpack.c.l.b16 %v1212
        %v1578 = vunpack.c.h.b16 %v1212
        %v1579 = vunpack.c.l.b16 %v1213
        %v1580 = vunpack.c.h.b16 %v1213
        %v1581 = vunpack.c.l.b16 %v1214
        %v1582 = vunpack.c.h.b16 %v1214
        %v1583 = vunpack.c.l.b16 %v1215
        %v1584 = vunpack.c.h.b16 %v1215
        %v1585 = vunpack.c.l.b16 %v1216
        %v1586 = vunpack.c.h.b16 %v1216
        %v1587 = vunpack.c.l.b16 %v1217
        %v1588 = vunpack.c.h.b16 %v1217
        %v1589 = vunpack.c.l.b16 %v1218
        %v1590 = vunpack.c.h.b16 %v1218
        %v1591 = vunpack.c.l.b16 %v1219
        %v1592 = vunpack.c.h.b16 %v1219
        %v1593 = vunpack.c.l.b16 %v1220
        %v1594 = vunpack.c.h.b16 %v1220
        %v1595 = vunpack.c.l.b16 %v1221
        %v1596 = vunpack.c.h.b16 %v1221
        %v1597 = vunpack.c.l.b16 %v1222
        %v1598 = vunpack.c.h.b16 %v1222
        %v1599 = vunpack.c.l.b16 %v1223
        %v1600 = vunpack.c.h.b16 %v1223
        %v1601 = vunpack.c.l.b16 %v1224
        %v1602 = vunpack.c.h.b16 %v1224
        %v1603 = vunpack.c.l.b16 %v1225
        %v1604 = vunpack.c.h.b16 %v1225
        %v1605 = vunpack.c.l.b16 %v1226
        %v1606 = vunpack.c.h.b16 %v1226
        %v1607 = vunpack.c.l.b16 %v1227
        %v1608 = vunpack.c.h.b16 %v1227
        %v1609 = vunpack.c.l.b16 %v1228
        %v1610 = vunpack.c.h.b16 %v1228
        %v1611 = vunpack.c.l.b16 %v1229
        %v1612 = vunpack.c.h.b16 %v1229
        %v1613 = vunpack.c.l.b16 %v1230
        %v1614 = vunpack.c.h.b16 %v1230
        %v1615 = vunpack.c.l.b16 %v1231
        %v1616 = vunpack.c.h.b16 %v1231
        %v1617 = vunpack.c.l.b16 %v1232
        %v1618 = vunpack.c.h.b16 %v1232
        %v1619 = vunpack.c.l.b16 %v1233
        %v1620 = vunpack.c.h.b16 %v1233
        %v1621 = vunpack.c.l.b16 %v1234
        %v1622 = vunpack.c.h.b16 %v1234
        %v1623 = vunpack.c.l.b16 %v1235
        %v1624 = vunpack.c.h.b16 %v1235
        %v1625 = vunpack.c.l.b16 %v1236
        %v1626 = vunpack.c.h.b16 %v1236
        %v1627 = vunpack.c.l.b16 %v1237
        %v1628 = vunpack.c.h.b16 %v1237
        %v1629 = vunpack.c.l.b16 %v1238
        %v1630 = vunpack.c.h.b16 %v1238
        %v1631 = vunpack.c.l.b16 %v1239
        %v1632 = vunpack.c.h.b16 %v1239
        %v1633 = vunpack.c.l.b16 %v1240
        %v1634 = vunpack.c.h.b16 %v1240
        %v1635 = vunpack.c.l.b16 %v1241
        %v1636 = vunpack.c.h.b16 %v1241
        %v1637 = vunpack.c.l.b16 %v1242
        %v1638 = vunpack.c.h.b16 %v1242
        %v1639 = vunpack.c.l.b16 %v1243
        %v1640 = vunpack.c.h.b16 %v1243
        %v1641 = vunpack.c.l.b16 %v1244
        %v1642 = vunpack.c.h.b16 %v1244
        %v1643 = vunpack.c.l.b16 %v1245
        %v1644 = vunpack.c.h.b16 %v1245
        %v1645 = vunpack.c.l.b16 %v1246
        %v1646 = vunpack.c.h.b16 %v1246
        %v1647 = vunpack.c.l.b16 %v1247
        %v1648 = vunpack.c.h.b16 %v1247
        %v1649 = vunpack.c.l.b16 %v1248
        %v1650 = vunpack.c.h.b16 %v1248
        %v1651 = vunpack.c.l.b16 %v1249
        %v1652 = vunpack.c.h.b16 %v1249
        %v1653 = vunpack.c.l.b16 %v1250
        %v1654 = vunpack.c.h.b16 %v1250
        %v1655 = vpack.c.b16 %v1407, %v1399
        %v1656 = vpack.c.b16 %v1408, %v1400
        %v1657 = vpack.c.b16 %v1409, %v1401
        %v1658 = vpack.c.b16 %v1410, %v1402
        %v1659 = vpack.c.b16 %v1411, %v1403
        %v1660 = vpack.c.b16 %v1412, %v1404
        %v1661 = vpack.c.b16 %v1413, %v1405
        %v1662 = vpack.c.b16 %v1414, %v1406
        %v1663 = vpack.c.b16 %v1423, %v1415
        %v1664 = vpack.c.b16 %v1424, %v1416
        %v1665 = vpack.c.b16 %v1425, %v1417
        %v1666 = vpack.c.b16 %v1426, %v1418
        %v1667 = vpack.c.b16 %v1427, %v1419
        %v1668 = vpack.c.b16 %v1428, %v1420
        %v1669 = vpack.c.b16 %v1429, %v1421
        %v1670 = vpack.c.b16 %v1430, %v1422
        %v1671 = vpack.c.b16 %v1439, %v1431
        %v1672 = vpack.c.b16 %v1440, %v1432
        %v1673 = vpack.c.b16 %v1441, %v1433
        %v1674 = vpack.c.b16 %v1442, %v1434
        %v1675 = vpack.c.b16 %v1443, %v1435
        %v1676 = vpack.c.b16 %v1444, %v1436
        %v1677 = vpack.c.b16 %v1445, %v1437
        %v1678 = vpack.c.b16 %v1446, %v1438
        %v1679 = vpack.c.b16 %v1455, %v1447
        %v1680 = vpack.c.b16 %v1456, %v1448
        %v1681 = vpack.c.b16 %v1457, %v1449
        %v1682 = vpack.c.b16 %v1458, %v1450
        %v1683 = vpack.c.b16 %v1459, %v1451
        %v1684 = vpack.c.b16 %v1460, %v1452
        %v1685 = vpack.c.b16 %v1461, %v1453
        %v1686 = vpack.c.b16 %v1462, %v1454
        %v1687 = vpack.c.b16 %v1471, %v1463
        %v1688 = vpack.c.b16 %v1472, %v1464
        %v1689 = vpack.c.b16 %v1473, %v1465
        %v1690 = vpack.c.b16 %v1474, %v1466
        %v1691 = vpack.c.b16 %v1475, %v1467
        %v1692 = vpack.c.b16 %v1476, %v1468
        %v1693 = vpack.c.b16 %v1477, %v1469
        %v1694 = vpack.c.b16 %v1478, %v1470
        %v1695 = vpack.c.b16 %v1487, %v1479
        %v1696 = vpack.c.b16 %v1488, %v1480
        %v1697 = vpack.c.b16 %v1489, %v1481
        %v1698 = vpack.c.b16 %v1490, %v1482
        %v1699 = vpack.c.b16 %v1491, %v1483
        %v1700 = vpack.c.b16 %v1492, %v1484
        %v1701 = vpack.c.b16 %v1493, %v1485
        %v1702 = vpack.c.b16 %v1494, %v1486
        %v1703 = vpack.c.b16 %v1503, %v1495
        %v1704 = vpack.c.b16 %v1504, %v1496
        %v1705 = vpack.c.b16 %v1505, %v1497
        %v1706 = vpack.c.b16 %v1506, %v1498
        %v1707 = vpack.c.b16 %v1507, %v1499
        %v1708 = vpack.c.b16 %v1508, %v1500
        %v1709 = vpack.c.b16 %v1509, %v1501
        %v1710 = vpack.c.b16 %v1510, %v1502
        %v1711 = vpack.c.b16 %v1519, %v1511
        %v1712 = vpack.c.b16 %v1520, %v1512
        %v1713 = vpack.c.b16 %v1521, %v1513
        %v1714 = vpack.c.b16 %v1522, %v1514
        %v1715 = vpack.c.b16 %v1523, %v1515
        %v1716 = vpack.c.b16 %v1524, %v1516
        %v1717 = vpack.c.b16 %v1525, %v1517
        %v1718 = vpack.c.b16 %v1526, %v1518
        %v1719 = vpack.c.b16 %v1535, %v1527
        %v1720 = vpack.c.b16 %v1536, %v1528
        %v1721 = vpack.c.b16 %v1537, %v1529
        %v1722 = vpack.c.b16 %v1538, %v1530
        %v1723 = vpack.c.b16 %v1539, %v1531
        %v1724 = vpack.c.b16 %v1540, %v1532
        %v1725 = vpack.c.b16 %v1541, %v1533
        %v1726 = vpack.c.b16 %v1542, %v1534
        %v1727 = vpack.c.b16 %v1551, %v1543
        %v1728 = vpack.c.b16 %v1552, %v1544
        %v1729 = vpack.c.b16 %v1553, %v1545
        %v1730 = vpack.c.b16 %v1554, %v1546
        %v1731 = vpack.c.b16 %v1555, %v1547
        %v1732 = vpack.c.b16 %v1556, %v1548
        %v1733 = vpack.c.b16 %v1557, %v1549
        %v1734 = vpack.c.b16 %v1558, %v1550
        %v1735 = vpack.c.b16 %v1567, %v1559
        %v1736 = vpack.c.b16 %v1568, %v1560
        %v1737 = vpack.c.b16 %v1569, %v1561
        %v1738 = vpack.c.b16 %v1570, %v1562
        %v1739 = vpack.c.b16 %v1571, %v1563
        %v1740 = vpack.c.b16 %v1572, %v1564
        %v1741 = vpack.c.b16 %v1573, %v1565
        %v1742 = vpack.c.b16 %v1574, %v1566
        %v1743 = vpack.c.b16 %v1583, %v1575
        %v1744 = vpack.c.b16 %v1584, %v1576
        %v1745 = vpack.c.b16 %v1585, %v1577
        %v1746 = vpack.c.b16 %v1586, %v1578
        %v1747 = vpack.c.b16 %v1587, %v1579
        %v1748 = vpack.c.b16 %v1588, %v1580
        %v1749 = vpack.c.b16 %v1589, %v1581
        %v1750 = vpack.c.b16 %v1590, %v1582
        %v1751 = vpack.c.b16 %v1599, %v1591
        %v1752 = vpack.c.b16 %v1600, %v1592
        %v1753 = vpack.c.b16 %v1601, %v1593
        %v1754 = vpack.c.b16 %v1602, %v1594
        %v1755 = vpack.c.b16 %v1603, %v1595
        %v1756 = vpack.c.b16 %v1604, %v1596
        %v1757 = vpack.c.b16 %v1605, %v1597
        %v1758 = vpack.c.b16 %v1606, %v1598
        %v1759 = vpack.c.b16 %v1615, %v1607
        %v1760 = vpack.c.b16 %v1616, %v1608
        %v1761 = vpack.c.b16 %v1617, %v1609
        %v1762 = vpack.c.b16 %v1618, %v1610
        %v1763 = vpack.c.b16 %v1619, %v1611
        %v1764 = vpack.c.b16 %v1620, %v1612
        %v1765 = vpack.c.b16 %v1621, %v1613
        %v1766 = vpack.c.b16 %v1622, %v1614
        %v1767 = vpack.c.b16 %v1631, %v1623
        %v1768 = vpack.c.b16 %v1632, %v1624
        %v1769 = vpack.c.b16 %v1633, %v1625
        %v1770 = vpack.c.b16 %v1634, %v1626
        %v1771 = vpack.c.b16 %v1635, %v1627
        %v1772 = vpack.c.b16 %v1636, %v1628
        %v1773 = vpack.c.b16 %v1637, %v1629
        %v1774 = vpack.c.b16 %v1638, %v1630
        %v1775 = vpack.c.b16 %v1647, %v1639
        %v1776 = vpack.c.b16 %v1648, %v1640
        %v1777 = vpack.c.b16 %v1649, %v1641
        %v1778 = vpack.c.b16 %v1650, %v1642
        %v1779 = vpack.c.b16 %v1651, %v1643
        %v1780 = vpack.c.b16 %v1652, %v1644
        %v1781 = vpack.c.b16 %v1653, %v1645
        %v1782 = vpack.c.b16 %v1654, %v1646
        %1911 = vmatpush.bf16.msra.mxu0 %v1711
        %1912 = vmatpush.bf16.msra.mxu0 %v1703
        %1913 = vmatpush.bf16.msra.mxu0 %v1695
        %1914 = vmatpush.bf16.msra.mxu0 %v1687
        %1915 = vmatpush.bf16.msra.mxu0 %v1679
        %1916 = vmatpush.bf16.msra.mxu0 %v1671
        %1917 = vmatpush.bf16.msra.mxu0 %v1663
        %1918 = vmatpush.bf16.msra.mxu0 %v1655
        %1919 = vmatmul.bf16.gmra.mxu0 %v1252
        %v1920 = vpop.f32.mrf.mxu0
        %v1921 = vadd.f32 %v1255, %v1920
        %v1922 = vpop.f32.mrf.mxu0
        %1923 = vdwg.mxu0
        %1924 = vmatpush.bf16.msra.mxu0 %v1775
        %1925 = vmatpush.bf16.msra.mxu0 %v1767
        %1926 = vmatpush.bf16.msra.mxu0 %v1759
        %1927 = vmatpush.bf16.msra.mxu0 %v1751
        %1928 = vmatpush.bf16.msra.mxu0 %v1743
        %1929 = vmatpush.bf16.msra.mxu0 %v1735
        %1930 = vmatpush.bf16.msra.mxu0 %v1727
        %1931 = vmatpush.bf16.msra.mxu0 %v1719
        %1932 = vmatmul.bf16.gmra.mxu0 %v1253
        %v1933 = vpop.f32.mrf.mxu0
        %v1934 = vadd.f32 %v1921, %v1933
        %v1935 = vpop.f32.mrf.mxu0
        %1936 = vdwg.mxu0
        %1937 = vmatpush.bf16.msra.mxu0 %v1712
        %1938 = vmatpush.bf16.msra.mxu0 %v1704
        %1939 = vmatpush.bf16.msra.mxu0 %v1696
        %1940 = vmatpush.bf16.msra.mxu0 %v1688
        %1941 = vmatpush.bf16.msra.mxu0 %v1680
        %1942 = vmatpush.bf16.msra.mxu0 %v1672
        %1943 = vmatpush.bf16.msra.mxu0 %v1664
        %1944 = vmatpush.bf16.msra.mxu0 %v1656
        %1945 = vmatmul.bf16.gmra.mxu0 %v1252
        %v1946 = vpop.f32.mrf.mxu0
        %v1947 = vadd.f32 %v1256, %v1946
        %v1948 = vpop.f32.mrf.mxu0
        %1949 = vdwg.mxu0
        %1950 = vmatpush.bf16.msra.mxu0 %v1776
        %1951 = vmatpush.bf16.msra.mxu0 %v1768
        %1952 = vmatpush.bf16.msra.mxu0 %v1760
        %1953 = vmatpush.bf16.msra.mxu0 %v1752
        %1954 = vmatpush.bf16.msra.mxu0 %v1744
        %1955 = vmatpush.bf16.msra.mxu0 %v1736
        %1956 = vmatpush.bf16.msra.mxu0 %v1728
        %1957 = vmatpush.bf16.msra.mxu0 %v1720
        %1958 = vmatmul.bf16.gmra.mxu0 %v1253
        %v1959 = vpop.f32.mrf.mxu0
        %v1960 = vadd.f32 %v1947, %v1959
        %v1961 = vpop.f32.mrf.mxu0
        %1962 = vdwg.mxu0
        %1963 = vmatpush.bf16.msra.mxu0 %v1713
        %1964 = vmatpush.bf16.msra.mxu0 %v1705
        %1965 = vmatpush.bf16.msra.mxu0 %v1697
        %1966 = vmatpush.bf16.msra.mxu0 %v1689
        %1967 = vmatpush.bf16.msra.mxu0 %v1681
        %1968 = vmatpush.bf16.msra.mxu0 %v1673
        %1969 = vmatpush.bf16.msra.mxu0 %v1665
        %1970 = vmatpush.bf16.msra.mxu0 %v1657
        %1971 = vmatmul.bf16.gmra.mxu0 %v1252
        %v1972 = vpop.f32.mrf.mxu0
        %v1973 = vadd.f32 %v1257, %v1972
        %v1974 = vpop.f32.mrf.mxu0
        %1975 = vdwg.mxu0
        %1976 = vmatpush.bf16.msra.mxu0 %v1777
        %1977 = vmatpush.bf16.msra.mxu0 %v1769
        %1978 = vmatpush.bf16.msra.mxu0 %v1761
        %1979 = vmatpush.bf16.msra.mxu0 %v1753
        %1980 = vmatpush.bf16.msra.mxu0 %v1745
        %1981 = vmatpush.bf16.msra.mxu0 %v1737
        %1982 = vmatpush.bf16.msra.mxu0 %v1729
        %1983 = vmatpush.bf16.msra.mxu0 %v1721
        %1984 = vmatmul.bf16.gmra.mxu0 %v1253
        %v1985 = vpop.f32.mrf.mxu0
        %v1986 = vadd.f32 %v1973, %v1985
        %v1987 = vpop.f32.mrf.mxu0
        %1988 = vdwg.mxu0
        %1989 = vmatpush.bf16.msra.mxu0 %v1714
        %1990 = vmatpush.bf16.msra.mxu0 %v1706
        %1991 = vmatpush.bf16.msra.mxu0 %v1698
        %1992 = vmatpush.bf16.msra.mxu0 %v1690
        %1993 = vmatpush.bf16.msra.mxu0 %v1682
        %1994 = vmatpush.bf16.msra.mxu0 %v1674
        %1995 = vmatpush.bf16.msra.mxu0 %v1666
        %1996 = vmatpush.bf16.msra.mxu0 %v1658
        %1997 = vmatmul.bf16.gmra.mxu0 %v1252
        %v1998 = vpop.f32.mrf.mxu0
        %v1999 = vadd.f32 %v1258, %v1998
        %v2000 = vpop.f32.mrf.mxu0
        %2001 = vdwg.mxu0
        %2002 = vmatpush.bf16.msra.mxu0 %v1778
        %2003 = vmatpush.bf16.msra.mxu0 %v1770
        %2004 = vmatpush.bf16.msra.mxu0 %v1762
        %2005 = vmatpush.bf16.msra.mxu0 %v1754
        %2006 = vmatpush.bf16.msra.mxu0 %v1746
        %2007 = vmatpush.bf16.msra.mxu0 %v1738
        %2008 = vmatpush.bf16.msra.mxu0 %v1730
        %2009 = vmatpush.bf16.msra.mxu0 %v1722
        %2010 = vmatmul.bf16.gmra.mxu0 %v1253
        %v2011 = vpop.f32.mrf.mxu0
        %v2012 = vadd.f32 %v1999, %v2011
        %v2013 = vpop.f32.mrf.mxu0
        %2014 = vdwg.mxu0
        %2015 = vmatpush.bf16.msra.mxu0 %v1715
        %2016 = vmatpush.bf16.msra.mxu0 %v1707
        %2017 = vmatpush.bf16.msra.mxu0 %v1699
        %2018 = vmatpush.bf16.msra.mxu0 %v1691
        %2019 = vmatpush.bf16.msra.mxu0 %v1683
        %2020 = vmatpush.bf16.msra.mxu0 %v1675
        %2021 = vmatpush.bf16.msra.mxu0 %v1667
        %2022 = vmatpush.bf16.msra.mxu0 %v1659
        %2023 = vmatmul.bf16.gmra.mxu0 %v1252
        %v2024 = vpop.f32.mrf.mxu0
        %v2025 = vadd.f32 %v1259, %v2024
        %v2026 = vpop.f32.mrf.mxu0
        %2027 = vdwg.mxu0
        %2028 = vmatpush.bf16.msra.mxu0 %v1779
        %2029 = vmatpush.bf16.msra.mxu0 %v1771
        %2030 = vmatpush.bf16.msra.mxu0 %v1763
        %2031 = vmatpush.bf16.msra.mxu0 %v1755
        %2032 = vmatpush.bf16.msra.mxu0 %v1747
        %2033 = vmatpush.bf16.msra.mxu0 %v1739
        %2034 = vmatpush.bf16.msra.mxu0 %v1731
        %2035 = vmatpush.bf16.msra.mxu0 %v1723
        %2036 = vmatmul.bf16.gmra.mxu0 %v1253
        %v2037 = vpop.f32.mrf.mxu0
        %v2038 = vadd.f32 %v2025, %v2037
        %v2039 = vpop.f32.mrf.mxu0
        %2040 = vdwg.mxu0
        %2041 = vmatpush.bf16.msra.mxu0 %v1716
        %2042 = vmatpush.bf16.msra.mxu0 %v1708
        %2043 = vmatpush.bf16.msra.mxu0 %v1700
        %2044 = vmatpush.bf16.msra.mxu0 %v1692
        %2045 = vmatpush.bf16.msra.mxu0 %v1684
        %2046 = vmatpush.bf16.msra.mxu0 %v1676
        %2047 = vmatpush.bf16.msra.mxu0 %v1668
        %2048 = vmatpush.bf16.msra.mxu0 %v1660
        %2049 = vmatmul.bf16.gmra.mxu0 %v1252
        %v2050 = vpop.f32.mrf.mxu0
        %v2051 = vadd.f32 %v1260, %v2050
        %v2052 = vpop.f32.mrf.mxu0
        %2053 = vdwg.mxu0
        %2054 = vmatpush.bf16.msra.mxu0 %v1780
        %2055 = vmatpush.bf16.msra.mxu0 %v1772
        %2056 = vmatpush.bf16.msra.mxu0 %v1764
        %2057 = vmatpush.bf16.msra.mxu0 %v1756
        %2058 = vmatpush.bf16.msra.mxu0 %v1748
        %2059 = vmatpush.bf16.msra.mxu0 %v1740
        %2060 = vmatpush.bf16.msra.mxu0 %v1732
        %2061 = vmatpush.bf16.msra.mxu0 %v1724
        %2062 = vmatmul.bf16.gmra.mxu0 %v1253
        %v2063 = vpop.f32.mrf.mxu0
        %v2064 = vadd.f32 %v2051, %v2063
        %v2065 = vpop.f32.mrf.mxu0
        %2066 = vdwg.mxu0
        %2067 = vmatpush.bf16.msra.mxu0 %v1717
        %2068 = vmatpush.bf16.msra.mxu0 %v1709
        %2069 = vmatpush.bf16.msra.mxu0 %v1701
        %2070 = vmatpush.bf16.msra.mxu0 %v1693
        %2071 = vmatpush.bf16.msra.mxu0 %v1685
        %2072 = vmatpush.bf16.msra.mxu0 %v1677
        %2073 = vmatpush.bf16.msra.mxu0 %v1669
        %2074 = vmatpush.bf16.msra.mxu0 %v1661
        %2075 = vmatmul.bf16.gmra.mxu0 %v1252
        %v2076 = vpop.f32.mrf.mxu0
        %v2077 = vadd.f32 %v1261, %v2076
        %v2078 = vpop.f32.mrf.mxu0
        %2079 = vdwg.mxu0
        %2080 = vmatpush.bf16.msra.mxu0 %v1781
        %2081 = vmatpush.bf16.msra.mxu0 %v1773
        %2082 = vmatpush.bf16.msra.mxu0 %v1765
        %2083 = vmatpush.bf16.msra.mxu0 %v1757
        %2084 = vmatpush.bf16.msra.mxu0 %v1749
        %2085 = vmatpush.bf16.msra.mxu0 %v1741
        %2086 = vmatpush.bf16.msra.mxu0 %v1733
        %2087 = vmatpush.bf16.msra.mxu0 %v1725
        %2088 = vmatmul.bf16.gmra.mxu0 %v1253
        %v2089 = vpop.f32.mrf.mxu0
        %v2090 = vadd.f32 %v2077, %v2089
        %v2091 = vpop.f32.mrf.mxu0
        %2092 = vdwg.mxu0
        %2093 = vmatpush.bf16.msra.mxu0 %v1718
        %2094 = vmatpush.bf16.msra.mxu0 %v1710
        %2095 = vmatpush.bf16.msra.mxu0 %v1702
        %2096 = vmatpush.bf16.msra.mxu0 %v1694
        %2097 = vmatpush.bf16.msra.mxu0 %v1686
        %2098 = vmatpush.bf16.msra.mxu0 %v1678
        %2099 = vmatpush.bf16.msra.mxu0 %v1670
        %2100 = vmatpush.bf16.msra.mxu0 %v1662
        %2101 = vmatmul.bf16.gmra.mxu0 %v1252
        %v2102 = vpop.f32.mrf.mxu0
        %v2103 = vadd.f32 %v1262, %v2102
        %v2104 = vpop.f32.mrf.mxu0
        %2105 = vdwg.mxu0
        %2106 = vmatpush.bf16.msra.mxu0 %v1782
        %2107 = vmatpush.bf16.msra.mxu0 %v1774
        %2108 = vmatpush.bf16.msra.mxu0 %v1766
        %2109 = vmatpush.bf16.msra.mxu0 %v1758
        %2110 = vmatpush.bf16.msra.mxu0 %v1750
        %2111 = vmatpush.bf16.msra.mxu0 %v1742
        %2112 = vmatpush.bf16.msra.mxu0 %v1734
        %2113 = vmatpush.bf16.msra.mxu0 %v1726
        %2114 = vmatmul.bf16.gmra.mxu0 %v1253
        %v2115 = vpop.f32.mrf.mxu0
        %v2116 = vadd.f32 %v2103, %v2115
        %v2117 = vpop.f32.mrf.mxu0
        %2118 = vdwg.mxu0
        %vm2119 = vcmp.ge.f32.partialorder %v1934, 0.0
        %vm2120 = vcmp.ge.f32.partialorder %v1960, 0.0
        %vm2121 = vcmp.ge.f32.partialorder %v1986, 0.0
        %vm2122 = vcmp.ge.f32.partialorder %v2012, 0.0
        %vm2123 = vcmp.ge.f32.partialorder %v2038, 0.0
        %vm2124 = vcmp.ge.f32.partialorder %v2064, 0.0
        %vm2125 = vcmp.ge.f32.partialorder %v2090, 0.0
        %vm2126 = vcmp.ge.f32.partialorder %v2116, 0.0
        %v2127 = vmul.f32 %v1934, 0.01
        %v2128 = vmul.f32 %v1960, 0.01
        %v2129 = vmul.f32 %v1986, 0.01
        %v2130 = vmul.f32 %v2012, 0.01
        %v2131 = vmul.f32 %v2038, 0.01
        %v2132 = vmul.f32 %v2064, 0.01
        %v2133 = vmul.f32 %v2090, 0.01
        %v2134 = vmul.f32 %v2116, 0.01
        %v2135 = vsel %vm2119, %v1934, %v2127
        %v2136 = vsel %vm2120, %v1960, %v2128
        %v2137 = vsel %vm2121, %v1986, %v2129
        %v2138 = vsel %vm2122, %v2012, %v2130
        %v2139 = vsel %vm2123, %v2038, %v2131
        %v2140 = vsel %vm2124, %v2064, %v2132
        %v2141 = vsel %vm2125, %v2090, %v2133
        %v2142 = vsel %vm2126, %v2116, %v2134
        %v2143 = vld [vmem:[#allocation8] sm:$0xff]
        %v2144 = vld [vmem:[#allocation8 + $0x8] sm:$0xff]
        %v2145 = vld [vmem:[#allocation8 + $0x10] sm:$0xff]
        %v2146 = vld [vmem:[#allocation8 + $0x18] sm:$0xff]
        %v2147 = vld [vmem:[#allocation8 + $0x20] sm:$0xff]
        %v2148 = vld [vmem:[#allocation8 + $0x28] sm:$0xff]
        %v2149 = vld [vmem:[#allocation8 + $0x30] sm:$0xff]
        %v2150 = vld [vmem:[#allocation8 + $0x38] sm:$0xff]
        %v2151 = vld [vmem:[#allocation8 + $0x40] sm:$0xff]
        %v2152 = vld [vmem:[#allocation8 + $0x48] sm:$0xff]
        %v2153 = vld [vmem:[#allocation8 + $0x50] sm:$0xff]
        %v2154 = vld [vmem:[#allocation8 + $0x58] sm:$0xff]
        %v2155 = vld [vmem:[#allocation8 + $0x60] sm:$0xff]
        %v2156 = vld [vmem:[#allocation8 + $0x68] sm:$0xff]
        %v2157 = vld [vmem:[#allocation8 + $0x70] sm:$0xff]
        %v2158 = vld [vmem:[#allocation8 + $0x78] sm:$0xff]
        %v2159 = vld [vmem:[#allocation8 + $0x80] sm:$0xff]
        %v2160 = vld [vmem:[#allocation8 + $0x88] sm:$0xff]
        %v2161 = vld [vmem:[#allocation8 + $0x90] sm:$0xff]
        %v2162 = vld [vmem:[#allocation8 + $0x98] sm:$0xff]
        %v2163 = vld [vmem:[#allocation8 + $0xa0] sm:$0xff]
        %v2164 = vld [vmem:[#allocation8 + $0xa8] sm:$0xff]
        %v2165 = vld [vmem:[#allocation8 + $0xb0] sm:$0xff]
        %v2166 = vld [vmem:[#allocation8 + $0xb8] sm:$0xff]
        %v2167 = vld [vmem:[#allocation8 + $0xc0] sm:$0xff]
        %v2168 = vld [vmem:[#allocation8 + $0xc8] sm:$0xff]
        %v2169 = vld [vmem:[#allocation8 + $0xd0] sm:$0xff]
        %v2170 = vld [vmem:[#allocation8 + $0xd8] sm:$0xff]
        %v2171 = vld [vmem:[#allocation8 + $0xe0] sm:$0xff]
        %v2172 = vld [vmem:[#allocation8 + $0xe8] sm:$0xff]
        %v2173 = vld [vmem:[#allocation8 + $0xf0] sm:$0xff]
        %v2174 = vld [vmem:[#allocation8 + $0xf8] sm:$0xff]
        %v2175 = vld [vmem:[#allocation8 + $0x100] sm:$0xff]
        %v2176 = vld [vmem:[#allocation8 + $0x108] sm:$0xff]
        %v2177 = vld [vmem:[#allocation8 + $0x110] sm:$0xff]
        %v2178 = vld [vmem:[#allocation8 + $0x118] sm:$0xff]
        %v2179 = vld [vmem:[#allocation8 + $0x120] sm:$0xff]
        %v2180 = vld [vmem:[#allocation8 + $0x128] sm:$0xff]
        %v2181 = vld [vmem:[#allocation8 + $0x130] sm:$0xff]
        %v2182 = vld [vmem:[#allocation8 + $0x138] sm:$0xff]
        %v2183 = vld [vmem:[#allocation8 + $0x140] sm:$0xff]
        %v2184 = vld [vmem:[#allocation8 + $0x148] sm:$0xff]
        %v2185 = vld [vmem:[#allocation8 + $0x150] sm:$0xff]
        %v2186 = vld [vmem:[#allocation8 + $0x158] sm:$0xff]
        %v2187 = vld [vmem:[#allocation8 + $0x160] sm:$0xff]
        %v2188 = vld [vmem:[#allocation8 + $0x168] sm:$0xff]
        %v2189 = vld [vmem:[#allocation8 + $0x170] sm:$0xff]
        %v2190 = vld [vmem:[#allocation8 + $0x178] sm:$0xff]
        %v2191 = vld [vmem:[#allocation8 + $0x180] sm:$0xff]
        %v2192 = vld [vmem:[#allocation8 + $0x188] sm:$0xff]
        %v2193 = vld [vmem:[#allocation8 + $0x190] sm:$0xff]
        %v2194 = vld [vmem:[#allocation8 + $0x198] sm:$0xff]
        %v2195 = vld [vmem:[#allocation8 + $0x1a0] sm:$0xff]
        %v2196 = vld [vmem:[#allocation8 + $0x1a8] sm:$0xff]
        %v2197 = vld [vmem:[#allocation8 + $0x1b0] sm:$0xff]
        %v2198 = vld [vmem:[#allocation8 + $0x1b8] sm:$0xff]
        %v2199 = vld [vmem:[#allocation8 + $0x1c0] sm:$0xff]
        %v2200 = vld [vmem:[#allocation8 + $0x1c8] sm:$0xff]
        %v2201 = vld [vmem:[#allocation8 + $0x1d0] sm:$0xff]
        %v2202 = vld [vmem:[#allocation8 + $0x1d8] sm:$0xff]
        %v2203 = vld [vmem:[#allocation8 + $0x1e0] sm:$0xff]
        %v2204 = vld [vmem:[#allocation8 + $0x1e8] sm:$0xff]
        %v2205 = vld [vmem:[#allocation8 + $0x1f0] sm:$0xff]
        %v2206 = vld [vmem:[#allocation8 + $0x1f8] sm:$0xff]
        %v2207 = vld [vmem:[#allocation8 + $0x200] sm:$0xff]
        %v2208 = vld [vmem:[#allocation8 + $0x208] sm:$0xff]
        %v2209 = vld [vmem:[#allocation8 + $0x210] sm:$0xff]
        %v2210 = vld [vmem:[#allocation8 + $0x218] sm:$0xff]
        %v2211 = vld [vmem:[#allocation8 + $0x220] sm:$0xff]
        %v2212 = vld [vmem:[#allocation8 + $0x228] sm:$0xff]
        %v2213 = vld [vmem:[#allocation8 + $0x230] sm:$0xff]
        %v2214 = vld [vmem:[#allocation8 + $0x238] sm:$0xff]
        %v2215 = vld [vmem:[#allocation8 + $0x240] sm:$0xff]
        %v2216 = vld [vmem:[#allocation8 + $0x248] sm:$0xff]
        %v2217 = vld [vmem:[#allocation8 + $0x250] sm:$0xff]
        %v2218 = vld [vmem:[#allocation8 + $0x258] sm:$0xff]
        %v2219 = vld [vmem:[#allocation8 + $0x260] sm:$0xff]
        %v2220 = vld [vmem:[#allocation8 + $0x268] sm:$0xff]
        %v2221 = vld [vmem:[#allocation8 + $0x270] sm:$0xff]
        %v2222 = vld [vmem:[#allocation8 + $0x278] sm:$0xff]
        %v2223 = vld [vmem:[#allocation8 + $0x280] sm:$0xff]
        %v2224 = vld [vmem:[#allocation8 + $0x288] sm:$0xff]
        %v2225 = vld [vmem:[#allocation8 + $0x290] sm:$0xff]
        %v2226 = vld [vmem:[#allocation8 + $0x298] sm:$0xff]
        %v2227 = vld [vmem:[#allocation8 + $0x2a0] sm:$0xff]
        %v2228 = vld [vmem:[#allocation8 + $0x2a8] sm:$0xff]
        %v2229 = vld [vmem:[#allocation8 + $0x2b0] sm:$0xff]
        %v2230 = vld [vmem:[#allocation8 + $0x2b8] sm:$0xff]
        %v2231 = vld [vmem:[#allocation8 + $0x2c0] sm:$0xff]
        %v2232 = vld [vmem:[#allocation8 + $0x2c8] sm:$0xff]
        %v2233 = vld [vmem:[#allocation8 + $0x2d0] sm:$0xff]
        %v2234 = vld [vmem:[#allocation8 + $0x2d8] sm:$0xff]
        %v2235 = vld [vmem:[#allocation8 + $0x2e0] sm:$0xff]
        %v2236 = vld [vmem:[#allocation8 + $0x2e8] sm:$0xff]
        %v2237 = vld [vmem:[#allocation8 + $0x2f0] sm:$0xff]
        %v2238 = vld [vmem:[#allocation8 + $0x2f8] sm:$0xff]
        %v2239 = vld [vmem:[#allocation8 + $0x300] sm:$0xff]
        %v2240 = vld [vmem:[#allocation8 + $0x308] sm:$0xff]
        %v2241 = vld [vmem:[#allocation8 + $0x310] sm:$0xff]
        %v2242 = vld [vmem:[#allocation8 + $0x318] sm:$0xff]
        %v2243 = vld [vmem:[#allocation8 + $0x320] sm:$0xff]
        %v2244 = vld [vmem:[#allocation8 + $0x328] sm:$0xff]
        %v2245 = vld [vmem:[#allocation8 + $0x330] sm:$0xff]
        %v2246 = vld [vmem:[#allocation8 + $0x338] sm:$0xff]
        %v2247 = vld [vmem:[#allocation8 + $0x340] sm:$0xff]
        %v2248 = vld [vmem:[#allocation8 + $0x348] sm:$0xff]
        %v2249 = vld [vmem:[#allocation8 + $0x350] sm:$0xff]
        %v2250 = vld [vmem:[#allocation8 + $0x358] sm:$0xff]
        %v2251 = vld [vmem:[#allocation8 + $0x360] sm:$0xff]
        %v2252 = vld [vmem:[#allocation8 + $0x368] sm:$0xff]
        %v2253 = vld [vmem:[#allocation8 + $0x370] sm:$0xff]
        %v2254 = vld [vmem:[#allocation8 + $0x378] sm:$0xff]
        %v2255 = vld [vmem:[#allocation8 + $0x380] sm:$0xff]
        %v2256 = vld [vmem:[#allocation8 + $0x388] sm:$0xff]
        %v2257 = vld [vmem:[#allocation8 + $0x390] sm:$0xff]
        %v2258 = vld [vmem:[#allocation8 + $0x398] sm:$0xff]
        %v2259 = vld [vmem:[#allocation8 + $0x3a0] sm:$0xff]
        %v2260 = vld [vmem:[#allocation8 + $0x3a8] sm:$0xff]
        %v2261 = vld [vmem:[#allocation8 + $0x3b0] sm:$0xff]
        %v2262 = vld [vmem:[#allocation8 + $0x3b8] sm:$0xff]
        %v2263 = vld [vmem:[#allocation8 + $0x3c0] sm:$0xff]
        %v2264 = vld [vmem:[#allocation8 + $0x3c8] sm:$0xff]
        %v2265 = vld [vmem:[#allocation8 + $0x3d0] sm:$0xff]
        %v2266 = vld [vmem:[#allocation8 + $0x3d8] sm:$0xff]
        %v2267 = vld [vmem:[#allocation8 + $0x3e0] sm:$0xff]
        %v2268 = vld [vmem:[#allocation8 + $0x3e8] sm:$0xff]
        %v2269 = vld [vmem:[#allocation8 + $0x3f0] sm:$0xff]
        %v2270 = vld [vmem:[#allocation8 + $0x3f8] sm:$0xff]
        %v2271 = vld [vmem:[#allocation8 + $0x400] sm:$0xff]
        %v2272 = vld [vmem:[#allocation8 + $0x408] sm:$0xff]
        %v2273 = vld [vmem:[#allocation8 + $0x410] sm:$0xff]
        %v2274 = vld [vmem:[#allocation8 + $0x418] sm:$0xff]
        %v2275 = vld [vmem:[#allocation8 + $0x420] sm:$0xff]
        %v2276 = vld [vmem:[#allocation8 + $0x428] sm:$0xff]
        %v2277 = vld [vmem:[#allocation8 + $0x430] sm:$0xff]
        %v2278 = vld [vmem:[#allocation8 + $0x438] sm:$0xff]
        %v2279 = vld [vmem:[#allocation8 + $0x440] sm:$0xff]
        %v2280 = vld [vmem:[#allocation8 + $0x448] sm:$0xff]
        %v2281 = vld [vmem:[#allocation8 + $0x450] sm:$0xff]
        %v2282 = vld [vmem:[#allocation8 + $0x458] sm:$0xff]
        %v2283 = vld [vmem:[#allocation8 + $0x460] sm:$0xff]
        %v2284 = vld [vmem:[#allocation8 + $0x468] sm:$0xff]
        %v2285 = vld [vmem:[#allocation8 + $0x470] sm:$0xff]
        %v2286 = vld [vmem:[#allocation8 + $0x478] sm:$0xff]
        %v2287 = vld [vmem:[#allocation8 + $0x480] sm:$0xff]
        %v2288 = vld [vmem:[#allocation8 + $0x488] sm:$0xff]
        %v2289 = vld [vmem:[#allocation8 + $0x490] sm:$0xff]
        %v2290 = vld [vmem:[#allocation8 + $0x498] sm:$0xff]
        %v2291 = vld [vmem:[#allocation8 + $0x4a0] sm:$0xff]
        %v2292 = vld [vmem:[#allocation8 + $0x4a8] sm:$0xff]
        %v2293 = vld [vmem:[#allocation8 + $0x4b0] sm:$0xff]
        %v2294 = vld [vmem:[#allocation8 + $0x4b8] sm:$0xff]
        %v2295 = vld [vmem:[#allocation8 + $0x4c0] sm:$0xff]
        %v2296 = vld [vmem:[#allocation8 + $0x4c8] sm:$0xff]
        %v2297 = vld [vmem:[#allocation8 + $0x4d0] sm:$0xff]
        %v2298 = vld [vmem:[#allocation8 + $0x4d8] sm:$0xff]
        %v2299 = vld [vmem:[#allocation8 + $0x4e0] sm:$0xff]
        %v2300 = vld [vmem:[#allocation8 + $0x4e8] sm:$0xff]
        %v2301 = vld [vmem:[#allocation8 + $0x4f0] sm:$0xff]
        %v2302 = vld [vmem:[#allocation8 + $0x4f8] sm:$0xff]
        %v2303 = vld [vmem:[#allocation8 + $0x500] sm:$0xff]
        %v2304 = vld [vmem:[#allocation8 + $0x508] sm:$0xff]
        %v2305 = vld [vmem:[#allocation8 + $0x510] sm:$0xff]
        %v2306 = vld [vmem:[#allocation8 + $0x518] sm:$0xff]
        %v2307 = vld [vmem:[#allocation8 + $0x520] sm:$0xff]
        %v2308 = vld [vmem:[#allocation8 + $0x528] sm:$0xff]
        %v2309 = vld [vmem:[#allocation8 + $0x530] sm:$0xff]
        %v2310 = vld [vmem:[#allocation8 + $0x538] sm:$0xff]
        %v2311 = vld [vmem:[#allocation8 + $0x540] sm:$0xff]
        %v2312 = vld [vmem:[#allocation8 + $0x548] sm:$0xff]
        %v2313 = vld [vmem:[#allocation8 + $0x550] sm:$0xff]
        %v2314 = vld [vmem:[#allocation8 + $0x558] sm:$0xff]
        %v2315 = vld [vmem:[#allocation8 + $0x560] sm:$0xff]
        %v2316 = vld [vmem:[#allocation8 + $0x568] sm:$0xff]
        %v2317 = vld [vmem:[#allocation8 + $0x570] sm:$0xff]
        %v2318 = vld [vmem:[#allocation8 + $0x578] sm:$0xff]
        %v2319 = vld [vmem:[#allocation8 + $0x580] sm:$0xff]
        %v2320 = vld [vmem:[#allocation8 + $0x588] sm:$0xff]
        %v2321 = vld [vmem:[#allocation8 + $0x590] sm:$0xff]
        %v2322 = vld [vmem:[#allocation8 + $0x598] sm:$0xff]
        %v2323 = vld [vmem:[#allocation8 + $0x5a0] sm:$0xff]
        %v2324 = vld [vmem:[#allocation8 + $0x5a8] sm:$0xff]
        %v2325 = vld [vmem:[#allocation8 + $0x5b0] sm:$0xff]
        %v2326 = vld [vmem:[#allocation8 + $0x5b8] sm:$0xff]
        %v2327 = vld [vmem:[#allocation8 + $0x5c0] sm:$0xff]
        %v2328 = vld [vmem:[#allocation8 + $0x5c8] sm:$0xff]
        %v2329 = vld [vmem:[#allocation8 + $0x5d0] sm:$0xff]
        %v2330 = vld [vmem:[#allocation8 + $0x5d8] sm:$0xff]
        %v2331 = vld [vmem:[#allocation8 + $0x5e0] sm:$0xff]
        %v2332 = vld [vmem:[#allocation8 + $0x5e8] sm:$0xff]
        %v2333 = vld [vmem:[#allocation8 + $0x5f0] sm:$0xff]
        %v2334 = vld [vmem:[#allocation8 + $0x5f8] sm:$0xff]
        %v2335 = vld [vmem:[#allocation8 + $0x600] sm:$0xff]
        %v2336 = vld [vmem:[#allocation8 + $0x608] sm:$0xff]
        %v2337 = vld [vmem:[#allocation8 + $0x610] sm:$0xff]
        %v2338 = vld [vmem:[#allocation8 + $0x618] sm:$0xff]
        %v2339 = vld [vmem:[#allocation8 + $0x620] sm:$0xff]
        %v2340 = vld [vmem:[#allocation8 + $0x628] sm:$0xff]
        %v2341 = vld [vmem:[#allocation8 + $0x630] sm:$0xff]
        %v2342 = vld [vmem:[#allocation8 + $0x638] sm:$0xff]
        %v2343 = vld [vmem:[#allocation8 + $0x640] sm:$0xff]
        %v2344 = vld [vmem:[#allocation8 + $0x648] sm:$0xff]
        %v2345 = vld [vmem:[#allocation8 + $0x650] sm:$0xff]
        %v2346 = vld [vmem:[#allocation8 + $0x658] sm:$0xff]
        %v2347 = vld [vmem:[#allocation8 + $0x660] sm:$0xff]
        %v2348 = vld [vmem:[#allocation8 + $0x668] sm:$0xff]
        %v2349 = vld [vmem:[#allocation8 + $0x670] sm:$0xff]
        %v2350 = vld [vmem:[#allocation8 + $0x678] sm:$0xff]
        %v2351 = vld [vmem:[#allocation8 + $0x680] sm:$0xff]
        %v2352 = vld [vmem:[#allocation8 + $0x688] sm:$0xff]
        %v2353 = vld [vmem:[#allocation8 + $0x690] sm:$0xff]
        %v2354 = vld [vmem:[#allocation8 + $0x698] sm:$0xff]
        %v2355 = vld [vmem:[#allocation8 + $0x6a0] sm:$0xff]
        %v2356 = vld [vmem:[#allocation8 + $0x6a8] sm:$0xff]
        %v2357 = vld [vmem:[#allocation8 + $0x6b0] sm:$0xff]
        %v2358 = vld [vmem:[#allocation8 + $0x6b8] sm:$0xff]
        %v2359 = vld [vmem:[#allocation8 + $0x6c0] sm:$0xff]
        %v2360 = vld [vmem:[#allocation8 + $0x6c8] sm:$0xff]
        %v2361 = vld [vmem:[#allocation8 + $0x6d0] sm:$0xff]
        %v2362 = vld [vmem:[#allocation8 + $0x6d8] sm:$0xff]
        %v2363 = vld [vmem:[#allocation8 + $0x6e0] sm:$0xff]
        %v2364 = vld [vmem:[#allocation8 + $0x6e8] sm:$0xff]
        %v2365 = vld [vmem:[#allocation8 + $0x6f0] sm:$0xff]
        %v2366 = vld [vmem:[#allocation8 + $0x6f8] sm:$0xff]
        %v2367 = vld [vmem:[#allocation8 + $0x700] sm:$0xff]
        %v2368 = vld [vmem:[#allocation8 + $0x708] sm:$0xff]
        %v2369 = vld [vmem:[#allocation8 + $0x710] sm:$0xff]
        %v2370 = vld [vmem:[#allocation8 + $0x718] sm:$0xff]
        %v2371 = vld [vmem:[#allocation8 + $0x720] sm:$0xff]
        %v2372 = vld [vmem:[#allocation8 + $0x728] sm:$0xff]
        %v2373 = vld [vmem:[#allocation8 + $0x730] sm:$0xff]
        %v2374 = vld [vmem:[#allocation8 + $0x738] sm:$0xff]
        %v2375 = vld [vmem:[#allocation8 + $0x740] sm:$0xff]
        %v2376 = vld [vmem:[#allocation8 + $0x748] sm:$0xff]
        %v2377 = vld [vmem:[#allocation8 + $0x750] sm:$0xff]
        %v2378 = vld [vmem:[#allocation8 + $0x758] sm:$0xff]
        %v2379 = vld [vmem:[#allocation8 + $0x760] sm:$0xff]
        %v2380 = vld [vmem:[#allocation8 + $0x768] sm:$0xff]
        %v2381 = vld [vmem:[#allocation8 + $0x770] sm:$0xff]
        %v2382 = vld [vmem:[#allocation8 + $0x778] sm:$0xff]
        %v2383 = vld [vmem:[#allocation8 + $0x780] sm:$0xff]
        %v2384 = vld [vmem:[#allocation8 + $0x788] sm:$0xff]
        %v2385 = vld [vmem:[#allocation8 + $0x790] sm:$0xff]
        %v2386 = vld [vmem:[#allocation8 + $0x798] sm:$0xff]
        %v2387 = vld [vmem:[#allocation8 + $0x7a0] sm:$0xff]
        %v2388 = vld [vmem:[#allocation8 + $0x7a8] sm:$0xff]
        %v2389 = vld [vmem:[#allocation8 + $0x7b0] sm:$0xff]
        %v2390 = vld [vmem:[#allocation8 + $0x7b8] sm:$0xff]
        %v2391 = vld [vmem:[#allocation8 + $0x7c0] sm:$0xff]
        %v2392 = vld [vmem:[#allocation8 + $0x7c8] sm:$0xff]
        %v2393 = vld [vmem:[#allocation8 + $0x7d0] sm:$0xff]
        %v2394 = vld [vmem:[#allocation8 + $0x7d8] sm:$0xff]
        %v2395 = vld [vmem:[#allocation8 + $0x7e0] sm:$0xff]
        %v2396 = vld [vmem:[#allocation8 + $0x7e8] sm:$0xff]
        %v2397 = vld [vmem:[#allocation8 + $0x7f0] sm:$0xff]
        %v2398 = vld [vmem:[#allocation8 + $0x7f8] sm:$0xff]
        %v2399 = vld [vmem:[#allocation10] sm:$0xf]
        %v2400 = vpack.c.bf16 %v2135, %v2135
        %v2401 = vpack.c.bf16 %v2136, %v2136
        %v2402 = vpack.c.bf16 %v2137, %v2137
        %v2403 = vpack.c.bf16 %v2138, %v2138
        %v2404 = vpack.c.bf16 %v2139, %v2139
        %v2405 = vpack.c.bf16 %v2140, %v2140
        %v2406 = vpack.c.bf16 %v2141, %v2141
        %v2407 = vpack.c.bf16 %v2142, %v2142
        %v2409 = vperm.slane %v2399, 0
        %v2410 = vperm.slane %v2399, 1
        %v2411 = vperm.slane %v2399, 2
        %v2412 = vperm.slane %v2399, 3
        %v2673 = vunpack.c.l.b16 %v2143
        %v2674 = vunpack.c.h.b16 %v2143
        %v2675 = vunpack.c.l.b16 %v2144
        %v2676 = vunpack.c.h.b16 %v2144
        %v2677 = vunpack.c.l.b16 %v2145
        %v2678 = vunpack.c.h.b16 %v2145
        %v2679 = vunpack.c.l.b16 %v2146
        %v2680 = vunpack.c.h.b16 %v2146
        %v2681 = vunpack.c.l.b16 %v2147
        %v2682 = vunpack.c.h.b16 %v2147
        %v2683 = vunpack.c.l.b16 %v2148
        %v2684 = vunpack.c.h.b16 %v2148
        %v2685 = vunpack.c.l.b16 %v2149
        %v2686 = vunpack.c.h.b16 %v2149
        %v2687 = vunpack.c.l.b16 %v2150
        %v2688 = vunpack.c.h.b16 %v2150
        %v2689 = vunpack.c.l.b16 %v2151
        %v2690 = vunpack.c.h.b16 %v2151
        %v2691 = vunpack.c.l.b16 %v2152
        %v2692 = vunpack.c.h.b16 %v2152
        %v2693 = vunpack.c.l.b16 %v2153
        %v2694 = vunpack.c.h.b16 %v2153
        %v2695 = vunpack.c.l.b16 %v2154
        %v2696 = vunpack.c.h.b16 %v2154
        %v2697 = vunpack.c.l.b16 %v2155
        %v2698 = vunpack.c.h.b16 %v2155
        %v2699 = vunpack.c.l.b16 %v2156
        %v2700 = vunpack.c.h.b16 %v2156
        %v2701 = vunpack.c.l.b16 %v2157
        %v2702 = vunpack.c.h.b16 %v2157
        %v2703 = vunpack.c.l.b16 %v2158
        %v2704 = vunpack.c.h.b16 %v2158
        %v2705 = vunpack.c.l.b16 %v2159
        %v2706 = vunpack.c.h.b16 %v2159
        %v2707 = vunpack.c.l.b16 %v2160
        %v2708 = vunpack.c.h.b16 %v2160
        %v2709 = vunpack.c.l.b16 %v2161
        %v2710 = vunpack.c.h.b16 %v2161
        %v2711 = vunpack.c.l.b16 %v2162
        %v2712 = vunpack.c.h.b16 %v2162
        %v2713 = vunpack.c.l.b16 %v2163
        %v2714 = vunpack.c.h.b16 %v2163
        %v2715 = vunpack.c.l.b16 %v2164
        %v2716 = vunpack.c.h.b16 %v2164
        %v2717 = vunpack.c.l.b16 %v2165
        %v2718 = vunpack.c.h.b16 %v2165
        %v2719 = vunpack.c.l.b16 %v2166
        %v2720 = vunpack.c.h.b16 %v2166
        %v2721 = vunpack.c.l.b16 %v2167
        %v2722 = vunpack.c.h.b16 %v2167
        %v2723 = vunpack.c.l.b16 %v2168
        %v2724 = vunpack.c.h.b16 %v2168
        %v2725 = vunpack.c.l.b16 %v2169
        %v2726 = vunpack.c.h.b16 %v2169
        %v2727 = vunpack.c.l.b16 %v2170
        %v2728 = vunpack.c.h.b16 %v2170
        %v2729 = vunpack.c.l.b16 %v2171
        %v2730 = vunpack.c.h.b16 %v2171
        %v2731 = vunpack.c.l.b16 %v2172
        %v2732 = vunpack.c.h.b16 %v2172
        %v2733 = vunpack.c.l.b16 %v2173
        %v2734 = vunpack.c.h.b16 %v2173
        %v2735 = vunpack.c.l.b16 %v2174
        %v2736 = vunpack.c.h.b16 %v2174
        %v2737 = vunpack.c.l.b16 %v2175
        %v2738 = vunpack.c.h.b16 %v2175
        %v2739 = vunpack.c.l.b16 %v2176
        %v2740 = vunpack.c.h.b16 %v2176
        %v2741 = vunpack.c.l.b16 %v2177
        %v2742 = vunpack.c.h.b16 %v2177
        %v2743 = vunpack.c.l.b16 %v2178
        %v2744 = vunpack.c.h.b16 %v2178
        %v2745 = vunpack.c.l.b16 %v2179
        %v2746 = vunpack.c.h.b16 %v2179
        %v2747 = vunpack.c.l.b16 %v2180
        %v2748 = vunpack.c.h.b16 %v2180
        %v2749 = vunpack.c.l.b16 %v2181
        %v2750 = vunpack.c.h.b16 %v2181
        %v2751 = vunpack.c.l.b16 %v2182
        %v2752 = vunpack.c.h.b16 %v2182
        %v2753 = vunpack.c.l.b16 %v2183
        %v2754 = vunpack.c.h.b16 %v2183
        %v2755 = vunpack.c.l.b16 %v2184
        %v2756 = vunpack.c.h.b16 %v2184
        %v2757 = vunpack.c.l.b16 %v2185
        %v2758 = vunpack.c.h.b16 %v2185
        %v2759 = vunpack.c.l.b16 %v2186
        %v2760 = vunpack.c.h.b16 %v2186
        %v2761 = vunpack.c.l.b16 %v2187
        %v2762 = vunpack.c.h.b16 %v2187
        %v2763 = vunpack.c.l.b16 %v2188
        %v2764 = vunpack.c.h.b16 %v2188
        %v2765 = vunpack.c.l.b16 %v2189
        %v2766 = vunpack.c.h.b16 %v2189
        %v2767 = vunpack.c.l.b16 %v2190
        %v2768 = vunpack.c.h.b16 %v2190
        %v2769 = vunpack.c.l.b16 %v2191
        %v2770 = vunpack.c.h.b16 %v2191
        %v2771 = vunpack.c.l.b16 %v2192
        %v2772 = vunpack.c.h.b16 %v2192
        %v2773 = vunpack.c.l.b16 %v2193
        %v2774 = vunpack.c.h.b16 %v2193
        %v2775 = vunpack.c.l.b16 %v2194
        %v2776 = vunpack.c.h.b16 %v2194
        %v2777 = vunpack.c.l.b16 %v2195
        %v2778 = vunpack.c.h.b16 %v2195
        %v2779 = vunpack.c.l.b16 %v2196
        %v2780 = vunpack.c.h.b16 %v2196
        %v2781 = vunpack.c.l.b16 %v2197
        %v2782 = vunpack.c.h.b16 %v2197
        %v2783 = vunpack.c.l.b16 %v2198
        %v2784 = vunpack.c.h.b16 %v2198
        %v2785 = vunpack.c.l.b16 %v2199
        %v2786 = vunpack.c.h.b16 %v2199
        %v2787 = vunpack.c.l.b16 %v2200
        %v2788 = vunpack.c.h.b16 %v2200
        %v2789 = vunpack.c.l.b16 %v2201
        %v2790 = vunpack.c.h.b16 %v2201
        %v2791 = vunpack.c.l.b16 %v2202
        %v2792 = vunpack.c.h.b16 %v2202
        %v2793 = vunpack.c.l.b16 %v2203
        %v2794 = vunpack.c.h.b16 %v2203
        %v2795 = vunpack.c.l.b16 %v2204
        %v2796 = vunpack.c.h.b16 %v2204
        %v2797 = vunpack.c.l.b16 %v2205
        %v2798 = vunpack.c.h.b16 %v2205
        %v2799 = vunpack.c.l.b16 %v2206
        %v2800 = vunpack.c.h.b16 %v2206
        %v2801 = vunpack.c.l.b16 %v2207
        %v2802 = vunpack.c.h.b16 %v2207
        %v2803 = vunpack.c.l.b16 %v2208
        %v2804 = vunpack.c.h.b16 %v2208
        %v2805 = vunpack.c.l.b16 %v2209
        %v2806 = vunpack.c.h.b16 %v2209
        %v2807 = vunpack.c.l.b16 %v2210
        %v2808 = vunpack.c.h.b16 %v2210
        %v2809 = vunpack.c.l.b16 %v2211
        %v2810 = vunpack.c.h.b16 %v2211
        %v2811 = vunpack.c.l.b16 %v2212
        %v2812 = vunpack.c.h.b16 %v2212
        %v2813 = vunpack.c.l.b16 %v2213
        %v2814 = vunpack.c.h.b16 %v2213
        %v2815 = vunpack.c.l.b16 %v2214
        %v2816 = vunpack.c.h.b16 %v2214
        %v2817 = vunpack.c.l.b16 %v2215
        %v2818 = vunpack.c.h.b16 %v2215
        %v2819 = vunpack.c.l.b16 %v2216
        %v2820 = vunpack.c.h.b16 %v2216
        %v2821 = vunpack.c.l.b16 %v2217
        %v2822 = vunpack.c.h.b16 %v2217
        %v2823 = vunpack.c.l.b16 %v2218
        %v2824 = vunpack.c.h.b16 %v2218
        %v2825 = vunpack.c.l.b16 %v2219
        %v2826 = vunpack.c.h.b16 %v2219
        %v2827 = vunpack.c.l.b16 %v2220
        %v2828 = vunpack.c.h.b16 %v2220
        %v2829 = vunpack.c.l.b16 %v2221
        %v2830 = vunpack.c.h.b16 %v2221
        %v2831 = vunpack.c.l.b16 %v2222
        %v2832 = vunpack.c.h.b16 %v2222
        %v2833 = vunpack.c.l.b16 %v2223
        %v2834 = vunpack.c.h.b16 %v2223
        %v2835 = vunpack.c.l.b16 %v2224
        %v2836 = vunpack.c.h.b16 %v2224
        %v2837 = vunpack.c.l.b16 %v2225
        %v2838 = vunpack.c.h.b16 %v2225
        %v2839 = vunpack.c.l.b16 %v2226
        %v2840 = vunpack.c.h.b16 %v2226
        %v2841 = vunpack.c.l.b16 %v2227
        %v2842 = vunpack.c.h.b16 %v2227
        %v2843 = vunpack.c.l.b16 %v2228
        %v2844 = vunpack.c.h.b16 %v2228
        %v2845 = vunpack.c.l.b16 %v2229
        %v2846 = vunpack.c.h.b16 %v2229
        %v2847 = vunpack.c.l.b16 %v2230
        %v2848 = vunpack.c.h.b16 %v2230
        %v2849 = vunpack.c.l.b16 %v2231
        %v2850 = vunpack.c.h.b16 %v2231
        %v2851 = vunpack.c.l.b16 %v2232
        %v2852 = vunpack.c.h.b16 %v2232
        %v2853 = vunpack.c.l.b16 %v2233
        %v2854 = vunpack.c.h.b16 %v2233
        %v2855 = vunpack.c.l.b16 %v2234
        %v2856 = vunpack.c.h.b16 %v2234
        %v2857 = vunpack.c.l.b16 %v2235
        %v2858 = vunpack.c.h.b16 %v2235
        %v2859 = vunpack.c.l.b16 %v2236
        %v2860 = vunpack.c.h.b16 %v2236
        %v2861 = vunpack.c.l.b16 %v2237
        %v2862 = vunpack.c.h.b16 %v2237
        %v2863 = vunpack.c.l.b16 %v2238
        %v2864 = vunpack.c.h.b16 %v2238
        %v2865 = vunpack.c.l.b16 %v2239
        %v2866 = vunpack.c.h.b16 %v2239
        %v2867 = vunpack.c.l.b16 %v2240
        %v2868 = vunpack.c.h.b16 %v2240
        %v2869 = vunpack.c.l.b16 %v2241
        %v2870 = vunpack.c.h.b16 %v2241
        %v2871 = vunpack.c.l.b16 %v2242
        %v2872 = vunpack.c.h.b16 %v2242
        %v2873 = vunpack.c.l.b16 %v2243
        %v2874 = vunpack.c.h.b16 %v2243
        %v2875 = vunpack.c.l.b16 %v2244
        %v2876 = vunpack.c.h.b16 %v2244
        %v2877 = vunpack.c.l.b16 %v2245
        %v2878 = vunpack.c.h.b16 %v2245
        %v2879 = vunpack.c.l.b16 %v2246
        %v2880 = vunpack.c.h.b16 %v2246
        %v2881 = vunpack.c.l.b16 %v2247
        %v2882 = vunpack.c.h.b16 %v2247
        %v2883 = vunpack.c.l.b16 %v2248
        %v2884 = vunpack.c.h.b16 %v2248
        %v2885 = vunpack.c.l.b16 %v2249
        %v2886 = vunpack.c.h.b16 %v2249
        %v2887 = vunpack.c.l.b16 %v2250
        %v2888 = vunpack.c.h.b16 %v2250
        %v2889 = vunpack.c.l.b16 %v2251
        %v2890 = vunpack.c.h.b16 %v2251
        %v2891 = vunpack.c.l.b16 %v2252
        %v2892 = vunpack.c.h.b16 %v2252
        %v2893 = vunpack.c.l.b16 %v2253
        %v2894 = vunpack.c.h.b16 %v2253
        %v2895 = vunpack.c.l.b16 %v2254
        %v2896 = vunpack.c.h.b16 %v2254
        %v2897 = vunpack.c.l.b16 %v2255
        %v2898 = vunpack.c.h.b16 %v2255
        %v2899 = vunpack.c.l.b16 %v2256
        %v2900 = vunpack.c.h.b16 %v2256
        %v2901 = vunpack.c.l.b16 %v2257
        %v2902 = vunpack.c.h.b16 %v2257
        %v2903 = vunpack.c.l.b16 %v2258
        %v2904 = vunpack.c.h.b16 %v2258
        %v2905 = vunpack.c.l.b16 %v2259
        %v2906 = vunpack.c.h.b16 %v2259
        %v2907 = vunpack.c.l.b16 %v2260
        %v2908 = vunpack.c.h.b16 %v2260
        %v2909 = vunpack.c.l.b16 %v2261
        %v2910 = vunpack.c.h.b16 %v2261
        %v2911 = vunpack.c.l.b16 %v2262
        %v2912 = vunpack.c.h.b16 %v2262
        %v2913 = vunpack.c.l.b16 %v2263
        %v2914 = vunpack.c.h.b16 %v2263
        %v2915 = vunpack.c.l.b16 %v2264
        %v2916 = vunpack.c.h.b16 %v2264
        %v2917 = vunpack.c.l.b16 %v2265
        %v2918 = vunpack.c.h.b16 %v2265
        %v2919 = vunpack.c.l.b16 %v2266
        %v2920 = vunpack.c.h.b16 %v2266
        %v2921 = vunpack.c.l.b16 %v2267
        %v2922 = vunpack.c.h.b16 %v2267
        %v2923 = vunpack.c.l.b16 %v2268
        %v2924 = vunpack.c.h.b16 %v2268
        %v2925 = vunpack.c.l.b16 %v2269
        %v2926 = vunpack.c.h.b16 %v2269
        %v2927 = vunpack.c.l.b16 %v2270
        %v2928 = vunpack.c.h.b16 %v2270
        %v2929 = vunpack.c.l.b16 %v2271
        %v2930 = vunpack.c.h.b16 %v2271
        %v2931 = vunpack.c.l.b16 %v2272
        %v2932 = vunpack.c.h.b16 %v2272
        %v2933 = vunpack.c.l.b16 %v2273
        %v2934 = vunpack.c.h.b16 %v2273
        %v2935 = vunpack.c.l.b16 %v2274
        %v2936 = vunpack.c.h.b16 %v2274
        %v2937 = vunpack.c.l.b16 %v2275
        %v2938 = vunpack.c.h.b16 %v2275
        %v2939 = vunpack.c.l.b16 %v2276
        %v2940 = vunpack.c.h.b16 %v2276
        %v2941 = vunpack.c.l.b16 %v2277
        %v2942 = vunpack.c.h.b16 %v2277
        %v2943 = vunpack.c.l.b16 %v2278
        %v2944 = vunpack.c.h.b16 %v2278
        %v2945 = vunpack.c.l.b16 %v2279
        %v2946 = vunpack.c.h.b16 %v2279
        %v2947 = vunpack.c.l.b16 %v2280
        %v2948 = vunpack.c.h.b16 %v2280
        %v2949 = vunpack.c.l.b16 %v2281
        %v2950 = vunpack.c.h.b16 %v2281
        %v2951 = vunpack.c.l.b16 %v2282
        %v2952 = vunpack.c.h.b16 %v2282
        %v2953 = vunpack.c.l.b16 %v2283
        %v2954 = vunpack.c.h.b16 %v2283
        %v2955 = vunpack.c.l.b16 %v2284
        %v2956 = vunpack.c.h.b16 %v2284
        %v2957 = vunpack.c.l.b16 %v2285
        %v2958 = vunpack.c.h.b16 %v2285
        %v2959 = vunpack.c.l.b16 %v2286
        %v2960 = vunpack.c.h.b16 %v2286
        %v2961 = vunpack.c.l.b16 %v2287
        %v2962 = vunpack.c.h.b16 %v2287
        %v2963 = vunpack.c.l.b16 %v2288
        %v2964 = vunpack.c.h.b16 %v2288
        %v2965 = vunpack.c.l.b16 %v2289
        %v2966 = vunpack.c.h.b16 %v2289
        %v2967 = vunpack.c.l.b16 %v2290
        %v2968 = vunpack.c.h.b16 %v2290
        %v2969 = vunpack.c.l.b16 %v2291
        %v2970 = vunpack.c.h.b16 %v2291
        %v2971 = vunpack.c.l.b16 %v2292
        %v2972 = vunpack.c.h.b16 %v2292
        %v2973 = vunpack.c.l.b16 %v2293
        %v2974 = vunpack.c.h.b16 %v2293
        %v2975 = vunpack.c.l.b16 %v2294
        %v2976 = vunpack.c.h.b16 %v2294
        %v2977 = vunpack.c.l.b16 %v2295
        %v2978 = vunpack.c.h.b16 %v2295
        %v2979 = vunpack.c.l.b16 %v2296
        %v2980 = vunpack.c.h.b16 %v2296
        %v2981 = vunpack.c.l.b16 %v2297
        %v2982 = vunpack.c.h.b16 %v2297
        %v2983 = vunpack.c.l.b16 %v2298
        %v2984 = vunpack.c.h.b16 %v2298
        %v2985 = vunpack.c.l.b16 %v2299
        %v2986 = vunpack.c.h.b16 %v2299
        %v2987 = vunpack.c.l.b16 %v2300
        %v2988 = vunpack.c.h.b16 %v2300
        %v2989 = vunpack.c.l.b16 %v2301
        %v2990 = vunpack.c.h.b16 %v2301
        %v2991 = vunpack.c.l.b16 %v2302
        %v2992 = vunpack.c.h.b16 %v2302
        %v2993 = vunpack.c.l.b16 %v2303
        %v2994 = vunpack.c.h.b16 %v2303
        %v2995 = vunpack.c.l.b16 %v2304
        %v2996 = vunpack.c.h.b16 %v2304
        %v2997 = vunpack.c.l.b16 %v2305
        %v2998 = vunpack.c.h.b16 %v2305
        %v2999 = vunpack.c.l.b16 %v2306
        %v3000 = vunpack.c.h.b16 %v2306
        %v3001 = vunpack.c.l.b16 %v2307
        %v3002 = vunpack.c.h.b16 %v2307
        %v3003 = vunpack.c.l.b16 %v2308
        %v3004 = vunpack.c.h.b16 %v2308
        %v3005 = vunpack.c.l.b16 %v2309
        %v3006 = vunpack.c.h.b16 %v2309
        %v3007 = vunpack.c.l.b16 %v2310
        %v3008 = vunpack.c.h.b16 %v2310
        %v3009 = vunpack.c.l.b16 %v2311
        %v3010 = vunpack.c.h.b16 %v2311
        %v3011 = vunpack.c.l.b16 %v2312
        %v3012 = vunpack.c.h.b16 %v2312
        %v3013 = vunpack.c.l.b16 %v2313
        %v3014 = vunpack.c.h.b16 %v2313
        %v3015 = vunpack.c.l.b16 %v2314
        %v3016 = vunpack.c.h.b16 %v2314
        %v3017 = vunpack.c.l.b16 %v2315
        %v3018 = vunpack.c.h.b16 %v2315
        %v3019 = vunpack.c.l.b16 %v2316
        %v3020 = vunpack.c.h.b16 %v2316
        %v3021 = vunpack.c.l.b16 %v2317
        %v3022 = vunpack.c.h.b16 %v2317
        %v3023 = vunpack.c.l.b16 %v2318
        %v3024 = vunpack.c.h.b16 %v2318
        %v3025 = vunpack.c.l.b16 %v2319
        %v3026 = vunpack.c.h.b16 %v2319
        %v3027 = vunpack.c.l.b16 %v2320
        %v3028 = vunpack.c.h.b16 %v2320
        %v3029 = vunpack.c.l.b16 %v2321
        %v3030 = vunpack.c.h.b16 %v2321
        %v3031 = vunpack.c.l.b16 %v2322
        %v3032 = vunpack.c.h.b16 %v2322
        %v3033 = vunpack.c.l.b16 %v2323
        %v3034 = vunpack.c.h.b16 %v2323
        %v3035 = vunpack.c.l.b16 %v2324
        %v3036 = vunpack.c.h.b16 %v2324
        %v3037 = vunpack.c.l.b16 %v2325
        %v3038 = vunpack.c.h.b16 %v2325
        %v3039 = vunpack.c.l.b16 %v2326
        %v3040 = vunpack.c.h.b16 %v2326
        %v3041 = vunpack.c.l.b16 %v2327
        %v3042 = vunpack.c.h.b16 %v2327
        %v3043 = vunpack.c.l.b16 %v2328
        %v3044 = vunpack.c.h.b16 %v2328
        %v3045 = vunpack.c.l.b16 %v2329
        %v3046 = vunpack.c.h.b16 %v2329
        %v3047 = vunpack.c.l.b16 %v2330
        %v3048 = vunpack.c.h.b16 %v2330
        %v3049 = vunpack.c.l.b16 %v2331
        %v3050 = vunpack.c.h.b16 %v2331
        %v3051 = vunpack.c.l.b16 %v2332
        %v3052 = vunpack.c.h.b16 %v2332
        %v3053 = vunpack.c.l.b16 %v2333
        %v3054 = vunpack.c.h.b16 %v2333
        %v3055 = vunpack.c.l.b16 %v2334
        %v3056 = vunpack.c.h.b16 %v2334
        %v3057 = vunpack.c.l.b16 %v2335
        %v3058 = vunpack.c.h.b16 %v2335
        %v3059 = vunpack.c.l.b16 %v2336
        %v3060 = vunpack.c.h.b16 %v2336
        %v3061 = vunpack.c.l.b16 %v2337
        %v3062 = vunpack.c.h.b16 %v2337
        %v3063 = vunpack.c.l.b16 %v2338
        %v3064 = vunpack.c.h.b16 %v2338
        %v3065 = vunpack.c.l.b16 %v2339
        %v3066 = vunpack.c.h.b16 %v2339
        %v3067 = vunpack.c.l.b16 %v2340
        %v3068 = vunpack.c.h.b16 %v2340
        %v3069 = vunpack.c.l.b16 %v2341
        %v3070 = vunpack.c.h.b16 %v2341
        %v3071 = vunpack.c.l.b16 %v2342
        %v3072 = vunpack.c.h.b16 %v2342
        %v3073 = vunpack.c.l.b16 %v2343
        %v3074 = vunpack.c.h.b16 %v2343
        %v3075 = vunpack.c.l.b16 %v2344
        %v3076 = vunpack.c.h.b16 %v2344
        %v3077 = vunpack.c.l.b16 %v2345
        %v3078 = vunpack.c.h.b16 %v2345
        %v3079 = vunpack.c.l.b16 %v2346
        %v3080 = vunpack.c.h.b16 %v2346
        %v3081 = vunpack.c.l.b16 %v2347
        %v3082 = vunpack.c.h.b16 %v2347
        %v3083 = vunpack.c.l.b16 %v2348
        %v3084 = vunpack.c.h.b16 %v2348
        %v3085 = vunpack.c.l.b16 %v2349
        %v3086 = vunpack.c.h.b16 %v2349
        %v3087 = vunpack.c.l.b16 %v2350
        %v3088 = vunpack.c.h.b16 %v2350
        %v3089 = vunpack.c.l.b16 %v2351
        %v3090 = vunpack.c.h.b16 %v2351
        %v3091 = vunpack.c.l.b16 %v2352
        %v3092 = vunpack.c.h.b16 %v2352
        %v3093 = vunpack.c.l.b16 %v2353
        %v3094 = vunpack.c.h.b16 %v2353
        %v3095 = vunpack.c.l.b16 %v2354
        %v3096 = vunpack.c.h.b16 %v2354
        %v3097 = vunpack.c.l.b16 %v2355
        %v3098 = vunpack.c.h.b16 %v2355
        %v3099 = vunpack.c.l.b16 %v2356
        %v3100 = vunpack.c.h.b16 %v2356
        %v3101 = vunpack.c.l.b16 %v2357
        %v3102 = vunpack.c.h.b16 %v2357
        %v3103 = vunpack.c.l.b16 %v2358
        %v3104 = vunpack.c.h.b16 %v2358
        %v3105 = vunpack.c.l.b16 %v2359
        %v3106 = vunpack.c.h.b16 %v2359
        %v3107 = vunpack.c.l.b16 %v2360
        %v3108 = vunpack.c.h.b16 %v2360
        %v3109 = vunpack.c.l.b16 %v2361
        %v3110 = vunpack.c.h.b16 %v2361
        %v3111 = vunpack.c.l.b16 %v2362
        %v3112 = vunpack.c.h.b16 %v2362
        %v3113 = vunpack.c.l.b16 %v2363
        %v3114 = vunpack.c.h.b16 %v2363
        %v3115 = vunpack.c.l.b16 %v2364
        %v3116 = vunpack.c.h.b16 %v2364
        %v3117 = vunpack.c.l.b16 %v2365
        %v3118 = vunpack.c.h.b16 %v2365
        %v3119 = vunpack.c.l.b16 %v2366
        %v3120 = vunpack.c.h.b16 %v2366
        %v3121 = vunpack.c.l.b16 %v2367
        %v3122 = vunpack.c.h.b16 %v2367
        %v3123 = vunpack.c.l.b16 %v2368
        %v3124 = vunpack.c.h.b16 %v2368
        %v3125 = vunpack.c.l.b16 %v2369
        %v3126 = vunpack.c.h.b16 %v2369
        %v3127 = vunpack.c.l.b16 %v2370
        %v3128 = vunpack.c.h.b16 %v2370
        %v3129 = vunpack.c.l.b16 %v2371
        %v3130 = vunpack.c.h.b16 %v2371
        %v3131 = vunpack.c.l.b16 %v2372
        %v3132 = vunpack.c.h.b16 %v2372
        %v3133 = vunpack.c.l.b16 %v2373
        %v3134 = vunpack.c.h.b16 %v2373
        %v3135 = vunpack.c.l.b16 %v2374
        %v3136 = vunpack.c.h.b16 %v2374
        %v3137 = vunpack.c.l.b16 %v2375
        %v3138 = vunpack.c.h.b16 %v2375
        %v3139 = vunpack.c.l.b16 %v2376
        %v3140 = vunpack.c.h.b16 %v2376
        %v3141 = vunpack.c.l.b16 %v2377
        %v3142 = vunpack.c.h.b16 %v2377
        %v3143 = vunpack.c.l.b16 %v2378
        %v3144 = vunpack.c.h.b16 %v2378
        %v3145 = vunpack.c.l.b16 %v2379
        %v3146 = vunpack.c.h.b16 %v2379
        %v3147 = vunpack.c.l.b16 %v2380
        %v3148 = vunpack.c.h.b16 %v2380
        %v3149 = vunpack.c.l.b16 %v2381
        %v3150 = vunpack.c.h.b16 %v2381
        %v3151 = vunpack.c.l.b16 %v2382
        %v3152 = vunpack.c.h.b16 %v2382
        %v3153 = vunpack.c.l.b16 %v2383
        %v3154 = vunpack.c.h.b16 %v2383
        %v3155 = vunpack.c.l.b16 %v2384
        %v3156 = vunpack.c.h.b16 %v2384
        %v3157 = vunpack.c.l.b16 %v2385
        %v3158 = vunpack.c.h.b16 %v2385
        %v3159 = vunpack.c.l.b16 %v2386
        %v3160 = vunpack.c.h.b16 %v2386
        %v3161 = vunpack.c.l.b16 %v2387
        %v3162 = vunpack.c.h.b16 %v2387
        %v3163 = vunpack.c.l.b16 %v2388
        %v3164 = vunpack.c.h.b16 %v2388
        %v3165 = vunpack.c.l.b16 %v2389
        %v3166 = vunpack.c.h.b16 %v2389
        %v3167 = vunpack.c.l.b16 %v2390
        %v3168 = vunpack.c.h.b16 %v2390
        %v3169 = vunpack.c.l.b16 %v2391
        %v3170 = vunpack.c.h.b16 %v2391
        %v3171 = vunpack.c.l.b16 %v2392
        %v3172 = vunpack.c.h.b16 %v2392
        %v3173 = vunpack.c.l.b16 %v2393
        %v3174 = vunpack.c.h.b16 %v2393
        %v3175 = vunpack.c.l.b16 %v2394
        %v3176 = vunpack.c.h.b16 %v2394
        %v3177 = vunpack.c.l.b16 %v2395
        %v3178 = vunpack.c.h.b16 %v2395
        %v3179 = vunpack.c.l.b16 %v2396
        %v3180 = vunpack.c.h.b16 %v2396
        %v3181 = vunpack.c.l.b16 %v2397
        %v3182 = vunpack.c.h.b16 %v2397
        %v3183 = vunpack.c.l.b16 %v2398
        %v3184 = vunpack.c.h.b16 %v2398
        %v3185 = vpack.c.b16 %v2677, %v2673
        %v3186 = vpack.c.b16 %v2678, %v2674
        %v3187 = vpack.c.b16 %v2679, %v2675
        %v3188 = vpack.c.b16 %v2680, %v2676
        %v3189 = vpack.c.b16 %v2685, %v2681
        %v3190 = vpack.c.b16 %v2686, %v2682
        %v3191 = vpack.c.b16 %v2687, %v2683
        %v3192 = vpack.c.b16 %v2688, %v2684
        %v3193 = vpack.c.b16 %v2693, %v2689
        %v3194 = vpack.c.b16 %v2694, %v2690
        %v3195 = vpack.c.b16 %v2695, %v2691
        %v3196 = vpack.c.b16 %v2696, %v2692
        %v3197 = vpack.c.b16 %v2701, %v2697
        %v3198 = vpack.c.b16 %v2702, %v2698
        %v3199 = vpack.c.b16 %v2703, %v2699
        %v3200 = vpack.c.b16 %v2704, %v2700
        %v3201 = vpack.c.b16 %v2709, %v2705
        %v3202 = vpack.c.b16 %v2710, %v2706
        %v3203 = vpack.c.b16 %v2711, %v2707
        %v3204 = vpack.c.b16 %v2712, %v2708
        %v3205 = vpack.c.b16 %v2717, %v2713
        %v3206 = vpack.c.b16 %v2718, %v2714
        %v3207 = vpack.c.b16 %v2719, %v2715
        %v3208 = vpack.c.b16 %v2720, %v2716
        %v3209 = vpack.c.b16 %v2725, %v2721
        %v3210 = vpack.c.b16 %v2726, %v2722
        %v3211 = vpack.c.b16 %v2727, %v2723
        %v3212 = vpack.c.b16 %v2728, %v2724
        %v3213 = vpack.c.b16 %v2733, %v2729
        %v3214 = vpack.c.b16 %v2734, %v2730
        %v3215 = vpack.c.b16 %v2735, %v2731
        %v3216 = vpack.c.b16 %v2736, %v2732
        %v3217 = vpack.c.b16 %v2741, %v2737
        %v3218 = vpack.c.b16 %v2742, %v2738
        %v3219 = vpack.c.b16 %v2743, %v2739
        %v3220 = vpack.c.b16 %v2744, %v2740
        %v3221 = vpack.c.b16 %v2749, %v2745
        %v3222 = vpack.c.b16 %v2750, %v2746
        %v3223 = vpack.c.b16 %v2751, %v2747
        %v3224 = vpack.c.b16 %v2752, %v2748
        %v3225 = vpack.c.b16 %v2757, %v2753
        %v3226 = vpack.c.b16 %v2758, %v2754
        %v3227 = vpack.c.b16 %v2759, %v2755
        %v3228 = vpack.c.b16 %v2760, %v2756
        %v3229 = vpack.c.b16 %v2765, %v2761
        %v3230 = vpack.c.b16 %v2766, %v2762
        %v3231 = vpack.c.b16 %v2767, %v2763
        %v3232 = vpack.c.b16 %v2768, %v2764
        %v3233 = vpack.c.b16 %v2773, %v2769
        %v3234 = vpack.c.b16 %v2774, %v2770
        %v3235 = vpack.c.b16 %v2775, %v2771
        %v3236 = vpack.c.b16 %v2776, %v2772
        %v3237 = vpack.c.b16 %v2781, %v2777
        %v3238 = vpack.c.b16 %v2782, %v2778
        %v3239 = vpack.c.b16 %v2783, %v2779
        %v3240 = vpack.c.b16 %v2784, %v2780
        %v3241 = vpack.c.b16 %v2789, %v2785
        %v3242 = vpack.c.b16 %v2790, %v2786
        %v3243 = vpack.c.b16 %v2791, %v2787
        %v3244 = vpack.c.b16 %v2792, %v2788
        %v3245 = vpack.c.b16 %v2797, %v2793
        %v3246 = vpack.c.b16 %v2798, %v2794
        %v3247 = vpack.c.b16 %v2799, %v2795
        %v3248 = vpack.c.b16 %v2800, %v2796
        %v3249 = vpack.c.b16 %v2805, %v2801
        %v3250 = vpack.c.b16 %v2806, %v2802
        %v3251 = vpack.c.b16 %v2807, %v2803
        %v3252 = vpack.c.b16 %v2808, %v2804
        %v3253 = vpack.c.b16 %v2813, %v2809
        %v3254 = vpack.c.b16 %v2814, %v2810
        %v3255 = vpack.c.b16 %v2815, %v2811
        %v3256 = vpack.c.b16 %v2816, %v2812
        %v3257 = vpack.c.b16 %v2821, %v2817
        %v3258 = vpack.c.b16 %v2822, %v2818
        %v3259 = vpack.c.b16 %v2823, %v2819
        %v3260 = vpack.c.b16 %v2824, %v2820
        %v3261 = vpack.c.b16 %v2829, %v2825
        %v3262 = vpack.c.b16 %v2830, %v2826
        %v3263 = vpack.c.b16 %v2831, %v2827
        %v3264 = vpack.c.b16 %v2832, %v2828
        %v3265 = vpack.c.b16 %v2837, %v2833
        %v3266 = vpack.c.b16 %v2838, %v2834
        %v3267 = vpack.c.b16 %v2839, %v2835
        %v3268 = vpack.c.b16 %v2840, %v2836
        %v3269 = vpack.c.b16 %v2845, %v2841
        %v3270 = vpack.c.b16 %v2846, %v2842
        %v3271 = vpack.c.b16 %v2847, %v2843
        %v3272 = vpack.c.b16 %v2848, %v2844
        %v3273 = vpack.c.b16 %v2853, %v2849
        %v3274 = vpack.c.b16 %v2854, %v2850
        %v3275 = vpack.c.b16 %v2855, %v2851
        %v3276 = vpack.c.b16 %v2856, %v2852
        %v3277 = vpack.c.b16 %v2861, %v2857
        %v3278 = vpack.c.b16 %v2862, %v2858
        %v3279 = vpack.c.b16 %v2863, %v2859
        %v3280 = vpack.c.b16 %v2864, %v2860
        %v3281 = vpack.c.b16 %v2869, %v2865
        %v3282 = vpack.c.b16 %v2870, %v2866
        %v3283 = vpack.c.b16 %v2871, %v2867
        %v3284 = vpack.c.b16 %v2872, %v2868
        %v3285 = vpack.c.b16 %v2877, %v2873
        %v3286 = vpack.c.b16 %v2878, %v2874
        %v3287 = vpack.c.b16 %v2879, %v2875
        %v3288 = vpack.c.b16 %v2880, %v2876
        %v3289 = vpack.c.b16 %v2885, %v2881
        %v3290 = vpack.c.b16 %v2886, %v2882
        %v3291 = vpack.c.b16 %v2887, %v2883
        %v3292 = vpack.c.b16 %v2888, %v2884
        %v3293 = vpack.c.b16 %v2893, %v2889
        %v3294 = vpack.c.b16 %v2894, %v2890
        %v3295 = vpack.c.b16 %v2895, %v2891
        %v3296 = vpack.c.b16 %v2896, %v2892
        %v3297 = vpack.c.b16 %v2901, %v2897
        %v3298 = vpack.c.b16 %v2902, %v2898
        %v3299 = vpack.c.b16 %v2903, %v2899
        %v3300 = vpack.c.b16 %v2904, %v2900
        %v3301 = vpack.c.b16 %v2909, %v2905
        %v3302 = vpack.c.b16 %v2910, %v2906
        %v3303 = vpack.c.b16 %v2911, %v2907
        %v3304 = vpack.c.b16 %v2912, %v2908
        %v3305 = vpack.c.b16 %v2917, %v2913
        %v3306 = vpack.c.b16 %v2918, %v2914
        %v3307 = vpack.c.b16 %v2919, %v2915
        %v3308 = vpack.c.b16 %v2920, %v2916
        %v3309 = vpack.c.b16 %v2925, %v2921
        %v3310 = vpack.c.b16 %v2926, %v2922
        %v3311 = vpack.c.b16 %v2927, %v2923
        %v3312 = vpack.c.b16 %v2928, %v2924
        %v3313 = vpack.c.b16 %v2933, %v2929
        %v3314 = vpack.c.b16 %v2934, %v2930
        %v3315 = vpack.c.b16 %v2935, %v2931
        %v3316 = vpack.c.b16 %v2936, %v2932
        %v3317 = vpack.c.b16 %v2941, %v2937
        %v3318 = vpack.c.b16 %v2942, %v2938
        %v3319 = vpack.c.b16 %v2943, %v2939
        %v3320 = vpack.c.b16 %v2944, %v2940
        %v3321 = vpack.c.b16 %v2949, %v2945
        %v3322 = vpack.c.b16 %v2950, %v2946
        %v3323 = vpack.c.b16 %v2951, %v2947
        %v3324 = vpack.c.b16 %v2952, %v2948
        %v3325 = vpack.c.b16 %v2957, %v2953
        %v3326 = vpack.c.b16 %v2958, %v2954
        %v3327 = vpack.c.b16 %v2959, %v2955
        %v3328 = vpack.c.b16 %v2960, %v2956
        %v3329 = vpack.c.b16 %v2965, %v2961
        %v3330 = vpack.c.b16 %v2966, %v2962
        %v3331 = vpack.c.b16 %v2967, %v2963
        %v3332 = vpack.c.b16 %v2968, %v2964
        %v3333 = vpack.c.b16 %v2973, %v2969
        %v3334 = vpack.c.b16 %v2974, %v2970
        %v3335 = vpack.c.b16 %v2975, %v2971
        %v3336 = vpack.c.b16 %v2976, %v2972
        %v3337 = vpack.c.b16 %v2981, %v2977
        %v3338 = vpack.c.b16 %v2982, %v2978
        %v3339 = vpack.c.b16 %v2983, %v2979
        %v3340 = vpack.c.b16 %v2984, %v2980
        %v3341 = vpack.c.b16 %v2989, %v2985
        %v3342 = vpack.c.b16 %v2990, %v2986
        %v3343 = vpack.c.b16 %v2991, %v2987
        %v3344 = vpack.c.b16 %v2992, %v2988
        %v3345 = vpack.c.b16 %v2997, %v2993
        %v3346 = vpack.c.b16 %v2998, %v2994
        %v3347 = vpack.c.b16 %v2999, %v2995
        %v3348 = vpack.c.b16 %v3000, %v2996
        %v3349 = vpack.c.b16 %v3005, %v3001
        %v3350 = vpack.c.b16 %v3006, %v3002
        %v3351 = vpack.c.b16 %v3007, %v3003
        %v3352 = vpack.c.b16 %v3008, %v3004
        %v3353 = vpack.c.b16 %v3013, %v3009
        %v3354 = vpack.c.b16 %v3014, %v3010
        %v3355 = vpack.c.b16 %v3015, %v3011
        %v3356 = vpack.c.b16 %v3016, %v3012
        %v3357 = vpack.c.b16 %v3021, %v3017
        %v3358 = vpack.c.b16 %v3022, %v3018
        %v3359 = vpack.c.b16 %v3023, %v3019
        %v3360 = vpack.c.b16 %v3024, %v3020
        %v3361 = vpack.c.b16 %v3029, %v3025
        %v3362 = vpack.c.b16 %v3030, %v3026
        %v3363 = vpack.c.b16 %v3031, %v3027
        %v3364 = vpack.c.b16 %v3032, %v3028
        %v3365 = vpack.c.b16 %v3037, %v3033
        %v3366 = vpack.c.b16 %v3038, %v3034
        %v3367 = vpack.c.b16 %v3039, %v3035
        %v3368 = vpack.c.b16 %v3040, %v3036
        %v3369 = vpack.c.b16 %v3045, %v3041
        %v3370 = vpack.c.b16 %v3046, %v3042
        %v3371 = vpack.c.b16 %v3047, %v3043
        %v3372 = vpack.c.b16 %v3048, %v3044
        %v3373 = vpack.c.b16 %v3053, %v3049
        %v3374 = vpack.c.b16 %v3054, %v3050
        %v3375 = vpack.c.b16 %v3055, %v3051
        %v3376 = vpack.c.b16 %v3056, %v3052
        %v3377 = vpack.c.b16 %v3061, %v3057
        %v3378 = vpack.c.b16 %v3062, %v3058
        %v3379 = vpack.c.b16 %v3063, %v3059
        %v3380 = vpack.c.b16 %v3064, %v3060
        %v3381 = vpack.c.b16 %v3069, %v3065
        %v3382 = vpack.c.b16 %v3070, %v3066
        %v3383 = vpack.c.b16 %v3071, %v3067
        %v3384 = vpack.c.b16 %v3072, %v3068
        %v3385 = vpack.c.b16 %v3077, %v3073
        %v3386 = vpack.c.b16 %v3078, %v3074
        %v3387 = vpack.c.b16 %v3079, %v3075
        %v3388 = vpack.c.b16 %v3080, %v3076
        %v3389 = vpack.c.b16 %v3085, %v3081
        %v3390 = vpack.c.b16 %v3086, %v3082
        %v3391 = vpack.c.b16 %v3087, %v3083
        %v3392 = vpack.c.b16 %v3088, %v3084
        %v3393 = vpack.c.b16 %v3093, %v3089
        %v3394 = vpack.c.b16 %v3094, %v3090
        %v3395 = vpack.c.b16 %v3095, %v3091
        %v3396 = vpack.c.b16 %v3096, %v3092
        %v3397 = vpack.c.b16 %v3101, %v3097
        %v3398 = vpack.c.b16 %v3102, %v3098
        %v3399 = vpack.c.b16 %v3103, %v3099
        %v3400 = vpack.c.b16 %v3104, %v3100
        %v3401 = vpack.c.b16 %v3109, %v3105
        %v3402 = vpack.c.b16 %v3110, %v3106
        %v3403 = vpack.c.b16 %v3111, %v3107
        %v3404 = vpack.c.b16 %v3112, %v3108
        %v3405 = vpack.c.b16 %v3117, %v3113
        %v3406 = vpack.c.b16 %v3118, %v3114
        %v3407 = vpack.c.b16 %v3119, %v3115
        %v3408 = vpack.c.b16 %v3120, %v3116
        %v3409 = vpack.c.b16 %v3125, %v3121
        %v3410 = vpack.c.b16 %v3126, %v3122
        %v3411 = vpack.c.b16 %v3127, %v3123
        %v3412 = vpack.c.b16 %v3128, %v3124
        %v3413 = vpack.c.b16 %v3133, %v3129
        %v3414 = vpack.c.b16 %v3134, %v3130
        %v3415 = vpack.c.b16 %v3135, %v3131
        %v3416 = vpack.c.b16 %v3136, %v3132
        %v3417 = vpack.c.b16 %v3141, %v3137
        %v3418 = vpack.c.b16 %v3142, %v3138
        %v3419 = vpack.c.b16 %v3143, %v3139
        %v3420 = vpack.c.b16 %v3144, %v3140
        %v3421 = vpack.c.b16 %v3149, %v3145
        %v3422 = vpack.c.b16 %v3150, %v3146
        %v3423 = vpack.c.b16 %v3151, %v3147
        %v3424 = vpack.c.b16 %v3152, %v3148
        %v3425 = vpack.c.b16 %v3157, %v3153
        %v3426 = vpack.c.b16 %v3158, %v3154
        %v3427 = vpack.c.b16 %v3159, %v3155
        %v3428 = vpack.c.b16 %v3160, %v3156
        %v3429 = vpack.c.b16 %v3165, %v3161
        %v3430 = vpack.c.b16 %v3166, %v3162
        %v3431 = vpack.c.b16 %v3167, %v3163
        %v3432 = vpack.c.b16 %v3168, %v3164
        %v3433 = vpack.c.b16 %v3173, %v3169
        %v3434 = vpack.c.b16 %v3174, %v3170
        %v3435 = vpack.c.b16 %v3175, %v3171
        %v3436 = vpack.c.b16 %v3176, %v3172
        %v3437 = vpack.c.b16 %v3181, %v3177
        %v3438 = vpack.c.b16 %v3182, %v3178
        %v3439 = vpack.c.b16 %v3183, %v3179
        %v3440 = vpack.c.b16 %v3184, %v3180
        %3697 = vmatpush.bf16.msra.mxu0 %v3213
        %3698 = vmatpush.bf16.msra.mxu0 %v3209
        %3699 = vmatpush.bf16.msra.mxu0 %v3205
        %3700 = vmatpush.bf16.msra.mxu0 %v3201
        %3701 = vmatpush.bf16.msra.mxu0 %v3197
        %3702 = vmatpush.bf16.msra.mxu0 %v3193
        %3703 = vmatpush.bf16.msra.mxu0 %v3189
        %3704 = vmatpush.bf16.msra.mxu0 %v3185
        %3705 = vmatmul.bf16.gmra.mxu0 %v2400
        %v3706 = vpop.f32.mrf.mxu0
        %v3707 = vadd.f32 %v2409, %v3706
        %v3708 = vpop.f32.mrf.mxu0
        %3709 = vdwg.mxu0
        %3710 = vmatpush.bf16.msra.mxu0 %v3245
        %3711 = vmatpush.bf16.msra.mxu0 %v3241
        %3712 = vmatpush.bf16.msra.mxu0 %v3237
        %3713 = vmatpush.bf16.msra.mxu0 %v3233
        %3714 = vmatpush.bf16.msra.mxu0 %v3229
        %3715 = vmatpush.bf16.msra.mxu0 %v3225
        %3716 = vmatpush.bf16.msra.mxu0 %v3221
        %3717 = vmatpush.bf16.msra.mxu0 %v3217
        %3718 = vmatmul.bf16.gmra.mxu0 %v2401
        %v3719 = vpop.f32.mrf.mxu0
        %v3720 = vadd.f32 %v3707, %v3719
        %v3721 = vpop.f32.mrf.mxu0
        %3722 = vdwg.mxu0
        %3723 = vmatpush.bf16.msra.mxu0 %v3277
        %3724 = vmatpush.bf16.msra.mxu0 %v3273
        %3725 = vmatpush.bf16.msra.mxu0 %v3269
        %3726 = vmatpush.bf16.msra.mxu0 %v3265
        %3727 = vmatpush.bf16.msra.mxu0 %v3261
        %3728 = vmatpush.bf16.msra.mxu0 %v3257
        %3729 = vmatpush.bf16.msra.mxu0 %v3253
        %3730 = vmatpush.bf16.msra.mxu0 %v3249
        %3731 = vmatmul.bf16.gmra.mxu0 %v2402
        %v3732 = vpop.f32.mrf.mxu0
        %v3733 = vadd.f32 %v3720, %v3732
        %v3734 = vpop.f32.mrf.mxu0
        %3735 = vdwg.mxu0
        %3736 = vmatpush.bf16.msra.mxu0 %v3309
        %3737 = vmatpush.bf16.msra.mxu0 %v3305
        %3738 = vmatpush.bf16.msra.mxu0 %v3301
        %3739 = vmatpush.bf16.msra.mxu0 %v3297
        %3740 = vmatpush.bf16.msra.mxu0 %v3293
        %3741 = vmatpush.bf16.msra.mxu0 %v3289
        %3742 = vmatpush.bf16.msra.mxu0 %v3285
        %3743 = vmatpush.bf16.msra.mxu0 %v3281
        %3744 = vmatmul.bf16.gmra.mxu0 %v2403
        %v3745 = vpop.f32.mrf.mxu0
        %v3746 = vadd.f32 %v3733, %v3745
        %v3747 = vpop.f32.mrf.mxu0
        %3748 = vdwg.mxu0
        %3749 = vmatpush.bf16.msra.mxu0 %v3341
        %3750 = vmatpush.bf16.msra.mxu0 %v3337
        %3751 = vmatpush.bf16.msra.mxu0 %v3333
        %3752 = vmatpush.bf16.msra.mxu0 %v3329
        %3753 = vmatpush.bf16.msra.mxu0 %v3325
        %3754 = vmatpush.bf16.msra.mxu0 %v3321
        %3755 = vmatpush.bf16.msra.mxu0 %v3317
        %3756 = vmatpush.bf16.msra.mxu0 %v3313
        %3757 = vmatmul.bf16.gmra.mxu0 %v2404
        %v3758 = vpop.f32.mrf.mxu0
        %v3759 = vadd.f32 %v3746, %v3758
        %v3760 = vpop.f32.mrf.mxu0
        %3761 = vdwg.mxu0
        %3762 = vmatpush.bf16.msra.mxu0 %v3373
        %3763 = vmatpush.bf16.msra.mxu0 %v3369
        %3764 = vmatpush.bf16.msra.mxu0 %v3365
        %3765 = vmatpush.bf16.msra.mxu0 %v3361
        %3766 = vmatpush.bf16.msra.mxu0 %v3357
        %3767 = vmatpush.bf16.msra.mxu0 %v3353
        %3768 = vmatpush.bf16.msra.mxu0 %v3349
        %3769 = vmatpush.bf16.msra.mxu0 %v3345
        %3770 = vmatmul.bf16.gmra.mxu0 %v2405
        %v3771 = vpop.f32.mrf.mxu0
        %v3772 = vadd.f32 %v3759, %v3771
        %v3773 = vpop.f32.mrf.mxu0
        %3774 = vdwg.mxu0
        %3775 = vmatpush.bf16.msra.mxu0 %v3405
        %3776 = vmatpush.bf16.msra.mxu0 %v3401
        %3777 = vmatpush.bf16.msra.mxu0 %v3397
        %3778 = vmatpush.bf16.msra.mxu0 %v3393
        %3779 = vmatpush.bf16.msra.mxu0 %v3389
        %3780 = vmatpush.bf16.msra.mxu0 %v3385
        %3781 = vmatpush.bf16.msra.mxu0 %v3381
        %3782 = vmatpush.bf16.msra.mxu0 %v3377
        %3783 = vmatmul.bf16.gmra.mxu0 %v2406
        %v3784 = vpop.f32.mrf.mxu0
        %v3785 = vadd.f32 %v3772, %v3784
        %v3786 = vpop.f32.mrf.mxu0
        %3787 = vdwg.mxu0
        %3788 = vmatpush.bf16.msra.mxu0 %v3437
        %3789 = vmatpush.bf16.msra.mxu0 %v3433
        %3790 = vmatpush.bf16.msra.mxu0 %v3429
        %3791 = vmatpush.bf16.msra.mxu0 %v3425
        %3792 = vmatpush.bf16.msra.mxu0 %v3421
        %3793 = vmatpush.bf16.msra.mxu0 %v3417
        %3794 = vmatpush.bf16.msra.mxu0 %v3413
        %3795 = vmatpush.bf16.msra.mxu0 %v3409
        %3796 = vmatmul.bf16.gmra.mxu0 %v2407
        %v3797 = vpop.f32.mrf.mxu0
        %v3798 = vadd.f32 %v3785, %v3797
        %v3799 = vpop.f32.mrf.mxu0
        %3800 = vdwg.mxu0
        %3801 = vmatpush.bf16.msra.mxu0 %v3214
        %3802 = vmatpush.bf16.msra.mxu0 %v3210
        %3803 = vmatpush.bf16.msra.mxu0 %v3206
        %3804 = vmatpush.bf16.msra.mxu0 %v3202
        %3805 = vmatpush.bf16.msra.mxu0 %v3198
        %3806 = vmatpush.bf16.msra.mxu0 %v3194
        %3807 = vmatpush.bf16.msra.mxu0 %v3190
        %3808 = vmatpush.bf16.msra.mxu0 %v3186
        %3809 = vmatmul.bf16.gmra.mxu0 %v2400
        %v3810 = vpop.f32.mrf.mxu0
        %v3811 = vadd.f32 %v2410, %v3810
        %v3812 = vpop.f32.mrf.mxu0
        %3813 = vdwg.mxu0
        %3814 = vmatpush.bf16.msra.mxu0 %v3246
        %3815 = vmatpush.bf16.msra.mxu0 %v3242
        %3816 = vmatpush.bf16.msra.mxu0 %v3238
        %3817 = vmatpush.bf16.msra.mxu0 %v3234
        %3818 = vmatpush.bf16.msra.mxu0 %v3230
        %3819 = vmatpush.bf16.msra.mxu0 %v3226
        %3820 = vmatpush.bf16.msra.mxu0 %v3222
        %3821 = vmatpush.bf16.msra.mxu0 %v3218
        %3822 = vmatmul.bf16.gmra.mxu0 %v2401
        %v3823 = vpop.f32.mrf.mxu0
        %v3824 = vadd.f32 %v3811, %v3823
        %v3825 = vpop.f32.mrf.mxu0
        %3826 = vdwg.mxu0
        %3827 = vmatpush.bf16.msra.mxu0 %v3278
        %3828 = vmatpush.bf16.msra.mxu0 %v3274
        %3829 = vmatpush.bf16.msra.mxu0 %v3270
        %3830 = vmatpush.bf16.msra.mxu0 %v3266
        %3831 = vmatpush.bf16.msra.mxu0 %v3262
        %3832 = vmatpush.bf16.msra.mxu0 %v3258
        %3833 = vmatpush.bf16.msra.mxu0 %v3254
        %3834 = vmatpush.bf16.msra.mxu0 %v3250
        %3835 = vmatmul.bf16.gmra.mxu0 %v2402
        %v3836 = vpop.f32.mrf.mxu0
        %v3837 = vadd.f32 %v3824, %v3836
        %v3838 = vpop.f32.mrf.mxu0
        %3839 = vdwg.mxu0
        %3840 = vmatpush.bf16.msra.mxu0 %v3310
        %3841 = vmatpush.bf16.msra.mxu0 %v3306
        %3842 = vmatpush.bf16.msra.mxu0 %v3302
        %3843 = vmatpush.bf16.msra.mxu0 %v3298
        %3844 = vmatpush.bf16.msra.mxu0 %v3294
        %3845 = vmatpush.bf16.msra.mxu0 %v3290
        %3846 = vmatpush.bf16.msra.mxu0 %v3286
        %3847 = vmatpush.bf16.msra.mxu0 %v3282
        %3848 = vmatmul.bf16.gmra.mxu0 %v2403
        %v3849 = vpop.f32.mrf.mxu0
        %v3850 = vadd.f32 %v3837, %v3849
        %v3851 = vpop.f32.mrf.mxu0
        %3852 = vdwg.mxu0
        %3853 = vmatpush.bf16.msra.mxu0 %v3342
        %3854 = vmatpush.bf16.msra.mxu0 %v3338
        %3855 = vmatpush.bf16.msra.mxu0 %v3334
        %3856 = vmatpush.bf16.msra.mxu0 %v3330
        %3857 = vmatpush.bf16.msra.mxu0 %v3326
        %3858 = vmatpush.bf16.msra.mxu0 %v3322
        %3859 = vmatpush.bf16.msra.mxu0 %v3318
        %3860 = vmatpush.bf16.msra.mxu0 %v3314
        %3861 = vmatmul.bf16.gmra.mxu0 %v2404
        %v3862 = vpop.f32.mrf.mxu0
        %v3863 = vadd.f32 %v3850, %v3862
        %v3864 = vpop.f32.mrf.mxu0
        %3865 = vdwg.mxu0
        %3866 = vmatpush.bf16.msra.mxu0 %v3374
        %3867 = vmatpush.bf16.msra.mxu0 %v3370
        %3868 = vmatpush.bf16.msra.mxu0 %v3366
        %3869 = vmatpush.bf16.msra.mxu0 %v3362
        %3870 = vmatpush.bf16.msra.mxu0 %v3358
        %3871 = vmatpush.bf16.msra.mxu0 %v3354
        %3872 = vmatpush.bf16.msra.mxu0 %v3350
        %3873 = vmatpush.bf16.msra.mxu0 %v3346
        %3874 = vmatmul.bf16.gmra.mxu0 %v2405
        %v3875 = vpop.f32.mrf.mxu0
        %v3876 = vadd.f32 %v3863, %v3875
        %v3877 = vpop.f32.mrf.mxu0
        %3878 = vdwg.mxu0
        %3879 = vmatpush.bf16.msra.mxu0 %v3406
        %3880 = vmatpush.bf16.msra.mxu0 %v3402
        %3881 = vmatpush.bf16.msra.mxu0 %v3398
        %3882 = vmatpush.bf16.msra.mxu0 %v3394
        %3883 = vmatpush.bf16.msra.mxu0 %v3390
        %3884 = vmatpush.bf16.msra.mxu0 %v3386
        %3885 = vmatpush.bf16.msra.mxu0 %v3382
        %3886 = vmatpush.bf16.msra.mxu0 %v3378
        %3887 = vmatmul.bf16.gmra.mxu0 %v2406
        %v3888 = vpop.f32.mrf.mxu0
        %v3889 = vadd.f32 %v3876, %v3888
        %v3890 = vpop.f32.mrf.mxu0
        %3891 = vdwg.mxu0
        %3892 = vmatpush.bf16.msra.mxu0 %v3438
        %3893 = vmatpush.bf16.msra.mxu0 %v3434
        %3894 = vmatpush.bf16.msra.mxu0 %v3430
        %3895 = vmatpush.bf16.msra.mxu0 %v3426
        %3896 = vmatpush.bf16.msra.mxu0 %v3422
        %3897 = vmatpush.bf16.msra.mxu0 %v3418
        %3898 = vmatpush.bf16.msra.mxu0 %v3414
        %3899 = vmatpush.bf16.msra.mxu0 %v3410
        %3900 = vmatmul.bf16.gmra.mxu0 %v2407
        %v3901 = vpop.f32.mrf.mxu0
        %v3902 = vadd.f32 %v3889, %v3901
        %v3903 = vpop.f32.mrf.mxu0
        %3904 = vdwg.mxu0
        %3905 = vmatpush.bf16.msra.mxu0 %v3215
        %3906 = vmatpush.bf16.msra.mxu0 %v3211
        %3907 = vmatpush.bf16.msra.mxu0 %v3207
        %3908 = vmatpush.bf16.msra.mxu0 %v3203
        %3909 = vmatpush.bf16.msra.mxu0 %v3199
        %3910 = vmatpush.bf16.msra.mxu0 %v3195
        %3911 = vmatpush.bf16.msra.mxu0 %v3191
        %3912 = vmatpush.bf16.msra.mxu0 %v3187
        %3913 = vmatmul.bf16.gmra.mxu0 %v2400
        %v3914 = vpop.f32.mrf.mxu0
        %v3915 = vadd.f32 %v2411, %v3914
        %v3916 = vpop.f32.mrf.mxu0
        %3917 = vdwg.mxu0
        %3918 = vmatpush.bf16.msra.mxu0 %v3247
        %3919 = vmatpush.bf16.msra.mxu0 %v3243
        %3920 = vmatpush.bf16.msra.mxu0 %v3239
        %3921 = vmatpush.bf16.msra.mxu0 %v3235
        %3922 = vmatpush.bf16.msra.mxu0 %v3231
        %3923 = vmatpush.bf16.msra.mxu0 %v3227
        %3924 = vmatpush.bf16.msra.mxu0 %v3223
        %3925 = vmatpush.bf16.msra.mxu0 %v3219
        %3926 = vmatmul.bf16.gmra.mxu0 %v2401
        %v3927 = vpop.f32.mrf.mxu0
        %v3928 = vadd.f32 %v3915, %v3927
        %v3929 = vpop.f32.mrf.mxu0
        %3930 = vdwg.mxu0
        %3931 = vmatpush.bf16.msra.mxu0 %v3279
        %3932 = vmatpush.bf16.msra.mxu0 %v3275
        %3933 = vmatpush.bf16.msra.mxu0 %v3271
        %3934 = vmatpush.bf16.msra.mxu0 %v3267
        %3935 = vmatpush.bf16.msra.mxu0 %v3263
        %3936 = vmatpush.bf16.msra.mxu0 %v3259
        %3937 = vmatpush.bf16.msra.mxu0 %v3255
        %3938 = vmatpush.bf16.msra.mxu0 %v3251
        %3939 = vmatmul.bf16.gmra.mxu0 %v2402
        %v3940 = vpop.f32.mrf.mxu0
        %v3941 = vadd.f32 %v3928, %v3940
        %v3942 = vpop.f32.mrf.mxu0
        %3943 = vdwg.mxu0
        %3944 = vmatpush.bf16.msra.mxu0 %v3311
        %3945 = vmatpush.bf16.msra.mxu0 %v3307
        %3946 = vmatpush.bf16.msra.mxu0 %v3303
        %3947 = vmatpush.bf16.msra.mxu0 %v3299
        %3948 = vmatpush.bf16.msra.mxu0 %v3295
        %3949 = vmatpush.bf16.msra.mxu0 %v3291
        %3950 = vmatpush.bf16.msra.mxu0 %v3287
        %3951 = vmatpush.bf16.msra.mxu0 %v3283
        %3952 = vmatmul.bf16.gmra.mxu0 %v2403
        %v3953 = vpop.f32.mrf.mxu0
        %v3954 = vadd.f32 %v3941, %v3953
        %v3955 = vpop.f32.mrf.mxu0
        %3956 = vdwg.mxu0
        %3957 = vmatpush.bf16.msra.mxu0 %v3343
        %3958 = vmatpush.bf16.msra.mxu0 %v3339
        %3959 = vmatpush.bf16.msra.mxu0 %v3335
        %3960 = vmatpush.bf16.msra.mxu0 %v3331
        %3961 = vmatpush.bf16.msra.mxu0 %v3327
        %3962 = vmatpush.bf16.msra.mxu0 %v3323
        %3963 = vmatpush.bf16.msra.mxu0 %v3319
        %3964 = vmatpush.bf16.msra.mxu0 %v3315
        %3965 = vmatmul.bf16.gmra.mxu0 %v2404
        %v3966 = vpop.f32.mrf.mxu0
        %v3967 = vadd.f32 %v3954, %v3966
        %v3968 = vpop.f32.mrf.mxu0
        %3969 = vdwg.mxu0
        %3970 = vmatpush.bf16.msra.mxu0 %v3375
        %3971 = vmatpush.bf16.msra.mxu0 %v3371
        %3972 = vmatpush.bf16.msra.mxu0 %v3367
        %3973 = vmatpush.bf16.msra.mxu0 %v3363
        %3974 = vmatpush.bf16.msra.mxu0 %v3359
        %3975 = vmatpush.bf16.msra.mxu0 %v3355
        %3976 = vmatpush.bf16.msra.mxu0 %v3351
        %3977 = vmatpush.bf16.msra.mxu0 %v3347
        %3978 = vmatmul.bf16.gmra.mxu0 %v2405
        %v3979 = vpop.f32.mrf.mxu0
        %v3980 = vadd.f32 %v3967, %v3979
        %v3981 = vpop.f32.mrf.mxu0
        %3982 = vdwg.mxu0
        %3983 = vmatpush.bf16.msra.mxu0 %v3407
        %3984 = vmatpush.bf16.msra.mxu0 %v3403
        %3985 = vmatpush.bf16.msra.mxu0 %v3399
        %3986 = vmatpush.bf16.msra.mxu0 %v3395
        %3987 = vmatpush.bf16.msra.mxu0 %v3391
        %3988 = vmatpush.bf16.msra.mxu0 %v3387
        %3989 = vmatpush.bf16.msra.mxu0 %v3383
        %3990 = vmatpush.bf16.msra.mxu0 %v3379
        %3991 = vmatmul.bf16.gmra.mxu0 %v2406
        %v3992 = vpop.f32.mrf.mxu0
        %v3993 = vadd.f32 %v3980, %v3992
        %v3994 = vpop.f32.mrf.mxu0
        %3995 = vdwg.mxu0
        %3996 = vmatpush.bf16.msra.mxu0 %v3439
        %3997 = vmatpush.bf16.msra.mxu0 %v3435
        %3998 = vmatpush.bf16.msra.mxu0 %v3431
        %3999 = vmatpush.bf16.msra.mxu0 %v3427
        %4000 = vmatpush.bf16.msra.mxu0 %v3423
        %4001 = vmatpush.bf16.msra.mxu0 %v3419
        %4002 = vmatpush.bf16.msra.mxu0 %v3415
        %4003 = vmatpush.bf16.msra.mxu0 %v3411
        %4004 = vmatmul.bf16.gmra.mxu0 %v2407
        %v4005 = vpop.f32.mrf.mxu0
        %v4006 = vadd.f32 %v3993, %v4005
        %v4007 = vpop.f32.mrf.mxu0
        %4008 = vdwg.mxu0
        %4009 = vmatpush.bf16.msra.mxu0 %v3216
        %4010 = vmatpush.bf16.msra.mxu0 %v3212
        %4011 = vmatpush.bf16.msra.mxu0 %v3208
        %4012 = vmatpush.bf16.msra.mxu0 %v3204
        %4013 = vmatpush.bf16.msra.mxu0 %v3200
        %4014 = vmatpush.bf16.msra.mxu0 %v3196
        %4015 = vmatpush.bf16.msra.mxu0 %v3192
        %4016 = vmatpush.bf16.msra.mxu0 %v3188
        %4017 = vmatmul.bf16.gmra.mxu0 %v2400
        %v4018 = vpop.f32.mrf.mxu0
        %v4019 = vadd.f32 %v2412, %v4018
        %v4020 = vpop.f32.mrf.mxu0
        %4021 = vdwg.mxu0
        %4022 = vmatpush.bf16.msra.mxu0 %v3248
        %4023 = vmatpush.bf16.msra.mxu0 %v3244
        %4024 = vmatpush.bf16.msra.mxu0 %v3240
        %4025 = vmatpush.bf16.msra.mxu0 %v3236
        %4026 = vmatpush.bf16.msra.mxu0 %v3232
        %4027 = vmatpush.bf16.msra.mxu0 %v3228
        %4028 = vmatpush.bf16.msra.mxu0 %v3224
        %4029 = vmatpush.bf16.msra.mxu0 %v3220
        %4030 = vmatmul.bf16.gmra.mxu0 %v2401
        %v4031 = vpop.f32.mrf.mxu0
        %v4032 = vadd.f32 %v4019, %v4031
        %v4033 = vpop.f32.mrf.mxu0
        %4034 = vdwg.mxu0
        %4035 = vmatpush.bf16.msra.mxu0 %v3280
        %4036 = vmatpush.bf16.msra.mxu0 %v3276
        %4037 = vmatpush.bf16.msra.mxu0 %v3272
        %4038 = vmatpush.bf16.msra.mxu0 %v3268
        %4039 = vmatpush.bf16.msra.mxu0 %v3264
        %4040 = vmatpush.bf16.msra.mxu0 %v3260
        %4041 = vmatpush.bf16.msra.mxu0 %v3256
        %4042 = vmatpush.bf16.msra.mxu0 %v3252
        %4043 = vmatmul.bf16.gmra.mxu0 %v2402
        %v4044 = vpop.f32.mrf.mxu0
        %v4045 = vadd.f32 %v4032, %v4044
        %v4046 = vpop.f32.mrf.mxu0
        %4047 = vdwg.mxu0
        %4048 = vmatpush.bf16.msra.mxu0 %v3312
        %4049 = vmatpush.bf16.msra.mxu0 %v3308
        %4050 = vmatpush.bf16.msra.mxu0 %v3304
        %4051 = vmatpush.bf16.msra.mxu0 %v3300
        %4052 = vmatpush.bf16.msra.mxu0 %v3296
        %4053 = vmatpush.bf16.msra.mxu0 %v3292
        %4054 = vmatpush.bf16.msra.mxu0 %v3288
        %4055 = vmatpush.bf16.msra.mxu0 %v3284
        %4056 = vmatmul.bf16.gmra.mxu0 %v2403
        %v4057 = vpop.f32.mrf.mxu0
        %v4058 = vadd.f32 %v4045, %v4057
        %v4059 = vpop.f32.mrf.mxu0
        %4060 = vdwg.mxu0
        %4061 = vmatpush.bf16.msra.mxu0 %v3344
        %4062 = vmatpush.bf16.msra.mxu0 %v3340
        %4063 = vmatpush.bf16.msra.mxu0 %v3336
        %4064 = vmatpush.bf16.msra.mxu0 %v3332
        %4065 = vmatpush.bf16.msra.mxu0 %v3328
        %4066 = vmatpush.bf16.msra.mxu0 %v3324
        %4067 = vmatpush.bf16.msra.mxu0 %v3320
        %4068 = vmatpush.bf16.msra.mxu0 %v3316
        %4069 = vmatmul.bf16.gmra.mxu0 %v2404
        %v4070 = vpop.f32.mrf.mxu0
        %v4071 = vadd.f32 %v4058, %v4070
        %v4072 = vpop.f32.mrf.mxu0
        %4073 = vdwg.mxu0
        %4074 = vmatpush.bf16.msra.mxu0 %v3376
        %4075 = vmatpush.bf16.msra.mxu0 %v3372
        %4076 = vmatpush.bf16.msra.mxu0 %v3368
        %4077 = vmatpush.bf16.msra.mxu0 %v3364
        %4078 = vmatpush.bf16.msra.mxu0 %v3360
        %4079 = vmatpush.bf16.msra.mxu0 %v3356
        %4080 = vmatpush.bf16.msra.mxu0 %v3352
        %4081 = vmatpush.bf16.msra.mxu0 %v3348
        %4082 = vmatmul.bf16.gmra.mxu0 %v2405
        %v4083 = vpop.f32.mrf.mxu0
        %v4084 = vadd.f32 %v4071, %v4083
        %v4085 = vpop.f32.mrf.mxu0
        %4086 = vdwg.mxu0
        %4087 = vmatpush.bf16.msra.mxu0 %v3408
        %4088 = vmatpush.bf16.msra.mxu0 %v3404
        %4089 = vmatpush.bf16.msra.mxu0 %v3400
        %4090 = vmatpush.bf16.msra.mxu0 %v3396
        %4091 = vmatpush.bf16.msra.mxu0 %v3392
        %4092 = vmatpush.bf16.msra.mxu0 %v3388
        %4093 = vmatpush.bf16.msra.mxu0 %v3384
        %4094 = vmatpush.bf16.msra.mxu0 %v3380
        %4095 = vmatmul.bf16.gmra.mxu0 %v2406
        %v4096 = vpop.f32.mrf.mxu0
        %v4097 = vadd.f32 %v4084, %v4096
        %v4098 = vpop.f32.mrf.mxu0
        %4099 = vdwg.mxu0
        %4100 = vmatpush.bf16.msra.mxu0 %v3440
        %4101 = vmatpush.bf16.msra.mxu0 %v3436
        %4102 = vmatpush.bf16.msra.mxu0 %v3432
        %4103 = vmatpush.bf16.msra.mxu0 %v3428
        %4104 = vmatpush.bf16.msra.mxu0 %v3424
        %4105 = vmatpush.bf16.msra.mxu0 %v3420
        %4106 = vmatpush.bf16.msra.mxu0 %v3416
        %4107 = vmatpush.bf16.msra.mxu0 %v3412
        %4108 = vmatmul.bf16.gmra.mxu0 %v2407
        %v4109 = vpop.f32.mrf.mxu0
        %v4110 = vadd.f32 %v4097, %v4109
        %v4111 = vpop.f32.mrf.mxu0
        %4112 = vdwg.mxu0
        %vm4113 = vcmp.ge.f32.partialorder %v3798, 0.0
        %vm4114 = vcmp.ge.f32.partialorder %v3902, 0.0
        %vm4115 = vcmp.ge.f32.partialorder %v4006, 0.0
        %vm4116 = vcmp.ge.f32.partialorder %v4110, 0.0
        %v4117 = vmul.f32 %v3798, 0.01
        %v4118 = vmul.f32 %v3902, 0.01
        %v4119 = vmul.f32 %v4006, 0.01
        %v4120 = vmul.f32 %v4110, 0.01
        %v4121 = vsel %vm4113, %v3798, %v4117
        %v4122 = vsel %vm4114, %v3902, %v4118
        %v4123 = vsel %vm4115, %v4006, %v4119
        %v4124 = vsel %vm4116, %v4110, %v4120
        %v4125 = vld [vmem:[#allocation11] sm:$0xff]
        %v4126 = vld [vmem:[#allocation11 + $0x8] sm:$0xff]
        %v4127 = vld [vmem:[#allocation11 + $0x10] sm:$0xff]
        %v4128 = vld [vmem:[#allocation11 + $0x18] sm:$0xff]
        %v4129 = vld [vmem:[#allocation11 + $0x20] sm:$0xff]
        %v4130 = vld [vmem:[#allocation11 + $0x28] sm:$0xff]
        %v4131 = vld [vmem:[#allocation11 + $0x30] sm:$0xff]
        %v4132 = vld [vmem:[#allocation11 + $0x38] sm:$0xff]
        %v4133 = vld [vmem:[#allocation11 + $0x40] sm:$0xff]
        %v4134 = vld [vmem:[#allocation11 + $0x48] sm:$0xff]
        %v4135 = vld [vmem:[#allocation11 + $0x50] sm:$0xff]
        %v4136 = vld [vmem:[#allocation11 + $0x58] sm:$0xff]
        %v4137 = vld [vmem:[#allocation11 + $0x60] sm:$0xff]
        %v4138 = vld [vmem:[#allocation11 + $0x68] sm:$0xff]
        %v4139 = vld [vmem:[#allocation11 + $0x70] sm:$0xff]
        %v4140 = vld [vmem:[#allocation11 + $0x78] sm:$0xff]
        %v4141 = vld [vmem:[#allocation11 + $0x80] sm:$0xff]
        %v4142 = vld [vmem:[#allocation11 + $0x88] sm:$0xff]
        %v4143 = vld [vmem:[#allocation11 + $0x90] sm:$0xff]
        %v4144 = vld [vmem:[#allocation11 + $0x98] sm:$0xff]
        %v4145 = vld [vmem:[#allocation11 + $0xa0] sm:$0xff]
        %v4146 = vld [vmem:[#allocation11 + $0xa8] sm:$0xff]
        %v4147 = vld [vmem:[#allocation11 + $0xb0] sm:$0xff]
        %v4148 = vld [vmem:[#allocation11 + $0xb8] sm:$0xff]
        %v4149 = vld [vmem:[#allocation11 + $0xc0] sm:$0xff]
        %v4150 = vld [vmem:[#allocation11 + $0xc8] sm:$0xff]
        %v4151 = vld [vmem:[#allocation11 + $0xd0] sm:$0xff]
        %v4152 = vld [vmem:[#allocation11 + $0xd8] sm:$0xff]
        %v4153 = vld [vmem:[#allocation11 + $0xe0] sm:$0xff]
        %v4154 = vld [vmem:[#allocation11 + $0xe8] sm:$0xff]
        %v4155 = vld [vmem:[#allocation11 + $0xf0] sm:$0xff]
        %v4156 = vld [vmem:[#allocation11 + $0xf8] sm:$0xff]
        %v4157 = vld [vmem:[#allocation11 + $0x100] sm:$0xff]
        %v4158 = vld [vmem:[#allocation11 + $0x108] sm:$0xff]
        %v4159 = vld [vmem:[#allocation11 + $0x110] sm:$0xff]
        %v4160 = vld [vmem:[#allocation11 + $0x118] sm:$0xff]
        %v4161 = vld [vmem:[#allocation11 + $0x120] sm:$0xff]
        %v4162 = vld [vmem:[#allocation11 + $0x128] sm:$0xff]
        %v4163 = vld [vmem:[#allocation11 + $0x130] sm:$0xff]
        %v4164 = vld [vmem:[#allocation11 + $0x138] sm:$0xff]
        %v4165 = vld [vmem:[#allocation11 + $0x140] sm:$0xff]
        %v4166 = vld [vmem:[#allocation11 + $0x148] sm:$0xff]
        %v4167 = vld [vmem:[#allocation11 + $0x150] sm:$0xff]
        %v4168 = vld [vmem:[#allocation11 + $0x158] sm:$0xff]
        %v4169 = vld [vmem:[#allocation11 + $0x160] sm:$0xff]
        %v4170 = vld [vmem:[#allocation11 + $0x168] sm:$0xff]
        %v4171 = vld [vmem:[#allocation11 + $0x170] sm:$0xff]
        %v4172 = vld [vmem:[#allocation11 + $0x178] sm:$0xff]
        %v4173 = vld [vmem:[#allocation11 + $0x180] sm:$0xff]
        %v4174 = vld [vmem:[#allocation11 + $0x188] sm:$0xff]
        %v4175 = vld [vmem:[#allocation11 + $0x190] sm:$0xff]
        %v4176 = vld [vmem:[#allocation11 + $0x198] sm:$0xff]
        %v4177 = vld [vmem:[#allocation11 + $0x1a0] sm:$0xff]
        %v4178 = vld [vmem:[#allocation11 + $0x1a8] sm:$0xff]
        %v4179 = vld [vmem:[#allocation11 + $0x1b0] sm:$0xff]
        %v4180 = vld [vmem:[#allocation11 + $0x1b8] sm:$0xff]
        %v4181 = vld [vmem:[#allocation11 + $0x1c0] sm:$0xff]
        %v4182 = vld [vmem:[#allocation11 + $0x1c8] sm:$0xff]
        %v4183 = vld [vmem:[#allocation11 + $0x1d0] sm:$0xff]
        %v4184 = vld [vmem:[#allocation11 + $0x1d8] sm:$0xff]
        %v4185 = vld [vmem:[#allocation11 + $0x1e0] sm:$0xff]
        %v4186 = vld [vmem:[#allocation11 + $0x1e8] sm:$0xff]
        %v4187 = vld [vmem:[#allocation11 + $0x1f0] sm:$0xff]
        %v4188 = vld [vmem:[#allocation11 + $0x1f8] sm:$0xff]
        %v4189 = vld [vmem:[%s6] sm:$0x3]
        %v4190 = vpack.c.bf16 %v4121, %v4121
        %v4191 = vpack.c.bf16 %v4122, %v4122
        %v4192 = vpack.c.bf16 %v4123, %v4123
        %v4193 = vpack.c.bf16 %v4124, %v4124
        %v4195 = vperm.slane %v4189, 0
        %v4196 = vperm.slane %v4189, 1
        %v4263 = vunpack.c.l.b16 %v4125
        %v4264 = vunpack.c.h.b16 %v4125
        %v4265 = vunpack.c.l.b16 %v4126
        %v4266 = vunpack.c.h.b16 %v4126
        %v4267 = vunpack.c.l.b16 %v4127
        %v4268 = vunpack.c.h.b16 %v4127
        %v4269 = vunpack.c.l.b16 %v4128
        %v4270 = vunpack.c.h.b16 %v4128
        %v4271 = vunpack.c.l.b16 %v4129
        %v4272 = vunpack.c.h.b16 %v4129
        %v4273 = vunpack.c.l.b16 %v4130
        %v4274 = vunpack.c.h.b16 %v4130
        %v4275 = vunpack.c.l.b16 %v4131
        %v4276 = vunpack.c.h.b16 %v4131
        %v4277 = vunpack.c.l.b16 %v4132
        %v4278 = vunpack.c.h.b16 %v4132
        %v4279 = vunpack.c.l.b16 %v4133
        %v4280 = vunpack.c.h.b16 %v4133
        %v4281 = vunpack.c.l.b16 %v4134
        %v4282 = vunpack.c.h.b16 %v4134
        %v4283 = vunpack.c.l.b16 %v4135
        %v4284 = vunpack.c.h.b16 %v4135
        %v4285 = vunpack.c.l.b16 %v4136
        %v4286 = vunpack.c.h.b16 %v4136
        %v4287 = vunpack.c.l.b16 %v4137
        %v4288 = vunpack.c.h.b16 %v4137
        %v4289 = vunpack.c.l.b16 %v4138
        %v4290 = vunpack.c.h.b16 %v4138
        %v4291 = vunpack.c.l.b16 %v4139
        %v4292 = vunpack.c.h.b16 %v4139
        %v4293 = vunpack.c.l.b16 %v4140
        %v4294 = vunpack.c.h.b16 %v4140
        %v4295 = vunpack.c.l.b16 %v4141
        %v4296 = vunpack.c.h.b16 %v4141
        %v4297 = vunpack.c.l.b16 %v4142
        %v4298 = vunpack.c.h.b16 %v4142
        %v4299 = vunpack.c.l.b16 %v4143
        %v4300 = vunpack.c.h.b16 %v4143
        %v4301 = vunpack.c.l.b16 %v4144
        %v4302 = vunpack.c.h.b16 %v4144
        %v4303 = vunpack.c.l.b16 %v4145
        %v4304 = vunpack.c.h.b16 %v4145
        %v4305 = vunpack.c.l.b16 %v4146
        %v4306 = vunpack.c.h.b16 %v4146
        %v4307 = vunpack.c.l.b16 %v4147
        %v4308 = vunpack.c.h.b16 %v4147
        %v4309 = vunpack.c.l.b16 %v4148
        %v4310 = vunpack.c.h.b16 %v4148
        %v4311 = vunpack.c.l.b16 %v4149
        %v4312 = vunpack.c.h.b16 %v4149
        %v4313 = vunpack.c.l.b16 %v4150
        %v4314 = vunpack.c.h.b16 %v4150
        %v4315 = vunpack.c.l.b16 %v4151
        %v4316 = vunpack.c.h.b16 %v4151
        %v4317 = vunpack.c.l.b16 %v4152
        %v4318 = vunpack.c.h.b16 %v4152
        %v4319 = vunpack.c.l.b16 %v4153
        %v4320 = vunpack.c.h.b16 %v4153
        %v4321 = vunpack.c.l.b16 %v4154
        %v4322 = vunpack.c.h.b16 %v4154
        %v4323 = vunpack.c.l.b16 %v4155
        %v4324 = vunpack.c.h.b16 %v4155
        %v4325 = vunpack.c.l.b16 %v4156
        %v4326 = vunpack.c.h.b16 %v4156
        %v4327 = vunpack.c.l.b16 %v4157
        %v4328 = vunpack.c.h.b16 %v4157
        %v4329 = vunpack.c.l.b16 %v4158
        %v4330 = vunpack.c.h.b16 %v4158
        %v4331 = vunpack.c.l.b16 %v4159
        %v4332 = vunpack.c.h.b16 %v4159
        %v4333 = vunpack.c.l.b16 %v4160
        %v4334 = vunpack.c.h.b16 %v4160
        %v4335 = vunpack.c.l.b16 %v4161
        %v4336 = vunpack.c.h.b16 %v4161
        %v4337 = vunpack.c.l.b16 %v4162
        %v4338 = vunpack.c.h.b16 %v4162
        %v4339 = vunpack.c.l.b16 %v4163
        %v4340 = vunpack.c.h.b16 %v4163
        %v4341 = vunpack.c.l.b16 %v4164
        %v4342 = vunpack.c.h.b16 %v4164
        %v4343 = vunpack.c.l.b16 %v4165
        %v4344 = vunpack.c.h.b16 %v4165
        %v4345 = vunpack.c.l.b16 %v4166
        %v4346 = vunpack.c.h.b16 %v4166
        %v4347 = vunpack.c.l.b16 %v4167
        %v4348 = vunpack.c.h.b16 %v4167
        %v4349 = vunpack.c.l.b16 %v4168
        %v4350 = vunpack.c.h.b16 %v4168
        %v4351 = vunpack.c.l.b16 %v4169
        %v4352 = vunpack.c.h.b16 %v4169
        %v4353 = vunpack.c.l.b16 %v4170
        %v4354 = vunpack.c.h.b16 %v4170
        %v4355 = vunpack.c.l.b16 %v4171
        %v4356 = vunpack.c.h.b16 %v4171
        %v4357 = vunpack.c.l.b16 %v4172
        %v4358 = vunpack.c.h.b16 %v4172
        %v4359 = vunpack.c.l.b16 %v4173
        %v4360 = vunpack.c.h.b16 %v4173
        %v4361 = vunpack.c.l.b16 %v4174
        %v4362 = vunpack.c.h.b16 %v4174
        %v4363 = vunpack.c.l.b16 %v4175
        %v4364 = vunpack.c.h.b16 %v4175
        %v4365 = vunpack.c.l.b16 %v4176
        %v4366 = vunpack.c.h.b16 %v4176
        %v4367 = vunpack.c.l.b16 %v4177
        %v4368 = vunpack.c.h.b16 %v4177
        %v4369 = vunpack.c.l.b16 %v4178
        %v4370 = vunpack.c.h.b16 %v4178
        %v4371 = vunpack.c.l.b16 %v4179
        %v4372 = vunpack.c.h.b16 %v4179
        %v4373 = vunpack.c.l.b16 %v4180
        %v4374 = vunpack.c.h.b16 %v4180
        %v4375 = vunpack.c.l.b16 %v4181
        %v4376 = vunpack.c.h.b16 %v4181
        %v4377 = vunpack.c.l.b16 %v4182
        %v4378 = vunpack.c.h.b16 %v4182
        %v4379 = vunpack.c.l.b16 %v4183
        %v4380 = vunpack.c.h.b16 %v4183
        %v4381 = vunpack.c.l.b16 %v4184
        %v4382 = vunpack.c.h.b16 %v4184
        %v4383 = vunpack.c.l.b16 %v4185
        %v4384 = vunpack.c.h.b16 %v4185
        %v4385 = vunpack.c.l.b16 %v4186
        %v4386 = vunpack.c.h.b16 %v4186
        %v4387 = vunpack.c.l.b16 %v4187
        %v4388 = vunpack.c.h.b16 %v4187
        %v4389 = vunpack.c.l.b16 %v4188
        %v4390 = vunpack.c.h.b16 %v4188
        %v4391 = vpack.c.b16 %v4265, %v4263
        %v4392 = vpack.c.b16 %v4266, %v4264
        %v4393 = vpack.c.b16 %v4269, %v4267
        %v4394 = vpack.c.b16 %v4270, %v4268
        %v4395 = vpack.c.b16 %v4273, %v4271
        %v4396 = vpack.c.b16 %v4274, %v4272
        %v4397 = vpack.c.b16 %v4277, %v4275
        %v4398 = vpack.c.b16 %v4278, %v4276
        %v4399 = vpack.c.b16 %v4281, %v4279
        %v4400 = vpack.c.b16 %v4282, %v4280
        %v4401 = vpack.c.b16 %v4285, %v4283
        %v4402 = vpack.c.b16 %v4286, %v4284
        %v4403 = vpack.c.b16 %v4289, %v4287
        %v4404 = vpack.c.b16 %v4290, %v4288
        %v4405 = vpack.c.b16 %v4293, %v4291
        %v4406 = vpack.c.b16 %v4294, %v4292
        %v4407 = vpack.c.b16 %v4297, %v4295
        %v4408 = vpack.c.b16 %v4298, %v4296
        %v4409 = vpack.c.b16 %v4301, %v4299
        %v4410 = vpack.c.b16 %v4302, %v4300
        %v4411 = vpack.c.b16 %v4305, %v4303
        %v4412 = vpack.c.b16 %v4306, %v4304
        %v4413 = vpack.c.b16 %v4309, %v4307
        %v4414 = vpack.c.b16 %v4310, %v4308
        %v4415 = vpack.c.b16 %v4313, %v4311
        %v4416 = vpack.c.b16 %v4314, %v4312
        %v4417 = vpack.c.b16 %v4317, %v4315
        %v4418 = vpack.c.b16 %v4318, %v4316
        %v4419 = vpack.c.b16 %v4321, %v4319
        %v4420 = vpack.c.b16 %v4322, %v4320
        %v4421 = vpack.c.b16 %v4325, %v4323
        %v4422 = vpack.c.b16 %v4326, %v4324
        %v4423 = vpack.c.b16 %v4329, %v4327
        %v4424 = vpack.c.b16 %v4330, %v4328
        %v4425 = vpack.c.b16 %v4333, %v4331
        %v4426 = vpack.c.b16 %v4334, %v4332
        %v4427 = vpack.c.b16 %v4337, %v4335
        %v4428 = vpack.c.b16 %v4338, %v4336
        %v4429 = vpack.c.b16 %v4341, %v4339
        %v4430 = vpack.c.b16 %v4342, %v4340
        %v4431 = vpack.c.b16 %v4345, %v4343
        %v4432 = vpack.c.b16 %v4346, %v4344
        %v4433 = vpack.c.b16 %v4349, %v4347
        %v4434 = vpack.c.b16 %v4350, %v4348
        %v4435 = vpack.c.b16 %v4353, %v4351
        %v4436 = vpack.c.b16 %v4354, %v4352
        %v4437 = vpack.c.b16 %v4357, %v4355
        %v4438 = vpack.c.b16 %v4358, %v4356
        %v4439 = vpack.c.b16 %v4361, %v4359
        %v4440 = vpack.c.b16 %v4362, %v4360
        %v4441 = vpack.c.b16 %v4365, %v4363
        %v4442 = vpack.c.b16 %v4366, %v4364
        %v4443 = vpack.c.b16 %v4369, %v4367
        %v4444 = vpack.c.b16 %v4370, %v4368
        %v4445 = vpack.c.b16 %v4373, %v4371
        %v4446 = vpack.c.b16 %v4374, %v4372
        %v4447 = vpack.c.b16 %v4377, %v4375
        %v4448 = vpack.c.b16 %v4378, %v4376
        %v4449 = vpack.c.b16 %v4381, %v4379
        %v4450 = vpack.c.b16 %v4382, %v4380
        %v4451 = vpack.c.b16 %v4385, %v4383
        %v4452 = vpack.c.b16 %v4386, %v4384
        %v4453 = vpack.c.b16 %v4389, %v4387
        %v4454 = vpack.c.b16 %v4390, %v4388
        %4519 = vmatpush.bf16.msra.mxu0 %v4405
        %4520 = vmatpush.bf16.msra.mxu0 %v4403
        %4521 = vmatpush.bf16.msra.mxu0 %v4401
        %4522 = vmatpush.bf16.msra.mxu0 %v4399
        %4523 = vmatpush.bf16.msra.mxu0 %v4397
        %4524 = vmatpush.bf16.msra.mxu0 %v4395
        %4525 = vmatpush.bf16.msra.mxu0 %v4393
        %4526 = vmatpush.bf16.msra.mxu0 %v4391
        %4527 = vmatmul.bf16.gmra.mxu0 %v4190
        %v4528 = vpop.f32.mrf.mxu0
        %v4529 = vadd.f32 %v4195, %v4528
        %v4530 = vpop.f32.mrf.mxu0
        %4531 = vdwg.mxu0
        %4532 = vmatpush.bf16.msra.mxu0 %v4421
        %4533 = vmatpush.bf16.msra.mxu0 %v4419
        %4534 = vmatpush.bf16.msra.mxu0 %v4417
        %4535 = vmatpush.bf16.msra.mxu0 %v4415
        %4536 = vmatpush.bf16.msra.mxu0 %v4413
        %4537 = vmatpush.bf16.msra.mxu0 %v4411
        %4538 = vmatpush.bf16.msra.mxu0 %v4409
        %4539 = vmatpush.bf16.msra.mxu0 %v4407
        %4540 = vmatmul.bf16.gmra.mxu0 %v4191
        %v4541 = vpop.f32.mrf.mxu0
        %v4542 = vadd.f32 %v4529, %v4541
        %v4543 = vpop.f32.mrf.mxu0
        %4544 = vdwg.mxu0
        %4545 = vmatpush.bf16.msra.mxu0 %v4437
        %4546 = vmatpush.bf16.msra.mxu0 %v4435
        %4547 = vmatpush.bf16.msra.mxu0 %v4433
        %4548 = vmatpush.bf16.msra.mxu0 %v4431
        %4549 = vmatpush.bf16.msra.mxu0 %v4429
        %4550 = vmatpush.bf16.msra.mxu0 %v4427
        %4551 = vmatpush.bf16.msra.mxu0 %v4425
        %4552 = vmatpush.bf16.msra.mxu0 %v4423
        %4553 = vmatmul.bf16.gmra.mxu0 %v4192
        %v4554 = vpop.f32.mrf.mxu0
        %v4555 = vadd.f32 %v4542, %v4554
        %v4556 = vpop.f32.mrf.mxu0
        %4557 = vdwg.mxu0
        %4558 = vmatpush.bf16.msra.mxu0 %v4453
        %4559 = vmatpush.bf16.msra.mxu0 %v4451
        %4560 = vmatpush.bf16.msra.mxu0 %v4449
        %4561 = vmatpush.bf16.msra.mxu0 %v4447
        %4562 = vmatpush.bf16.msra.mxu0 %v4445
        %4563 = vmatpush.bf16.msra.mxu0 %v4443
        %4564 = vmatpush.bf16.msra.mxu0 %v4441
        %4565 = vmatpush.bf16.msra.mxu0 %v4439
        %4566 = vmatmul.bf16.gmra.mxu0 %v4193
        %v4567 = vpop.f32.mrf.mxu0
        %v4568 = vadd.f32 %v4555, %v4567
        %v4569 = vpop.f32.mrf.mxu0
        %4570 = vdwg.mxu0
        %4571 = vmatpush.bf16.msra.mxu0 %v4406
        %4572 = vmatpush.bf16.msra.mxu0 %v4404
        %4573 = vmatpush.bf16.msra.mxu0 %v4402
        %4574 = vmatpush.bf16.msra.mxu0 %v4400
        %4575 = vmatpush.bf16.msra.mxu0 %v4398
        %4576 = vmatpush.bf16.msra.mxu0 %v4396
        %4577 = vmatpush.bf16.msra.mxu0 %v4394
        %4578 = vmatpush.bf16.msra.mxu0 %v4392
        %4579 = vmatmul.bf16.gmra.mxu0 %v4190
        %v4580 = vpop.f32.mrf.mxu0
        %v4581 = vadd.f32 %v4196, %v4580
        %v4582 = vpop.f32.mrf.mxu0
        %4583 = vdwg.mxu0
        %4584 = vmatpush.bf16.msra.mxu0 %v4422
        %4585 = vmatpush.bf16.msra.mxu0 %v4420
        %4586 = vmatpush.bf16.msra.mxu0 %v4418
        %4587 = vmatpush.bf16.msra.mxu0 %v4416
        %4588 = vmatpush.bf16.msra.mxu0 %v4414
        %4589 = vmatpush.bf16.msra.mxu0 %v4412
        %4590 = vmatpush.bf16.msra.mxu0 %v4410
        %4591 = vmatpush.bf16.msra.mxu0 %v4408
        %4592 = vmatmul.bf16.gmra.mxu0 %v4191
        %v4593 = vpop.f32.mrf.mxu0
        %v4594 = vadd.f32 %v4581, %v4593
        %v4595 = vpop.f32.mrf.mxu0
        %4596 = vdwg.mxu0
        %4597 = vmatpush.bf16.msra.mxu0 %v4438
        %4598 = vmatpush.bf16.msra.mxu0 %v4436
        %4599 = vmatpush.bf16.msra.mxu0 %v4434
        %4600 = vmatpush.bf16.msra.mxu0 %v4432
        %4601 = vmatpush.bf16.msra.mxu0 %v4430
        %4602 = vmatpush.bf16.msra.mxu0 %v4428
        %4603 = vmatpush.bf16.msra.mxu0 %v4426
        %4604 = vmatpush.bf16.msra.mxu0 %v4424
        %4605 = vmatmul.bf16.gmra.mxu0 %v4192
        %v4606 = vpop.f32.mrf.mxu0
        %v4607 = vadd.f32 %v4594, %v4606
        %v4608 = vpop.f32.mrf.mxu0
        %4609 = vdwg.mxu0
        %4610 = vmatpush.bf16.msra.mxu0 %v4454
        %4611 = vmatpush.bf16.msra.mxu0 %v4452
        %4612 = vmatpush.bf16.msra.mxu0 %v4450
        %4613 = vmatpush.bf16.msra.mxu0 %v4448
        %4614 = vmatpush.bf16.msra.mxu0 %v4446
        %4615 = vmatpush.bf16.msra.mxu0 %v4444
        %4616 = vmatpush.bf16.msra.mxu0 %v4442
        %4617 = vmatpush.bf16.msra.mxu0 %v4440
        %4618 = vmatmul.bf16.gmra.mxu0 %v4193
        %v4619 = vpop.f32.mrf.mxu0
        %v4620 = vadd.f32 %v4607, %v4619
        %v4621 = vpop.f32.mrf.mxu0
        %4622 = vdwg.mxu0
        %vm4623 = vcmp.ge.f32.partialorder %v4568, 0.0
        %vm4624 = vcmp.ge.f32.partialorder %v4620, 0.0
        %v4625 = vmul.f32 %v4568, 0.01
        %v4626 = vmul.f32 %v4620, 0.01
        %v4627 = vsel %vm4623, %v4568, %v4625
        %v4628 = vsel %vm4624, %v4620, %v4626
        %v4629 = vld [vmem:[#allocation13] sm:$0xf]
        %v4630 = vld [vmem:[#allocation13 + $0x4] sm:$0xf]
        %v4631 = vld [vmem:[#allocation13 + $0x8] sm:$0xf]
        %v4632 = vld [vmem:[#allocation13 + $0xc] sm:$0xf]
        %v4633 = vld [vmem:[#allocation13 + $0x10] sm:$0xf]
        %v4634 = vld [vmem:[#allocation13 + $0x14] sm:$0xf]
        %v4635 = vld [vmem:[#allocation13 + $0x18] sm:$0xf]
        %v4636 = vld [vmem:[#allocation13 + $0x1c] sm:$0xf]
        %v4637 = vld [vmem:[#allocation13 + $0x20] sm:$0xf]
        %v4638 = vld [vmem:[#allocation13 + $0x24] sm:$0xf]
        %v4639 = vld [vmem:[#allocation13 + $0x28] sm:$0xf]
        %v4640 = vld [vmem:[#allocation13 + $0x2c] sm:$0xf]
        %v4641 = vld [vmem:[#allocation13 + $0x30] sm:$0xf]
        %v4642 = vld [vmem:[#allocation13 + $0x34] sm:$0xf]
        %v4643 = vld [vmem:[#allocation13 + $0x38] sm:$0xf]
        %v4644 = vld [vmem:[#allocation13 + $0x3c] sm:$0xf]
        %v4645 = vld [vmem:[#allocation13 + $0x40] sm:$0xf]
        %v4646 = vld [vmem:[#allocation13 + $0x44] sm:$0xf]
        %v4647 = vld [vmem:[#allocation13 + $0x48] sm:$0xf]
        %v4648 = vld [vmem:[#allocation13 + $0x4c] sm:$0xf]
        %v4649 = vld [vmem:[#allocation13 + $0x50] sm:$0xf]
        %v4650 = vld [vmem:[#allocation13 + $0x54] sm:$0xf]
        %v4651 = vld [vmem:[#allocation13 + $0x58] sm:$0xf]
        %v4652 = vld [vmem:[#allocation13 + $0x5c] sm:$0xf]
        %v4653 = vld [vmem:[#allocation13 + $0x60] sm:$0xf]
        %v4654 = vld [vmem:[#allocation13 + $0x64] sm:$0xf]
        %v4655 = vld [vmem:[#allocation13 + $0x68] sm:$0xf]
        %v4656 = vld [vmem:[#allocation13 + $0x6c] sm:$0xf]
        %v4657 = vld [vmem:[#allocation13 + $0x70] sm:$0xf]
        %v4658 = vld [vmem:[#allocation13 + $0x74] sm:$0xf]
        %v4659 = vld [vmem:[#allocation13 + $0x78] sm:$0xf]
        %v4660 = vld [vmem:[#allocation13 + $0x7c] sm:$0xf]
        %v4661 = vld [vmem:[#allocation14] sm:$0x1]
        %v4662 = vpack.c.bf16 %v4627, %v4627
        %v4663 = vpack.c.bf16 %v4628, %v4628
        %v4665 = vperm.slane %v4661, 0
        %v4699 = vunpack.c.l.b16 %v4629
        %v4700 = vunpack.c.l.b16 %v4630
        %v4701 = vunpack.c.l.b16 %v4631
        %v4702 = vunpack.c.l.b16 %v4632
        %v4703 = vunpack.c.l.b16 %v4633
        %v4704 = vunpack.c.l.b16 %v4634
        %v4705 = vunpack.c.l.b16 %v4635
        %v4706 = vunpack.c.l.b16 %v4636
        %v4707 = vunpack.c.l.b16 %v4637
        %v4708 = vunpack.c.l.b16 %v4638
        %v4709 = vunpack.c.l.b16 %v4639
        %v4710 = vunpack.c.l.b16 %v4640
        %v4711 = vunpack.c.l.b16 %v4641
        %v4712 = vunpack.c.l.b16 %v4642
        %v4713 = vunpack.c.l.b16 %v4643
        %v4714 = vunpack.c.l.b16 %v4644
        %v4715 = vunpack.c.l.b16 %v4645
        %v4716 = vunpack.c.l.b16 %v4646
        %v4717 = vunpack.c.l.b16 %v4647
        %v4718 = vunpack.c.l.b16 %v4648
        %v4719 = vunpack.c.l.b16 %v4649
        %v4720 = vunpack.c.l.b16 %v4650
        %v4721 = vunpack.c.l.b16 %v4651
        %v4722 = vunpack.c.l.b16 %v4652
        %v4723 = vunpack.c.l.b16 %v4653
        %v4724 = vunpack.c.l.b16 %v4654
        %v4725 = vunpack.c.l.b16 %v4655
        %v4726 = vunpack.c.l.b16 %v4656
        %v4727 = vunpack.c.l.b16 %v4657
        %v4728 = vunpack.c.l.b16 %v4658
        %v4729 = vunpack.c.l.b16 %v4659
        %v4730 = vunpack.c.l.b16 %v4660
        %v4731 = vpack.c.b16 %v4700, %v4699
        %v4732 = vpack.c.b16 %v4702, %v4701
        %v4733 = vpack.c.b16 %v4704, %v4703
        %v4734 = vpack.c.b16 %v4706, %v4705
        %v4735 = vpack.c.b16 %v4708, %v4707
        %v4736 = vpack.c.b16 %v4710, %v4709
        %v4737 = vpack.c.b16 %v4712, %v4711
        %v4738 = vpack.c.b16 %v4714, %v4713
        %v4739 = vpack.c.b16 %v4716, %v4715
        %v4740 = vpack.c.b16 %v4718, %v4717
        %v4741 = vpack.c.b16 %v4720, %v4719
        %v4742 = vpack.c.b16 %v4722, %v4721
        %v4743 = vpack.c.b16 %v4724, %v4723
        %v4744 = vpack.c.b16 %v4726, %v4725
        %v4745 = vpack.c.b16 %v4728, %v4727
        %v4746 = vpack.c.b16 %v4730, %v4729
        %4763 = vmatpush.bf16.msra.mxu0 %v4738
        %4764 = vmatpush.bf16.msra.mxu0 %v4737
        %4765 = vmatpush.bf16.msra.mxu0 %v4736
        %4766 = vmatpush.bf16.msra.mxu0 %v4735
        %4767 = vmatpush.bf16.msra.mxu0 %v4734
        %4768 = vmatpush.bf16.msra.mxu0 %v4733
        %4769 = vmatpush.bf16.msra.mxu0 %v4732
        %4770 = vmatpush.bf16.msra.mxu0 %v4731
        %4771 = vmatmul.bf16.gmra.mxu0 %v4662
        %v4772 = vpop.f32.mrf.mxu0
        %v4773 = vadd.f32 %v4665, %v4772
        %v4774 = vpop.f32.mrf.mxu0
        %4775 = vdwg.mxu0
        %4776 = vmatpush.bf16.msra.mxu0 %v4746
        %4777 = vmatpush.bf16.msra.mxu0 %v4745
        %4778 = vmatpush.bf16.msra.mxu0 %v4744
        %4779 = vmatpush.bf16.msra.mxu0 %v4743
        %4780 = vmatpush.bf16.msra.mxu0 %v4742
        %4781 = vmatpush.bf16.msra.mxu0 %v4741
        %4782 = vmatpush.bf16.msra.mxu0 %v4740
        %4783 = vmatpush.bf16.msra.mxu0 %v4739
        %4784 = vmatmul.bf16.gmra.mxu0 %v4663
        %v4785 = vpop.f32.mrf.mxu0
        %v4786 = vadd.f32 %v4773, %v4785
        %v4787 = vpop.f32.mrf.mxu0
        %4788 = vdwg.mxu0
        %vm4789 = vcmp.ge.f32.partialorder %v4786, 0.0
        %v4790 = vmul.f32 %v4786, 0.01
        %v4791 = vsel %vm4789, %v4786, %v4790
        %v4792 = vld [vmem:[#allocation16] sm:$0xf]
        %v4793 = vld [vmem:[#allocation16 + $0x4] sm:$0xf]
        %v4794 = vld [vmem:[#allocation16 + $0x8] sm:$0xf]
        %v4795 = vld [vmem:[#allocation16 + $0xc] sm:$0xf]
        %v4796 = vld [vmem:[#allocation16 + $0x10] sm:$0xf]
        %v4797 = vld [vmem:[#allocation16 + $0x14] sm:$0xf]
        %v4798 = vld [vmem:[#allocation16 + $0x18] sm:$0xf]
        %v4799 = vld [vmem:[#allocation16 + $0x1c] sm:$0xf]
        %v4800 = vld [vmem:[#allocation16 + $0x20] sm:$0xf]
        %v4801 = vld [vmem:[#allocation16 + $0x24] sm:$0xf]
        %v4802 = vld [vmem:[#allocation16 + $0x28] sm:$0xf]
        %v4803 = vld [vmem:[#allocation16 + $0x2c] sm:$0xf]
        %v4804 = vld [vmem:[#allocation16 + $0x30] sm:$0xf]
        %v4805 = vld [vmem:[#allocation16 + $0x34] sm:$0xf]
        %v4806 = vld [vmem:[#allocation16 + $0x38] sm:$0xf]
        %v4807 = vld [vmem:[#allocation16 + $0x3c] sm:$0xf]
        %v4808 = vld [vmem:[#allocation17] sm:$0x1]
        %v4809 = vpack.c.bf16 %v4791, %v4791
        %v4811 = vperm.slane %v4808, 0
        %v4829 = vunpack.c.l.b16 %v4792
        %v4830 = vunpack.c.l.b16 %v4793
        %v4831 = vunpack.c.l.b16 %v4794
        %v4832 = vunpack.c.l.b16 %v4795
        %v4833 = vunpack.c.l.b16 %v4796
        %v4834 = vunpack.c.l.b16 %v4797
        %v4835 = vunpack.c.l.b16 %v4798
        %v4836 = vunpack.c.l.b16 %v4799
        %v4837 = vunpack.c.l.b16 %v4800
        %v4838 = vunpack.c.l.b16 %v4801
        %v4839 = vunpack.c.l.b16 %v4802
        %v4840 = vunpack.c.l.b16 %v4803
        %v4841 = vunpack.c.l.b16 %v4804
        %v4842 = vunpack.c.l.b16 %v4805
        %v4843 = vunpack.c.l.b16 %v4806
        %v4844 = vunpack.c.l.b16 %v4807
        %v4845 = vpack.c.b16 %v4830, %v4829
        %v4846 = vpack.c.b16 %v4832, %v4831
        %v4847 = vpack.c.b16 %v4834, %v4833
        %v4848 = vpack.c.b16 %v4836, %v4835
        %v4849 = vpack.c.b16 %v4838, %v4837
        %v4850 = vpack.c.b16 %v4840, %v4839
        %v4851 = vpack.c.b16 %v4842, %v4841
        %v4852 = vpack.c.b16 %v4844, %v4843
        %4861 = vmatpush.bf16.msra.mxu0 %v4852
        %4862 = vmatpush.bf16.msra.mxu0 %v4851
        %4863 = vmatpush.bf16.msra.mxu0 %v4850
        %4864 = vmatpush.bf16.msra.mxu0 %v4849
        %4865 = vmatpush.bf16.msra.mxu0 %v4848
        %4866 = vmatpush.bf16.msra.mxu0 %v4847
        %4867 = vmatpush.bf16.msra.mxu0 %v4846
        %4868 = vmatpush.bf16.msra.mxu0 %v4845
        %4869 = vmatmul.bf16.gmra.mxu0 %v4809
        %v4870 = vpop.f32.mrf.mxu0
        %v4871 = vadd.f32 %v4811, %v4870
        %v4872 = vpop.f32.mrf.mxu0
        %4873 = vdwg.mxu0
        %vm4874 = vcmp.ge.f32.partialorder %v4871, 0.0
        %v4875 = vmul.f32 %v4871, 0.01
        %v4876 = vsel %vm4874, %v4871, %v4875
        %v4877 = vld [vmem:[#allocation19] sm:$0xf]
        %v4878 = vld [vmem:[#allocation19 + $0x4] sm:$0xf]
        %v4879 = vld [vmem:[#allocation19 + $0x8] sm:$0xf]
        %v4880 = vld [vmem:[#allocation19 + $0xc] sm:$0xf]
        %v4881 = vld [vmem:[#allocation19 + $0x10] sm:$0xf]
        %v4882 = vld [vmem:[#allocation19 + $0x14] sm:$0xf]
        %v4883 = vld [vmem:[#allocation19 + $0x18] sm:$0xf]
        %v4884 = vld [vmem:[#allocation19 + $0x1c] sm:$0xf]
        %v4885 = vld [vmem:[#allocation19 + $0x20] sm:$0xf]
        %v4886 = vld [vmem:[#allocation19 + $0x24] sm:$0xf]
        %v4887 = vld [vmem:[#allocation19 + $0x28] sm:$0xf]
        %v4888 = vld [vmem:[#allocation19 + $0x2c] sm:$0xf]
        %v4889 = vld [vmem:[#allocation19 + $0x30] sm:$0xf]
        %v4890 = vld [vmem:[#allocation19 + $0x34] sm:$0xf]
        %v4891 = vld [vmem:[#allocation19 + $0x38] sm:$0xf]
        %v4892 = vld [vmem:[#allocation19 + $0x3c] sm:$0xf]
        %v4893 = vld [vmem:[#allocation20] sm:$0x1]
        %v4894 = vpack.c.bf16 %v4876, %v4876
        %v4896 = vperm.slane %v4893, 0
        %v4914 = vunpack.c.l.b16 %v4877
        %v4915 = vunpack.c.l.b16 %v4878
        %v4916 = vunpack.c.l.b16 %v4879
        %v4917 = vunpack.c.l.b16 %v4880
        %v4918 = vunpack.c.l.b16 %v4881
        %v4919 = vunpack.c.l.b16 %v4882
        %v4920 = vunpack.c.l.b16 %v4883
        %v4921 = vunpack.c.l.b16 %v4884
        %v4922 = vunpack.c.l.b16 %v4885
        %v4923 = vunpack.c.l.b16 %v4886
        %v4924 = vunpack.c.l.b16 %v4887
        %v4925 = vunpack.c.l.b16 %v4888
        %v4926 = vunpack.c.l.b16 %v4889
        %v4927 = vunpack.c.l.b16 %v4890
        %v4928 = vunpack.c.l.b16 %v4891
        %v4929 = vunpack.c.l.b16 %v4892
        %v4930 = vpack.c.b16 %v4915, %v4914
        %v4931 = vpack.c.b16 %v4917, %v4916
        %v4932 = vpack.c.b16 %v4919, %v4918
        %v4933 = vpack.c.b16 %v4921, %v4920
        %v4934 = vpack.c.b16 %v4923, %v4922
        %v4935 = vpack.c.b16 %v4925, %v4924
        %v4936 = vpack.c.b16 %v4927, %v4926
        %v4937 = vpack.c.b16 %v4929, %v4928
        %4946 = vmatpush.bf16.msra.mxu0 %v4937
        %4947 = vmatpush.bf16.msra.mxu0 %v4936
        %4948 = vmatpush.bf16.msra.mxu0 %v4935
        %4949 = vmatpush.bf16.msra.mxu0 %v4934
        %4950 = vmatpush.bf16.msra.mxu0 %v4933
        %4951 = vmatpush.bf16.msra.mxu0 %v4932
        %4952 = vmatpush.bf16.msra.mxu0 %v4931
        %4953 = vmatpush.bf16.msra.mxu0 %v4930
        %4954 = vmatmul.bf16.gmra.mxu0 %v4894
        %v4955 = vpop.f32.mrf.mxu0
        %v4956 = vadd.f32 %v4896, %v4955
        %v4957 = vpop.f32.mrf.mxu0
        %4958 = vdwg.mxu0
        %4959 = vst [vmem:[%s1120] sm:$0xff] %v4956
        %v4960 = vld [vmem:[#allocation22] sm:$0xf]
        %v4961 = vld [vmem:[#allocation22 + $0x4] sm:$0xf]
        %v4962 = vld [vmem:[#allocation22 + $0x8] sm:$0xf]
        %v4963 = vld [vmem:[#allocation22 + $0xc] sm:$0xf]
        %v4964 = vld [vmem:[#allocation22 + $0x10] sm:$0xf]
        %v4965 = vld [vmem:[#allocation22 + $0x14] sm:$0xf]
        %v4966 = vld [vmem:[#allocation22 + $0x18] sm:$0xf]
        %v4967 = vld [vmem:[#allocation22 + $0x1c] sm:$0xf]
        %v4968 = vld [vmem:[#allocation22 + $0x20] sm:$0xf]
        %v4969 = vld [vmem:[#allocation22 + $0x24] sm:$0xf]
        %v4970 = vld [vmem:[#allocation22 + $0x28] sm:$0xf]
        %v4971 = vld [vmem:[#allocation22 + $0x2c] sm:$0xf]
        %v4972 = vld [vmem:[#allocation22 + $0x30] sm:$0xf]
        %v4973 = vld [vmem:[#allocation22 + $0x34] sm:$0xf]
        %v4974 = vld [vmem:[#allocation22 + $0x38] sm:$0xf]
        %v4975 = vld [vmem:[#allocation22 + $0x3c] sm:$0xf]
        %v4976 = vld [vmem:[#allocation23] sm:$0x1]
        %v4977 = vpack.c.bf16 %v4956, %v4956
        %v4979 = vperm.slane %v4976, 0
        %v4997 = vunpack.c.l.b16 %v4960
        %v4998 = vunpack.c.l.b16 %v4961
        %v4999 = vunpack.c.l.b16 %v4962
        %v5000 = vunpack.c.l.b16 %v4963
        %v5001 = vunpack.c.l.b16 %v4964
        %v5002 = vunpack.c.l.b16 %v4965
        %v5003 = vunpack.c.l.b16 %v4966
        %v5004 = vunpack.c.l.b16 %v4967
        %v5005 = vunpack.c.l.b16 %v4968
        %v5006 = vunpack.c.l.b16 %v4969
        %v5007 = vunpack.c.l.b16 %v4970
        %v5008 = vunpack.c.l.b16 %v4971
        %v5009 = vunpack.c.l.b16 %v4972
        %v5010 = vunpack.c.l.b16 %v4973
        %v5011 = vunpack.c.l.b16 %v4974
        %v5012 = vunpack.c.l.b16 %v4975
        %v5013 = vpack.c.b16 %v4998, %v4997
        %v5014 = vpack.c.b16 %v5000, %v4999
        %v5015 = vpack.c.b16 %v5002, %v5001
        %v5016 = vpack.c.b16 %v5004, %v5003
        %v5017 = vpack.c.b16 %v5006, %v5005
        %v5018 = vpack.c.b16 %v5008, %v5007
        %v5019 = vpack.c.b16 %v5010, %v5009
        %v5020 = vpack.c.b16 %v5012, %v5011
        %5029 = vmatpush.bf16.msra.mxu0 %v5020
        %5030 = vmatpush.bf16.msra.mxu0 %v5019
        %5031 = vmatpush.bf16.msra.mxu0 %v5018
        %5032 = vmatpush.bf16.msra.mxu0 %v5017
        %5033 = vmatpush.bf16.msra.mxu0 %v5016
        %5034 = vmatpush.bf16.msra.mxu0 %v5015
        %5035 = vmatpush.bf16.msra.mxu0 %v5014
        %5036 = vmatpush.bf16.msra.mxu0 %v5013
        %5037 = vmatmul.bf16.gmra.mxu0 %v4977
        %v5038 = vpop.f32.mrf.mxu0
        %v5039 = vadd.f32 %v4979, %v5038
        %v5040 = vpop.f32.mrf.mxu0
        %5041 = vdwg.mxu0
        %v5042 = vmax.f32 %v5039, 0.0
        %v5043 = vld [vmem:[#allocation25] sm:$0xf]
        %v5044 = vld [vmem:[#allocation25 + $0x4] sm:$0xf]
        %v5045 = vld [vmem:[#allocation25 + $0x8] sm:$0xf]
        %v5046 = vld [vmem:[#allocation25 + $0xc] sm:$0xf]
        %v5047 = vld [vmem:[#allocation25 + $0x10] sm:$0xf]
        %v5048 = vld [vmem:[#allocation25 + $0x14] sm:$0xf]
        %v5049 = vld [vmem:[#allocation25 + $0x18] sm:$0xf]
        %v5050 = vld [vmem:[#allocation25 + $0x1c] sm:$0xf]
        %v5051 = vld [vmem:[#allocation25 + $0x20] sm:$0xf]
        %v5052 = vld [vmem:[#allocation25 + $0x24] sm:$0xf]
        %v5053 = vld [vmem:[#allocation25 + $0x28] sm:$0xf]
        %v5054 = vld [vmem:[#allocation25 + $0x2c] sm:$0xf]
        %v5055 = vld [vmem:[#allocation25 + $0x30] sm:$0xf]
        %v5056 = vld [vmem:[#allocation25 + $0x34] sm:$0xf]
        %v5057 = vld [vmem:[#allocation25 + $0x38] sm:$0xf]
        %v5058 = vld [vmem:[#allocation25 + $0x3c] sm:$0xf]
        %v5059 = vld [vmem:[#allocation26] sm:$0x1]
        %v5060 = vpack.c.bf16 %v5042, %v5042
        %v5062 = vperm.slane %v5059, 0
        %v5080 = vunpack.c.l.b16 %v5043
        %v5081 = vunpack.c.l.b16 %v5044
        %v5082 = vunpack.c.l.b16 %v5045
        %v5083 = vunpack.c.l.b16 %v5046
        %v5084 = vunpack.c.l.b16 %v5047
        %v5085 = vunpack.c.l.b16 %v5048
        %v5086 = vunpack.c.l.b16 %v5049
        %v5087 = vunpack.c.l.b16 %v5050
        %v5088 = vunpack.c.l.b16 %v5051
        %v5089 = vunpack.c.l.b16 %v5052
        %v5090 = vunpack.c.l.b16 %v5053
        %v5091 = vunpack.c.l.b16 %v5054
        %v5092 = vunpack.c.l.b16 %v5055
        %v5093 = vunpack.c.l.b16 %v5056
        %v5094 = vunpack.c.l.b16 %v5057
        %v5095 = vunpack.c.l.b16 %v5058
        %v5096 = vpack.c.b16 %v5081, %v5080
        %v5097 = vpack.c.b16 %v5083, %v5082
        %v5098 = vpack.c.b16 %v5085, %v5084
        %v5099 = vpack.c.b16 %v5087, %v5086
        %v5100 = vpack.c.b16 %v5089, %v5088
        %v5101 = vpack.c.b16 %v5091, %v5090
        %v5102 = vpack.c.b16 %v5093, %v5092
        %v5103 = vpack.c.b16 %v5095, %v5094
        %5112 = vmatpush.bf16.msra.mxu0 %v5103
        %5113 = vmatpush.bf16.msra.mxu0 %v5102
        %5114 = vmatpush.bf16.msra.mxu0 %v5101
        %5115 = vmatpush.bf16.msra.mxu0 %v5100
        %5116 = vmatpush.bf16.msra.mxu0 %v5099
        %5117 = vmatpush.bf16.msra.mxu0 %v5098
        %5118 = vmatpush.bf16.msra.mxu0 %v5097
        %5119 = vmatpush.bf16.msra.mxu0 %v5096
        %5120 = vmatmul.bf16.gmra.mxu0 %v5060
        %v5121 = vpop.f32.mrf.mxu0
        %v5122 = vadd.f32 %v5062, %v5121
        %v5123 = vpop.f32.mrf.mxu0
        %5124 = vdwg.mxu0
        %v5125 = vmax.f32 %v5122, 0.0
        %v5126 = vld [vmem:[#allocation28] sm:$0xff]
        %v5127 = vld [vmem:[#allocation28 + $0x8] sm:$0xff]
        %v5128 = vld [vmem:[#allocation28 + $0x10] sm:$0xff]
        %v5129 = vld [vmem:[#allocation28 + $0x18] sm:$0xff]
        %v5130 = vld [vmem:[#allocation28 + $0x20] sm:$0xff]
        %v5131 = vld [vmem:[#allocation28 + $0x28] sm:$0xff]
        %v5132 = vld [vmem:[#allocation28 + $0x30] sm:$0xff]
        %v5133 = vld [vmem:[#allocation28 + $0x38] sm:$0xff]
        %v5134 = vld [vmem:[#allocation28 + $0x40] sm:$0xff]
        %v5135 = vld [vmem:[#allocation28 + $0x48] sm:$0xff]
        %v5136 = vld [vmem:[#allocation28 + $0x50] sm:$0xff]
        %v5137 = vld [vmem:[#allocation28 + $0x58] sm:$0xff]
        %v5138 = vld [vmem:[#allocation28 + $0x60] sm:$0xff]
        %v5139 = vld [vmem:[#allocation28 + $0x68] sm:$0xff]
        %v5140 = vld [vmem:[#allocation28 + $0x70] sm:$0xff]
        %v5141 = vld [vmem:[#allocation28 + $0x78] sm:$0xff]
        %v5142 = vld [vmem:[%s18] sm:$0x3]
        %v5143 = vpack.c.bf16 %v5125, %v5125
        %v5145 = vperm.slane %v5142, 0
        %v5146 = vperm.slane %v5142, 1
        %v5165 = vunpack.c.l.b16 %v5126
        %v5166 = vunpack.c.h.b16 %v5126
        %v5167 = vunpack.c.l.b16 %v5127
        %v5168 = vunpack.c.h.b16 %v5127
        %v5169 = vunpack.c.l.b16 %v5128
        %v5170 = vunpack.c.h.b16 %v5128
        %v5171 = vunpack.c.l.b16 %v5129
        %v5172 = vunpack.c.h.b16 %v5129
        %v5173 = vunpack.c.l.b16 %v5130
        %v5174 = vunpack.c.h.b16 %v5130
        %v5175 = vunpack.c.l.b16 %v5131
        %v5176 = vunpack.c.h.b16 %v5131
        %v5177 = vunpack.c.l.b16 %v5132
        %v5178 = vunpack.c.h.b16 %v5132
        %v5179 = vunpack.c.l.b16 %v5133
        %v5180 = vunpack.c.h.b16 %v5133
        %v5181 = vunpack.c.l.b16 %v5134
        %v5182 = vunpack.c.h.b16 %v5134
        %v5183 = vunpack.c.l.b16 %v5135
        %v5184 = vunpack.c.h.b16 %v5135
        %v5185 = vunpack.c.l.b16 %v5136
        %v5186 = vunpack.c.h.b16 %v5136
        %v5187 = vunpack.c.l.b16 %v5137
        %v5188 = vunpack.c.h.b16 %v5137
        %v5189 = vunpack.c.l.b16 %v5138
        %v5190 = vunpack.c.h.b16 %v5138
        %v5191 = vunpack.c.l.b16 %v5139
        %v5192 = vunpack.c.h.b16 %v5139
        %v5193 = vunpack.c.l.b16 %v5140
        %v5194 = vunpack.c.h.b16 %v5140
        %v5195 = vunpack.c.l.b16 %v5141
        %v5196 = vunpack.c.h.b16 %v5141
        %v5197 = vpack.c.b16 %v5167, %v5165
        %v5198 = vpack.c.b16 %v5168, %v5166
        %v5199 = vpack.c.b16 %v5171, %v5169
        %v5200 = vpack.c.b16 %v5172, %v5170
        %v5201 = vpack.c.b16 %v5175, %v5173
        %v5202 = vpack.c.b16 %v5176, %v5174
        %v5203 = vpack.c.b16 %v5179, %v5177
        %v5204 = vpack.c.b16 %v5180, %v5178
        %v5205 = vpack.c.b16 %v5183, %v5181
        %v5206 = vpack.c.b16 %v5184, %v5182
        %v5207 = vpack.c.b16 %v5187, %v5185
        %v5208 = vpack.c.b16 %v5188, %v5186
        %v5209 = vpack.c.b16 %v5191, %v5189
        %v5210 = vpack.c.b16 %v5192, %v5190
        %v5211 = vpack.c.b16 %v5195, %v5193
        %v5212 = vpack.c.b16 %v5196, %v5194
        %5229 = vmatpush.bf16.msra.mxu0 %v5211
        %5230 = vmatpush.bf16.msra.mxu0 %v5209
        %5231 = vmatpush.bf16.msra.mxu0 %v5207
        %5232 = vmatpush.bf16.msra.mxu0 %v5205
        %5233 = vmatpush.bf16.msra.mxu0 %v5203
        %5234 = vmatpush.bf16.msra.mxu0 %v5201
        %5235 = vmatpush.bf16.msra.mxu0 %v5199
        %5236 = vmatpush.bf16.msra.mxu0 %v5197
        %5237 = vmatmul.bf16.gmra.mxu0 %v5143
        %v5238 = vpop.f32.mrf.mxu0
        %v5239 = vadd.f32 %v5145, %v5238
        %v5240 = vpop.f32.mrf.mxu0
        %5241 = vdwg.mxu0
        %5242 = vmatpush.bf16.msra.mxu0 %v5212
        %5243 = vmatpush.bf16.msra.mxu0 %v5210
        %5244 = vmatpush.bf16.msra.mxu0 %v5208
        %5245 = vmatpush.bf16.msra.mxu0 %v5206
        %5246 = vmatpush.bf16.msra.mxu0 %v5204
        %5247 = vmatpush.bf16.msra.mxu0 %v5202
        %5248 = vmatpush.bf16.msra.mxu0 %v5200
        %5249 = vmatpush.bf16.msra.mxu0 %v5198
        %5250 = vmatmul.bf16.gmra.mxu0 %v5143
        %v5251 = vpop.f32.mrf.mxu0
        %v5252 = vadd.f32 %v5146, %v5251
        %v5253 = vpop.f32.mrf.mxu0
        %5254 = vdwg.mxu0
        %v5255 = vmax.f32 %v5239, 0.0
        %v5256 = vmax.f32 %v5252, 0.0
        %v5257 = vld [vmem:[#allocation29] sm:$0xff]
        %v5258 = vld [vmem:[#allocation29 + $0x8] sm:$0xff]
        %v5259 = vld [vmem:[#allocation29 + $0x10] sm:$0xff]
        %v5260 = vld [vmem:[#allocation29 + $0x18] sm:$0xff]
        %v5261 = vld [vmem:[#allocation29 + $0x20] sm:$0xff]
        %v5262 = vld [vmem:[#allocation29 + $0x28] sm:$0xff]
        %v5263 = vld [vmem:[#allocation29 + $0x30] sm:$0xff]
        %v5264 = vld [vmem:[#allocation29 + $0x38] sm:$0xff]
        %v5265 = vld [vmem:[#allocation29 + $0x40] sm:$0xff]
        %v5266 = vld [vmem:[#allocation29 + $0x48] sm:$0xff]
        %v5267 = vld [vmem:[#allocation29 + $0x50] sm:$0xff]
        %v5268 = vld [vmem:[#allocation29 + $0x58] sm:$0xff]
        %v5269 = vld [vmem:[#allocation29 + $0x60] sm:$0xff]
        %v5270 = vld [vmem:[#allocation29 + $0x68] sm:$0xff]
        %v5271 = vld [vmem:[#allocation29 + $0x70] sm:$0xff]
        %v5272 = vld [vmem:[#allocation29 + $0x78] sm:$0xff]
        %v5273 = vld [vmem:[#allocation29 + $0x80] sm:$0xff]
        %v5274 = vld [vmem:[#allocation29 + $0x88] sm:$0xff]
        %v5275 = vld [vmem:[#allocation29 + $0x90] sm:$0xff]
        %v5276 = vld [vmem:[#allocation29 + $0x98] sm:$0xff]
        %v5277 = vld [vmem:[#allocation29 + $0xa0] sm:$0xff]
        %v5278 = vld [vmem:[#allocation29 + $0xa8] sm:$0xff]
        %v5279 = vld [vmem:[#allocation29 + $0xb0] sm:$0xff]
        %v5280 = vld [vmem:[#allocation29 + $0xb8] sm:$0xff]
        %v5281 = vld [vmem:[#allocation29 + $0xc0] sm:$0xff]
        %v5282 = vld [vmem:[#allocation29 + $0xc8] sm:$0xff]
        %v5283 = vld [vmem:[#allocation29 + $0xd0] sm:$0xff]
        %v5284 = vld [vmem:[#allocation29 + $0xd8] sm:$0xff]
        %v5285 = vld [vmem:[#allocation29 + $0xe0] sm:$0xff]
        %v5286 = vld [vmem:[#allocation29 + $0xe8] sm:$0xff]
        %v5287 = vld [vmem:[#allocation29 + $0xf0] sm:$0xff]
        %v5288 = vld [vmem:[#allocation29 + $0xf8] sm:$0xff]
        %v5289 = vld [vmem:[#allocation29 + $0x100] sm:$0xff]
        %v5290 = vld [vmem:[#allocation29 + $0x108] sm:$0xff]
        %v5291 = vld [vmem:[#allocation29 + $0x110] sm:$0xff]
        %v5292 = vld [vmem:[#allocation29 + $0x118] sm:$0xff]
        %v5293 = vld [vmem:[#allocation29 + $0x120] sm:$0xff]
        %v5294 = vld [vmem:[#allocation29 + $0x128] sm:$0xff]
        %v5295 = vld [vmem:[#allocation29 + $0x130] sm:$0xff]
        %v5296 = vld [vmem:[#allocation29 + $0x138] sm:$0xff]
        %v5297 = vld [vmem:[#allocation29 + $0x140] sm:$0xff]
        %v5298 = vld [vmem:[#allocation29 + $0x148] sm:$0xff]
        %v5299 = vld [vmem:[#allocation29 + $0x150] sm:$0xff]
        %v5300 = vld [vmem:[#allocation29 + $0x158] sm:$0xff]
        %v5301 = vld [vmem:[#allocation29 + $0x160] sm:$0xff]
        %v5302 = vld [vmem:[#allocation29 + $0x168] sm:$0xff]
        %v5303 = vld [vmem:[#allocation29 + $0x170] sm:$0xff]
        %v5304 = vld [vmem:[#allocation29 + $0x178] sm:$0xff]
        %v5305 = vld [vmem:[#allocation29 + $0x180] sm:$0xff]
        %v5306 = vld [vmem:[#allocation29 + $0x188] sm:$0xff]
        %v5307 = vld [vmem:[#allocation29 + $0x190] sm:$0xff]
        %v5308 = vld [vmem:[#allocation29 + $0x198] sm:$0xff]
        %v5309 = vld [vmem:[#allocation29 + $0x1a0] sm:$0xff]
        %v5310 = vld [vmem:[#allocation29 + $0x1a8] sm:$0xff]
        %v5311 = vld [vmem:[#allocation29 + $0x1b0] sm:$0xff]
        %v5312 = vld [vmem:[#allocation29 + $0x1b8] sm:$0xff]
        %v5313 = vld [vmem:[#allocation29 + $0x1c0] sm:$0xff]
        %v5314 = vld [vmem:[#allocation29 + $0x1c8] sm:$0xff]
        %v5315 = vld [vmem:[#allocation29 + $0x1d0] sm:$0xff]
        %v5316 = vld [vmem:[#allocation29 + $0x1d8] sm:$0xff]
        %v5317 = vld [vmem:[#allocation29 + $0x1e0] sm:$0xff]
        %v5318 = vld [vmem:[#allocation29 + $0x1e8] sm:$0xff]
        %v5319 = vld [vmem:[#allocation29 + $0x1f0] sm:$0xff]
        %v5320 = vld [vmem:[#allocation29 + $0x1f8] sm:$0xff]
        %v5321 = vld [vmem:[%s20] sm:$0xf]
        %v5322 = vpack.c.bf16 %v5255, %v5255
        %v5323 = vpack.c.bf16 %v5256, %v5256
        %v5325 = vperm.slane %v5321, 0
        %v5326 = vperm.slane %v5321, 1
        %v5327 = vperm.slane %v5321, 2
        %v5328 = vperm.slane %v5321, 3
        %v5397 = vunpack.c.l.b16 %v5257
        %v5398 = vunpack.c.h.b16 %v5257
        %v5399 = vunpack.c.l.b16 %v5258
        %v5400 = vunpack.c.h.b16 %v5258
        %v5401 = vunpack.c.l.b16 %v5259
        %v5402 = vunpack.c.h.b16 %v5259
        %v5403 = vunpack.c.l.b16 %v5260
        %v5404 = vunpack.c.h.b16 %v5260
        %v5405 = vunpack.c.l.b16 %v5261
        %v5406 = vunpack.c.h.b16 %v5261
        %v5407 = vunpack.c.l.b16 %v5262
        %v5408 = vunpack.c.h.b16 %v5262
        %v5409 = vunpack.c.l.b16 %v5263
        %v5410 = vunpack.c.h.b16 %v5263
        %v5411 = vunpack.c.l.b16 %v5264
        %v5412 = vunpack.c.h.b16 %v5264
        %v5413 = vunpack.c.l.b16 %v5265
        %v5414 = vunpack.c.h.b16 %v5265
        %v5415 = vunpack.c.l.b16 %v5266
        %v5416 = vunpack.c.h.b16 %v5266
        %v5417 = vunpack.c.l.b16 %v5267
        %v5418 = vunpack.c.h.b16 %v5267
        %v5419 = vunpack.c.l.b16 %v5268
        %v5420 = vunpack.c.h.b16 %v5268
        %v5421 = vunpack.c.l.b16 %v5269
        %v5422 = vunpack.c.h.b16 %v5269
        %v5423 = vunpack.c.l.b16 %v5270
        %v5424 = vunpack.c.h.b16 %v5270
        %v5425 = vunpack.c.l.b16 %v5271
        %v5426 = vunpack.c.h.b16 %v5271
        %v5427 = vunpack.c.l.b16 %v5272
        %v5428 = vunpack.c.h.b16 %v5272
        %v5429 = vunpack.c.l.b16 %v5273
        %v5430 = vunpack.c.h.b16 %v5273
        %v5431 = vunpack.c.l.b16 %v5274
        %v5432 = vunpack.c.h.b16 %v5274
        %v5433 = vunpack.c.l.b16 %v5275
        %v5434 = vunpack.c.h.b16 %v5275
        %v5435 = vunpack.c.l.b16 %v5276
        %v5436 = vunpack.c.h.b16 %v5276
        %v5437 = vunpack.c.l.b16 %v5277
        %v5438 = vunpack.c.h.b16 %v5277
        %v5439 = vunpack.c.l.b16 %v5278
        %v5440 = vunpack.c.h.b16 %v5278
        %v5441 = vunpack.c.l.b16 %v5279
        %v5442 = vunpack.c.h.b16 %v5279
        %v5443 = vunpack.c.l.b16 %v5280
        %v5444 = vunpack.c.h.b16 %v5280
        %v5445 = vunpack.c.l.b16 %v5281
        %v5446 = vunpack.c.h.b16 %v5281
        %v5447 = vunpack.c.l.b16 %v5282
        %v5448 = vunpack.c.h.b16 %v5282
        %v5449 = vunpack.c.l.b16 %v5283
        %v5450 = vunpack.c.h.b16 %v5283
        %v5451 = vunpack.c.l.b16 %v5284
        %v5452 = vunpack.c.h.b16 %v5284
        %v5453 = vunpack.c.l.b16 %v5285
        %v5454 = vunpack.c.h.b16 %v5285
        %v5455 = vunpack.c.l.b16 %v5286
        %v5456 = vunpack.c.h.b16 %v5286
        %v5457 = vunpack.c.l.b16 %v5287
        %v5458 = vunpack.c.h.b16 %v5287
        %v5459 = vunpack.c.l.b16 %v5288
        %v5460 = vunpack.c.h.b16 %v5288
        %v5461 = vunpack.c.l.b16 %v5289
        %v5462 = vunpack.c.h.b16 %v5289
        %v5463 = vunpack.c.l.b16 %v5290
        %v5464 = vunpack.c.h.b16 %v5290
        %v5465 = vunpack.c.l.b16 %v5291
        %v5466 = vunpack.c.h.b16 %v5291
        %v5467 = vunpack.c.l.b16 %v5292
        %v5468 = vunpack.c.h.b16 %v5292
        %v5469 = vunpack.c.l.b16 %v5293
        %v5470 = vunpack.c.h.b16 %v5293
        %v5471 = vunpack.c.l.b16 %v5294
        %v5472 = vunpack.c.h.b16 %v5294
        %v5473 = vunpack.c.l.b16 %v5295
        %v5474 = vunpack.c.h.b16 %v5295
        %v5475 = vunpack.c.l.b16 %v5296
        %v5476 = vunpack.c.h.b16 %v5296
        %v5477 = vunpack.c.l.b16 %v5297
        %v5478 = vunpack.c.h.b16 %v5297
        %v5479 = vunpack.c.l.b16 %v5298
        %v5480 = vunpack.c.h.b16 %v5298
        %v5481 = vunpack.c.l.b16 %v5299
        %v5482 = vunpack.c.h.b16 %v5299
        %v5483 = vunpack.c.l.b16 %v5300
        %v5484 = vunpack.c.h.b16 %v5300
        %v5485 = vunpack.c.l.b16 %v5301
        %v5486 = vunpack.c.h.b16 %v5301
        %v5487 = vunpack.c.l.b16 %v5302
        %v5488 = vunpack.c.h.b16 %v5302
        %v5489 = vunpack.c.l.b16 %v5303
        %v5490 = vunpack.c.h.b16 %v5303
        %v5491 = vunpack.c.l.b16 %v5304
        %v5492 = vunpack.c.h.b16 %v5304
        %v5493 = vunpack.c.l.b16 %v5305
        %v5494 = vunpack.c.h.b16 %v5305
        %v5495 = vunpack.c.l.b16 %v5306
        %v5496 = vunpack.c.h.b16 %v5306
        %v5497 = vunpack.c.l.b16 %v5307
        %v5498 = vunpack.c.h.b16 %v5307
        %v5499 = vunpack.c.l.b16 %v5308
        %v5500 = vunpack.c.h.b16 %v5308
        %v5501 = vunpack.c.l.b16 %v5309
        %v5502 = vunpack.c.h.b16 %v5309
        %v5503 = vunpack.c.l.b16 %v5310
        %v5504 = vunpack.c.h.b16 %v5310
        %v5505 = vunpack.c.l.b16 %v5311
        %v5506 = vunpack.c.h.b16 %v5311
        %v5507 = vunpack.c.l.b16 %v5312
        %v5508 = vunpack.c.h.b16 %v5312
        %v5509 = vunpack.c.l.b16 %v5313
        %v5510 = vunpack.c.h.b16 %v5313
        %v5511 = vunpack.c.l.b16 %v5314
        %v5512 = vunpack.c.h.b16 %v5314
        %v5513 = vunpack.c.l.b16 %v5315
        %v5514 = vunpack.c.h.b16 %v5315
        %v5515 = vunpack.c.l.b16 %v5316
        %v5516 = vunpack.c.h.b16 %v5316
        %v5517 = vunpack.c.l.b16 %v5317
        %v5518 = vunpack.c.h.b16 %v5317
        %v5519 = vunpack.c.l.b16 %v5318
        %v5520 = vunpack.c.h.b16 %v5318
        %v5521 = vunpack.c.l.b16 %v5319
        %v5522 = vunpack.c.h.b16 %v5319
        %v5523 = vunpack.c.l.b16 %v5320
        %v5524 = vunpack.c.h.b16 %v5320
        %v5525 = vpack.c.b16 %v5401, %v5397
        %v5526 = vpack.c.b16 %v5402, %v5398
        %v5527 = vpack.c.b16 %v5403, %v5399
        %v5528 = vpack.c.b16 %v5404, %v5400
        %v5529 = vpack.c.b16 %v5409, %v5405
        %v5530 = vpack.c.b16 %v5410, %v5406
        %v5531 = vpack.c.b16 %v5411, %v5407
        %v5532 = vpack.c.b16 %v5412, %v5408
        %v5533 = vpack.c.b16 %v5417, %v5413
        %v5534 = vpack.c.b16 %v5418, %v5414
        %v5535 = vpack.c.b16 %v5419, %v5415
        %v5536 = vpack.c.b16 %v5420, %v5416
        %v5537 = vpack.c.b16 %v5425, %v5421
        %v5538 = vpack.c.b16 %v5426, %v5422
        %v5539 = vpack.c.b16 %v5427, %v5423
        %v5540 = vpack.c.b16 %v5428, %v5424
        %v5541 = vpack.c.b16 %v5433, %v5429
        %v5542 = vpack.c.b16 %v5434, %v5430
        %v5543 = vpack.c.b16 %v5435, %v5431
        %v5544 = vpack.c.b16 %v5436, %v5432
        %v5545 = vpack.c.b16 %v5441, %v5437
        %v5546 = vpack.c.b16 %v5442, %v5438
        %v5547 = vpack.c.b16 %v5443, %v5439
        %v5548 = vpack.c.b16 %v5444, %v5440
        %v5549 = vpack.c.b16 %v5449, %v5445
        %v5550 = vpack.c.b16 %v5450, %v5446
        %v5551 = vpack.c.b16 %v5451, %v5447
        %v5552 = vpack.c.b16 %v5452, %v5448
        %v5553 = vpack.c.b16 %v5457, %v5453
        %v5554 = vpack.c.b16 %v5458, %v5454
        %v5555 = vpack.c.b16 %v5459, %v5455
        %v5556 = vpack.c.b16 %v5460, %v5456
        %v5557 = vpack.c.b16 %v5465, %v5461
        %v5558 = vpack.c.b16 %v5466, %v5462
        %v5559 = vpack.c.b16 %v5467, %v5463
        %v5560 = vpack.c.b16 %v5468, %v5464
        %v5561 = vpack.c.b16 %v5473, %v5469
        %v5562 = vpack.c.b16 %v5474, %v5470
        %v5563 = vpack.c.b16 %v5475, %v5471
        %v5564 = vpack.c.b16 %v5476, %v5472
        %v5565 = vpack.c.b16 %v5481, %v5477
        %v5566 = vpack.c.b16 %v5482, %v5478
        %v5567 = vpack.c.b16 %v5483, %v5479
        %v5568 = vpack.c.b16 %v5484, %v5480
        %v5569 = vpack.c.b16 %v5489, %v5485
        %v5570 = vpack.c.b16 %v5490, %v5486
        %v5571 = vpack.c.b16 %v5491, %v5487
        %v5572 = vpack.c.b16 %v5492, %v5488
        %v5573 = vpack.c.b16 %v5497, %v5493
        %v5574 = vpack.c.b16 %v5498, %v5494
        %v5575 = vpack.c.b16 %v5499, %v5495
        %v5576 = vpack.c.b16 %v5500, %v5496
        %v5577 = vpack.c.b16 %v5505, %v5501
        %v5578 = vpack.c.b16 %v5506, %v5502
        %v5579 = vpack.c.b16 %v5507, %v5503
        %v5580 = vpack.c.b16 %v5508, %v5504
        %v5581 = vpack.c.b16 %v5513, %v5509
        %v5582 = vpack.c.b16 %v5514, %v5510
        %v5583 = vpack.c.b16 %v5515, %v5511
        %v5584 = vpack.c.b16 %v5516, %v5512
        %v5585 = vpack.c.b16 %v5521, %v5517
        %v5586 = vpack.c.b16 %v5522, %v5518
        %v5587 = vpack.c.b16 %v5523, %v5519
        %v5588 = vpack.c.b16 %v5524, %v5520
        %5653 = vmatpush.bf16.msra.mxu0 %v5553
        %5654 = vmatpush.bf16.msra.mxu0 %v5549
        %5655 = vmatpush.bf16.msra.mxu0 %v5545
        %5656 = vmatpush.bf16.msra.mxu0 %v5541
        %5657 = vmatpush.bf16.msra.mxu0 %v5537
        %5658 = vmatpush.bf16.msra.mxu0 %v5533
        %5659 = vmatpush.bf16.msra.mxu0 %v5529
        %5660 = vmatpush.bf16.msra.mxu0 %v5525
        %5661 = vmatmul.bf16.gmra.mxu0 %v5322
        %v5662 = vpop.f32.mrf.mxu0
        %v5663 = vadd.f32 %v5325, %v5662
        %v5664 = vpop.f32.mrf.mxu0
        %5665 = vdwg.mxu0
        %5666 = vmatpush.bf16.msra.mxu0 %v5585
        %5667 = vmatpush.bf16.msra.mxu0 %v5581
        %5668 = vmatpush.bf16.msra.mxu0 %v5577
        %5669 = vmatpush.bf16.msra.mxu0 %v5573
        %5670 = vmatpush.bf16.msra.mxu0 %v5569
        %5671 = vmatpush.bf16.msra.mxu0 %v5565
        %5672 = vmatpush.bf16.msra.mxu0 %v5561
        %5673 = vmatpush.bf16.msra.mxu0 %v5557
        %5674 = vmatmul.bf16.gmra.mxu0 %v5323
        %v5675 = vpop.f32.mrf.mxu0
        %v5676 = vadd.f32 %v5663, %v5675
        %v5677 = vpop.f32.mrf.mxu0
        %5678 = vdwg.mxu0
        %5679 = vmatpush.bf16.msra.mxu0 %v5554
        %5680 = vmatpush.bf16.msra.mxu0 %v5550
        %5681 = vmatpush.bf16.msra.mxu0 %v5546
        %5682 = vmatpush.bf16.msra.mxu0 %v5542
        %5683 = vmatpush.bf16.msra.mxu0 %v5538
        %5684 = vmatpush.bf16.msra.mxu0 %v5534
        %5685 = vmatpush.bf16.msra.mxu0 %v5530
        %5686 = vmatpush.bf16.msra.mxu0 %v5526
        %5687 = vmatmul.bf16.gmra.mxu0 %v5322
        %v5688 = vpop.f32.mrf.mxu0
        %v5689 = vadd.f32 %v5326, %v5688
        %v5690 = vpop.f32.mrf.mxu0
        %5691 = vdwg.mxu0
        %5692 = vmatpush.bf16.msra.mxu0 %v5586
        %5693 = vmatpush.bf16.msra.mxu0 %v5582
        %5694 = vmatpush.bf16.msra.mxu0 %v5578
        %5695 = vmatpush.bf16.msra.mxu0 %v5574
        %5696 = vmatpush.bf16.msra.mxu0 %v5570
        %5697 = vmatpush.bf16.msra.mxu0 %v5566
        %5698 = vmatpush.bf16.msra.mxu0 %v5562
        %5699 = vmatpush.bf16.msra.mxu0 %v5558
        %5700 = vmatmul.bf16.gmra.mxu0 %v5323
        %v5701 = vpop.f32.mrf.mxu0
        %v5702 = vadd.f32 %v5689, %v5701
        %v5703 = vpop.f32.mrf.mxu0
        %5704 = vdwg.mxu0
        %5705 = vmatpush.bf16.msra.mxu0 %v5555
        %5706 = vmatpush.bf16.msra.mxu0 %v5551
        %5707 = vmatpush.bf16.msra.mxu0 %v5547
        %5708 = vmatpush.bf16.msra.mxu0 %v5543
        %5709 = vmatpush.bf16.msra.mxu0 %v5539
        %5710 = vmatpush.bf16.msra.mxu0 %v5535
        %5711 = vmatpush.bf16.msra.mxu0 %v5531
        %5712 = vmatpush.bf16.msra.mxu0 %v5527
        %5713 = vmatmul.bf16.gmra.mxu0 %v5322
        %v5714 = vpop.f32.mrf.mxu0
        %v5715 = vadd.f32 %v5327, %v5714
        %v5716 = vpop.f32.mrf.mxu0
        %5717 = vdwg.mxu0
        %5718 = vmatpush.bf16.msra.mxu0 %v5587
        %5719 = vmatpush.bf16.msra.mxu0 %v5583
        %5720 = vmatpush.bf16.msra.mxu0 %v5579
        %5721 = vmatpush.bf16.msra.mxu0 %v5575
        %5722 = vmatpush.bf16.msra.mxu0 %v5571
        %5723 = vmatpush.bf16.msra.mxu0 %v5567
        %5724 = vmatpush.bf16.msra.mxu0 %v5563
        %5725 = vmatpush.bf16.msra.mxu0 %v5559
        %5726 = vmatmul.bf16.gmra.mxu0 %v5323
        %v5727 = vpop.f32.mrf.mxu0
        %v5728 = vadd.f32 %v5715, %v5727
        %v5729 = vpop.f32.mrf.mxu0
        %5730 = vdwg.mxu0
        %5731 = vmatpush.bf16.msra.mxu0 %v5556
        %5732 = vmatpush.bf16.msra.mxu0 %v5552
        %5733 = vmatpush.bf16.msra.mxu0 %v5548
        %5734 = vmatpush.bf16.msra.mxu0 %v5544
        %5735 = vmatpush.bf16.msra.mxu0 %v5540
        %5736 = vmatpush.bf16.msra.mxu0 %v5536
        %5737 = vmatpush.bf16.msra.mxu0 %v5532
        %5738 = vmatpush.bf16.msra.mxu0 %v5528
        %5739 = vmatmul.bf16.gmra.mxu0 %v5322
        %v5740 = vpop.f32.mrf.mxu0
        %v5741 = vadd.f32 %v5328, %v5740
        %v5742 = vpop.f32.mrf.mxu0
        %5743 = vdwg.mxu0
        %5744 = vmatpush.bf16.msra.mxu0 %v5588
        %5745 = vmatpush.bf16.msra.mxu0 %v5584
        %5746 = vmatpush.bf16.msra.mxu0 %v5580
        %5747 = vmatpush.bf16.msra.mxu0 %v5576
        %5748 = vmatpush.bf16.msra.mxu0 %v5572
        %5749 = vmatpush.bf16.msra.mxu0 %v5568
        %5750 = vmatpush.bf16.msra.mxu0 %v5564
        %5751 = vmatpush.bf16.msra.mxu0 %v5560
        %5752 = vmatmul.bf16.gmra.mxu0 %v5323
        %v5753 = vpop.f32.mrf.mxu0
        %v5754 = vadd.f32 %v5741, %v5753
        %v5755 = vpop.f32.mrf.mxu0
        %5756 = vdwg.mxu0
        %v5757 = vmax.f32 %v5676, 0.0
        %v5758 = vmax.f32 %v5702, 0.0
        %v5759 = vmax.f32 %v5728, 0.0
        %v5760 = vmax.f32 %v5754, 0.0
        %v5761 = vld [vmem:[#allocation31] sm:$0xff]
        %v5762 = vld [vmem:[#allocation31 + $0x8] sm:$0xff]
        %v5763 = vld [vmem:[#allocation31 + $0x10] sm:$0xff]
        %v5764 = vld [vmem:[#allocation31 + $0x18] sm:$0xff]
        %v5765 = vld [vmem:[#allocation31 + $0x20] sm:$0xff]
        %v5766 = vld [vmem:[#allocation31 + $0x28] sm:$0xff]
        %v5767 = vld [vmem:[#allocation31 + $0x30] sm:$0xff]
        %v5768 = vld [vmem:[#allocation31 + $0x38] sm:$0xff]
        %v5769 = vld [vmem:[#allocation31 + $0x40] sm:$0xff]
        %v5770 = vld [vmem:[#allocation31 + $0x48] sm:$0xff]
        %v5771 = vld [vmem:[#allocation31 + $0x50] sm:$0xff]
        %v5772 = vld [vmem:[#allocation31 + $0x58] sm:$0xff]
        %v5773 = vld [vmem:[#allocation31 + $0x60] sm:$0xff]
        %v5774 = vld [vmem:[#allocation31 + $0x68] sm:$0xff]
        %v5775 = vld [vmem:[#allocation31 + $0x70] sm:$0xff]
        %v5776 = vld [vmem:[#allocation31 + $0x78] sm:$0xff]
        %v5777 = vld [vmem:[#allocation31 + $0x80] sm:$0xff]
        %v5778 = vld [vmem:[#allocation31 + $0x88] sm:$0xff]
        %v5779 = vld [vmem:[#allocation31 + $0x90] sm:$0xff]
        %v5780 = vld [vmem:[#allocation31 + $0x98] sm:$0xff]
        %v5781 = vld [vmem:[#allocation31 + $0xa0] sm:$0xff]
        %v5782 = vld [vmem:[#allocation31 + $0xa8] sm:$0xff]
        %v5783 = vld [vmem:[#allocation31 + $0xb0] sm:$0xff]
        %v5784 = vld [vmem:[#allocation31 + $0xb8] sm:$0xff]
        %v5785 = vld [vmem:[#allocation31 + $0xc0] sm:$0xff]
        %v5786 = vld [vmem:[#allocation31 + $0xc8] sm:$0xff]
        %v5787 = vld [vmem:[#allocation31 + $0xd0] sm:$0xff]
        %v5788 = vld [vmem:[#allocation31 + $0xd8] sm:$0xff]
        %v5789 = vld [vmem:[#allocation31 + $0xe0] sm:$0xff]
        %v5790 = vld [vmem:[#allocation31 + $0xe8] sm:$0xff]
        %v5791 = vld [vmem:[#allocation31 + $0xf0] sm:$0xff]
        %v5792 = vld [vmem:[#allocation31 + $0xf8] sm:$0xff]
        %v5793 = vld [vmem:[#allocation31 + $0x100] sm:$0xff]
        %v5794 = vld [vmem:[#allocation31 + $0x108] sm:$0xff]
        %v5795 = vld [vmem:[#allocation31 + $0x110] sm:$0xff]
        %v5796 = vld [vmem:[#allocation31 + $0x118] sm:$0xff]
        %v5797 = vld [vmem:[#allocation31 + $0x120] sm:$0xff]
        %v5798 = vld [vmem:[#allocation31 + $0x128] sm:$0xff]
        %v5799 = vld [vmem:[#allocation31 + $0x130] sm:$0xff]
        %v5800 = vld [vmem:[#allocation31 + $0x138] sm:$0xff]
        %v5801 = vld [vmem:[#allocation31 + $0x140] sm:$0xff]
        %v5802 = vld [vmem:[#allocation31 + $0x148] sm:$0xff]
        %v5803 = vld [vmem:[#allocation31 + $0x150] sm:$0xff]
        %v5804 = vld [vmem:[#allocation31 + $0x158] sm:$0xff]
        %v5805 = vld [vmem:[#allocation31 + $0x160] sm:$0xff]
        %v5806 = vld [vmem:[#allocation31 + $0x168] sm:$0xff]
        %v5807 = vld [vmem:[#allocation31 + $0x170] sm:$0xff]
        %v5808 = vld [vmem:[#allocation31 + $0x178] sm:$0xff]
        %v5809 = vld [vmem:[#allocation31 + $0x180] sm:$0xff]
        %v5810 = vld [vmem:[#allocation31 + $0x188] sm:$0xff]
        %v5811 = vld [vmem:[#allocation31 + $0x190] sm:$0xff]
        %v5812 = vld [vmem:[#allocation31 + $0x198] sm:$0xff]
        %v5813 = vld [vmem:[#allocation31 + $0x1a0] sm:$0xff]
        %v5814 = vld [vmem:[#allocation31 + $0x1a8] sm:$0xff]
        %v5815 = vld [vmem:[#allocation31 + $0x1b0] sm:$0xff]
        %v5816 = vld [vmem:[#allocation31 + $0x1b8] sm:$0xff]
        %v5817 = vld [vmem:[#allocation31 + $0x1c0] sm:$0xff]
        %v5818 = vld [vmem:[#allocation31 + $0x1c8] sm:$0xff]
        %v5819 = vld [vmem:[#allocation31 + $0x1d0] sm:$0xff]
        %v5820 = vld [vmem:[#allocation31 + $0x1d8] sm:$0xff]
        %v5821 = vld [vmem:[#allocation31 + $0x1e0] sm:$0xff]
        %v5822 = vld [vmem:[#allocation31 + $0x1e8] sm:$0xff]
        %v5823 = vld [vmem:[#allocation31 + $0x1f0] sm:$0xff]
        %v5824 = vld [vmem:[#allocation31 + $0x1f8] sm:$0xff]
        %v5825 = vld [vmem:[#allocation31 + $0x200] sm:$0xff]
        %v5826 = vld [vmem:[#allocation31 + $0x208] sm:$0xff]
        %v5827 = vld [vmem:[#allocation31 + $0x210] sm:$0xff]
        %v5828 = vld [vmem:[#allocation31 + $0x218] sm:$0xff]
        %v5829 = vld [vmem:[#allocation31 + $0x220] sm:$0xff]
        %v5830 = vld [vmem:[#allocation31 + $0x228] sm:$0xff]
        %v5831 = vld [vmem:[#allocation31 + $0x230] sm:$0xff]
        %v5832 = vld [vmem:[#allocation31 + $0x238] sm:$0xff]
        %v5833 = vld [vmem:[#allocation31 + $0x240] sm:$0xff]
        %v5834 = vld [vmem:[#allocation31 + $0x248] sm:$0xff]
        %v5835 = vld [vmem:[#allocation31 + $0x250] sm:$0xff]
        %v5836 = vld [vmem:[#allocation31 + $0x258] sm:$0xff]
        %v5837 = vld [vmem:[#allocation31 + $0x260] sm:$0xff]
        %v5838 = vld [vmem:[#allocation31 + $0x268] sm:$0xff]
        %v5839 = vld [vmem:[#allocation31 + $0x270] sm:$0xff]
        %v5840 = vld [vmem:[#allocation31 + $0x278] sm:$0xff]
        %v5841 = vld [vmem:[#allocation31 + $0x280] sm:$0xff]
        %v5842 = vld [vmem:[#allocation31 + $0x288] sm:$0xff]
        %v5843 = vld [vmem:[#allocation31 + $0x290] sm:$0xff]
        %v5844 = vld [vmem:[#allocation31 + $0x298] sm:$0xff]
        %v5845 = vld [vmem:[#allocation31 + $0x2a0] sm:$0xff]
        %v5846 = vld [vmem:[#allocation31 + $0x2a8] sm:$0xff]
        %v5847 = vld [vmem:[#allocation31 + $0x2b0] sm:$0xff]
        %v5848 = vld [vmem:[#allocation31 + $0x2b8] sm:$0xff]
        %v5849 = vld [vmem:[#allocation31 + $0x2c0] sm:$0xff]
        %v5850 = vld [vmem:[#allocation31 + $0x2c8] sm:$0xff]
        %v5851 = vld [vmem:[#allocation31 + $0x2d0] sm:$0xff]
        %v5852 = vld [vmem:[#allocation31 + $0x2d8] sm:$0xff]
        %v5853 = vld [vmem:[#allocation31 + $0x2e0] sm:$0xff]
        %v5854 = vld [vmem:[#allocation31 + $0x2e8] sm:$0xff]
        %v5855 = vld [vmem:[#allocation31 + $0x2f0] sm:$0xff]
        %v5856 = vld [vmem:[#allocation31 + $0x2f8] sm:$0xff]
        %v5857 = vld [vmem:[#allocation31 + $0x300] sm:$0xff]
        %v5858 = vld [vmem:[#allocation31 + $0x308] sm:$0xff]
        %v5859 = vld [vmem:[#allocation31 + $0x310] sm:$0xff]
        %v5860 = vld [vmem:[#allocation31 + $0x318] sm:$0xff]
        %v5861 = vld [vmem:[#allocation31 + $0x320] sm:$0xff]
        %v5862 = vld [vmem:[#allocation31 + $0x328] sm:$0xff]
        %v5863 = vld [vmem:[#allocation31 + $0x330] sm:$0xff]
        %v5864 = vld [vmem:[#allocation31 + $0x338] sm:$0xff]
        %v5865 = vld [vmem:[#allocation31 + $0x340] sm:$0xff]
        %v5866 = vld [vmem:[#allocation31 + $0x348] sm:$0xff]
        %v5867 = vld [vmem:[#allocation31 + $0x350] sm:$0xff]
        %v5868 = vld [vmem:[#allocation31 + $0x358] sm:$0xff]
        %v5869 = vld [vmem:[#allocation31 + $0x360] sm:$0xff]
        %v5870 = vld [vmem:[#allocation31 + $0x368] sm:$0xff]
        %v5871 = vld [vmem:[#allocation31 + $0x370] sm:$0xff]
        %v5872 = vld [vmem:[#allocation31 + $0x378] sm:$0xff]
        %v5873 = vld [vmem:[#allocation31 + $0x380] sm:$0xff]
        %v5874 = vld [vmem:[#allocation31 + $0x388] sm:$0xff]
        %v5875 = vld [vmem:[#allocation31 + $0x390] sm:$0xff]
        %v5876 = vld [vmem:[#allocation31 + $0x398] sm:$0xff]
        %v5877 = vld [vmem:[#allocation31 + $0x3a0] sm:$0xff]
        %v5878 = vld [vmem:[#allocation31 + $0x3a8] sm:$0xff]
        %v5879 = vld [vmem:[#allocation31 + $0x3b0] sm:$0xff]
        %v5880 = vld [vmem:[#allocation31 + $0x3b8] sm:$0xff]
        %v5881 = vld [vmem:[#allocation31 + $0x3c0] sm:$0xff]
        %v5882 = vld [vmem:[#allocation31 + $0x3c8] sm:$0xff]
        %v5883 = vld [vmem:[#allocation31 + $0x3d0] sm:$0xff]
        %v5884 = vld [vmem:[#allocation31 + $0x3d8] sm:$0xff]
        %v5885 = vld [vmem:[#allocation31 + $0x3e0] sm:$0xff]
        %v5886 = vld [vmem:[#allocation31 + $0x3e8] sm:$0xff]
        %v5887 = vld [vmem:[#allocation31 + $0x3f0] sm:$0xff]
        %v5888 = vld [vmem:[#allocation31 + $0x3f8] sm:$0xff]
        %v5889 = vld [vmem:[#allocation31 + $0x400] sm:$0xff]
        %v5890 = vld [vmem:[#allocation31 + $0x408] sm:$0xff]
        %v5891 = vld [vmem:[#allocation31 + $0x410] sm:$0xff]
        %v5892 = vld [vmem:[#allocation31 + $0x418] sm:$0xff]
        %v5893 = vld [vmem:[#allocation31 + $0x420] sm:$0xff]
        %v5894 = vld [vmem:[#allocation31 + $0x428] sm:$0xff]
        %v5895 = vld [vmem:[#allocation31 + $0x430] sm:$0xff]
        %v5896 = vld [vmem:[#allocation31 + $0x438] sm:$0xff]
        %v5897 = vld [vmem:[#allocation31 + $0x440] sm:$0xff]
        %v5898 = vld [vmem:[#allocation31 + $0x448] sm:$0xff]
        %v5899 = vld [vmem:[#allocation31 + $0x450] sm:$0xff]
        %v5900 = vld [vmem:[#allocation31 + $0x458] sm:$0xff]
        %v5901 = vld [vmem:[#allocation31 + $0x460] sm:$0xff]
        %v5902 = vld [vmem:[#allocation31 + $0x468] sm:$0xff]
        %v5903 = vld [vmem:[#allocation31 + $0x470] sm:$0xff]
        %v5904 = vld [vmem:[#allocation31 + $0x478] sm:$0xff]
        %v5905 = vld [vmem:[#allocation31 + $0x480] sm:$0xff]
        %v5906 = vld [vmem:[#allocation31 + $0x488] sm:$0xff]
        %v5907 = vld [vmem:[#allocation31 + $0x490] sm:$0xff]
        %v5908 = vld [vmem:[#allocation31 + $0x498] sm:$0xff]
        %v5909 = vld [vmem:[#allocation31 + $0x4a0] sm:$0xff]
        %v5910 = vld [vmem:[#allocation31 + $0x4a8] sm:$0xff]
        %v5911 = vld [vmem:[#allocation31 + $0x4b0] sm:$0xff]
        %v5912 = vld [vmem:[#allocation31 + $0x4b8] sm:$0xff]
        %v5913 = vld [vmem:[#allocation31 + $0x4c0] sm:$0xff]
        %v5914 = vld [vmem:[#allocation31 + $0x4c8] sm:$0xff]
        %v5915 = vld [vmem:[#allocation31 + $0x4d0] sm:$0xff]
        %v5916 = vld [vmem:[#allocation31 + $0x4d8] sm:$0xff]
        %v5917 = vld [vmem:[#allocation31 + $0x4e0] sm:$0xff]
        %v5918 = vld [vmem:[#allocation31 + $0x4e8] sm:$0xff]
        %v5919 = vld [vmem:[#allocation31 + $0x4f0] sm:$0xff]
        %v5920 = vld [vmem:[#allocation31 + $0x4f8] sm:$0xff]
        %v5921 = vld [vmem:[#allocation31 + $0x500] sm:$0xff]
        %v5922 = vld [vmem:[#allocation31 + $0x508] sm:$0xff]
        %v5923 = vld [vmem:[#allocation31 + $0x510] sm:$0xff]
        %v5924 = vld [vmem:[#allocation31 + $0x518] sm:$0xff]
        %v5925 = vld [vmem:[#allocation31 + $0x520] sm:$0xff]
        %v5926 = vld [vmem:[#allocation31 + $0x528] sm:$0xff]
        %v5927 = vld [vmem:[#allocation31 + $0x530] sm:$0xff]
        %v5928 = vld [vmem:[#allocation31 + $0x538] sm:$0xff]
        %v5929 = vld [vmem:[#allocation31 + $0x540] sm:$0xff]
        %v5930 = vld [vmem:[#allocation31 + $0x548] sm:$0xff]
        %v5931 = vld [vmem:[#allocation31 + $0x550] sm:$0xff]
        %v5932 = vld [vmem:[#allocation31 + $0x558] sm:$0xff]
        %v5933 = vld [vmem:[#allocation31 + $0x560] sm:$0xff]
        %v5934 = vld [vmem:[#allocation31 + $0x568] sm:$0xff]
        %v5935 = vld [vmem:[#allocation31 + $0x570] sm:$0xff]
        %v5936 = vld [vmem:[#allocation31 + $0x578] sm:$0xff]
        %v5937 = vld [vmem:[#allocation31 + $0x580] sm:$0xff]
        %v5938 = vld [vmem:[#allocation31 + $0x588] sm:$0xff]
        %v5939 = vld [vmem:[#allocation31 + $0x590] sm:$0xff]
        %v5940 = vld [vmem:[#allocation31 + $0x598] sm:$0xff]
        %v5941 = vld [vmem:[#allocation31 + $0x5a0] sm:$0xff]
        %v5942 = vld [vmem:[#allocation31 + $0x5a8] sm:$0xff]
        %v5943 = vld [vmem:[#allocation31 + $0x5b0] sm:$0xff]
        %v5944 = vld [vmem:[#allocation31 + $0x5b8] sm:$0xff]
        %v5945 = vld [vmem:[#allocation31 + $0x5c0] sm:$0xff]
        %v5946 = vld [vmem:[#allocation31 + $0x5c8] sm:$0xff]
        %v5947 = vld [vmem:[#allocation31 + $0x5d0] sm:$0xff]
        %v5948 = vld [vmem:[#allocation31 + $0x5d8] sm:$0xff]
        %v5949 = vld [vmem:[#allocation31 + $0x5e0] sm:$0xff]
        %v5950 = vld [vmem:[#allocation31 + $0x5e8] sm:$0xff]
        %v5951 = vld [vmem:[#allocation31 + $0x5f0] sm:$0xff]
        %v5952 = vld [vmem:[#allocation31 + $0x5f8] sm:$0xff]
        %v5953 = vld [vmem:[#allocation31 + $0x600] sm:$0xff]
        %v5954 = vld [vmem:[#allocation31 + $0x608] sm:$0xff]
        %v5955 = vld [vmem:[#allocation31 + $0x610] sm:$0xff]
        %v5956 = vld [vmem:[#allocation31 + $0x618] sm:$0xff]
        %v5957 = vld [vmem:[#allocation31 + $0x620] sm:$0xff]
        %v5958 = vld [vmem:[#allocation31 + $0x628] sm:$0xff]
        %v5959 = vld [vmem:[#allocation31 + $0x630] sm:$0xff]
        %v5960 = vld [vmem:[#allocation31 + $0x638] sm:$0xff]
        %v5961 = vld [vmem:[#allocation31 + $0x640] sm:$0xff]
        %v5962 = vld [vmem:[#allocation31 + $0x648] sm:$0xff]
        %v5963 = vld [vmem:[#allocation31 + $0x650] sm:$0xff]
        %v5964 = vld [vmem:[#allocation31 + $0x658] sm:$0xff]
        %v5965 = vld [vmem:[#allocation31 + $0x660] sm:$0xff]
        %v5966 = vld [vmem:[#allocation31 + $0x668] sm:$0xff]
        %v5967 = vld [vmem:[#allocation31 + $0x670] sm:$0xff]
        %v5968 = vld [vmem:[#allocation31 + $0x678] sm:$0xff]
        %v5969 = vld [vmem:[#allocation31 + $0x680] sm:$0xff]
        %v5970 = vld [vmem:[#allocation31 + $0x688] sm:$0xff]
        %v5971 = vld [vmem:[#allocation31 + $0x690] sm:$0xff]
        %v5972 = vld [vmem:[#allocation31 + $0x698] sm:$0xff]
        %v5973 = vld [vmem:[#allocation31 + $0x6a0] sm:$0xff]
        %v5974 = vld [vmem:[#allocation31 + $0x6a8] sm:$0xff]
        %v5975 = vld [vmem:[#allocation31 + $0x6b0] sm:$0xff]
        %v5976 = vld [vmem:[#allocation31 + $0x6b8] sm:$0xff]
        %v5977 = vld [vmem:[#allocation31 + $0x6c0] sm:$0xff]
        %v5978 = vld [vmem:[#allocation31 + $0x6c8] sm:$0xff]
        %v5979 = vld [vmem:[#allocation31 + $0x6d0] sm:$0xff]
        %v5980 = vld [vmem:[#allocation31 + $0x6d8] sm:$0xff]
        %v5981 = vld [vmem:[#allocation31 + $0x6e0] sm:$0xff]
        %v5982 = vld [vmem:[#allocation31 + $0x6e8] sm:$0xff]
        %v5983 = vld [vmem:[#allocation31 + $0x6f0] sm:$0xff]
        %v5984 = vld [vmem:[#allocation31 + $0x6f8] sm:$0xff]
        %v5985 = vld [vmem:[#allocation31 + $0x700] sm:$0xff]
        %v5986 = vld [vmem:[#allocation31 + $0x708] sm:$0xff]
        %v5987 = vld [vmem:[#allocation31 + $0x710] sm:$0xff]
        %v5988 = vld [vmem:[#allocation31 + $0x718] sm:$0xff]
        %v5989 = vld [vmem:[#allocation31 + $0x720] sm:$0xff]
        %v5990 = vld [vmem:[#allocation31 + $0x728] sm:$0xff]
        %v5991 = vld [vmem:[#allocation31 + $0x730] sm:$0xff]
        %v5992 = vld [vmem:[#allocation31 + $0x738] sm:$0xff]
        %v5993 = vld [vmem:[#allocation31 + $0x740] sm:$0xff]
        %v5994 = vld [vmem:[#allocation31 + $0x748] sm:$0xff]
        %v5995 = vld [vmem:[#allocation31 + $0x750] sm:$0xff]
        %v5996 = vld [vmem:[#allocation31 + $0x758] sm:$0xff]
        %v5997 = vld [vmem:[#allocation31 + $0x760] sm:$0xff]
        %v5998 = vld [vmem:[#allocation31 + $0x768] sm:$0xff]
        %v5999 = vld [vmem:[#allocation31 + $0x770] sm:$0xff]
        %v6000 = vld [vmem:[#allocation31 + $0x778] sm:$0xff]
        %v6001 = vld [vmem:[#allocation31 + $0x780] sm:$0xff]
        %v6002 = vld [vmem:[#allocation31 + $0x788] sm:$0xff]
        %v6003 = vld [vmem:[#allocation31 + $0x790] sm:$0xff]
        %v6004 = vld [vmem:[#allocation31 + $0x798] sm:$0xff]
        %v6005 = vld [vmem:[#allocation31 + $0x7a0] sm:$0xff]
        %v6006 = vld [vmem:[#allocation31 + $0x7a8] sm:$0xff]
        %v6007 = vld [vmem:[#allocation31 + $0x7b0] sm:$0xff]
        %v6008 = vld [vmem:[#allocation31 + $0x7b8] sm:$0xff]
        %v6009 = vld [vmem:[#allocation31 + $0x7c0] sm:$0xff]
        %v6010 = vld [vmem:[#allocation31 + $0x7c8] sm:$0xff]
        %v6011 = vld [vmem:[#allocation31 + $0x7d0] sm:$0xff]
        %v6012 = vld [vmem:[#allocation31 + $0x7d8] sm:$0xff]
        %v6013 = vld [vmem:[#allocation31 + $0x7e0] sm:$0xff]
        %v6014 = vld [vmem:[#allocation31 + $0x7e8] sm:$0xff]
        %v6015 = vld [vmem:[#allocation31 + $0x7f0] sm:$0xff]
        %v6016 = vld [vmem:[#allocation31 + $0x7f8] sm:$0xff]
        %v6017 = vld [vmem:[%s22] sm:$0xff]
        %v6018 = vpack.c.bf16 %v5757, %v5757
        %v6019 = vpack.c.bf16 %v5758, %v5758
        %v6020 = vpack.c.bf16 %v5759, %v5759
        %v6021 = vpack.c.bf16 %v5760, %v5760
        %v6023 = vperm.slane %v6017, 0
        %v6024 = vperm.slane %v6017, 1
        %v6025 = vperm.slane %v6017, 2
        %v6026 = vperm.slane %v6017, 3
        %v6027 = vperm.slane %v6017, 4
        %v6028 = vperm.slane %v6017, 5
        %v6029 = vperm.slane %v6017, 6
        %v6030 = vperm.slane %v6017, 7
        %v6295 = vunpack.c.l.b16 %v5761
        %v6296 = vunpack.c.h.b16 %v5761
        %v6297 = vunpack.c.l.b16 %v5762
        %v6298 = vunpack.c.h.b16 %v5762
        %v6299 = vunpack.c.l.b16 %v5763
        %v6300 = vunpack.c.h.b16 %v5763
        %v6301 = vunpack.c.l.b16 %v5764
        %v6302 = vunpack.c.h.b16 %v5764
        %v6303 = vunpack.c.l.b16 %v5765
        %v6304 = vunpack.c.h.b16 %v5765
        %v6305 = vunpack.c.l.b16 %v5766
        %v6306 = vunpack.c.h.b16 %v5766
        %v6307 = vunpack.c.l.b16 %v5767
        %v6308 = vunpack.c.h.b16 %v5767
        %v6309 = vunpack.c.l.b16 %v5768
        %v6310 = vunpack.c.h.b16 %v5768
        %v6311 = vunpack.c.l.b16 %v5769
        %v6312 = vunpack.c.h.b16 %v5769
        %v6313 = vunpack.c.l.b16 %v5770
        %v6314 = vunpack.c.h.b16 %v5770
        %v6315 = vunpack.c.l.b16 %v5771
        %v6316 = vunpack.c.h.b16 %v5771
        %v6317 = vunpack.c.l.b16 %v5772
        %v6318 = vunpack.c.h.b16 %v5772
        %v6319 = vunpack.c.l.b16 %v5773
        %v6320 = vunpack.c.h.b16 %v5773
        %v6321 = vunpack.c.l.b16 %v5774
        %v6322 = vunpack.c.h.b16 %v5774
        %v6323 = vunpack.c.l.b16 %v5775
        %v6324 = vunpack.c.h.b16 %v5775
        %v6325 = vunpack.c.l.b16 %v5776
        %v6326 = vunpack.c.h.b16 %v5776
        %v6327 = vunpack.c.l.b16 %v5777
        %v6328 = vunpack.c.h.b16 %v5777
        %v6329 = vunpack.c.l.b16 %v5778
        %v6330 = vunpack.c.h.b16 %v5778
        %v6331 = vunpack.c.l.b16 %v5779
        %v6332 = vunpack.c.h.b16 %v5779
        %v6333 = vunpack.c.l.b16 %v5780
        %v6334 = vunpack.c.h.b16 %v5780
        %v6335 = vunpack.c.l.b16 %v5781
        %v6336 = vunpack.c.h.b16 %v5781
        %v6337 = vunpack.c.l.b16 %v5782
        %v6338 = vunpack.c.h.b16 %v5782
        %v6339 = vunpack.c.l.b16 %v5783
        %v6340 = vunpack.c.h.b16 %v5783
        %v6341 = vunpack.c.l.b16 %v5784
        %v6342 = vunpack.c.h.b16 %v5784
        %v6343 = vunpack.c.l.b16 %v5785
        %v6344 = vunpack.c.h.b16 %v5785
        %v6345 = vunpack.c.l.b16 %v5786
        %v6346 = vunpack.c.h.b16 %v5786
        %v6347 = vunpack.c.l.b16 %v5787
        %v6348 = vunpack.c.h.b16 %v5787
        %v6349 = vunpack.c.l.b16 %v5788
        %v6350 = vunpack.c.h.b16 %v5788
        %v6351 = vunpack.c.l.b16 %v5789
        %v6352 = vunpack.c.h.b16 %v5789
        %v6353 = vunpack.c.l.b16 %v5790
        %v6354 = vunpack.c.h.b16 %v5790
        %v6355 = vunpack.c.l.b16 %v5791
        %v6356 = vunpack.c.h.b16 %v5791
        %v6357 = vunpack.c.l.b16 %v5792
        %v6358 = vunpack.c.h.b16 %v5792
        %v6359 = vunpack.c.l.b16 %v5793
        %v6360 = vunpack.c.h.b16 %v5793
        %v6361 = vunpack.c.l.b16 %v5794
        %v6362 = vunpack.c.h.b16 %v5794
        %v6363 = vunpack.c.l.b16 %v5795
        %v6364 = vunpack.c.h.b16 %v5795
        %v6365 = vunpack.c.l.b16 %v5796
        %v6366 = vunpack.c.h.b16 %v5796
        %v6367 = vunpack.c.l.b16 %v5797
        %v6368 = vunpack.c.h.b16 %v5797
        %v6369 = vunpack.c.l.b16 %v5798
        %v6370 = vunpack.c.h.b16 %v5798
        %v6371 = vunpack.c.l.b16 %v5799
        %v6372 = vunpack.c.h.b16 %v5799
        %v6373 = vunpack.c.l.b16 %v5800
        %v6374 = vunpack.c.h.b16 %v5800
        %v6375 = vunpack.c.l.b16 %v5801
        %v6376 = vunpack.c.h.b16 %v5801
        %v6377 = vunpack.c.l.b16 %v5802
        %v6378 = vunpack.c.h.b16 %v5802
        %v6379 = vunpack.c.l.b16 %v5803
        %v6380 = vunpack.c.h.b16 %v5803
        %v6381 = vunpack.c.l.b16 %v5804
        %v6382 = vunpack.c.h.b16 %v5804
        %v6383 = vunpack.c.l.b16 %v5805
        %v6384 = vunpack.c.h.b16 %v5805
        %v6385 = vunpack.c.l.b16 %v5806
        %v6386 = vunpack.c.h.b16 %v5806
        %v6387 = vunpack.c.l.b16 %v5807
        %v6388 = vunpack.c.h.b16 %v5807
        %v6389 = vunpack.c.l.b16 %v5808
        %v6390 = vunpack.c.h.b16 %v5808
        %v6391 = vunpack.c.l.b16 %v5809
        %v6392 = vunpack.c.h.b16 %v5809
        %v6393 = vunpack.c.l.b16 %v5810
        %v6394 = vunpack.c.h.b16 %v5810
        %v6395 = vunpack.c.l.b16 %v5811
        %v6396 = vunpack.c.h.b16 %v5811
        %v6397 = vunpack.c.l.b16 %v5812
        %v6398 = vunpack.c.h.b16 %v5812
        %v6399 = vunpack.c.l.b16 %v5813
        %v6400 = vunpack.c.h.b16 %v5813
        %v6401 = vunpack.c.l.b16 %v5814
        %v6402 = vunpack.c.h.b16 %v5814
        %v6403 = vunpack.c.l.b16 %v5815
        %v6404 = vunpack.c.h.b16 %v5815
        %v6405 = vunpack.c.l.b16 %v5816
        %v6406 = vunpack.c.h.b16 %v5816
        %v6407 = vunpack.c.l.b16 %v5817
        %v6408 = vunpack.c.h.b16 %v5817
        %v6409 = vunpack.c.l.b16 %v5818
        %v6410 = vunpack.c.h.b16 %v5818
        %v6411 = vunpack.c.l.b16 %v5819
        %v6412 = vunpack.c.h.b16 %v5819
        %v6413 = vunpack.c.l.b16 %v5820
        %v6414 = vunpack.c.h.b16 %v5820
        %v6415 = vunpack.c.l.b16 %v5821
        %v6416 = vunpack.c.h.b16 %v5821
        %v6417 = vunpack.c.l.b16 %v5822
        %v6418 = vunpack.c.h.b16 %v5822
        %v6419 = vunpack.c.l.b16 %v5823
        %v6420 = vunpack.c.h.b16 %v5823
        %v6421 = vunpack.c.l.b16 %v5824
        %v6422 = vunpack.c.h.b16 %v5824
        %v6423 = vunpack.c.l.b16 %v5825
        %v6424 = vunpack.c.h.b16 %v5825
        %v6425 = vunpack.c.l.b16 %v5826
        %v6426 = vunpack.c.h.b16 %v5826
        %v6427 = vunpack.c.l.b16 %v5827
        %v6428 = vunpack.c.h.b16 %v5827
        %v6429 = vunpack.c.l.b16 %v5828
        %v6430 = vunpack.c.h.b16 %v5828
        %v6431 = vunpack.c.l.b16 %v5829
        %v6432 = vunpack.c.h.b16 %v5829
        %v6433 = vunpack.c.l.b16 %v5830
        %v6434 = vunpack.c.h.b16 %v5830
        %v6435 = vunpack.c.l.b16 %v5831
        %v6436 = vunpack.c.h.b16 %v5831
        %v6437 = vunpack.c.l.b16 %v5832
        %v6438 = vunpack.c.h.b16 %v5832
        %v6439 = vunpack.c.l.b16 %v5833
        %v6440 = vunpack.c.h.b16 %v5833
        %v6441 = vunpack.c.l.b16 %v5834
        %v6442 = vunpack.c.h.b16 %v5834
        %v6443 = vunpack.c.l.b16 %v5835
        %v6444 = vunpack.c.h.b16 %v5835
        %v6445 = vunpack.c.l.b16 %v5836
        %v6446 = vunpack.c.h.b16 %v5836
        %v6447 = vunpack.c.l.b16 %v5837
        %v6448 = vunpack.c.h.b16 %v5837
        %v6449 = vunpack.c.l.b16 %v5838
        %v6450 = vunpack.c.h.b16 %v5838
        %v6451 = vunpack.c.l.b16 %v5839
        %v6452 = vunpack.c.h.b16 %v5839
        %v6453 = vunpack.c.l.b16 %v5840
        %v6454 = vunpack.c.h.b16 %v5840
        %v6455 = vunpack.c.l.b16 %v5841
        %v6456 = vunpack.c.h.b16 %v5841
        %v6457 = vunpack.c.l.b16 %v5842
        %v6458 = vunpack.c.h.b16 %v5842
        %v6459 = vunpack.c.l.b16 %v5843
        %v6460 = vunpack.c.h.b16 %v5843
        %v6461 = vunpack.c.l.b16 %v5844
        %v6462 = vunpack.c.h.b16 %v5844
        %v6463 = vunpack.c.l.b16 %v5845
        %v6464 = vunpack.c.h.b16 %v5845
        %v6465 = vunpack.c.l.b16 %v5846
        %v6466 = vunpack.c.h.b16 %v5846
        %v6467 = vunpack.c.l.b16 %v5847
        %v6468 = vunpack.c.h.b16 %v5847
        %v6469 = vunpack.c.l.b16 %v5848
        %v6470 = vunpack.c.h.b16 %v5848
        %v6471 = vunpack.c.l.b16 %v5849
        %v6472 = vunpack.c.h.b16 %v5849
        %v6473 = vunpack.c.l.b16 %v5850
        %v6474 = vunpack.c.h.b16 %v5850
        %v6475 = vunpack.c.l.b16 %v5851
        %v6476 = vunpack.c.h.b16 %v5851
        %v6477 = vunpack.c.l.b16 %v5852
        %v6478 = vunpack.c.h.b16 %v5852
        %v6479 = vunpack.c.l.b16 %v5853
        %v6480 = vunpack.c.h.b16 %v5853
        %v6481 = vunpack.c.l.b16 %v5854
        %v6482 = vunpack.c.h.b16 %v5854
        %v6483 = vunpack.c.l.b16 %v5855
        %v6484 = vunpack.c.h.b16 %v5855
        %v6485 = vunpack.c.l.b16 %v5856
        %v6486 = vunpack.c.h.b16 %v5856
        %v6487 = vunpack.c.l.b16 %v5857
        %v6488 = vunpack.c.h.b16 %v5857
        %v6489 = vunpack.c.l.b16 %v5858
        %v6490 = vunpack.c.h.b16 %v5858
        %v6491 = vunpack.c.l.b16 %v5859
        %v6492 = vunpack.c.h.b16 %v5859
        %v6493 = vunpack.c.l.b16 %v5860
        %v6494 = vunpack.c.h.b16 %v5860
        %v6495 = vunpack.c.l.b16 %v5861
        %v6496 = vunpack.c.h.b16 %v5861
        %v6497 = vunpack.c.l.b16 %v5862
        %v6498 = vunpack.c.h.b16 %v5862
        %v6499 = vunpack.c.l.b16 %v5863
        %v6500 = vunpack.c.h.b16 %v5863
        %v6501 = vunpack.c.l.b16 %v5864
        %v6502 = vunpack.c.h.b16 %v5864
        %v6503 = vunpack.c.l.b16 %v5865
        %v6504 = vunpack.c.h.b16 %v5865
        %v6505 = vunpack.c.l.b16 %v5866
        %v6506 = vunpack.c.h.b16 %v5866
        %v6507 = vunpack.c.l.b16 %v5867
        %v6508 = vunpack.c.h.b16 %v5867
        %v6509 = vunpack.c.l.b16 %v5868
        %v6510 = vunpack.c.h.b16 %v5868
        %v6511 = vunpack.c.l.b16 %v5869
        %v6512 = vunpack.c.h.b16 %v5869
        %v6513 = vunpack.c.l.b16 %v5870
        %v6514 = vunpack.c.h.b16 %v5870
        %v6515 = vunpack.c.l.b16 %v5871
        %v6516 = vunpack.c.h.b16 %v5871
        %v6517 = vunpack.c.l.b16 %v5872
        %v6518 = vunpack.c.h.b16 %v5872
        %v6519 = vunpack.c.l.b16 %v5873
        %v6520 = vunpack.c.h.b16 %v5873
        %v6521 = vunpack.c.l.b16 %v5874
        %v6522 = vunpack.c.h.b16 %v5874
        %v6523 = vunpack.c.l.b16 %v5875
        %v6524 = vunpack.c.h.b16 %v5875
        %v6525 = vunpack.c.l.b16 %v5876
        %v6526 = vunpack.c.h.b16 %v5876
        %v6527 = vunpack.c.l.b16 %v5877
        %v6528 = vunpack.c.h.b16 %v5877
        %v6529 = vunpack.c.l.b16 %v5878
        %v6530 = vunpack.c.h.b16 %v5878
        %v6531 = vunpack.c.l.b16 %v5879
        %v6532 = vunpack.c.h.b16 %v5879
        %v6533 = vunpack.c.l.b16 %v5880
        %v6534 = vunpack.c.h.b16 %v5880
        %v6535 = vunpack.c.l.b16 %v5881
        %v6536 = vunpack.c.h.b16 %v5881
        %v6537 = vunpack.c.l.b16 %v5882
        %v6538 = vunpack.c.h.b16 %v5882
        %v6539 = vunpack.c.l.b16 %v5883
        %v6540 = vunpack.c.h.b16 %v5883
        %v6541 = vunpack.c.l.b16 %v5884
        %v6542 = vunpack.c.h.b16 %v5884
        %v6543 = vunpack.c.l.b16 %v5885
        %v6544 = vunpack.c.h.b16 %v5885
        %v6545 = vunpack.c.l.b16 %v5886
        %v6546 = vunpack.c.h.b16 %v5886
        %v6547 = vunpack.c.l.b16 %v5887
        %v6548 = vunpack.c.h.b16 %v5887
        %v6549 = vunpack.c.l.b16 %v5888
        %v6550 = vunpack.c.h.b16 %v5888
        %v6551 = vunpack.c.l.b16 %v5889
        %v6552 = vunpack.c.h.b16 %v5889
        %v6553 = vunpack.c.l.b16 %v5890
        %v6554 = vunpack.c.h.b16 %v5890
        %v6555 = vunpack.c.l.b16 %v5891
        %v6556 = vunpack.c.h.b16 %v5891
        %v6557 = vunpack.c.l.b16 %v5892
        %v6558 = vunpack.c.h.b16 %v5892
        %v6559 = vunpack.c.l.b16 %v5893
        %v6560 = vunpack.c.h.b16 %v5893
        %v6561 = vunpack.c.l.b16 %v5894
        %v6562 = vunpack.c.h.b16 %v5894
        %v6563 = vunpack.c.l.b16 %v5895
        %v6564 = vunpack.c.h.b16 %v5895
        %v6565 = vunpack.c.l.b16 %v5896
        %v6566 = vunpack.c.h.b16 %v5896
        %v6567 = vunpack.c.l.b16 %v5897
        %v6568 = vunpack.c.h.b16 %v5897
        %v6569 = vunpack.c.l.b16 %v5898
        %v6570 = vunpack.c.h.b16 %v5898
        %v6571 = vunpack.c.l.b16 %v5899
        %v6572 = vunpack.c.h.b16 %v5899
        %v6573 = vunpack.c.l.b16 %v5900
        %v6574 = vunpack.c.h.b16 %v5900
        %v6575 = vunpack.c.l.b16 %v5901
        %v6576 = vunpack.c.h.b16 %v5901
        %v6577 = vunpack.c.l.b16 %v5902
        %v6578 = vunpack.c.h.b16 %v5902
        %v6579 = vunpack.c.l.b16 %v5903
        %v6580 = vunpack.c.h.b16 %v5903
        %v6581 = vunpack.c.l.b16 %v5904
        %v6582 = vunpack.c.h.b16 %v5904
        %v6583 = vunpack.c.l.b16 %v5905
        %v6584 = vunpack.c.h.b16 %v5905
        %v6585 = vunpack.c.l.b16 %v5906
        %v6586 = vunpack.c.h.b16 %v5906
        %v6587 = vunpack.c.l.b16 %v5907
        %v6588 = vunpack.c.h.b16 %v5907
        %v6589 = vunpack.c.l.b16 %v5908
        %v6590 = vunpack.c.h.b16 %v5908
        %v6591 = vunpack.c.l.b16 %v5909
        %v6592 = vunpack.c.h.b16 %v5909
        %v6593 = vunpack.c.l.b16 %v5910
        %v6594 = vunpack.c.h.b16 %v5910
        %v6595 = vunpack.c.l.b16 %v5911
        %v6596 = vunpack.c.h.b16 %v5911
        %v6597 = vunpack.c.l.b16 %v5912
        %v6598 = vunpack.c.h.b16 %v5912
        %v6599 = vunpack.c.l.b16 %v5913
        %v6600 = vunpack.c.h.b16 %v5913
        %v6601 = vunpack.c.l.b16 %v5914
        %v6602 = vunpack.c.h.b16 %v5914
        %v6603 = vunpack.c.l.b16 %v5915
        %v6604 = vunpack.c.h.b16 %v5915
        %v6605 = vunpack.c.l.b16 %v5916
        %v6606 = vunpack.c.h.b16 %v5916
        %v6607 = vunpack.c.l.b16 %v5917
        %v6608 = vunpack.c.h.b16 %v5917
        %v6609 = vunpack.c.l.b16 %v5918
        %v6610 = vunpack.c.h.b16 %v5918
        %v6611 = vunpack.c.l.b16 %v5919
        %v6612 = vunpack.c.h.b16 %v5919
        %v6613 = vunpack.c.l.b16 %v5920
        %v6614 = vunpack.c.h.b16 %v5920
        %v6615 = vunpack.c.l.b16 %v5921
        %v6616 = vunpack.c.h.b16 %v5921
        %v6617 = vunpack.c.l.b16 %v5922
        %v6618 = vunpack.c.h.b16 %v5922
        %v6619 = vunpack.c.l.b16 %v5923
        %v6620 = vunpack.c.h.b16 %v5923
        %v6621 = vunpack.c.l.b16 %v5924
        %v6622 = vunpack.c.h.b16 %v5924
        %v6623 = vunpack.c.l.b16 %v5925
        %v6624 = vunpack.c.h.b16 %v5925
        %v6625 = vunpack.c.l.b16 %v5926
        %v6626 = vunpack.c.h.b16 %v5926
        %v6627 = vunpack.c.l.b16 %v5927
        %v6628 = vunpack.c.h.b16 %v5927
        %v6629 = vunpack.c.l.b16 %v5928
        %v6630 = vunpack.c.h.b16 %v5928
        %v6631 = vunpack.c.l.b16 %v5929
        %v6632 = vunpack.c.h.b16 %v5929
        %v6633 = vunpack.c.l.b16 %v5930
        %v6634 = vunpack.c.h.b16 %v5930
        %v6635 = vunpack.c.l.b16 %v5931
        %v6636 = vunpack.c.h.b16 %v5931
        %v6637 = vunpack.c.l.b16 %v5932
        %v6638 = vunpack.c.h.b16 %v5932
        %v6639 = vunpack.c.l.b16 %v5933
        %v6640 = vunpack.c.h.b16 %v5933
        %v6641 = vunpack.c.l.b16 %v5934
        %v6642 = vunpack.c.h.b16 %v5934
        %v6643 = vunpack.c.l.b16 %v5935
        %v6644 = vunpack.c.h.b16 %v5935
        %v6645 = vunpack.c.l.b16 %v5936
        %v6646 = vunpack.c.h.b16 %v5936
        %v6647 = vunpack.c.l.b16 %v5937
        %v6648 = vunpack.c.h.b16 %v5937
        %v6649 = vunpack.c.l.b16 %v5938
        %v6650 = vunpack.c.h.b16 %v5938
        %v6651 = vunpack.c.l.b16 %v5939
        %v6652 = vunpack.c.h.b16 %v5939
        %v6653 = vunpack.c.l.b16 %v5940
        %v6654 = vunpack.c.h.b16 %v5940
        %v6655 = vunpack.c.l.b16 %v5941
        %v6656 = vunpack.c.h.b16 %v5941
        %v6657 = vunpack.c.l.b16 %v5942
        %v6658 = vunpack.c.h.b16 %v5942
        %v6659 = vunpack.c.l.b16 %v5943
        %v6660 = vunpack.c.h.b16 %v5943
        %v6661 = vunpack.c.l.b16 %v5944
        %v6662 = vunpack.c.h.b16 %v5944
        %v6663 = vunpack.c.l.b16 %v5945
        %v6664 = vunpack.c.h.b16 %v5945
        %v6665 = vunpack.c.l.b16 %v5946
        %v6666 = vunpack.c.h.b16 %v5946
        %v6667 = vunpack.c.l.b16 %v5947
        %v6668 = vunpack.c.h.b16 %v5947
        %v6669 = vunpack.c.l.b16 %v5948
        %v6670 = vunpack.c.h.b16 %v5948
        %v6671 = vunpack.c.l.b16 %v5949
        %v6672 = vunpack.c.h.b16 %v5949
        %v6673 = vunpack.c.l.b16 %v5950
        %v6674 = vunpack.c.h.b16 %v5950
        %v6675 = vunpack.c.l.b16 %v5951
        %v6676 = vunpack.c.h.b16 %v5951
        %v6677 = vunpack.c.l.b16 %v5952
        %v6678 = vunpack.c.h.b16 %v5952
        %v6679 = vunpack.c.l.b16 %v5953
        %v6680 = vunpack.c.h.b16 %v5953
        %v6681 = vunpack.c.l.b16 %v5954
        %v6682 = vunpack.c.h.b16 %v5954
        %v6683 = vunpack.c.l.b16 %v5955
        %v6684 = vunpack.c.h.b16 %v5955
        %v6685 = vunpack.c.l.b16 %v5956
        %v6686 = vunpack.c.h.b16 %v5956
        %v6687 = vunpack.c.l.b16 %v5957
        %v6688 = vunpack.c.h.b16 %v5957
        %v6689 = vunpack.c.l.b16 %v5958
        %v6690 = vunpack.c.h.b16 %v5958
        %v6691 = vunpack.c.l.b16 %v5959
        %v6692 = vunpack.c.h.b16 %v5959
        %v6693 = vunpack.c.l.b16 %v5960
        %v6694 = vunpack.c.h.b16 %v5960
        %v6695 = vunpack.c.l.b16 %v5961
        %v6696 = vunpack.c.h.b16 %v5961
        %v6697 = vunpack.c.l.b16 %v5962
        %v6698 = vunpack.c.h.b16 %v5962
        %v6699 = vunpack.c.l.b16 %v5963
        %v6700 = vunpack.c.h.b16 %v5963
        %v6701 = vunpack.c.l.b16 %v5964
        %v6702 = vunpack.c.h.b16 %v5964
        %v6703 = vunpack.c.l.b16 %v5965
        %v6704 = vunpack.c.h.b16 %v5965
        %v6705 = vunpack.c.l.b16 %v5966
        %v6706 = vunpack.c.h.b16 %v5966
        %v6707 = vunpack.c.l.b16 %v5967
        %v6708 = vunpack.c.h.b16 %v5967
        %v6709 = vunpack.c.l.b16 %v5968
        %v6710 = vunpack.c.h.b16 %v5968
        %v6711 = vunpack.c.l.b16 %v5969
        %v6712 = vunpack.c.h.b16 %v5969
        %v6713 = vunpack.c.l.b16 %v5970
        %v6714 = vunpack.c.h.b16 %v5970
        %v6715 = vunpack.c.l.b16 %v5971
        %v6716 = vunpack.c.h.b16 %v5971
        %v6717 = vunpack.c.l.b16 %v5972
        %v6718 = vunpack.c.h.b16 %v5972
        %v6719 = vunpack.c.l.b16 %v5973
        %v6720 = vunpack.c.h.b16 %v5973
        %v6721 = vunpack.c.l.b16 %v5974
        %v6722 = vunpack.c.h.b16 %v5974
        %v6723 = vunpack.c.l.b16 %v5975
        %v6724 = vunpack.c.h.b16 %v5975
        %v6725 = vunpack.c.l.b16 %v5976
        %v6726 = vunpack.c.h.b16 %v5976
        %v6727 = vunpack.c.l.b16 %v5977
        %v6728 = vunpack.c.h.b16 %v5977
        %v6729 = vunpack.c.l.b16 %v5978
        %v6730 = vunpack.c.h.b16 %v5978
        %v6731 = vunpack.c.l.b16 %v5979
        %v6732 = vunpack.c.h.b16 %v5979
        %v6733 = vunpack.c.l.b16 %v5980
        %v6734 = vunpack.c.h.b16 %v5980
        %v6735 = vunpack.c.l.b16 %v5981
        %v6736 = vunpack.c.h.b16 %v5981
        %v6737 = vunpack.c.l.b16 %v5982
        %v6738 = vunpack.c.h.b16 %v5982
        %v6739 = vunpack.c.l.b16 %v5983
        %v6740 = vunpack.c.h.b16 %v5983
        %v6741 = vunpack.c.l.b16 %v5984
        %v6742 = vunpack.c.h.b16 %v5984
        %v6743 = vunpack.c.l.b16 %v5985
        %v6744 = vunpack.c.h.b16 %v5985
        %v6745 = vunpack.c.l.b16 %v5986
        %v6746 = vunpack.c.h.b16 %v5986
        %v6747 = vunpack.c.l.b16 %v5987
        %v6748 = vunpack.c.h.b16 %v5987
        %v6749 = vunpack.c.l.b16 %v5988
        %v6750 = vunpack.c.h.b16 %v5988
        %v6751 = vunpack.c.l.b16 %v5989
        %v6752 = vunpack.c.h.b16 %v5989
        %v6753 = vunpack.c.l.b16 %v5990
        %v6754 = vunpack.c.h.b16 %v5990
        %v6755 = vunpack.c.l.b16 %v5991
        %v6756 = vunpack.c.h.b16 %v5991
        %v6757 = vunpack.c.l.b16 %v5992
        %v6758 = vunpack.c.h.b16 %v5992
        %v6759 = vunpack.c.l.b16 %v5993
        %v6760 = vunpack.c.h.b16 %v5993
        %v6761 = vunpack.c.l.b16 %v5994
        %v6762 = vunpack.c.h.b16 %v5994
        %v6763 = vunpack.c.l.b16 %v5995
        %v6764 = vunpack.c.h.b16 %v5995
        %v6765 = vunpack.c.l.b16 %v5996
        %v6766 = vunpack.c.h.b16 %v5996
        %v6767 = vunpack.c.l.b16 %v5997
        %v6768 = vunpack.c.h.b16 %v5997
        %v6769 = vunpack.c.l.b16 %v5998
        %v6770 = vunpack.c.h.b16 %v5998
        %v6771 = vunpack.c.l.b16 %v5999
        %v6772 = vunpack.c.h.b16 %v5999
        %v6773 = vunpack.c.l.b16 %v6000
        %v6774 = vunpack.c.h.b16 %v6000
        %v6775 = vunpack.c.l.b16 %v6001
        %v6776 = vunpack.c.h.b16 %v6001
        %v6777 = vunpack.c.l.b16 %v6002
        %v6778 = vunpack.c.h.b16 %v6002
        %v6779 = vunpack.c.l.b16 %v6003
        %v6780 = vunpack.c.h.b16 %v6003
        %v6781 = vunpack.c.l.b16 %v6004
        %v6782 = vunpack.c.h.b16 %v6004
        %v6783 = vunpack.c.l.b16 %v6005
        %v6784 = vunpack.c.h.b16 %v6005
        %v6785 = vunpack.c.l.b16 %v6006
        %v6786 = vunpack.c.h.b16 %v6006
        %v6787 = vunpack.c.l.b16 %v6007
        %v6788 = vunpack.c.h.b16 %v6007
        %v6789 = vunpack.c.l.b16 %v6008
        %v6790 = vunpack.c.h.b16 %v6008
        %v6791 = vunpack.c.l.b16 %v6009
        %v6792 = vunpack.c.h.b16 %v6009
        %v6793 = vunpack.c.l.b16 %v6010
        %v6794 = vunpack.c.h.b16 %v6010
        %v6795 = vunpack.c.l.b16 %v6011
        %v6796 = vunpack.c.h.b16 %v6011
        %v6797 = vunpack.c.l.b16 %v6012
        %v6798 = vunpack.c.h.b16 %v6012
        %v6799 = vunpack.c.l.b16 %v6013
        %v6800 = vunpack.c.h.b16 %v6013
        %v6801 = vunpack.c.l.b16 %v6014
        %v6802 = vunpack.c.h.b16 %v6014
        %v6803 = vunpack.c.l.b16 %v6015
        %v6804 = vunpack.c.h.b16 %v6015
        %v6805 = vunpack.c.l.b16 %v6016
        %v6806 = vunpack.c.h.b16 %v6016
        %v6807 = vpack.c.b16 %v6303, %v6295
        %v6808 = vpack.c.b16 %v6304, %v6296
        %v6809 = vpack.c.b16 %v6305, %v6297
        %v6810 = vpack.c.b16 %v6306, %v6298
        %v6811 = vpack.c.b16 %v6307, %v6299
        %v6812 = vpack.c.b16 %v6308, %v6300
        %v6813 = vpack.c.b16 %v6309, %v6301
        %v6814 = vpack.c.b16 %v6310, %v6302
        %v6815 = vpack.c.b16 %v6319, %v6311
        %v6816 = vpack.c.b16 %v6320, %v6312
        %v6817 = vpack.c.b16 %v6321, %v6313
        %v6818 = vpack.c.b16 %v6322, %v6314
        %v6819 = vpack.c.b16 %v6323, %v6315
        %v6820 = vpack.c.b16 %v6324, %v6316
        %v6821 = vpack.c.b16 %v6325, %v6317
        %v6822 = vpack.c.b16 %v6326, %v6318
        %v6823 = vpack.c.b16 %v6335, %v6327
        %v6824 = vpack.c.b16 %v6336, %v6328
        %v6825 = vpack.c.b16 %v6337, %v6329
        %v6826 = vpack.c.b16 %v6338, %v6330
        %v6827 = vpack.c.b16 %v6339, %v6331
        %v6828 = vpack.c.b16 %v6340, %v6332
        %v6829 = vpack.c.b16 %v6341, %v6333
        %v6830 = vpack.c.b16 %v6342, %v6334
        %v6831 = vpack.c.b16 %v6351, %v6343
        %v6832 = vpack.c.b16 %v6352, %v6344
        %v6833 = vpack.c.b16 %v6353, %v6345
        %v6834 = vpack.c.b16 %v6354, %v6346
        %v6835 = vpack.c.b16 %v6355, %v6347
        %v6836 = vpack.c.b16 %v6356, %v6348
        %v6837 = vpack.c.b16 %v6357, %v6349
        %v6838 = vpack.c.b16 %v6358, %v6350
        %v6839 = vpack.c.b16 %v6367, %v6359
        %v6840 = vpack.c.b16 %v6368, %v6360
        %v6841 = vpack.c.b16 %v6369, %v6361
        %v6842 = vpack.c.b16 %v6370, %v6362
        %v6843 = vpack.c.b16 %v6371, %v6363
        %v6844 = vpack.c.b16 %v6372, %v6364
        %v6845 = vpack.c.b16 %v6373, %v6365
        %v6846 = vpack.c.b16 %v6374, %v6366
        %v6847 = vpack.c.b16 %v6383, %v6375
        %v6848 = vpack.c.b16 %v6384, %v6376
        %v6849 = vpack.c.b16 %v6385, %v6377
        %v6850 = vpack.c.b16 %v6386, %v6378
        %v6851 = vpack.c.b16 %v6387, %v6379
        %v6852 = vpack.c.b16 %v6388, %v6380
        %v6853 = vpack.c.b16 %v6389, %v6381
        %v6854 = vpack.c.b16 %v6390, %v6382
        %v6855 = vpack.c.b16 %v6399, %v6391
        %v6856 = vpack.c.b16 %v6400, %v6392
        %v6857 = vpack.c.b16 %v6401, %v6393
        %v6858 = vpack.c.b16 %v6402, %v6394
        %v6859 = vpack.c.b16 %v6403, %v6395
        %v6860 = vpack.c.b16 %v6404, %v6396
        %v6861 = vpack.c.b16 %v6405, %v6397
        %v6862 = vpack.c.b16 %v6406, %v6398
        %v6863 = vpack.c.b16 %v6415, %v6407
        %v6864 = vpack.c.b16 %v6416, %v6408
        %v6865 = vpack.c.b16 %v6417, %v6409
        %v6866 = vpack.c.b16 %v6418, %v6410
        %v6867 = vpack.c.b16 %v6419, %v6411
        %v6868 = vpack.c.b16 %v6420, %v6412
        %v6869 = vpack.c.b16 %v6421, %v6413
        %v6870 = vpack.c.b16 %v6422, %v6414
        %v6871 = vpack.c.b16 %v6431, %v6423
        %v6872 = vpack.c.b16 %v6432, %v6424
        %v6873 = vpack.c.b16 %v6433, %v6425
        %v6874 = vpack.c.b16 %v6434, %v6426
        %v6875 = vpack.c.b16 %v6435, %v6427
        %v6876 = vpack.c.b16 %v6436, %v6428
        %v6877 = vpack.c.b16 %v6437, %v6429
        %v6878 = vpack.c.b16 %v6438, %v6430
        %v6879 = vpack.c.b16 %v6447, %v6439
        %v6880 = vpack.c.b16 %v6448, %v6440
        %v6881 = vpack.c.b16 %v6449, %v6441
        %v6882 = vpack.c.b16 %v6450, %v6442
        %v6883 = vpack.c.b16 %v6451, %v6443
        %v6884 = vpack.c.b16 %v6452, %v6444
        %v6885 = vpack.c.b16 %v6453, %v6445
        %v6886 = vpack.c.b16 %v6454, %v6446
        %v6887 = vpack.c.b16 %v6463, %v6455
        %v6888 = vpack.c.b16 %v6464, %v6456
        %v6889 = vpack.c.b16 %v6465, %v6457
        %v6890 = vpack.c.b16 %v6466, %v6458
        %v6891 = vpack.c.b16 %v6467, %v6459
        %v6892 = vpack.c.b16 %v6468, %v6460
        %v6893 = vpack.c.b16 %v6469, %v6461
        %v6894 = vpack.c.b16 %v6470, %v6462
        %v6895 = vpack.c.b16 %v6479, %v6471
        %v6896 = vpack.c.b16 %v6480, %v6472
        %v6897 = vpack.c.b16 %v6481, %v6473
        %v6898 = vpack.c.b16 %v6482, %v6474
        %v6899 = vpack.c.b16 %v6483, %v6475
        %v6900 = vpack.c.b16 %v6484, %v6476
        %v6901 = vpack.c.b16 %v6485, %v6477
        %v6902 = vpack.c.b16 %v6486, %v6478
        %v6903 = vpack.c.b16 %v6495, %v6487
        %v6904 = vpack.c.b16 %v6496, %v6488
        %v6905 = vpack.c.b16 %v6497, %v6489
        %v6906 = vpack.c.b16 %v6498, %v6490
        %v6907 = vpack.c.b16 %v6499, %v6491
        %v6908 = vpack.c.b16 %v6500, %v6492
        %v6909 = vpack.c.b16 %v6501, %v6493
        %v6910 = vpack.c.b16 %v6502, %v6494
        %v6911 = vpack.c.b16 %v6511, %v6503
        %v6912 = vpack.c.b16 %v6512, %v6504
        %v6913 = vpack.c.b16 %v6513, %v6505
        %v6914 = vpack.c.b16 %v6514, %v6506
        %v6915 = vpack.c.b16 %v6515, %v6507
        %v6916 = vpack.c.b16 %v6516, %v6508
        %v6917 = vpack.c.b16 %v6517, %v6509
        %v6918 = vpack.c.b16 %v6518, %v6510
        %v6919 = vpack.c.b16 %v6527, %v6519
        %v6920 = vpack.c.b16 %v6528, %v6520
        %v6921 = vpack.c.b16 %v6529, %v6521
        %v6922 = vpack.c.b16 %v6530, %v6522
        %v6923 = vpack.c.b16 %v6531, %v6523
        %v6924 = vpack.c.b16 %v6532, %v6524
        %v6925 = vpack.c.b16 %v6533, %v6525
        %v6926 = vpack.c.b16 %v6534, %v6526
        %v6927 = vpack.c.b16 %v6543, %v6535
        %v6928 = vpack.c.b16 %v6544, %v6536
        %v6929 = vpack.c.b16 %v6545, %v6537
        %v6930 = vpack.c.b16 %v6546, %v6538
        %v6931 = vpack.c.b16 %v6547, %v6539
        %v6932 = vpack.c.b16 %v6548, %v6540
        %v6933 = vpack.c.b16 %v6549, %v6541
        %v6934 = vpack.c.b16 %v6550, %v6542
        %v6935 = vpack.c.b16 %v6559, %v6551
        %v6936 = vpack.c.b16 %v6560, %v6552
        %v6937 = vpack.c.b16 %v6561, %v6553
        %v6938 = vpack.c.b16 %v6562, %v6554
        %v6939 = vpack.c.b16 %v6563, %v6555
        %v6940 = vpack.c.b16 %v6564, %v6556
        %v6941 = vpack.c.b16 %v6565, %v6557
        %v6942 = vpack.c.b16 %v6566, %v6558
        %v6943 = vpack.c.b16 %v6575, %v6567
        %v6944 = vpack.c.b16 %v6576, %v6568
        %v6945 = vpack.c.b16 %v6577, %v6569
        %v6946 = vpack.c.b16 %v6578, %v6570
        %v6947 = vpack.c.b16 %v6579, %v6571
        %v6948 = vpack.c.b16 %v6580, %v6572
        %v6949 = vpack.c.b16 %v6581, %v6573
        %v6950 = vpack.c.b16 %v6582, %v6574
        %v6951 = vpack.c.b16 %v6591, %v6583
        %v6952 = vpack.c.b16 %v6592, %v6584
        %v6953 = vpack.c.b16 %v6593, %v6585
        %v6954 = vpack.c.b16 %v6594, %v6586
        %v6955 = vpack.c.b16 %v6595, %v6587
        %v6956 = vpack.c.b16 %v6596, %v6588
        %v6957 = vpack.c.b16 %v6597, %v6589
        %v6958 = vpack.c.b16 %v6598, %v6590
        %v6959 = vpack.c.b16 %v6607, %v6599
        %v6960 = vpack.c.b16 %v6608, %v6600
        %v6961 = vpack.c.b16 %v6609, %v6601
        %v6962 = vpack.c.b16 %v6610, %v6602
        %v6963 = vpack.c.b16 %v6611, %v6603
        %v6964 = vpack.c.b16 %v6612, %v6604
        %v6965 = vpack.c.b16 %v6613, %v6605
        %v6966 = vpack.c.b16 %v6614, %v6606
        %v6967 = vpack.c.b16 %v6623, %v6615
        %v6968 = vpack.c.b16 %v6624, %v6616
        %v6969 = vpack.c.b16 %v6625, %v6617
        %v6970 = vpack.c.b16 %v6626, %v6618
        %v6971 = vpack.c.b16 %v6627, %v6619
        %v6972 = vpack.c.b16 %v6628, %v6620
        %v6973 = vpack.c.b16 %v6629, %v6621
        %v6974 = vpack.c.b16 %v6630, %v6622
        %v6975 = vpack.c.b16 %v6639, %v6631
        %v6976 = vpack.c.b16 %v6640, %v6632
        %v6977 = vpack.c.b16 %v6641, %v6633
        %v6978 = vpack.c.b16 %v6642, %v6634
        %v6979 = vpack.c.b16 %v6643, %v6635
        %v6980 = vpack.c.b16 %v6644, %v6636
        %v6981 = vpack.c.b16 %v6645, %v6637
        %v6982 = vpack.c.b16 %v6646, %v6638
        %v6983 = vpack.c.b16 %v6655, %v6647
        %v6984 = vpack.c.b16 %v6656, %v6648
        %v6985 = vpack.c.b16 %v6657, %v6649
        %v6986 = vpack.c.b16 %v6658, %v6650
        %v6987 = vpack.c.b16 %v6659, %v6651
        %v6988 = vpack.c.b16 %v6660, %v6652
        %v6989 = vpack.c.b16 %v6661, %v6653
        %v6990 = vpack.c.b16 %v6662, %v6654
        %v6991 = vpack.c.b16 %v6671, %v6663
        %v6992 = vpack.c.b16 %v6672, %v6664
        %v6993 = vpack.c.b16 %v6673, %v6665
        %v6994 = vpack.c.b16 %v6674, %v6666
        %v6995 = vpack.c.b16 %v6675, %v6667
        %v6996 = vpack.c.b16 %v6676, %v6668
        %v6997 = vpack.c.b16 %v6677, %v6669
        %v6998 = vpack.c.b16 %v6678, %v6670
        %v6999 = vpack.c.b16 %v6687, %v6679
        %v7000 = vpack.c.b16 %v6688, %v6680
        %v7001 = vpack.c.b16 %v6689, %v6681
        %v7002 = vpack.c.b16 %v6690, %v6682
        %v7003 = vpack.c.b16 %v6691, %v6683
        %v7004 = vpack.c.b16 %v6692, %v6684
        %v7005 = vpack.c.b16 %v6693, %v6685
        %v7006 = vpack.c.b16 %v6694, %v6686
        %v7007 = vpack.c.b16 %v6703, %v6695
        %v7008 = vpack.c.b16 %v6704, %v6696
        %v7009 = vpack.c.b16 %v6705, %v6697
        %v7010 = vpack.c.b16 %v6706, %v6698
        %v7011 = vpack.c.b16 %v6707, %v6699
        %v7012 = vpack.c.b16 %v6708, %v6700
        %v7013 = vpack.c.b16 %v6709, %v6701
        %v7014 = vpack.c.b16 %v6710, %v6702
        %v7015 = vpack.c.b16 %v6719, %v6711
        %v7016 = vpack.c.b16 %v6720, %v6712
        %v7017 = vpack.c.b16 %v6721, %v6713
        %v7018 = vpack.c.b16 %v6722, %v6714
        %v7019 = vpack.c.b16 %v6723, %v6715
        %v7020 = vpack.c.b16 %v6724, %v6716
        %v7021 = vpack.c.b16 %v6725, %v6717
        %v7022 = vpack.c.b16 %v6726, %v6718
        %v7023 = vpack.c.b16 %v6735, %v6727
        %v7024 = vpack.c.b16 %v6736, %v6728
        %v7025 = vpack.c.b16 %v6737, %v6729
        %v7026 = vpack.c.b16 %v6738, %v6730
        %v7027 = vpack.c.b16 %v6739, %v6731
        %v7028 = vpack.c.b16 %v6740, %v6732
        %v7029 = vpack.c.b16 %v6741, %v6733
        %v7030 = vpack.c.b16 %v6742, %v6734
        %v7031 = vpack.c.b16 %v6751, %v6743
        %v7032 = vpack.c.b16 %v6752, %v6744
        %v7033 = vpack.c.b16 %v6753, %v6745
        %v7034 = vpack.c.b16 %v6754, %v6746
        %v7035 = vpack.c.b16 %v6755, %v6747
        %v7036 = vpack.c.b16 %v6756, %v6748
        %v7037 = vpack.c.b16 %v6757, %v6749
        %v7038 = vpack.c.b16 %v6758, %v6750
        %v7039 = vpack.c.b16 %v6767, %v6759
        %v7040 = vpack.c.b16 %v6768, %v6760
        %v7041 = vpack.c.b16 %v6769, %v6761
        %v7042 = vpack.c.b16 %v6770, %v6762
        %v7043 = vpack.c.b16 %v6771, %v6763
        %v7044 = vpack.c.b16 %v6772, %v6764
        %v7045 = vpack.c.b16 %v6773, %v6765
        %v7046 = vpack.c.b16 %v6774, %v6766
        %v7047 = vpack.c.b16 %v6783, %v6775
        %v7048 = vpack.c.b16 %v6784, %v6776
        %v7049 = vpack.c.b16 %v6785, %v6777
        %v7050 = vpack.c.b16 %v6786, %v6778
        %v7051 = vpack.c.b16 %v6787, %v6779
        %v7052 = vpack.c.b16 %v6788, %v6780
        %v7053 = vpack.c.b16 %v6789, %v6781
        %v7054 = vpack.c.b16 %v6790, %v6782
        %v7055 = vpack.c.b16 %v6799, %v6791
        %v7056 = vpack.c.b16 %v6800, %v6792
        %v7057 = vpack.c.b16 %v6801, %v6793
        %v7058 = vpack.c.b16 %v6802, %v6794
        %v7059 = vpack.c.b16 %v6803, %v6795
        %v7060 = vpack.c.b16 %v6804, %v6796
        %v7061 = vpack.c.b16 %v6805, %v6797
        %v7062 = vpack.c.b16 %v6806, %v6798
        %7319 = vmatpush.bf16.msra.mxu0 %v6863
        %7320 = vmatpush.bf16.msra.mxu0 %v6855
        %7321 = vmatpush.bf16.msra.mxu0 %v6847
        %7322 = vmatpush.bf16.msra.mxu0 %v6839
        %7323 = vmatpush.bf16.msra.mxu0 %v6831
        %7324 = vmatpush.bf16.msra.mxu0 %v6823
        %7325 = vmatpush.bf16.msra.mxu0 %v6815
        %7326 = vmatpush.bf16.msra.mxu0 %v6807
        %7327 = vmatmul.bf16.gmra.mxu0 %v6018
        %v7328 = vpop.f32.mrf.mxu0
        %v7329 = vadd.f32 %v6023, %v7328
        %v7330 = vpop.f32.mrf.mxu0
        %7331 = vdwg.mxu0
        %7332 = vmatpush.bf16.msra.mxu0 %v6927
        %7333 = vmatpush.bf16.msra.mxu0 %v6919
        %7334 = vmatpush.bf16.msra.mxu0 %v6911
        %7335 = vmatpush.bf16.msra.mxu0 %v6903
        %7336 = vmatpush.bf16.msra.mxu0 %v6895
        %7337 = vmatpush.bf16.msra.mxu0 %v6887
        %7338 = vmatpush.bf16.msra.mxu0 %v6879
        %7339 = vmatpush.bf16.msra.mxu0 %v6871
        %7340 = vmatmul.bf16.gmra.mxu0 %v6019
        %v7341 = vpop.f32.mrf.mxu0
        %v7342 = vadd.f32 %v7329, %v7341
        %v7343 = vpop.f32.mrf.mxu0
        %7344 = vdwg.mxu0
        %7345 = vmatpush.bf16.msra.mxu0 %v6991
        %7346 = vmatpush.bf16.msra.mxu0 %v6983
        %7347 = vmatpush.bf16.msra.mxu0 %v6975
        %7348 = vmatpush.bf16.msra.mxu0 %v6967
        %7349 = vmatpush.bf16.msra.mxu0 %v6959
        %7350 = vmatpush.bf16.msra.mxu0 %v6951
        %7351 = vmatpush.bf16.msra.mxu0 %v6943
        %7352 = vmatpush.bf16.msra.mxu0 %v6935
        %7353 = vmatmul.bf16.gmra.mxu0 %v6020
        %v7354 = vpop.f32.mrf.mxu0
        %v7355 = vadd.f32 %v7342, %v7354
        %v7356 = vpop.f32.mrf.mxu0
        %7357 = vdwg.mxu0
        %7358 = vmatpush.bf16.msra.mxu0 %v7055
        %7359 = vmatpush.bf16.msra.mxu0 %v7047
        %7360 = vmatpush.bf16.msra.mxu0 %v7039
        %7361 = vmatpush.bf16.msra.mxu0 %v7031
        %7362 = vmatpush.bf16.msra.mxu0 %v7023
        %7363 = vmatpush.bf16.msra.mxu0 %v7015
        %7364 = vmatpush.bf16.msra.mxu0 %v7007
        %7365 = vmatpush.bf16.msra.mxu0 %v6999
        %7366 = vmatmul.bf16.gmra.mxu0 %v6021
        %v7367 = vpop.f32.mrf.mxu0
        %v7368 = vadd.f32 %v7355, %v7367
        %v7369 = vpop.f32.mrf.mxu0
        %7370 = vdwg.mxu0
        %7371 = vmatpush.bf16.msra.mxu0 %v6864
        %7372 = vmatpush.bf16.msra.mxu0 %v6856
        %7373 = vmatpush.bf16.msra.mxu0 %v6848
        %7374 = vmatpush.bf16.msra.mxu0 %v6840
        %7375 = vmatpush.bf16.msra.mxu0 %v6832
        %7376 = vmatpush.bf16.msra.mxu0 %v6824
        %7377 = vmatpush.bf16.msra.mxu0 %v6816
        %7378 = vmatpush.bf16.msra.mxu0 %v6808
        %7379 = vmatmul.bf16.gmra.mxu0 %v6018
        %v7380 = vpop.f32.mrf.mxu0
        %v7381 = vadd.f32 %v6024, %v7380
        %v7382 = vpop.f32.mrf.mxu0
        %7383 = vdwg.mxu0
        %7384 = vmatpush.bf16.msra.mxu0 %v6928
        %7385 = vmatpush.bf16.msra.mxu0 %v6920
        %7386 = vmatpush.bf16.msra.mxu0 %v6912
        %7387 = vmatpush.bf16.msra.mxu0 %v6904
        %7388 = vmatpush.bf16.msra.mxu0 %v6896
        %7389 = vmatpush.bf16.msra.mxu0 %v6888
        %7390 = vmatpush.bf16.msra.mxu0 %v6880
        %7391 = vmatpush.bf16.msra.mxu0 %v6872
        %7392 = vmatmul.bf16.gmra.mxu0 %v6019
        %v7393 = vpop.f32.mrf.mxu0
        %v7394 = vadd.f32 %v7381, %v7393
        %v7395 = vpop.f32.mrf.mxu0
        %7396 = vdwg.mxu0
        %7397 = vmatpush.bf16.msra.mxu0 %v6992
        %7398 = vmatpush.bf16.msra.mxu0 %v6984
        %7399 = vmatpush.bf16.msra.mxu0 %v6976
        %7400 = vmatpush.bf16.msra.mxu0 %v6968
        %7401 = vmatpush.bf16.msra.mxu0 %v6960
        %7402 = vmatpush.bf16.msra.mxu0 %v6952
        %7403 = vmatpush.bf16.msra.mxu0 %v6944
        %7404 = vmatpush.bf16.msra.mxu0 %v6936
        %7405 = vmatmul.bf16.gmra.mxu0 %v6020
        %v7406 = vpop.f32.mrf.mxu0
        %v7407 = vadd.f32 %v7394, %v7406
        %v7408 = vpop.f32.mrf.mxu0
        %7409 = vdwg.mxu0
        %7410 = vmatpush.bf16.msra.mxu0 %v7056
        %7411 = vmatpush.bf16.msra.mxu0 %v7048
        %7412 = vmatpush.bf16.msra.mxu0 %v7040
        %7413 = vmatpush.bf16.msra.mxu0 %v7032
        %7414 = vmatpush.bf16.msra.mxu0 %v7024
        %7415 = vmatpush.bf16.msra.mxu0 %v7016
        %7416 = vmatpush.bf16.msra.mxu0 %v7008
        %7417 = vmatpush.bf16.msra.mxu0 %v7000
        %7418 = vmatmul.bf16.gmra.mxu0 %v6021
        %v7419 = vpop.f32.mrf.mxu0
        %v7420 = vadd.f32 %v7407, %v7419
        %v7421 = vpop.f32.mrf.mxu0
        %7422 = vdwg.mxu0
        %7423 = vmatpush.bf16.msra.mxu0 %v6865
        %7424 = vmatpush.bf16.msra.mxu0 %v6857
        %7425 = vmatpush.bf16.msra.mxu0 %v6849
        %7426 = vmatpush.bf16.msra.mxu0 %v6841
        %7427 = vmatpush.bf16.msra.mxu0 %v6833
        %7428 = vmatpush.bf16.msra.mxu0 %v6825
        %7429 = vmatpush.bf16.msra.mxu0 %v6817
        %7430 = vmatpush.bf16.msra.mxu0 %v6809
        %7431 = vmatmul.bf16.gmra.mxu0 %v6018
        %v7432 = vpop.f32.mrf.mxu0
        %v7433 = vadd.f32 %v6025, %v7432
        %v7434 = vpop.f32.mrf.mxu0
        %7435 = vdwg.mxu0
        %7436 = vmatpush.bf16.msra.mxu0 %v6929
        %7437 = vmatpush.bf16.msra.mxu0 %v6921
        %7438 = vmatpush.bf16.msra.mxu0 %v6913
        %7439 = vmatpush.bf16.msra.mxu0 %v6905
        %7440 = vmatpush.bf16.msra.mxu0 %v6897
        %7441 = vmatpush.bf16.msra.mxu0 %v6889
        %7442 = vmatpush.bf16.msra.mxu0 %v6881
        %7443 = vmatpush.bf16.msra.mxu0 %v6873
        %7444 = vmatmul.bf16.gmra.mxu0 %v6019
        %v7445 = vpop.f32.mrf.mxu0
        %v7446 = vadd.f32 %v7433, %v7445
        %v7447 = vpop.f32.mrf.mxu0
        %7448 = vdwg.mxu0
        %7449 = vmatpush.bf16.msra.mxu0 %v6993
        %7450 = vmatpush.bf16.msra.mxu0 %v6985
        %7451 = vmatpush.bf16.msra.mxu0 %v6977
        %7452 = vmatpush.bf16.msra.mxu0 %v6969
        %7453 = vmatpush.bf16.msra.mxu0 %v6961
        %7454 = vmatpush.bf16.msra.mxu0 %v6953
        %7455 = vmatpush.bf16.msra.mxu0 %v6945
        %7456 = vmatpush.bf16.msra.mxu0 %v6937
        %7457 = vmatmul.bf16.gmra.mxu0 %v6020
        %v7458 = vpop.f32.mrf.mxu0
        %v7459 = vadd.f32 %v7446, %v7458
        %v7460 = vpop.f32.mrf.mxu0
        %7461 = vdwg.mxu0
        %7462 = vmatpush.bf16.msra.mxu0 %v7057
        %7463 = vmatpush.bf16.msra.mxu0 %v7049
        %7464 = vmatpush.bf16.msra.mxu0 %v7041
        %7465 = vmatpush.bf16.msra.mxu0 %v7033
        %7466 = vmatpush.bf16.msra.mxu0 %v7025
        %7467 = vmatpush.bf16.msra.mxu0 %v7017
        %7468 = vmatpush.bf16.msra.mxu0 %v7009
        %7469 = vmatpush.bf16.msra.mxu0 %v7001
        %7470 = vmatmul.bf16.gmra.mxu0 %v6021
        %v7471 = vpop.f32.mrf.mxu0
        %v7472 = vadd.f32 %v7459, %v7471
        %v7473 = vpop.f32.mrf.mxu0
        %7474 = vdwg.mxu0
        %7475 = vmatpush.bf16.msra.mxu0 %v6866
        %7476 = vmatpush.bf16.msra.mxu0 %v6858
        %7477 = vmatpush.bf16.msra.mxu0 %v6850
        %7478 = vmatpush.bf16.msra.mxu0 %v6842
        %7479 = vmatpush.bf16.msra.mxu0 %v6834
        %7480 = vmatpush.bf16.msra.mxu0 %v6826
        %7481 = vmatpush.bf16.msra.mxu0 %v6818
        %7482 = vmatpush.bf16.msra.mxu0 %v6810
        %7483 = vmatmul.bf16.gmra.mxu0 %v6018
        %v7484 = vpop.f32.mrf.mxu0
        %v7485 = vadd.f32 %v6026, %v7484
        %v7486 = vpop.f32.mrf.mxu0
        %7487 = vdwg.mxu0
        %7488 = vmatpush.bf16.msra.mxu0 %v6930
        %7489 = vmatpush.bf16.msra.mxu0 %v6922
        %7490 = vmatpush.bf16.msra.mxu0 %v6914
        %7491 = vmatpush.bf16.msra.mxu0 %v6906
        %7492 = vmatpush.bf16.msra.mxu0 %v6898
        %7493 = vmatpush.bf16.msra.mxu0 %v6890
        %7494 = vmatpush.bf16.msra.mxu0 %v6882
        %7495 = vmatpush.bf16.msra.mxu0 %v6874
        %7496 = vmatmul.bf16.gmra.mxu0 %v6019
        %v7497 = vpop.f32.mrf.mxu0
        %v7498 = vadd.f32 %v7485, %v7497
        %v7499 = vpop.f32.mrf.mxu0
        %7500 = vdwg.mxu0
        %7501 = vmatpush.bf16.msra.mxu0 %v6994
        %7502 = vmatpush.bf16.msra.mxu0 %v6986
        %7503 = vmatpush.bf16.msra.mxu0 %v6978
        %7504 = vmatpush.bf16.msra.mxu0 %v6970
        %7505 = vmatpush.bf16.msra.mxu0 %v6962
        %7506 = vmatpush.bf16.msra.mxu0 %v6954
        %7507 = vmatpush.bf16.msra.mxu0 %v6946
        %7508 = vmatpush.bf16.msra.mxu0 %v6938
        %7509 = vmatmul.bf16.gmra.mxu0 %v6020
        %v7510 = vpop.f32.mrf.mxu0
        %v7511 = vadd.f32 %v7498, %v7510
        %v7512 = vpop.f32.mrf.mxu0
        %7513 = vdwg.mxu0
        %7514 = vmatpush.bf16.msra.mxu0 %v7058
        %7515 = vmatpush.bf16.msra.mxu0 %v7050
        %7516 = vmatpush.bf16.msra.mxu0 %v7042
        %7517 = vmatpush.bf16.msra.mxu0 %v7034
        %7518 = vmatpush.bf16.msra.mxu0 %v7026
        %7519 = vmatpush.bf16.msra.mxu0 %v7018
        %7520 = vmatpush.bf16.msra.mxu0 %v7010
        %7521 = vmatpush.bf16.msra.mxu0 %v7002
        %7522 = vmatmul.bf16.gmra.mxu0 %v6021
        %v7523 = vpop.f32.mrf.mxu0
        %v7524 = vadd.f32 %v7511, %v7523
        %v7525 = vpop.f32.mrf.mxu0
        %7526 = vdwg.mxu0
        %7527 = vmatpush.bf16.msra.mxu0 %v6867
        %7528 = vmatpush.bf16.msra.mxu0 %v6859
        %7529 = vmatpush.bf16.msra.mxu0 %v6851
        %7530 = vmatpush.bf16.msra.mxu0 %v6843
        %7531 = vmatpush.bf16.msra.mxu0 %v6835
        %7532 = vmatpush.bf16.msra.mxu0 %v6827
        %7533 = vmatpush.bf16.msra.mxu0 %v6819
        %7534 = vmatpush.bf16.msra.mxu0 %v6811
        %7535 = vmatmul.bf16.gmra.mxu0 %v6018
        %v7536 = vpop.f32.mrf.mxu0
        %v7537 = vadd.f32 %v6027, %v7536
        %v7538 = vpop.f32.mrf.mxu0
        %7539 = vdwg.mxu0
        %7540 = vmatpush.bf16.msra.mxu0 %v6931
        %7541 = vmatpush.bf16.msra.mxu0 %v6923
        %7542 = vmatpush.bf16.msra.mxu0 %v6915
        %7543 = vmatpush.bf16.msra.mxu0 %v6907
        %7544 = vmatpush.bf16.msra.mxu0 %v6899
        %7545 = vmatpush.bf16.msra.mxu0 %v6891
        %7546 = vmatpush.bf16.msra.mxu0 %v6883
        %7547 = vmatpush.bf16.msra.mxu0 %v6875
        %7548 = vmatmul.bf16.gmra.mxu0 %v6019
        %v7549 = vpop.f32.mrf.mxu0
        %v7550 = vadd.f32 %v7537, %v7549
        %v7551 = vpop.f32.mrf.mxu0
        %7552 = vdwg.mxu0
        %7553 = vmatpush.bf16.msra.mxu0 %v6995
        %7554 = vmatpush.bf16.msra.mxu0 %v6987
        %7555 = vmatpush.bf16.msra.mxu0 %v6979
        %7556 = vmatpush.bf16.msra.mxu0 %v6971
        %7557 = vmatpush.bf16.msra.mxu0 %v6963
        %7558 = vmatpush.bf16.msra.mxu0 %v6955
        %7559 = vmatpush.bf16.msra.mxu0 %v6947
        %7560 = vmatpush.bf16.msra.mxu0 %v6939
        %7561 = vmatmul.bf16.gmra.mxu0 %v6020
        %v7562 = vpop.f32.mrf.mxu0
        %v7563 = vadd.f32 %v7550, %v7562
        %v7564 = vpop.f32.mrf.mxu0
        %7565 = vdwg.mxu0
        %7566 = vmatpush.bf16.msra.mxu0 %v7059
        %7567 = vmatpush.bf16.msra.mxu0 %v7051
        %7568 = vmatpush.bf16.msra.mxu0 %v7043
        %7569 = vmatpush.bf16.msra.mxu0 %v7035
        %7570 = vmatpush.bf16.msra.mxu0 %v7027
        %7571 = vmatpush.bf16.msra.mxu0 %v7019
        %7572 = vmatpush.bf16.msra.mxu0 %v7011
        %7573 = vmatpush.bf16.msra.mxu0 %v7003
        %7574 = vmatmul.bf16.gmra.mxu0 %v6021
        %v7575 = vpop.f32.mrf.mxu0
        %v7576 = vadd.f32 %v7563, %v7575
        %v7577 = vpop.f32.mrf.mxu0
        %7578 = vdwg.mxu0
        %7579 = vmatpush.bf16.msra.mxu0 %v6868
        %7580 = vmatpush.bf16.msra.mxu0 %v6860
        %7581 = vmatpush.bf16.msra.mxu0 %v6852
        %7582 = vmatpush.bf16.msra.mxu0 %v6844
        %7583 = vmatpush.bf16.msra.mxu0 %v6836
        %7584 = vmatpush.bf16.msra.mxu0 %v6828
        %7585 = vmatpush.bf16.msra.mxu0 %v6820
        %7586 = vmatpush.bf16.msra.mxu0 %v6812
        %7587 = vmatmul.bf16.gmra.mxu0 %v6018
        %v7588 = vpop.f32.mrf.mxu0
        %v7589 = vadd.f32 %v6028, %v7588
        %v7590 = vpop.f32.mrf.mxu0
        %7591 = vdwg.mxu0
        %7592 = vmatpush.bf16.msra.mxu0 %v6932
        %7593 = vmatpush.bf16.msra.mxu0 %v6924
        %7594 = vmatpush.bf16.msra.mxu0 %v6916
        %7595 = vmatpush.bf16.msra.mxu0 %v6908
        %7596 = vmatpush.bf16.msra.mxu0 %v6900
        %7597 = vmatpush.bf16.msra.mxu0 %v6892
        %7598 = vmatpush.bf16.msra.mxu0 %v6884
        %7599 = vmatpush.bf16.msra.mxu0 %v6876
        %7600 = vmatmul.bf16.gmra.mxu0 %v6019
        %v7601 = vpop.f32.mrf.mxu0
        %v7602 = vadd.f32 %v7589, %v7601
        %v7603 = vpop.f32.mrf.mxu0
        %7604 = vdwg.mxu0
        %7605 = vmatpush.bf16.msra.mxu0 %v6996
        %7606 = vmatpush.bf16.msra.mxu0 %v6988
        %7607 = vmatpush.bf16.msra.mxu0 %v6980
        %7608 = vmatpush.bf16.msra.mxu0 %v6972
        %7609 = vmatpush.bf16.msra.mxu0 %v6964
        %7610 = vmatpush.bf16.msra.mxu0 %v6956
        %7611 = vmatpush.bf16.msra.mxu0 %v6948
        %7612 = vmatpush.bf16.msra.mxu0 %v6940
        %7613 = vmatmul.bf16.gmra.mxu0 %v6020
        %v7614 = vpop.f32.mrf.mxu0
        %v7615 = vadd.f32 %v7602, %v7614
        %v7616 = vpop.f32.mrf.mxu0
        %7617 = vdwg.mxu0
        %7618 = vmatpush.bf16.msra.mxu0 %v7060
        %7619 = vmatpush.bf16.msra.mxu0 %v7052
        %7620 = vmatpush.bf16.msra.mxu0 %v7044
        %7621 = vmatpush.bf16.msra.mxu0 %v7036
        %7622 = vmatpush.bf16.msra.mxu0 %v7028
        %7623 = vmatpush.bf16.msra.mxu0 %v7020
        %7624 = vmatpush.bf16.msra.mxu0 %v7012
        %7625 = vmatpush.bf16.msra.mxu0 %v7004
        %7626 = vmatmul.bf16.gmra.mxu0 %v6021
        %v7627 = vpop.f32.mrf.mxu0
        %v7628 = vadd.f32 %v7615, %v7627
        %v7629 = vpop.f32.mrf.mxu0
        %7630 = vdwg.mxu0
        %7631 = vmatpush.bf16.msra.mxu0 %v6869
        %7632 = vmatpush.bf16.msra.mxu0 %v6861
        %7633 = vmatpush.bf16.msra.mxu0 %v6853
        %7634 = vmatpush.bf16.msra.mxu0 %v6845
        %7635 = vmatpush.bf16.msra.mxu0 %v6837
        %7636 = vmatpush.bf16.msra.mxu0 %v6829
        %7637 = vmatpush.bf16.msra.mxu0 %v6821
        %7638 = vmatpush.bf16.msra.mxu0 %v6813
        %7639 = vmatmul.bf16.gmra.mxu0 %v6018
        %v7640 = vpop.f32.mrf.mxu0
        %v7641 = vadd.f32 %v6029, %v7640
        %v7642 = vpop.f32.mrf.mxu0
        %7643 = vdwg.mxu0
        %7644 = vmatpush.bf16.msra.mxu0 %v6933
        %7645 = vmatpush.bf16.msra.mxu0 %v6925
        %7646 = vmatpush.bf16.msra.mxu0 %v6917
        %7647 = vmatpush.bf16.msra.mxu0 %v6909
        %7648 = vmatpush.bf16.msra.mxu0 %v6901
        %7649 = vmatpush.bf16.msra.mxu0 %v6893
        %7650 = vmatpush.bf16.msra.mxu0 %v6885
        %7651 = vmatpush.bf16.msra.mxu0 %v6877
        %7652 = vmatmul.bf16.gmra.mxu0 %v6019
        %v7653 = vpop.f32.mrf.mxu0
        %v7654 = vadd.f32 %v7641, %v7653
        %v7655 = vpop.f32.mrf.mxu0
        %7656 = vdwg.mxu0
        %7657 = vmatpush.bf16.msra.mxu0 %v6997
        %7658 = vmatpush.bf16.msra.mxu0 %v6989
        %7659 = vmatpush.bf16.msra.mxu0 %v6981
        %7660 = vmatpush.bf16.msra.mxu0 %v6973
        %7661 = vmatpush.bf16.msra.mxu0 %v6965
        %7662 = vmatpush.bf16.msra.mxu0 %v6957
        %7663 = vmatpush.bf16.msra.mxu0 %v6949
        %7664 = vmatpush.bf16.msra.mxu0 %v6941
        %7665 = vmatmul.bf16.gmra.mxu0 %v6020
        %v7666 = vpop.f32.mrf.mxu0
        %v7667 = vadd.f32 %v7654, %v7666
        %v7668 = vpop.f32.mrf.mxu0
        %7669 = vdwg.mxu0
        %7670 = vmatpush.bf16.msra.mxu0 %v7061
        %7671 = vmatpush.bf16.msra.mxu0 %v7053
        %7672 = vmatpush.bf16.msra.mxu0 %v7045
        %7673 = vmatpush.bf16.msra.mxu0 %v7037
        %7674 = vmatpush.bf16.msra.mxu0 %v7029
        %7675 = vmatpush.bf16.msra.mxu0 %v7021
        %7676 = vmatpush.bf16.msra.mxu0 %v7013
        %7677 = vmatpush.bf16.msra.mxu0 %v7005
        %7678 = vmatmul.bf16.gmra.mxu0 %v6021
        %v7679 = vpop.f32.mrf.mxu0
        %v7680 = vadd.f32 %v7667, %v7679
        %v7681 = vpop.f32.mrf.mxu0
        %7682 = vdwg.mxu0
        %7683 = vmatpush.bf16.msra.mxu0 %v6870
        %7684 = vmatpush.bf16.msra.mxu0 %v6862
        %7685 = vmatpush.bf16.msra.mxu0 %v6854
        %7686 = vmatpush.bf16.msra.mxu0 %v6846
        %7687 = vmatpush.bf16.msra.mxu0 %v6838
        %7688 = vmatpush.bf16.msra.mxu0 %v6830
        %7689 = vmatpush.bf16.msra.mxu0 %v6822
        %7690 = vmatpush.bf16.msra.mxu0 %v6814
        %7691 = vmatmul.bf16.gmra.mxu0 %v6018
        %v7692 = vpop.f32.mrf.mxu0
        %v7693 = vadd.f32 %v6030, %v7692
        %v7694 = vpop.f32.mrf.mxu0
        %7695 = vdwg.mxu0
        %7696 = vmatpush.bf16.msra.mxu0 %v6934
        %7697 = vmatpush.bf16.msra.mxu0 %v6926
        %7698 = vmatpush.bf16.msra.mxu0 %v6918
        %7699 = vmatpush.bf16.msra.mxu0 %v6910
        %7700 = vmatpush.bf16.msra.mxu0 %v6902
        %7701 = vmatpush.bf16.msra.mxu0 %v6894
        %7702 = vmatpush.bf16.msra.mxu0 %v6886
        %7703 = vmatpush.bf16.msra.mxu0 %v6878
        %7704 = vmatmul.bf16.gmra.mxu0 %v6019
        %v7705 = vpop.f32.mrf.mxu0
        %v7706 = vadd.f32 %v7693, %v7705
        %v7707 = vpop.f32.mrf.mxu0
        %7708 = vdwg.mxu0
        %7709 = vmatpush.bf16.msra.mxu0 %v6998
        %7710 = vmatpush.bf16.msra.mxu0 %v6990
        %7711 = vmatpush.bf16.msra.mxu0 %v6982
        %7712 = vmatpush.bf16.msra.mxu0 %v6974
        %7713 = vmatpush.bf16.msra.mxu0 %v6966
        %7714 = vmatpush.bf16.msra.mxu0 %v6958
        %7715 = vmatpush.bf16.msra.mxu0 %v6950
        %7716 = vmatpush.bf16.msra.mxu0 %v6942
        %7717 = vmatmul.bf16.gmra.mxu0 %v6020
        %v7718 = vpop.f32.mrf.mxu0
        %v7719 = vadd.f32 %v7706, %v7718
        %v7720 = vpop.f32.mrf.mxu0
        %7721 = vdwg.mxu0
        %7722 = vmatpush.bf16.msra.mxu0 %v7062
        %7723 = vmatpush.bf16.msra.mxu0 %v7054
        %7724 = vmatpush.bf16.msra.mxu0 %v7046
        %7725 = vmatpush.bf16.msra.mxu0 %v7038
        %7726 = vmatpush.bf16.msra.mxu0 %v7030
        %7727 = vmatpush.bf16.msra.mxu0 %v7022
        %7728 = vmatpush.bf16.msra.mxu0 %v7014
        %7729 = vmatpush.bf16.msra.mxu0 %v7006
        %7730 = vmatmul.bf16.gmra.mxu0 %v6021
        %v7731 = vpop.f32.mrf.mxu0
        %v7732 = vadd.f32 %v7719, %v7731
        %v7733 = vpop.f32.mrf.mxu0
        %7734 = vdwg.mxu0
        %v7735 = vmax.f32 %v7368, 0.0
        %v7736 = vmax.f32 %v7420, 0.0
        %v7737 = vmax.f32 %v7472, 0.0
        %v7738 = vmax.f32 %v7524, 0.0
        %v7739 = vmax.f32 %v7576, 0.0
        %v7740 = vmax.f32 %v7628, 0.0
        %v7741 = vmax.f32 %v7680, 0.0
        %v7742 = vmax.f32 %v7732, 0.0
        %v7743 = vld [vmem:[#allocation32] sm:$0xff]
        %v7744 = vld [vmem:[#allocation32 + $0x8] sm:$0xff]
        %v7745 = vld [vmem:[#allocation32 + $0x10] sm:$0xff]
        %v7746 = vld [vmem:[#allocation32 + $0x18] sm:$0xff]
        %v7747 = vld [vmem:[#allocation32 + $0x20] sm:$0xff]
        %v7748 = vld [vmem:[#allocation32 + $0x28] sm:$0xff]
        %v7749 = vld [vmem:[#allocation32 + $0x30] sm:$0xff]
        %v7750 = vld [vmem:[#allocation32 + $0x38] sm:$0xff]
        %v7751 = vld [vmem:[#allocation32 + $0x40] sm:$0xff]
        %v7752 = vld [vmem:[#allocation32 + $0x48] sm:$0xff]
        %v7753 = vld [vmem:[#allocation32 + $0x50] sm:$0xff]
        %v7754 = vld [vmem:[#allocation32 + $0x58] sm:$0xff]
        %v7755 = vld [vmem:[#allocation32 + $0x60] sm:$0xff]
        %v7756 = vld [vmem:[#allocation32 + $0x68] sm:$0xff]
        %v7757 = vld [vmem:[#allocation32 + $0x70] sm:$0xff]
        %v7758 = vld [vmem:[#allocation32 + $0x78] sm:$0xff]
        %v7759 = vld [vmem:[#allocation32 + $0x80] sm:$0xff]
        %v7760 = vld [vmem:[#allocation32 + $0x88] sm:$0xff]
        %v7761 = vld [vmem:[#allocation32 + $0x90] sm:$0xff]
        %v7762 = vld [vmem:[#allocation32 + $0x98] sm:$0xff]
        %v7763 = vld [vmem:[#allocation32 + $0xa0] sm:$0xff]
        %v7764 = vld [vmem:[#allocation32 + $0xa8] sm:$0xff]
        %v7765 = vld [vmem:[#allocation32 + $0xb0] sm:$0xff]
        %v7766 = vld [vmem:[#allocation32 + $0xb8] sm:$0xff]
        %v7767 = vld [vmem:[#allocation32 + $0xc0] sm:$0xff]
        %v7768 = vld [vmem:[#allocation32 + $0xc8] sm:$0xff]
        %v7769 = vld [vmem:[#allocation32 + $0xd0] sm:$0xff]
        %v7770 = vld [vmem:[#allocation32 + $0xd8] sm:$0xff]
        %v7771 = vld [vmem:[#allocation32 + $0xe0] sm:$0xff]
        %v7772 = vld [vmem:[#allocation32 + $0xe8] sm:$0xff]
        %v7773 = vld [vmem:[#allocation32 + $0xf0] sm:$0xff]
        %v7774 = vld [vmem:[#allocation32 + $0xf8] sm:$0xff]
        %v7775 = vld [vmem:[#allocation32 + $0x100] sm:$0xff]
        %v7776 = vld [vmem:[#allocation32 + $0x108] sm:$0xff]
        %v7777 = vld [vmem:[#allocation32 + $0x110] sm:$0xff]
        %v7778 = vld [vmem:[#allocation32 + $0x118] sm:$0xff]
        %v7779 = vld [vmem:[#allocation32 + $0x120] sm:$0xff]
        %v7780 = vld [vmem:[#allocation32 + $0x128] sm:$0xff]
        %v7781 = vld [vmem:[#allocation32 + $0x130] sm:$0xff]
        %v7782 = vld [vmem:[#allocation32 + $0x138] sm:$0xff]
        %v7783 = vld [vmem:[#allocation32 + $0x140] sm:$0xff]
        %v7784 = vld [vmem:[#allocation32 + $0x148] sm:$0xff]
        %v7785 = vld [vmem:[#allocation32 + $0x150] sm:$0xff]
        %v7786 = vld [vmem:[#allocation32 + $0x158] sm:$0xff]
        %v7787 = vld [vmem:[#allocation32 + $0x160] sm:$0xff]
        %v7788 = vld [vmem:[#allocation32 + $0x168] sm:$0xff]
        %v7789 = vld [vmem:[#allocation32 + $0x170] sm:$0xff]
        %v7790 = vld [vmem:[#allocation32 + $0x178] sm:$0xff]
        %v7791 = vld [vmem:[#allocation32 + $0x180] sm:$0xff]
        %v7792 = vld [vmem:[#allocation32 + $0x188] sm:$0xff]
        %v7793 = vld [vmem:[#allocation32 + $0x190] sm:$0xff]
        %v7794 = vld [vmem:[#allocation32 + $0x198] sm:$0xff]
        %v7795 = vld [vmem:[#allocation32 + $0x1a0] sm:$0xff]
        %v7796 = vld [vmem:[#allocation32 + $0x1a8] sm:$0xff]
        %v7797 = vld [vmem:[#allocation32 + $0x1b0] sm:$0xff]
        %v7798 = vld [vmem:[#allocation32 + $0x1b8] sm:$0xff]
        %v7799 = vld [vmem:[#allocation32 + $0x1c0] sm:$0xff]
        %v7800 = vld [vmem:[#allocation32 + $0x1c8] sm:$0xff]
        %v7801 = vld [vmem:[#allocation32 + $0x1d0] sm:$0xff]
        %v7802 = vld [vmem:[#allocation32 + $0x1d8] sm:$0xff]
        %v7803 = vld [vmem:[#allocation32 + $0x1e0] sm:$0xff]
        %v7804 = vld [vmem:[#allocation32 + $0x1e8] sm:$0xff]
        %v7805 = vld [vmem:[#allocation32 + $0x1f0] sm:$0xff]
        %v7806 = vld [vmem:[#allocation32 + $0x1f8] sm:$0xff]
        %v7807 = vld [vmem:[#allocation32 + $0x200] sm:$0xff]
        %v7808 = vld [vmem:[#allocation32 + $0x208] sm:$0xff]
        %v7809 = vld [vmem:[#allocation32 + $0x210] sm:$0xff]
        %v7810 = vld [vmem:[#allocation32 + $0x218] sm:$0xff]
        %v7811 = vld [vmem:[#allocation32 + $0x220] sm:$0xff]
        %v7812 = vld [vmem:[#allocation32 + $0x228] sm:$0xff]
        %v7813 = vld [vmem:[#allocation32 + $0x230] sm:$0xff]
        %v7814 = vld [vmem:[#allocation32 + $0x238] sm:$0xff]
        %v7815 = vld [vmem:[#allocation32 + $0x240] sm:$0xff]
        %v7816 = vld [vmem:[#allocation32 + $0x248] sm:$0xff]
        %v7817 = vld [vmem:[#allocation32 + $0x250] sm:$0xff]
        %v7818 = vld [vmem:[#allocation32 + $0x258] sm:$0xff]
        %v7819 = vld [vmem:[#allocation32 + $0x260] sm:$0xff]
        %v7820 = vld [vmem:[#allocation32 + $0x268] sm:$0xff]
        %v7821 = vld [vmem:[#allocation32 + $0x270] sm:$0xff]
        %v7822 = vld [vmem:[#allocation32 + $0x278] sm:$0xff]
        %v7823 = vld [vmem:[#allocation32 + $0x280] sm:$0xff]
        %v7824 = vld [vmem:[#allocation32 + $0x288] sm:$0xff]
        %v7825 = vld [vmem:[#allocation32 + $0x290] sm:$0xff]
        %v7826 = vld [vmem:[#allocation32 + $0x298] sm:$0xff]
        %v7827 = vld [vmem:[#allocation32 + $0x2a0] sm:$0xff]
        %v7828 = vld [vmem:[#allocation32 + $0x2a8] sm:$0xff]
        %v7829 = vld [vmem:[#allocation32 + $0x2b0] sm:$0xff]
        %v7830 = vld [vmem:[#allocation32 + $0x2b8] sm:$0xff]
        %v7831 = vld [vmem:[#allocation32 + $0x2c0] sm:$0xff]
        %v7832 = vld [vmem:[#allocation32 + $0x2c8] sm:$0xff]
        %v7833 = vld [vmem:[#allocation32 + $0x2d0] sm:$0xff]
        %v7834 = vld [vmem:[#allocation32 + $0x2d8] sm:$0xff]
        %v7835 = vld [vmem:[#allocation32 + $0x2e0] sm:$0xff]
        %v7836 = vld [vmem:[#allocation32 + $0x2e8] sm:$0xff]
        %v7837 = vld [vmem:[#allocation32 + $0x2f0] sm:$0xff]
        %v7838 = vld [vmem:[#allocation32 + $0x2f8] sm:$0xff]
        %v7839 = vld [vmem:[#allocation32 + $0x300] sm:$0xff]
        %v7840 = vld [vmem:[#allocation32 + $0x308] sm:$0xff]
        %v7841 = vld [vmem:[#allocation32 + $0x310] sm:$0xff]
        %v7842 = vld [vmem:[#allocation32 + $0x318] sm:$0xff]
        %v7843 = vld [vmem:[#allocation32 + $0x320] sm:$0xff]
        %v7844 = vld [vmem:[#allocation32 + $0x328] sm:$0xff]
        %v7845 = vld [vmem:[#allocation32 + $0x330] sm:$0xff]
        %v7846 = vld [vmem:[#allocation32 + $0x338] sm:$0xff]
        %v7847 = vld [vmem:[#allocation32 + $0x340] sm:$0xff]
        %v7848 = vld [vmem:[#allocation32 + $0x348] sm:$0xff]
        %v7849 = vld [vmem:[#allocation32 + $0x350] sm:$0xff]
        %v7850 = vld [vmem:[#allocation32 + $0x358] sm:$0xff]
        %v7851 = vld [vmem:[#allocation32 + $0x360] sm:$0xff]
        %v7852 = vld [vmem:[#allocation32 + $0x368] sm:$0xff]
        %v7853 = vld [vmem:[#allocation32 + $0x370] sm:$0xff]
        %v7854 = vld [vmem:[#allocation32 + $0x378] sm:$0xff]
        %v7855 = vld [vmem:[#allocation32 + $0x380] sm:$0xff]
        %v7856 = vld [vmem:[#allocation32 + $0x388] sm:$0xff]
        %v7857 = vld [vmem:[#allocation32 + $0x390] sm:$0xff]
        %v7858 = vld [vmem:[#allocation32 + $0x398] sm:$0xff]
        %v7859 = vld [vmem:[#allocation32 + $0x3a0] sm:$0xff]
        %v7860 = vld [vmem:[#allocation32 + $0x3a8] sm:$0xff]
        %v7861 = vld [vmem:[#allocation32 + $0x3b0] sm:$0xff]
        %v7862 = vld [vmem:[#allocation32 + $0x3b8] sm:$0xff]
        %v7863 = vld [vmem:[#allocation32 + $0x3c0] sm:$0xff]
        %v7864 = vld [vmem:[#allocation32 + $0x3c8] sm:$0xff]
        %v7865 = vld [vmem:[#allocation32 + $0x3d0] sm:$0xff]
        %v7866 = vld [vmem:[#allocation32 + $0x3d8] sm:$0xff]
        %v7867 = vld [vmem:[#allocation32 + $0x3e0] sm:$0xff]
        %v7868 = vld [vmem:[#allocation32 + $0x3e8] sm:$0xff]
        %v7869 = vld [vmem:[#allocation32 + $0x3f0] sm:$0xff]
        %v7870 = vld [vmem:[#allocation32 + $0x3f8] sm:$0xff]
        %v7871 = vld [vmem:[%s24] sm:$0x3]
        %v7872 = vpack.c.bf16 %v7735, %v7735
        %v7873 = vpack.c.bf16 %v7736, %v7736
        %v7874 = vpack.c.bf16 %v7737, %v7737
        %v7875 = vpack.c.bf16 %v7738, %v7738
        %v7876 = vpack.c.bf16 %v7739, %v7739
        %v7877 = vpack.c.bf16 %v7740, %v7740
        %v7878 = vpack.c.bf16 %v7741, %v7741
        %v7879 = vpack.c.bf16 %v7742, %v7742
        %v7881 = vperm.slane %v7871, 0
        %v7882 = vperm.slane %v7871, 1
        %v8013 = vunpack.c.l.b16 %v7743
        %v8014 = vunpack.c.h.b16 %v7743
        %v8015 = vunpack.c.l.b16 %v7744
        %v8016 = vunpack.c.h.b16 %v7744
        %v8017 = vunpack.c.l.b16 %v7745
        %v8018 = vunpack.c.h.b16 %v7745
        %v8019 = vunpack.c.l.b16 %v7746
        %v8020 = vunpack.c.h.b16 %v7746
        %v8021 = vunpack.c.l.b16 %v7747
        %v8022 = vunpack.c.h.b16 %v7747
        %v8023 = vunpack.c.l.b16 %v7748
        %v8024 = vunpack.c.h.b16 %v7748
        %v8025 = vunpack.c.l.b16 %v7749
        %v8026 = vunpack.c.h.b16 %v7749
        %v8027 = vunpack.c.l.b16 %v7750
        %v8028 = vunpack.c.h.b16 %v7750
        %v8029 = vunpack.c.l.b16 %v7751
        %v8030 = vunpack.c.h.b16 %v7751
        %v8031 = vunpack.c.l.b16 %v7752
        %v8032 = vunpack.c.h.b16 %v7752
        %v8033 = vunpack.c.l.b16 %v7753
        %v8034 = vunpack.c.h.b16 %v7753
        %v8035 = vunpack.c.l.b16 %v7754
        %v8036 = vunpack.c.h.b16 %v7754
        %v8037 = vunpack.c.l.b16 %v7755
        %v8038 = vunpack.c.h.b16 %v7755
        %v8039 = vunpack.c.l.b16 %v7756
        %v8040 = vunpack.c.h.b16 %v7756
        %v8041 = vunpack.c.l.b16 %v7757
        %v8042 = vunpack.c.h.b16 %v7757
        %v8043 = vunpack.c.l.b16 %v7758
        %v8044 = vunpack.c.h.b16 %v7758
        %v8045 = vunpack.c.l.b16 %v7759
        %v8046 = vunpack.c.h.b16 %v7759
        %v8047 = vunpack.c.l.b16 %v7760
        %v8048 = vunpack.c.h.b16 %v7760
        %v8049 = vunpack.c.l.b16 %v7761
        %v8050 = vunpack.c.h.b16 %v7761
        %v8051 = vunpack.c.l.b16 %v7762
        %v8052 = vunpack.c.h.b16 %v7762
        %v8053 = vunpack.c.l.b16 %v7763
        %v8054 = vunpack.c.h.b16 %v7763
        %v8055 = vunpack.c.l.b16 %v7764
        %v8056 = vunpack.c.h.b16 %v7764
        %v8057 = vunpack.c.l.b16 %v7765
        %v8058 = vunpack.c.h.b16 %v7765
        %v8059 = vunpack.c.l.b16 %v7766
        %v8060 = vunpack.c.h.b16 %v7766
        %v8061 = vunpack.c.l.b16 %v7767
        %v8062 = vunpack.c.h.b16 %v7767
        %v8063 = vunpack.c.l.b16 %v7768
        %v8064 = vunpack.c.h.b16 %v7768
        %v8065 = vunpack.c.l.b16 %v7769
        %v8066 = vunpack.c.h.b16 %v7769
        %v8067 = vunpack.c.l.b16 %v7770
        %v8068 = vunpack.c.h.b16 %v7770
        %v8069 = vunpack.c.l.b16 %v7771
        %v8070 = vunpack.c.h.b16 %v7771
        %v8071 = vunpack.c.l.b16 %v7772
        %v8072 = vunpack.c.h.b16 %v7772
        %v8073 = vunpack.c.l.b16 %v7773
        %v8074 = vunpack.c.h.b16 %v7773
        %v8075 = vunpack.c.l.b16 %v7774
        %v8076 = vunpack.c.h.b16 %v7774
        %v8077 = vunpack.c.l.b16 %v7775
        %v8078 = vunpack.c.h.b16 %v7775
        %v8079 = vunpack.c.l.b16 %v7776
        %v8080 = vunpack.c.h.b16 %v7776
        %v8081 = vunpack.c.l.b16 %v7777
        %v8082 = vunpack.c.h.b16 %v7777
        %v8083 = vunpack.c.l.b16 %v7778
        %v8084 = vunpack.c.h.b16 %v7778
        %v8085 = vunpack.c.l.b16 %v7779
        %v8086 = vunpack.c.h.b16 %v7779
        %v8087 = vunpack.c.l.b16 %v7780
        %v8088 = vunpack.c.h.b16 %v7780
        %v8089 = vunpack.c.l.b16 %v7781
        %v8090 = vunpack.c.h.b16 %v7781
        %v8091 = vunpack.c.l.b16 %v7782
        %v8092 = vunpack.c.h.b16 %v7782
        %v8093 = vunpack.c.l.b16 %v7783
        %v8094 = vunpack.c.h.b16 %v7783
        %v8095 = vunpack.c.l.b16 %v7784
        %v8096 = vunpack.c.h.b16 %v7784
        %v8097 = vunpack.c.l.b16 %v7785
        %v8098 = vunpack.c.h.b16 %v7785
        %v8099 = vunpack.c.l.b16 %v7786
        %v8100 = vunpack.c.h.b16 %v7786
        %v8101 = vunpack.c.l.b16 %v7787
        %v8102 = vunpack.c.h.b16 %v7787
        %v8103 = vunpack.c.l.b16 %v7788
        %v8104 = vunpack.c.h.b16 %v7788
        %v8105 = vunpack.c.l.b16 %v7789
        %v8106 = vunpack.c.h.b16 %v7789
        %v8107 = vunpack.c.l.b16 %v7790
        %v8108 = vunpack.c.h.b16 %v7790
        %v8109 = vunpack.c.l.b16 %v7791
        %v8110 = vunpack.c.h.b16 %v7791
        %v8111 = vunpack.c.l.b16 %v7792
        %v8112 = vunpack.c.h.b16 %v7792
        %v8113 = vunpack.c.l.b16 %v7793
        %v8114 = vunpack.c.h.b16 %v7793
        %v8115 = vunpack.c.l.b16 %v7794
        %v8116 = vunpack.c.h.b16 %v7794
        %v8117 = vunpack.c.l.b16 %v7795
        %v8118 = vunpack.c.h.b16 %v7795
        %v8119 = vunpack.c.l.b16 %v7796
        %v8120 = vunpack.c.h.b16 %v7796
        %v8121 = vunpack.c.l.b16 %v7797
        %v8122 = vunpack.c.h.b16 %v7797
        %v8123 = vunpack.c.l.b16 %v7798
        %v8124 = vunpack.c.h.b16 %v7798
        %v8125 = vunpack.c.l.b16 %v7799
        %v8126 = vunpack.c.h.b16 %v7799
        %v8127 = vunpack.c.l.b16 %v7800
        %v8128 = vunpack.c.h.b16 %v7800
        %v8129 = vunpack.c.l.b16 %v7801
        %v8130 = vunpack.c.h.b16 %v7801
        %v8131 = vunpack.c.l.b16 %v7802
        %v8132 = vunpack.c.h.b16 %v7802
        %v8133 = vunpack.c.l.b16 %v7803
        %v8134 = vunpack.c.h.b16 %v7803
        %v8135 = vunpack.c.l.b16 %v7804
        %v8136 = vunpack.c.h.b16 %v7804
        %v8137 = vunpack.c.l.b16 %v7805
        %v8138 = vunpack.c.h.b16 %v7805
        %v8139 = vunpack.c.l.b16 %v7806
        %v8140 = vunpack.c.h.b16 %v7806
        %v8141 = vunpack.c.l.b16 %v7807
        %v8142 = vunpack.c.h.b16 %v7807
        %v8143 = vunpack.c.l.b16 %v7808
        %v8144 = vunpack.c.h.b16 %v7808
        %v8145 = vunpack.c.l.b16 %v7809
        %v8146 = vunpack.c.h.b16 %v7809
        %v8147 = vunpack.c.l.b16 %v7810
        %v8148 = vunpack.c.h.b16 %v7810
        %v8149 = vunpack.c.l.b16 %v7811
        %v8150 = vunpack.c.h.b16 %v7811
        %v8151 = vunpack.c.l.b16 %v7812
        %v8152 = vunpack.c.h.b16 %v7812
        %v8153 = vunpack.c.l.b16 %v7813
        %v8154 = vunpack.c.h.b16 %v7813
        %v8155 = vunpack.c.l.b16 %v7814
        %v8156 = vunpack.c.h.b16 %v7814
        %v8157 = vunpack.c.l.b16 %v7815
        %v8158 = vunpack.c.h.b16 %v7815
        %v8159 = vunpack.c.l.b16 %v7816
        %v8160 = vunpack.c.h.b16 %v7816
        %v8161 = vunpack.c.l.b16 %v7817
        %v8162 = vunpack.c.h.b16 %v7817
        %v8163 = vunpack.c.l.b16 %v7818
        %v8164 = vunpack.c.h.b16 %v7818
        %v8165 = vunpack.c.l.b16 %v7819
        %v8166 = vunpack.c.h.b16 %v7819
        %v8167 = vunpack.c.l.b16 %v7820
        %v8168 = vunpack.c.h.b16 %v7820
        %v8169 = vunpack.c.l.b16 %v7821
        %v8170 = vunpack.c.h.b16 %v7821
        %v8171 = vunpack.c.l.b16 %v7822
        %v8172 = vunpack.c.h.b16 %v7822
        %v8173 = vunpack.c.l.b16 %v7823
        %v8174 = vunpack.c.h.b16 %v7823
        %v8175 = vunpack.c.l.b16 %v7824
        %v8176 = vunpack.c.h.b16 %v7824
        %v8177 = vunpack.c.l.b16 %v7825
        %v8178 = vunpack.c.h.b16 %v7825
        %v8179 = vunpack.c.l.b16 %v7826
        %v8180 = vunpack.c.h.b16 %v7826
        %v8181 = vunpack.c.l.b16 %v7827
        %v8182 = vunpack.c.h.b16 %v7827
        %v8183 = vunpack.c.l.b16 %v7828
        %v8184 = vunpack.c.h.b16 %v7828
        %v8185 = vunpack.c.l.b16 %v7829
        %v8186 = vunpack.c.h.b16 %v7829
        %v8187 = vunpack.c.l.b16 %v7830
        %v8188 = vunpack.c.h.b16 %v7830
        %v8189 = vunpack.c.l.b16 %v7831
        %v8190 = vunpack.c.h.b16 %v7831
        %v8191 = vunpack.c.l.b16 %v7832
        %v8192 = vunpack.c.h.b16 %v7832
        %v8193 = vunpack.c.l.b16 %v7833
        %v8194 = vunpack.c.h.b16 %v7833
        %v8195 = vunpack.c.l.b16 %v7834
        %v8196 = vunpack.c.h.b16 %v7834
        %v8197 = vunpack.c.l.b16 %v7835
        %v8198 = vunpack.c.h.b16 %v7835
        %v8199 = vunpack.c.l.b16 %v7836
        %v8200 = vunpack.c.h.b16 %v7836
        %v8201 = vunpack.c.l.b16 %v7837
        %v8202 = vunpack.c.h.b16 %v7837
        %v8203 = vunpack.c.l.b16 %v7838
        %v8204 = vunpack.c.h.b16 %v7838
        %v8205 = vunpack.c.l.b16 %v7839
        %v8206 = vunpack.c.h.b16 %v7839
        %v8207 = vunpack.c.l.b16 %v7840
        %v8208 = vunpack.c.h.b16 %v7840
        %v8209 = vunpack.c.l.b16 %v7841
        %v8210 = vunpack.c.h.b16 %v7841
        %v8211 = vunpack.c.l.b16 %v7842
        %v8212 = vunpack.c.h.b16 %v7842
        %v8213 = vunpack.c.l.b16 %v7843
        %v8214 = vunpack.c.h.b16 %v7843
        %v8215 = vunpack.c.l.b16 %v7844
        %v8216 = vunpack.c.h.b16 %v7844
        %v8217 = vunpack.c.l.b16 %v7845
        %v8218 = vunpack.c.h.b16 %v7845
        %v8219 = vunpack.c.l.b16 %v7846
        %v8220 = vunpack.c.h.b16 %v7846
        %v8221 = vunpack.c.l.b16 %v7847
        %v8222 = vunpack.c.h.b16 %v7847
        %v8223 = vunpack.c.l.b16 %v7848
        %v8224 = vunpack.c.h.b16 %v7848
        %v8225 = vunpack.c.l.b16 %v7849
        %v8226 = vunpack.c.h.b16 %v7849
        %v8227 = vunpack.c.l.b16 %v7850
        %v8228 = vunpack.c.h.b16 %v7850
        %v8229 = vunpack.c.l.b16 %v7851
        %v8230 = vunpack.c.h.b16 %v7851
        %v8231 = vunpack.c.l.b16 %v7852
        %v8232 = vunpack.c.h.b16 %v7852
        %v8233 = vunpack.c.l.b16 %v7853
        %v8234 = vunpack.c.h.b16 %v7853
        %v8235 = vunpack.c.l.b16 %v7854
        %v8236 = vunpack.c.h.b16 %v7854
        %v8237 = vunpack.c.l.b16 %v7855
        %v8238 = vunpack.c.h.b16 %v7855
        %v8239 = vunpack.c.l.b16 %v7856
        %v8240 = vunpack.c.h.b16 %v7856
        %v8241 = vunpack.c.l.b16 %v7857
        %v8242 = vunpack.c.h.b16 %v7857
        %v8243 = vunpack.c.l.b16 %v7858
        %v8244 = vunpack.c.h.b16 %v7858
        %v8245 = vunpack.c.l.b16 %v7859
        %v8246 = vunpack.c.h.b16 %v7859
        %v8247 = vunpack.c.l.b16 %v7860
        %v8248 = vunpack.c.h.b16 %v7860
        %v8249 = vunpack.c.l.b16 %v7861
        %v8250 = vunpack.c.h.b16 %v7861
        %v8251 = vunpack.c.l.b16 %v7862
        %v8252 = vunpack.c.h.b16 %v7862
        %v8253 = vunpack.c.l.b16 %v7863
        %v8254 = vunpack.c.h.b16 %v7863
        %v8255 = vunpack.c.l.b16 %v7864
        %v8256 = vunpack.c.h.b16 %v7864
        %v8257 = vunpack.c.l.b16 %v7865
        %v8258 = vunpack.c.h.b16 %v7865
        %v8259 = vunpack.c.l.b16 %v7866
        %v8260 = vunpack.c.h.b16 %v7866
        %v8261 = vunpack.c.l.b16 %v7867
        %v8262 = vunpack.c.h.b16 %v7867
        %v8263 = vunpack.c.l.b16 %v7868
        %v8264 = vunpack.c.h.b16 %v7868
        %v8265 = vunpack.c.l.b16 %v7869
        %v8266 = vunpack.c.h.b16 %v7869
        %v8267 = vunpack.c.l.b16 %v7870
        %v8268 = vunpack.c.h.b16 %v7870
        %v8269 = vpack.c.b16 %v8015, %v8013
        %v8270 = vpack.c.b16 %v8016, %v8014
        %v8271 = vpack.c.b16 %v8019, %v8017
        %v8272 = vpack.c.b16 %v8020, %v8018
        %v8273 = vpack.c.b16 %v8023, %v8021
        %v8274 = vpack.c.b16 %v8024, %v8022
        %v8275 = vpack.c.b16 %v8027, %v8025
        %v8276 = vpack.c.b16 %v8028, %v8026
        %v8277 = vpack.c.b16 %v8031, %v8029
        %v8278 = vpack.c.b16 %v8032, %v8030
        %v8279 = vpack.c.b16 %v8035, %v8033
        %v8280 = vpack.c.b16 %v8036, %v8034
        %v8281 = vpack.c.b16 %v8039, %v8037
        %v8282 = vpack.c.b16 %v8040, %v8038
        %v8283 = vpack.c.b16 %v8043, %v8041
        %v8284 = vpack.c.b16 %v8044, %v8042
        %v8285 = vpack.c.b16 %v8047, %v8045
        %v8286 = vpack.c.b16 %v8048, %v8046
        %v8287 = vpack.c.b16 %v8051, %v8049
        %v8288 = vpack.c.b16 %v8052, %v8050
        %v8289 = vpack.c.b16 %v8055, %v8053
        %v8290 = vpack.c.b16 %v8056, %v8054
        %v8291 = vpack.c.b16 %v8059, %v8057
        %v8292 = vpack.c.b16 %v8060, %v8058
        %v8293 = vpack.c.b16 %v8063, %v8061
        %v8294 = vpack.c.b16 %v8064, %v8062
        %v8295 = vpack.c.b16 %v8067, %v8065
        %v8296 = vpack.c.b16 %v8068, %v8066
        %v8297 = vpack.c.b16 %v8071, %v8069
        %v8298 = vpack.c.b16 %v8072, %v8070
        %v8299 = vpack.c.b16 %v8075, %v8073
        %v8300 = vpack.c.b16 %v8076, %v8074
        %v8301 = vpack.c.b16 %v8079, %v8077
        %v8302 = vpack.c.b16 %v8080, %v8078
        %v8303 = vpack.c.b16 %v8083, %v8081
        %v8304 = vpack.c.b16 %v8084, %v8082
        %v8305 = vpack.c.b16 %v8087, %v8085
        %v8306 = vpack.c.b16 %v8088, %v8086
        %v8307 = vpack.c.b16 %v8091, %v8089
        %v8308 = vpack.c.b16 %v8092, %v8090
        %v8309 = vpack.c.b16 %v8095, %v8093
        %v8310 = vpack.c.b16 %v8096, %v8094
        %v8311 = vpack.c.b16 %v8099, %v8097
        %v8312 = vpack.c.b16 %v8100, %v8098
        %v8313 = vpack.c.b16 %v8103, %v8101
        %v8314 = vpack.c.b16 %v8104, %v8102
        %v8315 = vpack.c.b16 %v8107, %v8105
        %v8316 = vpack.c.b16 %v8108, %v8106
        %v8317 = vpack.c.b16 %v8111, %v8109
        %v8318 = vpack.c.b16 %v8112, %v8110
        %v8319 = vpack.c.b16 %v8115, %v8113
        %v8320 = vpack.c.b16 %v8116, %v8114
        %v8321 = vpack.c.b16 %v8119, %v8117
        %v8322 = vpack.c.b16 %v8120, %v8118
        %v8323 = vpack.c.b16 %v8123, %v8121
        %v8324 = vpack.c.b16 %v8124, %v8122
        %v8325 = vpack.c.b16 %v8127, %v8125
        %v8326 = vpack.c.b16 %v8128, %v8126
        %v8327 = vpack.c.b16 %v8131, %v8129
        %v8328 = vpack.c.b16 %v8132, %v8130
        %v8329 = vpack.c.b16 %v8135, %v8133
        %v8330 = vpack.c.b16 %v8136, %v8134
        %v8331 = vpack.c.b16 %v8139, %v8137
        %v8332 = vpack.c.b16 %v8140, %v8138
        %v8333 = vpack.c.b16 %v8143, %v8141
        %v8334 = vpack.c.b16 %v8144, %v8142
        %v8335 = vpack.c.b16 %v8147, %v8145
        %v8336 = vpack.c.b16 %v8148, %v8146
        %v8337 = vpack.c.b16 %v8151, %v8149
        %v8338 = vpack.c.b16 %v8152, %v8150
        %v8339 = vpack.c.b16 %v8155, %v8153
        %v8340 = vpack.c.b16 %v8156, %v8154
        %v8341 = vpack.c.b16 %v8159, %v8157
        %v8342 = vpack.c.b16 %v8160, %v8158
        %v8343 = vpack.c.b16 %v8163, %v8161
        %v8344 = vpack.c.b16 %v8164, %v8162
        %v8345 = vpack.c.b16 %v8167, %v8165
        %v8346 = vpack.c.b16 %v8168, %v8166
        %v8347 = vpack.c.b16 %v8171, %v8169
        %v8348 = vpack.c.b16 %v8172, %v8170
        %v8349 = vpack.c.b16 %v8175, %v8173
        %v8350 = vpack.c.b16 %v8176, %v8174
        %v8351 = vpack.c.b16 %v8179, %v8177
        %v8352 = vpack.c.b16 %v8180, %v8178
        %v8353 = vpack.c.b16 %v8183, %v8181
        %v8354 = vpack.c.b16 %v8184, %v8182
        %v8355 = vpack.c.b16 %v8187, %v8185
        %v8356 = vpack.c.b16 %v8188, %v8186
        %v8357 = vpack.c.b16 %v8191, %v8189
        %v8358 = vpack.c.b16 %v8192, %v8190
        %v8359 = vpack.c.b16 %v8195, %v8193
        %v8360 = vpack.c.b16 %v8196, %v8194
        %v8361 = vpack.c.b16 %v8199, %v8197
        %v8362 = vpack.c.b16 %v8200, %v8198
        %v8363 = vpack.c.b16 %v8203, %v8201
        %v8364 = vpack.c.b16 %v8204, %v8202
        %v8365 = vpack.c.b16 %v8207, %v8205
        %v8366 = vpack.c.b16 %v8208, %v8206
        %v8367 = vpack.c.b16 %v8211, %v8209
        %v8368 = vpack.c.b16 %v8212, %v8210
        %v8369 = vpack.c.b16 %v8215, %v8213
        %v8370 = vpack.c.b16 %v8216, %v8214
        %v8371 = vpack.c.b16 %v8219, %v8217
        %v8372 = vpack.c.b16 %v8220, %v8218
        %v8373 = vpack.c.b16 %v8223, %v8221
        %v8374 = vpack.c.b16 %v8224, %v8222
        %v8375 = vpack.c.b16 %v8227, %v8225
        %v8376 = vpack.c.b16 %v8228, %v8226
        %v8377 = vpack.c.b16 %v8231, %v8229
        %v8378 = vpack.c.b16 %v8232, %v8230
        %v8379 = vpack.c.b16 %v8235, %v8233
        %v8380 = vpack.c.b16 %v8236, %v8234
        %v8381 = vpack.c.b16 %v8239, %v8237
        %v8382 = vpack.c.b16 %v8240, %v8238
        %v8383 = vpack.c.b16 %v8243, %v8241
        %v8384 = vpack.c.b16 %v8244, %v8242
        %v8385 = vpack.c.b16 %v8247, %v8245
        %v8386 = vpack.c.b16 %v8248, %v8246
        %v8387 = vpack.c.b16 %v8251, %v8249
        %v8388 = vpack.c.b16 %v8252, %v8250
        %v8389 = vpack.c.b16 %v8255, %v8253
        %v8390 = vpack.c.b16 %v8256, %v8254
        %v8391 = vpack.c.b16 %v8259, %v8257
        %v8392 = vpack.c.b16 %v8260, %v8258
        %v8393 = vpack.c.b16 %v8263, %v8261
        %v8394 = vpack.c.b16 %v8264, %v8262
        %v8395 = vpack.c.b16 %v8267, %v8265
        %v8396 = vpack.c.b16 %v8268, %v8266
        %8525 = vmatpush.bf16.msra.mxu0 %v8283
        %8526 = vmatpush.bf16.msra.mxu0 %v8281
        %8527 = vmatpush.bf16.msra.mxu0 %v8279
        %8528 = vmatpush.bf16.msra.mxu0 %v8277
        %8529 = vmatpush.bf16.msra.mxu0 %v8275
        %8530 = vmatpush.bf16.msra.mxu0 %v8273
        %8531 = vmatpush.bf16.msra.mxu0 %v8271
        %8532 = vmatpush.bf16.msra.mxu0 %v8269
        %8533 = vmatmul.bf16.gmra.mxu0 %v7872
        %v8534 = vpop.f32.mrf.mxu0
        %v8535 = vadd.f32 %v7881, %v8534
        %v8536 = vpop.f32.mrf.mxu0
        %8537 = vdwg.mxu0
        %8538 = vmatpush.bf16.msra.mxu0 %v8299
        %8539 = vmatpush.bf16.msra.mxu0 %v8297
        %8540 = vmatpush.bf16.msra.mxu0 %v8295
        %8541 = vmatpush.bf16.msra.mxu0 %v8293
        %8542 = vmatpush.bf16.msra.mxu0 %v8291
        %8543 = vmatpush.bf16.msra.mxu0 %v8289
        %8544 = vmatpush.bf16.msra.mxu0 %v8287
        %8545 = vmatpush.bf16.msra.mxu0 %v8285
        %8546 = vmatmul.bf16.gmra.mxu0 %v7873
        %v8547 = vpop.f32.mrf.mxu0
        %v8548 = vadd.f32 %v8535, %v8547
        %v8549 = vpop.f32.mrf.mxu0
        %8550 = vdwg.mxu0
        %8551 = vmatpush.bf16.msra.mxu0 %v8315
        %8552 = vmatpush.bf16.msra.mxu0 %v8313
        %8553 = vmatpush.bf16.msra.mxu0 %v8311
        %8554 = vmatpush.bf16.msra.mxu0 %v8309
        %8555 = vmatpush.bf16.msra.mxu0 %v8307
        %8556 = vmatpush.bf16.msra.mxu0 %v8305
        %8557 = vmatpush.bf16.msra.mxu0 %v8303
        %8558 = vmatpush.bf16.msra.mxu0 %v8301
        %8559 = vmatmul.bf16.gmra.mxu0 %v7874
        %v8560 = vpop.f32.mrf.mxu0
        %v8561 = vadd.f32 %v8548, %v8560
        %v8562 = vpop.f32.mrf.mxu0
        %8563 = vdwg.mxu0
        %8564 = vmatpush.bf16.msra.mxu0 %v8331
        %8565 = vmatpush.bf16.msra.mxu0 %v8329
        %8566 = vmatpush.bf16.msra.mxu0 %v8327
        %8567 = vmatpush.bf16.msra.mxu0 %v8325
        %8568 = vmatpush.bf16.msra.mxu0 %v8323
        %8569 = vmatpush.bf16.msra.mxu0 %v8321
        %8570 = vmatpush.bf16.msra.mxu0 %v8319
        %8571 = vmatpush.bf16.msra.mxu0 %v8317
        %8572 = vmatmul.bf16.gmra.mxu0 %v7875
        %v8573 = vpop.f32.mrf.mxu0
        %v8574 = vadd.f32 %v8561, %v8573
        %v8575 = vpop.f32.mrf.mxu0
        %8576 = vdwg.mxu0
        %8577 = vmatpush.bf16.msra.mxu0 %v8347
        %8578 = vmatpush.bf16.msra.mxu0 %v8345
        %8579 = vmatpush.bf16.msra.mxu0 %v8343
        %8580 = vmatpush.bf16.msra.mxu0 %v8341
        %8581 = vmatpush.bf16.msra.mxu0 %v8339
        %8582 = vmatpush.bf16.msra.mxu0 %v8337
        %8583 = vmatpush.bf16.msra.mxu0 %v8335
        %8584 = vmatpush.bf16.msra.mxu0 %v8333
        %8585 = vmatmul.bf16.gmra.mxu0 %v7876
        %v8586 = vpop.f32.mrf.mxu0
        %v8587 = vadd.f32 %v8574, %v8586
        %v8588 = vpop.f32.mrf.mxu0
        %8589 = vdwg.mxu0
        %8590 = vmatpush.bf16.msra.mxu0 %v8363
        %8591 = vmatpush.bf16.msra.mxu0 %v8361
        %8592 = vmatpush.bf16.msra.mxu0 %v8359
        %8593 = vmatpush.bf16.msra.mxu0 %v8357
        %8594 = vmatpush.bf16.msra.mxu0 %v8355
        %8595 = vmatpush.bf16.msra.mxu0 %v8353
        %8596 = vmatpush.bf16.msra.mxu0 %v8351
        %8597 = vmatpush.bf16.msra.mxu0 %v8349
        %8598 = vmatmul.bf16.gmra.mxu0 %v7877
        %v8599 = vpop.f32.mrf.mxu0
        %v8600 = vadd.f32 %v8587, %v8599
        %v8601 = vpop.f32.mrf.mxu0
        %8602 = vdwg.mxu0
        %8603 = vmatpush.bf16.msra.mxu0 %v8379
        %8604 = vmatpush.bf16.msra.mxu0 %v8377
        %8605 = vmatpush.bf16.msra.mxu0 %v8375
        %8606 = vmatpush.bf16.msra.mxu0 %v8373
        %8607 = vmatpush.bf16.msra.mxu0 %v8371
        %8608 = vmatpush.bf16.msra.mxu0 %v8369
        %8609 = vmatpush.bf16.msra.mxu0 %v8367
        %8610 = vmatpush.bf16.msra.mxu0 %v8365
        %8611 = vmatmul.bf16.gmra.mxu0 %v7878
        %v8612 = vpop.f32.mrf.mxu0
        %v8613 = vadd.f32 %v8600, %v8612
        %v8614 = vpop.f32.mrf.mxu0
        %8615 = vdwg.mxu0
        %8616 = vmatpush.bf16.msra.mxu0 %v8395
        %8617 = vmatpush.bf16.msra.mxu0 %v8393
        %8618 = vmatpush.bf16.msra.mxu0 %v8391
        %8619 = vmatpush.bf16.msra.mxu0 %v8389
        %8620 = vmatpush.bf16.msra.mxu0 %v8387
        %8621 = vmatpush.bf16.msra.mxu0 %v8385
        %8622 = vmatpush.bf16.msra.mxu0 %v8383
        %8623 = vmatpush.bf16.msra.mxu0 %v8381
        %8624 = vmatmul.bf16.gmra.mxu0 %v7879
        %v8625 = vpop.f32.mrf.mxu0
        %v8626 = vadd.f32 %v8613, %v8625
        %v8627 = vpop.f32.mrf.mxu0
        %8628 = vdwg.mxu0
        %8629 = vmatpush.bf16.msra.mxu0 %v8284
        %8630 = vmatpush.bf16.msra.mxu0 %v8282
        %8631 = vmatpush.bf16.msra.mxu0 %v8280
        %8632 = vmatpush.bf16.msra.mxu0 %v8278
        %8633 = vmatpush.bf16.msra.mxu0 %v8276
        %8634 = vmatpush.bf16.msra.mxu0 %v8274
        %8635 = vmatpush.bf16.msra.mxu0 %v8272
        %8636 = vmatpush.bf16.msra.mxu0 %v8270
        %8637 = vmatmul.bf16.gmra.mxu0 %v7872
        %v8638 = vpop.f32.mrf.mxu0
        %v8639 = vadd.f32 %v7882, %v8638
        %v8640 = vpop.f32.mrf.mxu0
        %8641 = vdwg.mxu0
        %8642 = vmatpush.bf16.msra.mxu0 %v8300
        %8643 = vmatpush.bf16.msra.mxu0 %v8298
        %8644 = vmatpush.bf16.msra.mxu0 %v8296
        %8645 = vmatpush.bf16.msra.mxu0 %v8294
        %8646 = vmatpush.bf16.msra.mxu0 %v8292
        %8647 = vmatpush.bf16.msra.mxu0 %v8290
        %8648 = vmatpush.bf16.msra.mxu0 %v8288
        %8649 = vmatpush.bf16.msra.mxu0 %v8286
        %8650 = vmatmul.bf16.gmra.mxu0 %v7873
        %v8651 = vpop.f32.mrf.mxu0
        %v8652 = vadd.f32 %v8639, %v8651
        %v8653 = vpop.f32.mrf.mxu0
        %8654 = vdwg.mxu0
        %8655 = vmatpush.bf16.msra.mxu0 %v8316
        %8656 = vmatpush.bf16.msra.mxu0 %v8314
        %8657 = vmatpush.bf16.msra.mxu0 %v8312
        %8658 = vmatpush.bf16.msra.mxu0 %v8310
        %8659 = vmatpush.bf16.msra.mxu0 %v8308
        %8660 = vmatpush.bf16.msra.mxu0 %v8306
        %8661 = vmatpush.bf16.msra.mxu0 %v8304
        %8662 = vmatpush.bf16.msra.mxu0 %v8302
        %8663 = vmatmul.bf16.gmra.mxu0 %v7874
        %v8664 = vpop.f32.mrf.mxu0
        %v8665 = vadd.f32 %v8652, %v8664
        %v8666 = vpop.f32.mrf.mxu0
        %8667 = vdwg.mxu0
        %8668 = vmatpush.bf16.msra.mxu0 %v8332
        %8669 = vmatpush.bf16.msra.mxu0 %v8330
        %8670 = vmatpush.bf16.msra.mxu0 %v8328
        %8671 = vmatpush.bf16.msra.mxu0 %v8326
        %8672 = vmatpush.bf16.msra.mxu0 %v8324
        %8673 = vmatpush.bf16.msra.mxu0 %v8322
        %8674 = vmatpush.bf16.msra.mxu0 %v8320
        %8675 = vmatpush.bf16.msra.mxu0 %v8318
        %8676 = vmatmul.bf16.gmra.mxu0 %v7875
        %v8677 = vpop.f32.mrf.mxu0
        %v8678 = vadd.f32 %v8665, %v8677
        %v8679 = vpop.f32.mrf.mxu0
        %8680 = vdwg.mxu0
        %8681 = vmatpush.bf16.msra.mxu0 %v8348
        %8682 = vmatpush.bf16.msra.mxu0 %v8346
        %8683 = vmatpush.bf16.msra.mxu0 %v8344
        %8684 = vmatpush.bf16.msra.mxu0 %v8342
        %8685 = vmatpush.bf16.msra.mxu0 %v8340
        %8686 = vmatpush.bf16.msra.mxu0 %v8338
        %8687 = vmatpush.bf16.msra.mxu0 %v8336
        %8688 = vmatpush.bf16.msra.mxu0 %v8334
        %8689 = vmatmul.bf16.gmra.mxu0 %v7876
        %v8690 = vpop.f32.mrf.mxu0
        %v8691 = vadd.f32 %v8678, %v8690
        %v8692 = vpop.f32.mrf.mxu0
        %8693 = vdwg.mxu0
        %8694 = vmatpush.bf16.msra.mxu0 %v8364
        %8695 = vmatpush.bf16.msra.mxu0 %v8362
        %8696 = vmatpush.bf16.msra.mxu0 %v8360
        %8697 = vmatpush.bf16.msra.mxu0 %v8358
        %8698 = vmatpush.bf16.msra.mxu0 %v8356
        %8699 = vmatpush.bf16.msra.mxu0 %v8354
        %8700 = vmatpush.bf16.msra.mxu0 %v8352
        %8701 = vmatpush.bf16.msra.mxu0 %v8350
        %8702 = vmatmul.bf16.gmra.mxu0 %v7877
        %v8703 = vpop.f32.mrf.mxu0
        %v8704 = vadd.f32 %v8691, %v8703
        %v8705 = vpop.f32.mrf.mxu0
        %8706 = vdwg.mxu0
        %8707 = vmatpush.bf16.msra.mxu0 %v8380
        %8708 = vmatpush.bf16.msra.mxu0 %v8378
        %8709 = vmatpush.bf16.msra.mxu0 %v8376
        %8710 = vmatpush.bf16.msra.mxu0 %v8374
        %8711 = vmatpush.bf16.msra.mxu0 %v8372
        %8712 = vmatpush.bf16.msra.mxu0 %v8370
        %8713 = vmatpush.bf16.msra.mxu0 %v8368
        %8714 = vmatpush.bf16.msra.mxu0 %v8366
        %8715 = vmatmul.bf16.gmra.mxu0 %v7878
        %v8716 = vpop.f32.mrf.mxu0
        %v8717 = vadd.f32 %v8704, %v8716
        %v8718 = vpop.f32.mrf.mxu0
        %8719 = vdwg.mxu0
        %8720 = vmatpush.bf16.msra.mxu0 %v8396
        %8721 = vmatpush.bf16.msra.mxu0 %v8394
        %8722 = vmatpush.bf16.msra.mxu0 %v8392
        %8723 = vmatpush.bf16.msra.mxu0 %v8390
        %8724 = vmatpush.bf16.msra.mxu0 %v8388
        %8725 = vmatpush.bf16.msra.mxu0 %v8386
        %8726 = vmatpush.bf16.msra.mxu0 %v8384
        %8727 = vmatpush.bf16.msra.mxu0 %v8382
        %8728 = vmatmul.bf16.gmra.mxu0 %v7879
        %v8729 = vpop.f32.mrf.mxu0
        %v8730 = vadd.f32 %v8717, %v8729
        %v8731 = vpop.f32.mrf.mxu0
        %8732 = vdwg.mxu0
        %v8733 = vxor.u32 %v8626, 2147483648
        %v8734 = vxor.u32 %v8730, 2147483648
        %v8735 = vmul.f32 %v8733, 1.442695
        %v8736 = vpow.pop %v8735
        %v8737 = vmul.f32 %v8734, 1.442695
        %v8738 = vpow.pop %v8737
        %v8739 = vadd.f32 %v8736, 1.0
        %v8740 = vadd.f32 %v8738, 1.0
        %v8741 = vrcp.pop %v8739
        %v8742 = vmul.f32 %v8739, %v8741
        %v8743 = vsub.f32 1.0, %v8742
        %v8744 = vmul.f32 %v8741, %v8743
        %v8745 = vadd.f32 %v8741, %v8744
        %vm8746 = vweird.f32 %v8739
        %vm8747 = vweird.f32 %v8741
        %vm8748 = vmor %vm8746, %vm8747
        %v8749 = vsel %vm8748, %v8741, %v8745
        %v8750 = vand.u32 2147483647, %v8739
        %vm8751 = vcmp.eq.f32.partialorder %v8750, 8.507059e+37
        %v8752 = vand.u32 %v8739, 2147483648
        %v8753 = vor.u32 1.1754944e-38, %v8752
        %v8754 = vsel %vm8751, %v8753, %v8749
        %v8755 = vmul.f32 1.0, %v8754
        %v8756 = vrcp.pop %v8740
        %v8757 = vmul.f32 %v8740, %v8756
        %v8758 = vsub.f32 1.0, %v8757
        %v8759 = vmul.f32 %v8756, %v8758
        %v8760 = vadd.f32 %v8756, %v8759
        %vm8761 = vweird.f32 %v8740
        %vm8762 = vweird.f32 %v8756
        %vm8763 = vmor %vm8761, %vm8762
        %v8764 = vsel %vm8763, %v8756, %v8760
        %v8765 = vand.u32 2147483647, %v8740
        %vm8766 = vcmp.eq.f32.partialorder %v8765, 8.507059e+37
        %v8767 = vand.u32 %v8740, 2147483648
        %v8768 = vor.u32 1.1754944e-38, %v8767
        %v8769 = vsel %vm8766, %v8768, %v8764
        %v8770 = vmul.f32 1.0, %v8769
        %8771 = vst [vmem:[%s1113] sm:$0xff] %v8755
        %8772 = vst [vmem:[%s1113 + $0x8] sm:$0xff] %v8770
        %s8773 = sand.u32 %s595, 1
        %s8774 = scalar_lea.sflag [#allocation4], %s8773
        %s8775 = sand.u32 %s595, 1
        %s8776 = smul.addr %s8775, 16
        %s8777 = scalar_lea.vmem [#allocation34], %s8776
        %s8778 = sand.u32 %s621, 1
        %s8779 = scalar_lea.sflag [#allocation36], %s8778
        %s8780 = sand.u32 %s621, 1
        %s8781 = smul.addr %s8780, 8
        %s8782 = scalar_lea.vmem [#allocation35], %s8781
        // Predicated region
        $region201: #{tpu_custom_call.1} parent=119 // pred_check
          %p8783 = pneg %p605
        $region202: #{tpu_custom_call.1} parent=119 // pred_check_branch
          %8785 = sbr.rel (%p8783) target = $region204
        $region203: #{tpu_custom_call.1} parent=119 // pred_region
          %8787 = vsyncadd %s8774, 0
          %s8788 = smul.addr %s57, 2
          %s8789 = smul.addr %s8788, 8
          %s8790 = scalar_lea.hbm %s25, %s8789
          %s8792 = sshll.u32 %s8777, 4
          %s8793 = int_to_ptr.vmem [resolvable:$true] %s8792
          %s8794 = sshll.u32 %s8790, 4
          %s8795 = int_to_ptr.hbm [resolvable:$true] %s8794
          %8797 = dma.vmem_to_hbm [thread:$0]  %s8793, 256, %s8795, %s8774
        $region204: #{tpu_custom_call.1} parent=119 // pred_fallthru
          _
        // Predicated region
        $region205: #{tpu_custom_call.1} parent=119 // pred_check
          %p8798 = pneg %p631
        $region206: #{tpu_custom_call.1} parent=119 // pred_check_branch
          %8800 = sbr.rel (%p8798) target = $region208
        $region207: #{tpu_custom_call.1} parent=119 // pred_region
          %8802 = vsyncadd %s8779, 0
          %s8803 = smul.addr %s57, 8
          %s8804 = scalar_lea.hbm %s26, %s8803
          %s8806 = sshll.u32 %s8782, 4
          %s8807 = int_to_ptr.vmem [resolvable:$true] %s8806
          %s8808 = sshll.u32 %s8804, 4
          %s8809 = int_to_ptr.hbm [resolvable:$true] %s8808
          %8811 = dma.vmem_to_hbm [thread:$0]  %s8807, 128, %s8809, %s8779
        $region208: #{tpu_custom_call.1} parent=119 // pred_fallthru
          _
      $region120: #{tpu_custom_call.1} parent=5 // pred_fallthru
        _
      %p8812 = scmp.le.s32.totalorder 2, %s52
      // Predicated region
      $region209: #{tpu_custom_call.1} parent=5 // pred_check
        %p8813 = pneg %p8812
      $region210: #{tpu_custom_call.1} parent=5 // pred_check_branch
        %8815 = sbr.rel (%p8813) target = $region212
      $region211: #{tpu_custom_call.1} parent=5 // pred_region
        %s8816 = ssub.s32 %s52, 2
        // Predicated region
        $region213: #{tpu_custom_call.1} parent=211 // pred_check
          %p8817 = pneg %p611
        $region214: #{tpu_custom_call.1} parent=211 // pred_check_branch
          %8819 = sbr.rel (%p8817) target = $region216
        $region215: #{tpu_custom_call.1} parent=211 // pred_region
          %s8820 = sand.u32 %s596, 1
          %s8821 = scalar_lea.sflag [#allocation4], %s8820
          %s8822 = sand.u32 %s596, 1
          %s8823 = smul.addr %s8822, 16
          %s8824 = scalar_lea.vmem [#allocation34], %s8823
          %8826 = dma.done %s8821, 256
        $region216: #{tpu_custom_call.1} parent=211 // pred_fallthru
          _
        // Predicated region
        $region217: #{tpu_custom_call.1} parent=211 // pred_check
          %p8827 = pneg %p637
        $region218: #{tpu_custom_call.1} parent=211 // pred_check_branch
          %8829 = sbr.rel (%p8827) target = $region220
        $region219: #{tpu_custom_call.1} parent=211 // pred_region
          %s8830 = sand.u32 %s622, 1
          %s8831 = scalar_lea.sflag [#allocation36], %s8830
          %s8832 = sand.u32 %s622, 1
          %s8833 = smul.addr %s8832, 8
          %s8834 = scalar_lea.vmem [#allocation35], %s8833
          %8836 = dma.done %s8831, 128
        $region220: #{tpu_custom_call.1} parent=211 // pred_fallthru
          _
      $region212: #{tpu_custom_call.1} parent=5 // pred_fallthru
        _
    $region6: #{tpu_custom_call.1} parent=1 // loop_footer
      %s56 = sadd.s32 1, %s52
    $region7: #{tpu_custom_call.1} parent=1 // loop_footer_branch
      %51 = sbr.rel target = $region3
    $region8: #{tpu_custom_call.1} parent=1 // loop_exit
      _
    %8837 = vsyncpa [#allocation3], 1
    %s8838 = scalar_lea.sflag [#allocation3], 1
    %8839 = vsyncpa %s8838, 1
    %8840 = vsyncpa [#allocation6], 1
    %8841 = vsyncpa [#allocation9], 1
    %8842 = vsyncpa [#allocation12], 1
    %8843 = vsyncpa [#allocation15], 1
    %8844 = vsyncpa [#allocation18], 1
    %8845 = vsyncpa [#allocation21], 1
    %8846 = vsyncpa [#allocation24], 1
    %8847 = vsyncpa [#allocation27], 1
    %8848 = vsyncpa [#allocation30], 1
    %8849 = vsyncpa [#allocation33], 1
    %8850 = vsyncpa [#allocation4], 1
    %s8851 = scalar_lea.sflag [#allocation4], 1
    %8852 = vsyncpa %s8851, 1
    %8853 = vsyncpa [#allocation36], 1
    %s8854 = scalar_lea.sflag [#allocation36], 1
    %8855 = vsyncpa %s8854, 1

</llo_original>
